<compile_context>
chip_gen: v6e
topology: v6e:2x2x1
jax: 0.10.0
libtpu: 0.0.40
codegen_flags: <defaults>
</compile_context>

<pallas_src>
import math
import jax
import jax.numpy as jnp
from jax.experimental import pallas as pl
from jax.experimental.pallas import tpu as pltpu

# ----------------------------- configuration (small, forward-consistent) ----
BATCH = 2
LATENT = 8          # latent_dim
CH = 4              # channel_size (scaled down from 128 for a small run)
IMG = 8             # image_size
TEMB = 32           # time_step_embedding_size
NUM_CLASSES = 2
HEADS = 4
EMBED = 4 * CH      # cross-attention embed_dim

_VMEM_LIMIT = 32 * 1024 * 1024   # budget against v7x's smaller VMEM


# ----------------------------- helpers ---------------------------------------
def _apply_act(y, act):
    if act == "relu":
        return jnp.maximum(y, 0.0)
    if act == "sigmoid":
        # EUP reciprocal instead of a VALU divide.
        return pl.reciprocal(1.0 + jnp.exp(-y), approx=True)
    return y


def _full_spec(shape):
    n = len(shape)
    return pl.BlockSpec(shape, lambda *_: (0,) * n)


# ----------------------------- fused conv-GEMM kernel ------------------------
def _conv_gemm_kernel_factory(act, has_bias, has_bn, has_skip, eps):
    def kernel(*refs):
        it = iter(refs)
        w_ref = next(it)                         # (Cout, K) bf16
        p_ref = next(it)                         # (K, M)    bf16
        b_ref = next(it) if has_bias else None   # (Cout, 1) f32
        g_ref = next(it) if has_bn else None     # (Cout, 1) f32
        beta_ref = next(it) if has_bn else None  # (Cout, 1) f32
        skip_ref = next(it) if has_skip else None
        o_ref = next(it)                         # (Cout, M) f32

        y = jnp.dot(w_ref[...], p_ref[...], preferred_element_type=jnp.float32)
        if has_bias:
            y = y + b_ref[...]
        if has_bn:
            # train-mode batch statistics, per channel (row), reduce over lanes
            mean = jnp.mean(y, axis=1, keepdims=True)
            var = jnp.mean(jnp.square(y - mean), axis=1, keepdims=True)
            y = (y - mean) * jax.lax.rsqrt(var + eps) * g_ref[...] + beta_ref[...]
        y = _apply_act(y, act)
        if has_skip:
            y = y + skip_ref[...]
        o_ref[...] = y
    return kernel


def fused_conv_gemm(wmat, pmat, bias=None, act="none", bn=None, skip=None, eps=1e-5):
    """out(Cout, M) = act(BN(W(Cout,K) @ P(K,M) [+ b])) [+ skip]."""
    Cout, K = wmat.shape
    M = pmat.shape[1]
    has_bn = bn is not None
    # Bias is mathematically a no-op under train-mode BN (mean subtraction
    # removes any per-channel constant) -> drop it entirely in that case.
    has_bias = (bias is not None) and (not has_bn)
    has_skip = skip is not None

    args = [wmat.astype(jnp.bfloat16), pmat.astype(jnp.bfloat16)]
    specs = [_full_spec((Cout, K)), _full_spec((K, M))]
    if has_bias:
        args.append(jnp.asarray(bias, jnp.float32).reshape(Cout, 1))
        specs.append(_full_spec((Cout, 1)))
    if has_bn:
        g, be = bn
        args += [jnp.asarray(g, jnp.float32).reshape(Cout, 1),
                 jnp.asarray(be, jnp.float32).reshape(Cout, 1)]
        specs += [_full_spec((Cout, 1)), _full_spec((Cout, 1))]
    if has_skip:
        args.append(skip.astype(jnp.float32).reshape(Cout, M))
        specs.append(_full_spec((Cout, M)))

    return pl.pallas_call(
        _conv_gemm_kernel_factory(act, has_bias, has_bn, has_skip, eps),
        out_shape=jax.ShapeDtypeStruct((Cout, M), jnp.float32),
        grid=(1,),
        in_specs=specs,
        out_specs=_full_spec((Cout, M)),
        compiler_params=pltpu.CompilerParams(
            dimension_semantics=("arbitrary",),
            vmem_limit_bytes=_VMEM_LIMIT),
    )(*args)


# ----------------------------- conv / conv-transpose wrappers ----------------
def conv_cm(x_cm, w, b, stride=1, padding=1, act="none", bn=None, skip_cm=None):
    """x_cm: (C, N, H, W); w: (Cout, Cin, kh, kw) as in PyTorch Conv2d."""
    Cout, Cin, kh, kw = w.shape
    C, N, H, W = x_cm.shape
    xp = jnp.pad(x_cm.astype(jnp.bfloat16),
                 ((0, 0), (0, 0), (padding, padding), (padding, padding)))
    Ho = (H + 2 * padding - kh) // stride + 1
    Wo = (W + 2 * padding - kw) // stride + 1
    taps = []
    for dh in range(kh):
        for dw in range(kw):
            taps.append(xp[:, :,
                           dh:dh + stride * (Ho - 1) + 1:stride,
                           dw:dw + stride * (Wo - 1) + 1:stride])
    pmat = jnp.stack(taps, axis=0).reshape(kh * kw * Cin, N * Ho * Wo)
    wmat = jnp.transpose(w, (0, 2, 3, 1)).reshape(Cout, kh * kw * Cin)
    skip = None if skip_cm is None else skip_cm.reshape(Cout, N * Ho * Wo)
    out = fused_conv_gemm(wmat, pmat, bias=b, act=act, bn=bn, skip=skip)
    return out.reshape(Cout, N, Ho, Wo)


_KMAP = ((3, 1), (2, 0))   # parity -> kernel taps for k=4, s=2, p=1


def _convT_kernel_factory(act, has_bias, has_bn, eps):
    def kernel(*refs):
        it = iter(refs)
        w_ref = next(it)                         # (4, Cout, 4*Cin) bf16
        p_ref = next(it)                         # (4, 4*Cin, M')   bf16
        b_ref = next(it) if has_bias else None   # (Cout, 1) f32
        g_ref = next(it) if has_bn else None
        beta_ref = next(it) if has_bn else None
        o_ref = next(it)                         # (4, Cout, M') f32
        Mp = p_ref.shape[2]
        ys = []
        for rs in range(4):
            y = jnp.dot(w_ref[rs], p_ref[rs], preferred_element_type=jnp.float32)
            if has_bias:
                y = y + b_ref[...]
            ys.append(y)
        if has_bn:
            # channel stats over all 4 parities (the full output map)
            total = 4.0 * Mp
            mean = sum(jnp.sum(y, axis=1, keepdims=True) for y in ys) / total
            ex2 = sum(jnp.sum(y * y, axis=1, keepdims=True) for y in ys) / total
            var = ex2 - mean * mean
            inv = jax.lax.rsqrt(var + eps) * g_ref[...]
            ys = [(y - mean) * inv + beta_ref[...] for y in ys]
        for rs in range(4):
            o_ref[rs] = _apply_act(ys[rs], act)
    return kernel


def conv_transpose_cm(x_cm, w, b, act="none", bn=None, eps=1e-5):
    """ConvTranspose2d(k=4, s=2, p=1) via 4 sub-pixel 2x2 convs in one kernel.
    x_cm: (Cin, N, H, W); w: (Cin, Cout, 4, 4) as in PyTorch ConvTranspose2d."""
    Cin, Cout, kh, kw = w.shape
    C, N, H, W = x_cm.shape
    xp = jnp.pad(x_cm.astype(jnp.bfloat16), ((0, 0), (0, 0), (1, 1), (1, 1)))
    Mp = N * H * W
    pmats, wmats = [], []
    for r in range(2):
        for s in range(2):
            taps = [xp[:, :, r + dh:r + dh + H, s + dw:s + dw + W]
                    for dh in range(2) for dw in range(2)]
            pmats.append(jnp.stack(taps, axis=0).reshape(4 * Cin, Mp))
            wm = jnp.concatenate(
                [jnp.transpose(w[:, :, _KMAP[r][dh], _KMAP[s][dw]], (1, 0))
                 for dh in range(2) for dw in range(2)], axis=1)      # (Cout, 4*Cin)
            wmats.append(wm)
    P = jnp.stack(pmats, axis=0)              # (4, 4*Cin, M')
    Wt = jnp.stack(wmats, axis=0)             # (4, Cout, 4*Cin)

    has_bn = bn is not None
    has_bias = (b is not None) and (not has_bn)   # bias cancels under train-BN
    args = [Wt.astype(jnp.bfloat16), P.astype(jnp.bfloat16)]
    specs = [_full_spec(Wt.shape), _full_spec(P.shape)]
    if has_bias:
        args.append(jnp.asarray(b, jnp.float32).reshape(Cout, 1))
        specs.append(_full_spec((Cout, 1)))
    if has_bn:
        g, be = bn
        args += [jnp.asarray(g, jnp.float32).reshape(Cout, 1),
                 jnp.asarray(be, jnp.float32).reshape(Cout, 1)]
        specs += [_full_spec((Cout, 1)), _full_spec((Cout, 1))]
    out = pl.pallas_call(
        _convT_kernel_factory(act, has_bias, has_bn, eps),
        out_shape=jax.ShapeDtypeStruct((4, Cout, Mp), jnp.float32),
        grid=(1,),
        in_specs=specs,
        out_specs=_full_spec((4, Cout, Mp)),
        compiler_params=pltpu.CompilerParams(
            dimension_semantics=("arbitrary",),
            vmem_limit_bytes=_VMEM_LIMIT),
    )(*args)
    # interleave the 4 parities back into (Cout, N, 2H, 2W)
    out = out.reshape(2, 2, Cout, N, H, W)
    out = jnp.transpose(out, (2, 3, 4, 0, 5, 1)).reshape(Cout, N, 2 * H, 2 * W)
    return out


# ----------------------------- fused cross attention -------------------------
def _attn_kernel_factory(heads, scale):
    def kernel(x_ref, c_ref, wq_ref, wk_ref, wv_ref, bq_ref, bk_ref, bv_ref,
               wo_ref, bo_ref, o_ref):
        x = x_ref[0]                                   # (L, E) bf16
        c = c_ref[0]                                   # (L, E) bf16
        acc = jnp.zeros(o_ref.shape[1:], jnp.float32) + bo_ref[...]
        for h in range(heads):                         # all heads in one invocation
            q = jnp.dot(x, wq_ref[h], preferred_element_type=jnp.float32) + bq_ref[h]
            k = jnp.dot(c, wk_ref[h], preferred_element_type=jnp.float32) + bk_ref[h]
            v = jnp.dot(c, wv_ref[h], preferred_element_type=jnp.float32) + bv_ref[h]
            s = jax.lax.dot_general(q.astype(jnp.bfloat16), k.astype(jnp.bfloat16),
                                    (((1,), (1,)), ((), ())),
                                    preferred_element_type=jnp.float32) * scale
            m = jnp.max(s, axis=-1, keepdims=True)
            p = jnp.exp(s - m)
            denom = jnp.sum(p, axis=-1, keepdims=True)
            p = p * pl.reciprocal(denom, approx=True)
            hv = jnp.dot(p.astype(jnp.bfloat16), v.astype(jnp.bfloat16),
                         preferred_element_type=jnp.float32)
            acc = acc + jnp.dot(hv.astype(jnp.bfloat16), wo_ref[h],
                                preferred_element_type=jnp.float32)
        o_ref[0] = acc
    return kernel


def cross_attention(bt_cm, context, p):
    """bt_cm: (E, N, h, w) channels-leading; context: (N, E).  nn.MultiheadAttention."""
    E, N, h, w = bt_cm.shape
    L = h * w
    Dh = E // HEADS
    xf = jnp.transpose(bt_cm, (1, 2, 3, 0)).reshape(N, L, E).astype(jnp.bfloat16)
    ctx = jnp.broadcast_to(context[:, None, :], (N, L, E)).astype(jnp.bfloat16)

    in_w, in_b = p["in_w"], p["in_b"]
    wq, wk, wv = in_w[:E], in_w[E:2 * E], in_w[2 * E:]
    bq, bk, bv = in_b[:E], in_b[E:2 * E], in_b[2 * E:]

    def per_head_w(wmat):   # torch: y = x @ W.T ; split rows by head -> (H, E, Dh)
        return jnp.transpose(wmat.reshape(HEADS, Dh, E), (0, 2, 1)).astype(jnp.bfloat16)

    def per_head_b(bvec):
        return bvec.reshape(HEADS, 1, Dh).astype(jnp.float32)

    wo = jnp.transpose(p["out_w"].reshape(E, HEADS, Dh), (1, 2, 0)).astype(jnp.bfloat16)
    bo = p["out_b"].reshape(1, E).astype(jnp.float32)
    scale = 1.0 / math.sqrt(Dh)

    out = pl.pallas_call(
        _attn_kernel_factory(HEADS, scale),
        out_shape=jax.ShapeDtypeStruct((N, L, E), jnp.float32),
        grid=(N,),
        in_specs=[pl.BlockSpec((1, L, E), lambda i: (i, 0, 0)),
                  pl.BlockSpec((1, L, E), lambda i: (i, 0, 0)),
                  pl.BlockSpec((HEADS, E, Dh), lambda i: (0, 0, 0)),
                  pl.BlockSpec((HEADS, E, Dh), lambda i: (0, 0, 0)),
                  pl.BlockSpec((HEADS, E, Dh), lambda i: (0, 0, 0)),
                  pl.BlockSpec((HEADS, 1, Dh), lambda i: (0, 0, 0)),
                  pl.BlockSpec((HEADS, 1, Dh), lambda i: (0, 0, 0)),
                  pl.BlockSpec((HEADS, 1, Dh), lambda i: (0, 0, 0)),
                  pl.BlockSpec((HEADS, Dh, E), lambda i: (0, 0, 0)),
                  pl.BlockSpec((1, E), lambda i: (0, 0))],
        out_specs=pl.BlockSpec((1, L, E), lambda i: (i, 0, 0)),
        compiler_params=pltpu.CompilerParams(
            dimension_semantics=("parallel",),          # both TCs on v7x
            vmem_limit_bytes=_VMEM_LIMIT),
    )(xf, ctx, per_head_w(wq), per_head_w(wk), per_head_w(wv),
      per_head_b(bq), per_head_b(bk), per_head_b(bv), wo, bo)
    return out                                          # (N, L, E)


# ----------------------------- parameters -----------------------------------
def init_params(key):
    ks = iter(jax.random.split(key, 128))

    def rnd(shape, scale=0.05):
        return scale * jax.random.normal(next(ks), shape, dtype=jnp.float32)

    def conv_p(cout, cin, k):
        return {"w": rnd((cout, cin, k, k)), "b": rnd((cout,))}

    def convT_p(cin, cout, k):
        return {"w": rnd((cin, cout, k, k)), "b": rnd((cout,))}

    def bn_p(c):
        return {"g": jnp.ones((c,), jnp.float32), "b": jnp.zeros((c,), jnp.float32)}

    p = {
        "time_w": rnd((LATENT, TEMB)), "time_b": rnd((LATENT,)),
        # nn.Embedding label_embedding exists in __init__ but is unused in forward.
        "label_emb": rnd((NUM_CLASSES, EMBED)),
        "attn": {"in_w": rnd((3 * EMBED, EMBED)), "in_b": rnd((3 * EMBED,)),
                 "out_w": rnd((EMBED, EMBED)), "out_b": rnd((EMBED,))},
        "enc1": {"c1": conv_p(CH, LATENT, 3), "bn1": bn_p(CH),
                 "c2": conv_p(CH, CH, 3), "bn2": bn_p(CH)},
        "enc2": {"c1": conv_p(2 * CH, CH, 3), "bn1": bn_p(2 * CH),
                 "c2": conv_p(2 * CH, 2 * CH, 3), "bn2": bn_p(2 * CH)},
        "enc3": {"c1": conv_p(4 * CH, 2 * CH, 3), "bn1": bn_p(4 * CH),
                 "c2": conv_p(4 * CH, 4 * CH, 3), "bn2": bn_p(4 * CH)},
        "bott": {"c1": conv_p(8 * CH, 4 * CH, 3), "c2": conv_p(4 * CH, 8 * CH, 3)},
        "dec3": {"ct": convT_p(4 * CH, 4 * CH, 4), "bn1": bn_p(4 * CH),
                 "c": conv_p(2 * CH, 4 * CH, 3), "bn2": bn_p(2 * CH)},
        "dec2": {"ct": convT_p(2 * CH, 2 * CH, 4), "bn1": bn_p(2 * CH),
                 "c": conv_p(CH, 2 * CH, 3), "bn2": bn_p(CH)},
        "dec1": {"c1": conv_p(CH, CH, 3), "bn1": bn_p(CH),
                 "c2": conv_p(LATENT, CH, 3), "bn2": bn_p(LATENT)},
    }
    return p


# ----------------------------- forward ---------------------------------------
def sinusoidal_timestep_encoding(t, dim):
    half = dim // 2
    freqs = jnp.exp(jnp.arange(half, dtype=jnp.float32) * -(math.log(10000.0) / half))
    emb = jnp.asarray(t, jnp.float32) * freqs
    # interleave: even slots sin, odd slots cos (matches the reference)
    return jnp.stack([jnp.sin(emb), jnp.cos(emb)], axis=-1).reshape(1, dim)


def unet_forward(p, x, label, t):
    N = x.shape[0]
    x_cm = jnp.transpose(x.astype(jnp.float32), (1, 0, 2, 3))      # (LATENT, N, H, W)

    # time conditioning: Linear(TEMB -> LATENT) as a Pallas GEMM (bias kept, no BN)
    t_enc = sinusoidal_timestep_encoding(t, TEMB)                   # (1, TEMB)
    t_emb = fused_conv_gemm(p["time_w"], t_enc.T, bias=p["time_b"])  # (LATENT, 1)
    t_map = jnp.broadcast_to(t_emb.reshape(LATENT, 1, 1, 1), (LATENT, N, IMG, IMG))

    # label context: broadcast of the raw label (the nn.Embedding is unused in forward)
    label_ctx = jnp.broadcast_to(label.reshape(N, 1).astype(jnp.float32), (N, EMBED))

    # concat along the HEIGHT dim, exactly as the reference does
    h0 = jnp.concatenate([x_cm, t_map], axis=2)                     # (LATENT, N, 2*IMG, IMG)

    # enc1
    e = conv_cm(h0, p["enc1"]["c1"]["w"], p["enc1"]["c1"]["b"], act="relu",
                bn=(p["enc1"]["bn1"]["g"], p["enc1"]["bn1"]["b"]))
    enc1_out = conv_cm(e, p["enc1"]["c2"]["w"], p["enc1"]["c2"]["b"], act="relu",
                       bn=(p["enc1"]["bn2"]["g"], p["enc1"]["bn2"]["b"]))
    # enc2
    e = conv_cm(enc1_out, p["enc2"]["c1"]["w"], p["enc2"]["c1"]["b"], stride=2, act="relu",
                bn=(p["enc2"]["bn1"]["g"], p["enc2"]["bn1"]["b"]))
    enc2_out = conv_cm(e, p["enc2"]["c2"]["w"], p["enc2"]["c2"]["b"], act="relu",
                       bn=(p["enc2"]["bn2"]["g"], p["enc2"]["bn2"]["b"]))
    # enc3
    e = conv_cm(enc2_out, p["enc3"]["c1"]["w"], p["enc3"]["c1"]["b"], stride=2, act="relu",
                bn=(p["enc3"]["bn1"]["g"], p["enc3"]["bn1"]["b"]))
    enc3_out = conv_cm(e, p["enc3"]["c2"]["w"], p["enc3"]["c2"]["b"], act="relu",
                       bn=(p["enc3"]["bn2"]["g"], p["enc3"]["bn2"]["b"]))

    # bottleneck (conv + ReLU fused, no BN -> bias is kept here)
    bt = conv_cm(enc3_out, p["bott"]["c1"]["w"], p["bott"]["c1"]["b"], act="relu")
    bt = conv_cm(bt, p["bott"]["c2"]["w"], p["bott"]["c2"]["b"], act="relu")

    # cross attention on the label context (single fused kernel, all heads)
    E_, _, bh, bw = bt.shape
    attn = cross_attention(bt, label_ctx, p["attn"])                # (N, L, E)
    bottleneck_out = jnp.transpose(attn, (0, 2, 1)).reshape(N, E_, bh, bw)   # NCHW return
    bt_cm = jnp.transpose(attn, (2, 0, 1)).reshape(E_, N, bh, bw)            # CM for dec3

    # dec3: ConvT+BN+ReLU (one kernel), Conv+BN+ReLU+skip(enc2_out) (one kernel)
    d = conv_transpose_cm(bt_cm, p["dec3"]["ct"]["w"], p["dec3"]["ct"]["b"], act="relu",
                          bn=(p["dec3"]["bn1"]["g"], p["dec3"]["bn1"]["b"]))
    dec3 = conv_cm(d, p["dec3"]["c"]["w"], p["dec3"]["c"]["b"], act="relu",
                   bn=(p["dec3"]["bn2"]["g"], p["dec3"]["bn2"]["b"]), skip_cm=enc2_out)
    # dec2
    d = conv_transpose_cm(dec3, p["dec2"]["ct"]["w"], p["dec2"]["ct"]["b"], act="relu",
                          bn=(p["dec2"]["bn1"]["g"], p["dec2"]["bn1"]["b"]))
    dec2 = conv_cm(d, p["dec2"]["c"]["w"], p["dec2"]["c"]["b"], act="relu",
                   bn=(p["dec2"]["bn2"]["g"], p["dec2"]["bn2"]["b"]), skip_cm=enc1_out)
    # dec1: Conv+BN+ReLU, Conv+BN+Sigmoid+skip(x zero-padded to the doubled height)
    d = conv_cm(dec2, p["dec1"]["c1"]["w"], p["dec1"]["c1"]["b"], act="relu",
                bn=(p["dec1"]["bn1"]["g"], p["dec1"]["bn1"]["b"]))
    x_pad = jnp.pad(x_cm, ((0, 0), (0, 0), (0, IMG), (0, 0)))       # zeros outside the crop
    d = conv_cm(d, p["dec1"]["c2"]["w"], p["dec1"]["c2"]["b"], act="sigmoid",
                bn=(p["dec1"]["bn2"]["g"], p["dec1"]["bn2"]["b"]), skip_cm=x_pad)
    dec1_cm = d[:, :, :IMG, :IMG]                                   # crop to skip size
    dec1 = jnp.transpose(dec1_cm, (1, 0, 2, 3))                     # back to NCHW

    return dec1, bottleneck_out


# ----------------------------- main ------------------------------------------
if __name__ == "__main__":
    key = jax.random.PRNGKey(0)
    k_param, k_x = jax.random.split(key)

    params = init_params(k_param)
    x = jax.random.normal(k_x, (BATCH, LATENT, IMG, IMG), dtype=jnp.float32)
    label = jnp.array([0, 1], dtype=jnp.int32)
    t = 5.0

    forward = jax.jit(unet_forward)
    dec1, bottleneck = forward(params, x, label, t)
    jax.block_until_ready((dec1, bottleneck))

    assert dec1.shape == (BATCH, LATENT, IMG, IMG)
    assert bottleneck.shape == (BATCH, EMBED, IMG // 2, IMG // 4)
    assert jnp.all(jnp.isfinite(dec1)) and jnp.all(jnp.isfinite(bottleneck))
    print("KERNEL_OK")
</pallas_src>

<mosaic_0001>
module attributes {stable_mosaic.version = 11 : i64} {
  func.func @kernel(%arg0: i32, %arg1: memref<8x32xbf16, #tpu.memory_space<vmem>>, %arg2: memref<32x1xbf16, #tpu.memory_space<vmem>>, %arg3: memref<8x1xf32, #tpu.memory_space<vmem>>, %arg4: memref<8x1xf32, #tpu.memory_space<vmem>>) attributes {dimension_semantics = [#tpu.dimension_semantics<arbitrary>], iteration_bounds = array<i64: 1>, scalar_prefetch = 0 : i64, scratch_operands = 0 : i64, tpu.core_type = #tpu.core_type<tc>, window_params = [{pipeline_mode = #tpu.pipeline_mode<synchronous>, transform_indices = @transform_0, window_bounds = array<i64: 8, 32>}, {pipeline_mode = #tpu.pipeline_mode<synchronous>, transform_indices = @transform_1, window_bounds = array<i64: 32, 1>}, {pipeline_mode = #tpu.pipeline_mode<synchronous>, transform_indices = @transform_2, window_bounds = array<i64: 8, 1>}, {pipeline_mode = #tpu.pipeline_mode<synchronous>, transform_indices = @transform_3, window_bounds = array<i64: 8, 1>}]} {
    %c0 = arith.constant 0 : index
    %c0_0 = arith.constant 0 : index
    %0 = vector.load %arg1[%c0, %c0_0] : memref<8x32xbf16, #tpu.memory_space<vmem>>, vector<8x32xbf16>
    %c0_1 = arith.constant 0 : index
    %c0_2 = arith.constant 0 : index
    %1 = vector.load %arg2[%c0_1, %c0_2] : memref<32x1xbf16, #tpu.memory_space<vmem>>, vector<32x1xbf16>
    %cst = arith.constant dense<0.000000e+00> : vector<8x1xf32>
    %2 = tpu.matmul %0, %1, %cst {dimension_numbers = #tpu.dot_dimension_numbers<[1], [0], [0], [1], [0, 0, 1, 1], [], []>} : vector<8x32xbf16>, vector<32x1xbf16>, vector<8x1xf32> -> vector<8x1xf32>
    %c0_3 = arith.constant 0 : index
    %c0_4 = arith.constant 0 : index
    %3 = vector.load %arg3[%c0_3, %c0_4] : memref<8x1xf32, #tpu.memory_space<vmem>>, vector<8x1xf32>
    %4 = arith.addf %2, %3 : vector<8x1xf32>
    %c0_5 = arith.constant 0 : index
    %c0_6 = arith.constant 0 : index
    %5 = vector.load %arg4[%c0_5, %c0_6] : memref<8x1xf32, #tpu.memory_space<vmem>>, vector<8x1xf32>
    tpu.vector_store %arg4[%c0_5, %c0_6], %4 {strides = array<i32>} : memref<8x1xf32, #tpu.memory_space<vmem>>, vector<8x1xf32>,
    return
  }
  func.func @transform_0(%arg0: i32) -> (i32, i32) {
    %c0_i32 = arith.constant 0 : i32
    %c0_i32_0 = arith.constant 0 : i32
    %c0_i32_1 = arith.constant 0 : i32
    return %c0_i32, %c0_i32_0 : i32, i32
  }
  func.func @transform_1(%arg0: i32) -> (i32, i32) {
    %c0_i32 = arith.constant 0 : i32
    %c0_i32_0 = arith.constant 0 : i32
    %c0_i32_1 = arith.constant 0 : i32
    return %c0_i32, %c0_i32_0 : i32, i32
  }
  func.func @transform_2(%arg0: i32) -> (i32, i32) {
    %c0_i32 = arith.constant 0 : i32
    %c0_i32_0 = arith.constant 0 : i32
    %c0_i32_1 = arith.constant 0 : i32
    return %c0_i32, %c0_i32_0 : i32, i32
  }
  func.func @transform_3(%arg0: i32) -> (i32, i32) {
    %c0_i32 = arith.constant 0 : i32
    %c0_i32_0 = arith.constant 0 : i32
    %c0_i32_1 = arith.constant 0 : i32
    return %c0_i32, %c0_i32_0 : i32, i32
  }
}

module attributes {stable_mosaic.version = 11 : i64} {
  func.func @kernel(%arg0: i32, %arg1: memref<4x72xbf16, #tpu.memory_space<vmem>>, %arg2: memref<72x256xbf16, #tpu.memory_space<vmem>>, %arg3: memref<4x1xf32, #tpu.memory_space<vmem>>, %arg4: memref<4x1xf32, #tpu.memory_space<vmem>>, %arg5: memref<4x256xf32, #tpu.memory_space<vmem>>) attributes {dimension_semantics = [#tpu.dimension_semantics<arbitrary>], iteration_bounds = array<i64: 1>, scalar_prefetch = 0 : i64, scratch_operands = 0 : i64, tpu.core_type = #tpu.core_type<tc>, window_params = [{pipeline_mode = #tpu.pipeline_mode<synchronous>, transform_indices = @transform_0, window_bounds = array<i64: 4, 72>}, {pipeline_mode = #tpu.pipeline_mode<synchronous>, transform_indices = @transform_1, window_bounds = array<i64: 72, 256>}, {pipeline_mode = #tpu.pipeline_mode<synchronous>, transform_indices = @transform_2, window_bounds = array<i64: 4, 1>}, {pipeline_mode = #tpu.pipeline_mode<synchronous>, transform_indices = @transform_3, window_bounds = array<i64: 4, 1>}, {pipeline_mode = #tpu.pipeline_mode<synchronous>, transform_indices = @transform_4, window_bounds = array<i64: 4, 256>}]} {
    %c0 = arith.constant 0 : index
    %c0_0 = arith.constant 0 : index
    %0 = vector.load %arg1[%c0, %c0_0] : memref<4x72xbf16, #tpu.memory_space<vmem>>, vector<4x72xbf16>
    %c0_1 = arith.constant 0 : index
    %c0_2 = arith.constant 0 : index
    %1 = vector.load %arg2[%c0_1, %c0_2] : memref<72x256xbf16, #tpu.memory_space<vmem>>, vector<72x256xbf16>
    %cst = arith.constant dense<0.000000e+00> : vector<4x256xf32>
    %2 = tpu.matmul %0, %1, %cst {dimension_numbers = #tpu.dot_dimension_numbers<[1], [0], [0], [1], [0, 0, 1, 1], [], []>} : vector<4x72xbf16>, vector<72x256xbf16>, vector<4x256xf32> -> vector<4x256xf32>
    %cst_3 = arith.constant dense<0.000000e+00> : vector<4xf32>
    %3 = vector.multi_reduction <add>, %2, %cst_3 [1] : vector<4x256xf32> to vector<4xf32>
    %4 = vector.shape_cast %3 : vector<4xf32> to vector<4x1xf32>
    %cst_4 = arith.constant 2.560000e+02 : f32
    %5 = vector.broadcast %cst_4 : f32 to vector<4x1xf32>
    %6 = arith.divf %4, %5 : vector<4x1xf32>
    %7 = vector.broadcast %6 : vector<4x1xf32> to vector<4x256xf32>
    %8 = arith.subf %2, %7 : vector<4x256xf32>
    %9 = arith.mulf %8, %8 : vector<4x256xf32>
    %cst_5 = arith.constant dense<0.000000e+00> : vector<4xf32>
    %10 = vector.multi_reduction <add>, %9, %cst_5 [1] : vector<4x256xf32> to vector<4xf32>
    %11 = vector.shape_cast %10 : vector<4xf32> to vector<4x1xf32>
    %cst_6 = arith.constant 2.560000e+02 : f32
    %12 = vector.broadcast %cst_6 : f32 to vector<4x1xf32>
    %13 = arith.divf %11, %12 : vector<4x1xf32>
    %14 = vector.broadcast %6 : vector<4x1xf32> to vector<4x256xf32>
    %15 = arith.subf %2, %14 : vector<4x256xf32>
    %cst_7 = arith.constant 9.99999974E-6 : f32
    %16 = vector.broadcast %cst_7 : f32 to vector<4x1xf32>
    %17 = arith.addf %13, %16 : vector<4x1xf32>
    %18 = math.rsqrt %17 : vector<4x1xf32>
    %19 = vector.broadcast %18 : vector<4x1xf32> to vector<4x256xf32>
    %20 = arith.mulf %15, %19 : vector<4x256xf32>
    %c0_8 = arith.constant 0 : index
    %c0_9 = arith.constant 0 : index
    %21 = vector.load %arg3[%c0_8, %c0_9] : memref<4x1xf32, #tpu.memory_space<vmem>>, vector<4x1xf32>
    %22 = vector.broadcast %21 : vector<4x1xf32> to vector<4x256xf32>
    %23 = arith.mulf %20, %22 : vector<4x256xf32>
    %c0_10 = arith.constant 0 : index
    %c0_11 = arith.constant 0 : index
    %24 = vector.load %arg4[%c0_10, %c0_11] : memref<4x1xf32, #tpu.memory_space<vmem>>, vector<4x1xf32>
    %25 = vector.broadcast %24 : vector<4x1xf32> to vector<4x256xf32>
    %26 = arith.addf %23, %25 : vector<4x256xf32>
    %cst_12 = arith.constant 0.000000e+00 : f32
    %27 = vector.broadcast %cst_12 : f32 to vector<4x256xf32>
    %28 = arith.maximumf %26, %27 : vector<4x256xf32>
    %c0_13 = arith.constant 0 : index
    %c0_14 = arith.constant 0 : index
    %29 = vector.load %arg5[%c0_13, %c0_14] : memref<4x256xf32, #tpu.memory_space<vmem>>, vector<4x256xf32>
    tpu.vector_store %arg5[%c0_13, %c0_14], %28 {strides = array<i32>} : memref<4x256xf32, #tpu.memory_space<vmem>>, vector<4x256xf32>,
    return
  }
  func.func @transform_0(%arg0: i32) -> (i32, i32) {
    %c0_i32 = arith.constant 0 : i32
    %c0_i32_0 = arith.constant 0 : i32
    %c0_i32_1 = arith.constant 0 : i32
    return %c0_i32, %c0_i32_0 : i32, i32
  }
  func.func @transform_1(%arg0: i32) -> (i32, i32) {
    %c0_i32 = arith.constant 0 : i32
    %c0_i32_0 = arith.constant 0 : i32
    %c0_i32_1 = arith.constant 0 : i32
    return %c0_i32, %c0_i32_0 : i32, i32
  }
  func.func @transform_2(%arg0: i32) -> (i32, i32) {
    %c0_i32 = arith.constant 0 : i32
    %c0_i32_0 = arith.constant 0 : i32
    %c0_i32_1 = arith.constant 0 : i32
    return %c0_i32, %c0_i32_0 : i32, i32
  }
  func.func @transform_3(%arg0: i32) -> (i32, i32) {
    %c0_i32 = arith.constant 0 : i32
    %c0_i32_0 = arith.constant 0 : i32
    %c0_i32_1 = arith.constant 0 : i32
    return %c0_i32, %c0_i32_0 : i32, i32
  }
  func.func @transform_4(%arg0: i32) -> (i32, i32) {
    %c0_i32 = arith.constant 0 : i32
    %c0_i32_0 = arith.constant 0 : i32
    %c0_i32_1 = arith.constant 0 : i32
    return %c0_i32, %c0_i32_0 : i32, i32
  }
}

module attributes {stable_mosaic.version = 11 : i64} {
  func.func @kernel(%arg0: i32, %arg1: memref<4x36xbf16, #tpu.memory_space<vmem>>, %arg2: memref<36x256xbf16, #tpu.memory_space<vmem>>, %arg3: memref<4x1xf32, #tpu.memory_space<vmem>>, %arg4: memref<4x1xf32, #tpu.memory_space<vmem>>, %arg5: memref<4x256xf32, #tpu.memory_space<vmem>>) attributes {dimension_semantics = [#tpu.dimension_semantics<arbitrary>], iteration_bounds = array<i64: 1>, scalar_prefetch = 0 : i64, scratch_operands = 0 : i64, tpu.core_type = #tpu.core_type<tc>, window_params = [{pipeline_mode = #tpu.pipeline_mode<synchronous>, transform_indices = @transform_0, window_bounds = array<i64: 4, 36>}, {pipeline_mode = #tpu.pipeline_mode<synchronous>, transform_indices = @transform_1, window_bounds = array<i64: 36, 256>}, {pipeline_mode = #tpu.pipeline_mode<synchronous>, transform_indices = @transform_2, window_bounds = array<i64: 4, 1>}, {pipeline_mode = #tpu.pipeline_mode<synchronous>, transform_indices = @transform_3, window_bounds = array<i64: 4, 1>}, {pipeline_mode = #tpu.pipeline_mode<synchronous>, transform_indices = @transform_4, window_bounds = array<i64: 4, 256>}]} {
    %c0 = arith.constant 0 : index
    %c0_0 = arith.constant 0 : index
    %0 = vector.load %arg1[%c0, %c0_0] : memref<4x36xbf16, #tpu.memory_space<vmem>>, vector<4x36xbf16>
    %c0_1 = arith.constant 0 : index
    %c0_2 = arith.constant 0 : index
    %1 = vector.load %arg2[%c0_1, %c0_2] : memref<36x256xbf16, #tpu.memory_space<vmem>>, vector<36x256xbf16>
    %cst = arith.constant dense<0.000000e+00> : vector<4x256xf32>
    %2 = tpu.matmul %0, %1, %cst {dimension_numbers = #tpu.dot_dimension_numbers<[1], [0], [0], [1], [0, 0, 1, 1], [], []>} : vector<4x36xbf16>, vector<36x256xbf16>, vector<4x256xf32> -> vector<4x256xf32>
    %cst_3 = arith.constant dense<0.000000e+00> : vector<4xf32>
    %3 = vector.multi_reduction <add>, %2, %cst_3 [1] : vector<4x256xf32> to vector<4xf32>
    %4 = vector.shape_cast %3 : vector<4xf32> to vector<4x1xf32>
    %cst_4 = arith.constant 2.560000e+02 : f32
    %5 = vector.broadcast %cst_4 : f32 to vector<4x1xf32>
    %6 = arith.divf %4, %5 : vector<4x1xf32>
    %7 = vector.broadcast %6 : vector<4x1xf32> to vector<4x256xf32>
    %8 = arith.subf %2, %7 : vector<4x256xf32>
    %9 = arith.mulf %8, %8 : vector<4x256xf32>
    %cst_5 = arith.constant dense<0.000000e+00> : vector<4xf32>
    %10 = vector.multi_reduction <add>, %9, %cst_5 [1] : vector<4x256xf32> to vector<4xf32>
    %11 = vector.shape_cast %10 : vector<4xf32> to vector<4x1xf32>
    %cst_6 = arith.constant 2.560000e+02 : f32
    %12 = vector.broadcast %cst_6 : f32 to vector<4x1xf32>
    %13 = arith.divf %11, %12 : vector<4x1xf32>
    %14 = vector.broadcast %6 : vector<4x1xf32> to vector<4x256xf32>
    %15 = arith.subf %2, %14 : vector<4x256xf32>
    %cst_7 = arith.constant 9.99999974E-6 : f32
    %16 = vector.broadcast %cst_7 : f32 to vector<4x1xf32>
    %17 = arith.addf %13, %16 : vector<4x1xf32>
    %18 = math.rsqrt %17 : vector<4x1xf32>
    %19 = vector.broadcast %18 : vector<4x1xf32> to vector<4x256xf32>
    %20 = arith.mulf %15, %19 : vector<4x256xf32>
    %c0_8 = arith.constant 0 : index
    %c0_9 = arith.constant 0 : index
    %21 = vector.load %arg3[%c0_8, %c0_9] : memref<4x1xf32, #tpu.memory_space<vmem>>, vector<4x1xf32>
    %22 = vector.broadcast %21 : vector<4x1xf32> to vector<4x256xf32>
    %23 = arith.mulf %20, %22 : vector<4x256xf32>
    %c0_10 = arith.constant 0 : index
    %c0_11 = arith.constant 0 : index
    %24 = vector.load %arg4[%c0_10, %c0_11] : memref<4x1xf32, #tpu.memory_space<vmem>>, vector<4x1xf32>
    %25 = vector.broadcast %24 : vector<4x1xf32> to vector<4x256xf32>
    %26 = arith.addf %23, %25 : vector<4x256xf32>
    %cst_12 = arith.constant 0.000000e+00 : f32
    %27 = vector.broadcast %cst_12 : f32 to vector<4x256xf32>
    %28 = arith.maximumf %26, %27 : vector<4x256xf32>
    %c0_13 = arith.constant 0 : index
    %c0_14 = arith.constant 0 : index
    %29 = vector.load %arg5[%c0_13, %c0_14] : memref<4x256xf32, #tpu.memory_space<vmem>>, vector<4x256xf32>
    tpu.vector_store %arg5[%c0_13, %c0_14], %28 {strides = array<i32>} : memref<4x256xf32, #tpu.memory_space<vmem>>, vector<4x256xf32>,
    return
  }
  func.func @transform_0(%arg0: i32) -> (i32, i32) {
    %c0_i32 = arith.constant 0 : i32
    %c0_i32_0 = arith.constant 0 : i32
    %c0_i32_1 = arith.constant 0 : i32
    return %c0_i32, %c0_i32_0 : i32, i32
  }
  func.func @transform_1(%arg0: i32) -> (i32, i32) {
    %c0_i32 = arith.constant 0 : i32
    %c0_i32_0 = arith.constant 0 : i32
    %c0_i32_1 = arith.constant 0 : i32
    return %c0_i32, %c0_i32_0 : i32, i32
  }
  func.func @transform_2(%arg0: i32) -> (i32, i32) {
    %c0_i32 = arith.constant 0 : i32
    %c0_i32_0 = arith.constant 0 : i32
    %c0_i32_1 = arith.constant 0 : i32
    return %c0_i32, %c0_i32_0 : i32, i32
  }
  func.func @transform_3(%arg0: i32) -> (i32, i32) {
    %c0_i32 = arith.constant 0 : i32
    %c0_i32_0 = arith.constant 0 : i32
    %c0_i32_1 = arith.constant 0 : i32
    return %c0_i32, %c0_i32_0 : i32, i32
  }
  func.func @transform_4(%arg0: i32) -> (i32, i32) {
    %c0_i32 = arith.constant 0 : i32
    %c0_i32_0 = arith.constant 0 : i32
    %c0_i32_1 = arith.constant 0 : i32
    return %c0_i32, %c0_i32_0 : i32, i32
  }
}

module attributes {stable_mosaic.version = 11 : i64} {
  func.func @kernel(%arg0: i32, %arg1: memref<8x36xbf16, #tpu.memory_space<vmem>>, %arg2: memref<36x64xbf16, #tpu.memory_space<vmem>>, %arg3: memref<8x1xf32, #tpu.memory_space<vmem>>, %arg4: memref<8x1xf32, #tpu.memory_space<vmem>>, %arg5: memref<8x64xf32, #tpu.memory_space<vmem>>) attributes {dimension_semantics = [#tpu.dimension_semantics<arbitrary>], iteration_bounds = array<i64: 1>, scalar_prefetch = 0 : i64, scratch_operands = 0 : i64, tpu.core_type = #tpu.core_type<tc>, window_params = [{pipeline_mode = #tpu.pipeline_mode<synchronous>, transform_indices = @transform_0, window_bounds = array<i64: 8, 36>}, {pipeline_mode = #tpu.pipeline_mode<synchronous>, transform_indices = @transform_1, window_bounds = array<i64: 36, 64>}, {pipeline_mode = #tpu.pipeline_mode<synchronous>, transform_indices = @transform_2, window_bounds = array<i64: 8, 1>}, {pipeline_mode = #tpu.pipeline_mode<synchronous>, transform_indices = @transform_3, window_bounds = array<i64: 8, 1>}, {pipeline_mode = #tpu.pipeline_mode<synchronous>, transform_indices = @transform_4, window_bounds = array<i64: 8, 64>}]} {
    %c0 = arith.constant 0 : index
    %c0_0 = arith.constant 0 : index
    %0 = vector.load %arg1[%c0, %c0_0] : memref<8x36xbf16, #tpu.memory_space<vmem>>, vector<8x36xbf16>
    %c0_1 = arith.constant 0 : index
    %c0_2 = arith.constant 0 : index
    %1 = vector.load %arg2[%c0_1, %c0_2] : memref<36x64xbf16, #tpu.memory_space<vmem>>, vector<36x64xbf16>
    %cst = arith.constant dense<0.000000e+00> : vector<8x64xf32>
    %2 = tpu.matmul %0, %1, %cst {dimension_numbers = #tpu.dot_dimension_numbers<[1], [0], [0], [1], [0, 0, 1, 1], [], []>} : vector<8x36xbf16>, vector<36x64xbf16>, vector<8x64xf32> -> vector<8x64xf32>
    %cst_3 = arith.constant dense<0.000000e+00> : vector<8xf32>
    %3 = vector.multi_reduction <add>, %2, %cst_3 [1] : vector<8x64xf32> to vector<8xf32>
    %4 = vector.shape_cast %3 : vector<8xf32> to vector<8x1xf32>
    %cst_4 = arith.constant 6.400000e+01 : f32
    %5 = vector.broadcast %cst_4 : f32 to vector<8x1xf32>
    %6 = arith.divf %4, %5 : vector<8x1xf32>
    %7 = vector.broadcast %6 : vector<8x1xf32> to vector<8x64xf32>
    %8 = arith.subf %2, %7 : vector<8x64xf32>
    %9 = arith.mulf %8, %8 : vector<8x64xf32>
    %cst_5 = arith.constant dense<0.000000e+00> : vector<8xf32>
    %10 = vector.multi_reduction <add>, %9, %cst_5 [1] : vector<8x64xf32> to vector<8xf32>
    %11 = vector.shape_cast %10 : vector<8xf32> to vector<8x1xf32>
    %cst_6 = arith.constant 6.400000e+01 : f32
    %12 = vector.broadcast %cst_6 : f32 to vector<8x1xf32>
    %13 = arith.divf %11, %12 : vector<8x1xf32>
    %14 = vector.broadcast %6 : vector<8x1xf32> to vector<8x64xf32>
    %15 = arith.subf %2, %14 : vector<8x64xf32>
    %cst_7 = arith.constant 9.99999974E-6 : f32
    %16 = vector.broadcast %cst_7 : f32 to vector<8x1xf32>
    %17 = arith.addf %13, %16 : vector<8x1xf32>
    %18 = math.rsqrt %17 : vector<8x1xf32>
    %19 = vector.broadcast %18 : vector<8x1xf32> to vector<8x64xf32>
    %20 = arith.mulf %15, %19 : vector<8x64xf32>
    %c0_8 = arith.constant 0 : index
    %c0_9 = arith.constant 0 : index
    %21 = vector.load %arg3[%c0_8, %c0_9] : memref<8x1xf32, #tpu.memory_space<vmem>>, vector<8x1xf32>
    %22 = vector.broadcast %21 : vector<8x1xf32> to vector<8x64xf32>
    %23 = arith.mulf %20, %22 : vector<8x64xf32>
    %c0_10 = arith.constant 0 : index
    %c0_11 = arith.constant 0 : index
    %24 = vector.load %arg4[%c0_10, %c0_11] : memref<8x1xf32, #tpu.memory_space<vmem>>, vector<8x1xf32>
    %25 = vector.broadcast %24 : vector<8x1xf32> to vector<8x64xf32>
    %26 = arith.addf %23, %25 : vector<8x64xf32>
    %cst_12 = arith.constant 0.000000e+00 : f32
    %27 = vector.broadcast %cst_12 : f32 to vector<8x64xf32>
    %28 = arith.maximumf %26, %27 : vector<8x64xf32>
    %c0_13 = arith.constant 0 : index
    %c0_14 = arith.constant 0 : index
    %29 = vector.load %arg5[%c0_13, %c0_14] : memref<8x64xf32, #tpu.memory_space<vmem>>, vector<8x64xf32>
    tpu.vector_store %arg5[%c0_13, %c0_14], %28 {strides = array<i32>} : memref<8x64xf32, #tpu.memory_space<vmem>>, vector<8x64xf32>,
    return
  }
  func.func @transform_0(%arg0: i32) -> (i32, i32) {
    %c0_i32 = arith.constant 0 : i32
    %c0_i32_0 = arith.constant 0 : i32
    %c0_i32_1 = arith.constant 0 : i32
    return %c0_i32, %c0_i32_0 : i32, i32
  }
  func.func @transform_1(%arg0: i32) -> (i32, i32) {
    %c0_i32 = arith.constant 0 : i32
    %c0_i32_0 = arith.constant 0 : i32
    %c0_i32_1 = arith.constant 0 : i32
    return %c0_i32, %c0_i32_0 : i32, i32
  }
  func.func @transform_2(%arg0: i32) -> (i32, i32) {
    %c0_i32 = arith.constant 0 : i32
    %c0_i32_0 = arith.constant 0 : i32
    %c0_i32_1 = arith.constant 0 : i32
    return %c0_i32, %c0_i32_0 : i32, i32
  }
  func.func @transform_3(%arg0: i32) -> (i32, i32) {
    %c0_i32 = arith.constant 0 : i32
    %c0_i32_0 = arith.constant 0 : i32
    %c0_i32_1 = arith.constant 0 : i32
    return %c0_i32, %c0_i32_0 : i32, i32
  }
  func.func @transform_4(%arg0: i32) -> (i32, i32) {
    %c0_i32 = arith.constant 0 : i32
    %c0_i32_0 = arith.constant 0 : i32
    %c0_i32_1 = arith.constant 0 : i32
    return %c0_i32, %c0_i32_0 : i32, i32
  }
}

module attributes {stable_mosaic.version = 11 : i64} {
  func.func @kernel(%arg0: i32, %arg1: memref<8x72xbf16, #tpu.memory_space<vmem>>, %arg2: memref<72x64xbf16, #tpu.memory_space<vmem>>, %arg3: memref<8x1xf32, #tpu.memory_space<vmem>>, %arg4: memref<8x1xf32, #tpu.memory_space<vmem>>, %arg5: memref<8x64xf32, #tpu.memory_space<vmem>>) attributes {dimension_semantics = [#tpu.dimension_semantics<arbitrary>], iteration_bounds = array<i64: 1>, scalar_prefetch = 0 : i64, scratch_operands = 0 : i64, tpu.core_type = #tpu.core_type<tc>, window_params = [{pipeline_mode = #tpu.pipeline_mode<synchronous>, transform_indices = @transform_0, window_bounds = array<i64: 8, 72>}, {pipeline_mode = #tpu.pipeline_mode<synchronous>, transform_indices = @transform_1, window_bounds = array<i64: 72, 64>}, {pipeline_mode = #tpu.pipeline_mode<synchronous>, transform_indices = @transform_2, window_bounds = array<i64: 8, 1>}, {pipeline_mode = #tpu.pipeline_mode<synchronous>, transform_indices = @transform_3, window_bounds = array<i64: 8, 1>}, {pipeline_mode = #tpu.pipeline_mode<synchronous>, transform_indices = @transform_4, window_bounds = array<i64: 8, 64>}]} {
    %c0 = arith.constant 0 : index
    %c0_0 = arith.constant 0 : index
    %0 = vector.load %arg1[%c0, %c0_0] : memref<8x72xbf16, #tpu.memory_space<vmem>>, vector<8x72xbf16>
    %c0_1 = arith.constant 0 : index
    %c0_2 = arith.constant 0 : index
    %1 = vector.load %arg2[%c0_1, %c0_2] : memref<72x64xbf16, #tpu.memory_space<vmem>>, vector<72x64xbf16>
    %cst = arith.constant dense<0.000000e+00> : vector<8x64xf32>
    %2 = tpu.matmul %0, %1, %cst {dimension_numbers = #tpu.dot_dimension_numbers<[1], [0], [0], [1], [0, 0, 1, 1], [], []>} : vector<8x72xbf16>, vector<72x64xbf16>, vector<8x64xf32> -> vector<8x64xf32>
    %cst_3 = arith.constant dense<0.000000e+00> : vector<8xf32>
    %3 = vector.multi_reduction <add>, %2, %cst_3 [1] : vector<8x64xf32> to vector<8xf32>
    %4 = vector.shape_cast %3 : vector<8xf32> to vector<8x1xf32>
    %cst_4 = arith.constant 6.400000e+01 : f32
    %5 = vector.broadcast %cst_4 : f32 to vector<8x1xf32>
    %6 = arith.divf %4, %5 : vector<8x1xf32>
    %7 = vector.broadcast %6 : vector<8x1xf32> to vector<8x64xf32>
    %8 = arith.subf %2, %7 : vector<8x64xf32>
    %9 = arith.mulf %8, %8 : vector<8x64xf32>
    %cst_5 = arith.constant dense<0.000000e+00> : vector<8xf32>
    %10 = vector.multi_reduction <add>, %9, %cst_5 [1] : vector<8x64xf32> to vector<8xf32>
    %11 = vector.shape_cast %10 : vector<8xf32> to vector<8x1xf32>
    %cst_6 = arith.constant 6.400000e+01 : f32
    %12 = vector.broadcast %cst_6 : f32 to vector<8x1xf32>
    %13 = arith.divf %11, %12 : vector<8x1xf32>
    %14 = vector.broadcast %6 : vector<8x1xf32> to vector<8x64xf32>
    %15 = arith.subf %2, %14 : vector<8x64xf32>
    %cst_7 = arith.constant 9.99999974E-6 : f32
    %16 = vector.broadcast %cst_7 : f32 to vector<8x1xf32>
    %17 = arith.addf %13, %16 : vector<8x1xf32>
    %18 = math.rsqrt %17 : vector<8x1xf32>
    %19 = vector.broadcast %18 : vector<8x1xf32> to vector<8x64xf32>
    %20 = arith.mulf %15, %19 : vector<8x64xf32>
    %c0_8 = arith.constant 0 : index
    %c0_9 = arith.constant 0 : index
    %21 = vector.load %arg3[%c0_8, %c0_9] : memref<8x1xf32, #tpu.memory_space<vmem>>, vector<8x1xf32>
    %22 = vector.broadcast %21 : vector<8x1xf32> to vector<8x64xf32>
    %23 = arith.mulf %20, %22 : vector<8x64xf32>
    %c0_10 = arith.constant 0 : index
    %c0_11 = arith.constant 0 : index
    %24 = vector.load %arg4[%c0_10, %c0_11] : memref<8x1xf32, #tpu.memory_space<vmem>>, vector<8x1xf32>
    %25 = vector.broadcast %24 : vector<8x1xf32> to vector<8x64xf32>
    %26 = arith.addf %23, %25 : vector<8x64xf32>
    %cst_12 = arith.constant 0.000000e+00 : f32
    %27 = vector.broadcast %cst_12 : f32 to vector<8x64xf32>
    %28 = arith.maximumf %26, %27 : vector<8x64xf32>
    %c0_13 = arith.constant 0 : index
    %c0_14 = arith.constant 0 : index
    %29 = vector.load %arg5[%c0_13, %c0_14] : memref<8x64xf32, #tpu.memory_space<vmem>>, vector<8x64xf32>
    tpu.vector_store %arg5[%c0_13, %c0_14], %28 {strides = array<i32>} : memref<8x64xf32, #tpu.memory_space<vmem>>, vector<8x64xf32>,
    return
  }
  func.func @transform_0(%arg0: i32) -> (i32, i32) {
    %c0_i32 = arith.constant 0 : i32
    %c0_i32_0 = arith.constant 0 : i32
    %c0_i32_1 = arith.constant 0 : i32
    return %c0_i32, %c0_i32_0 : i32, i32
  }
  func.func @transform_1(%arg0: i32) -> (i32, i32) {
    %c0_i32 = arith.constant 0 : i32
    %c0_i32_0 = arith.constant 0 : i32
    %c0_i32_1 = arith.constant 0 : i32
    return %c0_i32, %c0_i32_0 : i32, i32
  }
  func.func @transform_2(%arg0: i32) -> (i32, i32) {
    %c0_i32 = arith.constant 0 : i32
    %c0_i32_0 = arith.constant 0 : i32
    %c0_i32_1 = arith.constant 0 : i32
    return %c0_i32, %c0_i32_0 : i32, i32
  }
  func.func @transform_3(%arg0: i32) -> (i32, i32) {
    %c0_i32 = arith.constant 0 : i32
    %c0_i32_0 = arith.constant 0 : i32
    %c0_i32_1 = arith.constant 0 : i32
    return %c0_i32, %c0_i32_0 : i32, i32
  }
  func.func @transform_4(%arg0: i32) -> (i32, i32) {
    %c0_i32 = arith.constant 0 : i32
    %c0_i32_0 = arith.constant 0 : i32
    %c0_i32_1 = arith.constant 0 : i32
    return %c0_i32, %c0_i32_0 : i32, i32
  }
}

module attributes {stable_mosaic.version = 11 : i64} {
  func.func @kernel(%arg0: i32, %arg1: memref<16x72xbf16, #tpu.memory_space<vmem>>, %arg2: memref<72x16xbf16, #tpu.memory_space<vmem>>, %arg3: memref<16x1xf32, #tpu.memory_space<vmem>>, %arg4: memref<16x1xf32, #tpu.memory_space<vmem>>, %arg5: memref<16x16xf32, #tpu.memory_space<vmem>>) attributes {dimension_semantics = [#tpu.dimension_semantics<arbitrary>], iteration_bounds = array<i64: 1>, scalar_prefetch = 0 : i64, scratch_operands = 0 : i64, tpu.core_type = #tpu.core_type<tc>, window_params = [{pipeline_mode = #tpu.pipeline_mode<synchronous>, transform_indices = @transform_0, window_bounds = array<i64: 16, 72>}, {pipeline_mode = #tpu.pipeline_mode<synchronous>, transform_indices = @transform_1, window_bounds = array<i64: 72, 16>}, {pipeline_mode = #tpu.pipeline_mode<synchronous>, transform_indices = @transform_2, window_bounds = array<i64: 16, 1>}, {pipeline_mode = #tpu.pipeline_mode<synchronous>, transform_indices = @transform_3, window_bounds = array<i64: 16, 1>}, {pipeline_mode = #tpu.pipeline_mode<synchronous>, transform_indices = @transform_4, window_bounds = array<i64: 16, 16>}]} {
    %c0 = arith.constant 0 : index
    %c0_0 = arith.constant 0 : index
    %0 = vector.load %arg1[%c0, %c0_0] : memref<16x72xbf16, #tpu.memory_space<vmem>>, vector<16x72xbf16>
    %c0_1 = arith.constant 0 : index
    %c0_2 = arith.constant 0 : index
    %1 = vector.load %arg2[%c0_1, %c0_2] : memref<72x16xbf16, #tpu.memory_space<vmem>>, vector<72x16xbf16>
    %cst = arith.constant dense<0.000000e+00> : vector<16x16xf32>
    %2 = tpu.matmul %0, %1, %cst {dimension_numbers = #tpu.dot_dimension_numbers<[1], [0], [0], [1], [0, 0, 1, 1], [], []>} : vector<16x72xbf16>, vector<72x16xbf16>, vector<16x16xf32> -> vector<16x16xf32>
    %cst_3 = arith.constant dense<0.000000e+00> : vector<16xf32>
    %3 = vector.multi_reduction <add>, %2, %cst_3 [1] : vector<16x16xf32> to vector<16xf32>
    %4 = vector.shape_cast %3 : vector<16xf32> to vector<16x1xf32>
    %cst_4 = arith.constant 1.600000e+01 : f32
    %5 = vector.broadcast %cst_4 : f32 to vector<16x1xf32>
    %6 = arith.divf %4, %5 : vector<16x1xf32>
    %7 = vector.broadcast %6 : vector<16x1xf32> to vector<16x16xf32>
    %8 = arith.subf %2, %7 : vector<16x16xf32>
    %9 = arith.mulf %8, %8 : vector<16x16xf32>
    %cst_5 = arith.constant dense<0.000000e+00> : vector<16xf32>
    %10 = vector.multi_reduction <add>, %9, %cst_5 [1] : vector<16x16xf32> to vector<16xf32>
    %11 = vector.shape_cast %10 : vector<16xf32> to vector<16x1xf32>
    %cst_6 = arith.constant 1.600000e+01 : f32
    %12 = vector.broadcast %cst_6 : f32 to vector<16x1xf32>
    %13 = arith.divf %11, %12 : vector<16x1xf32>
    %14 = vector.broadcast %6 : vector<16x1xf32> to vector<16x16xf32>
    %15 = arith.subf %2, %14 : vector<16x16xf32>
    %cst_7 = arith.constant 9.99999974E-6 : f32
    %16 = vector.broadcast %cst_7 : f32 to vector<16x1xf32>
    %17 = arith.addf %13, %16 : vector<16x1xf32>
    %18 = math.rsqrt %17 : vector<16x1xf32>
    %19 = vector.broadcast %18 : vector<16x1xf32> to vector<16x16xf32>
    %20 = arith.mulf %15, %19 : vector<16x16xf32>
    %c0_8 = arith.constant 0 : index
    %c0_9 = arith.constant 0 : index
    %21 = vector.load %arg3[%c0_8, %c0_9] : memref<16x1xf32, #tpu.memory_space<vmem>>, vector<16x1xf32>
    %22 = vector.broadcast %21 : vector<16x1xf32> to vector<16x16xf32>
    %23 = arith.mulf %20, %22 : vector<16x16xf32>
    %c0_10 = arith.constant 0 : index
    %c0_11 = arith.constant 0 : index
    %24 = vector.load %arg4[%c0_10, %c0_11] : memref<16x1xf32, #tpu.memory_space<vmem>>, vector<16x1xf32>
    %25 = vector.broadcast %24 : vector<16x1xf32> to vector<16x16xf32>
    %26 = arith.addf %23, %25 : vector<16x16xf32>
    %cst_12 = arith.constant 0.000000e+00 : f32
    %27 = vector.broadcast %cst_12 : f32 to vector<16x16xf32>
    %28 = arith.maximumf %26, %27 : vector<16x16xf32>
    %c0_13 = arith.constant 0 : index
    %c0_14 = arith.constant 0 : index
    %29 = vector.load %arg5[%c0_13, %c0_14] : memref<16x16xf32, #tpu.memory_space<vmem>>, vector<16x16xf32>
    tpu.vector_store %arg5[%c0_13, %c0_14], %28 {strides = array<i32>} : memref<16x16xf32, #tpu.memory_space<vmem>>, vector<16x16xf32>,
    return
  }
  func.func @transform_0(%arg0: i32) -> (i32, i32) {
    %c0_i32 = arith.constant 0 : i32
    %c0_i32_0 = arith.constant 0 : i32
    %c0_i32_1 = arith.constant 0 : i32
    return %c0_i32, %c0_i32_0 : i32, i32
  }
  func.func @transform_1(%arg0: i32) -> (i32, i32) {
    %c0_i32 = arith.constant 0 : i32
    %c0_i32_0 = arith.constant 0 : i32
    %c0_i32_1 = arith.constant 0 : i32
    return %c0_i32, %c0_i32_0 : i32, i32
  }
  func.func @transform_2(%arg0: i32) -> (i32, i32) {
    %c0_i32 = arith.constant 0 : i32
    %c0_i32_0 = arith.constant 0 : i32
    %c0_i32_1 = arith.constant 0 : i32
    return %c0_i32, %c0_i32_0 : i32, i32
  }
  func.func @transform_3(%arg0: i32) -> (i32, i32) {
    %c0_i32 = arith.constant 0 : i32
    %c0_i32_0 = arith.constant 0 : i32
    %c0_i32_1 = arith.constant 0 : i32
    return %c0_i32, %c0_i32_0 : i32, i32
  }
  func.func @transform_4(%arg0: i32) -> (i32, i32) {
    %c0_i32 = arith.constant 0 : i32
    %c0_i32_0 = arith.constant 0 : i32
    %c0_i32_1 = arith.constant 0 : i32
    return %c0_i32, %c0_i32_0 : i32, i32
  }
}

module attributes {stable_mosaic.version = 11 : i64} {
  func.func @kernel(%arg0: i32, %arg1: memref<16x144xbf16, #tpu.memory_space<vmem>>, %arg2: memref<144x16xbf16, #tpu.memory_space<vmem>>, %arg3: memref<16x1xf32, #tpu.memory_space<vmem>>, %arg4: memref<16x1xf32, #tpu.memory_space<vmem>>, %arg5: memref<16x16xf32, #tpu.memory_space<vmem>>) attributes {dimension_semantics = [#tpu.dimension_semantics<arbitrary>], iteration_bounds = array<i64: 1>, scalar_prefetch = 0 : i64, scratch_operands = 0 : i64, tpu.core_type = #tpu.core_type<tc>, window_params = [{pipeline_mode = #tpu.pipeline_mode<synchronous>, transform_indices = @transform_0, window_bounds = array<i64: 16, 144>}, {pipeline_mode = #tpu.pipeline_mode<synchronous>, transform_indices = @transform_1, window_bounds = array<i64: 144, 16>}, {pipeline_mode = #tpu.pipeline_mode<synchronous>, transform_indices = @transform_2, window_bounds = array<i64: 16, 1>}, {pipeline_mode = #tpu.pipeline_mode<synchronous>, transform_indices = @transform_3, window_bounds = array<i64: 16, 1>}, {pipeline_mode = #tpu.pipeline_mode<synchronous>, transform_indices = @transform_4, window_bounds = array<i64: 16, 16>}]} {
    %c0 = arith.constant 0 : index
    %c0_0 = arith.constant 0 : index
    %0 = vector.load %arg1[%c0, %c0_0] : memref<16x144xbf16, #tpu.memory_space<vmem>>, vector<16x144xbf16>
    %c0_1 = arith.constant 0 : index
    %c0_2 = arith.constant 0 : index
    %1 = vector.load %arg2[%c0_1, %c0_2] : memref<144x16xbf16, #tpu.memory_space<vmem>>, vector<144x16xbf16>
    %cst = arith.constant dense<0.000000e+00> : vector<16x16xf32>
    %2 = tpu.matmul %0, %1, %cst {dimension_numbers = #tpu.dot_dimension_numbers<[1], [0], [0], [1], [0, 0, 1, 1], [], []>} : vector<16x144xbf16>, vector<144x16xbf16>, vector<16x16xf32> -> vector<16x16xf32>
    %cst_3 = arith.constant dense<0.000000e+00> : vector<16xf32>
    %3 = vector.multi_reduction <add>, %2, %cst_3 [1] : vector<16x16xf32> to vector<16xf32>
    %4 = vector.shape_cast %3 : vector<16xf32> to vector<16x1xf32>
    %cst_4 = arith.constant 1.600000e+01 : f32
    %5 = vector.broadcast %cst_4 : f32 to vector<16x1xf32>
    %6 = arith.divf %4, %5 : vector<16x1xf32>
    %7 = vector.broadcast %6 : vector<16x1xf32> to vector<16x16xf32>
    %8 = arith.subf %2, %7 : vector<16x16xf32>
    %9 = arith.mulf %8, %8 : vector<16x16xf32>
    %cst_5 = arith.constant dense<0.000000e+00> : vector<16xf32>
    %10 = vector.multi_reduction <add>, %9, %cst_5 [1] : vector<16x16xf32> to vector<16xf32>
    %11 = vector.shape_cast %10 : vector<16xf32> to vector<16x1xf32>
    %cst_6 = arith.constant 1.600000e+01 : f32
    %12 = vector.broadcast %cst_6 : f32 to vector<16x1xf32>
    %13 = arith.divf %11, %12 : vector<16x1xf32>
    %14 = vector.broadcast %6 : vector<16x1xf32> to vector<16x16xf32>
    %15 = arith.subf %2, %14 : vector<16x16xf32>
    %cst_7 = arith.constant 9.99999974E-6 : f32
    %16 = vector.broadcast %cst_7 : f32 to vector<16x1xf32>
    %17 = arith.addf %13, %16 : vector<16x1xf32>
    %18 = math.rsqrt %17 : vector<16x1xf32>
    %19 = vector.broadcast %18 : vector<16x1xf32> to vector<16x16xf32>
    %20 = arith.mulf %15, %19 : vector<16x16xf32>
    %c0_8 = arith.constant 0 : index
    %c0_9 = arith.constant 0 : index
    %21 = vector.load %arg3[%c0_8, %c0_9] : memref<16x1xf32, #tpu.memory_space<vmem>>, vector<16x1xf32>
    %22 = vector.broadcast %21 : vector<16x1xf32> to vector<16x16xf32>
    %23 = arith.mulf %20, %22 : vector<16x16xf32>
    %c0_10 = arith.constant 0 : index
    %c0_11 = arith.constant 0 : index
    %24 = vector.load %arg4[%c0_10, %c0_11] : memref<16x1xf32, #tpu.memory_space<vmem>>, vector<16x1xf32>
    %25 = vector.broadcast %24 : vector<16x1xf32> to vector<16x16xf32>
    %26 = arith.addf %23, %25 : vector<16x16xf32>
    %cst_12 = arith.constant 0.000000e+00 : f32
    %27 = vector.broadcast %cst_12 : f32 to vector<16x16xf32>
    %28 = arith.maximumf %26, %27 : vector<16x16xf32>
    %c0_13 = arith.constant 0 : index
    %c0_14 = arith.constant 0 : index
    %29 = vector.load %arg5[%c0_13, %c0_14] : memref<16x16xf32, #tpu.memory_space<vmem>>, vector<16x16xf32>
    tpu.vector_store %arg5[%c0_13, %c0_14], %28 {strides = array<i32>} : memref<16x16xf32, #tpu.memory_space<vmem>>, vector<16x16xf32>,
    return
  }
  func.func @transform_0(%arg0: i32) -> (i32, i32) {
    %c0_i32 = arith.constant 0 : i32
    %c0_i32_0 = arith.constant 0 : i32
    %c0_i32_1 = arith.constant 0 : i32
    return %c0_i32, %c0_i32_0 : i32, i32
  }
  func.func @transform_1(%arg0: i32) -> (i32, i32) {
    %c0_i32 = arith.constant 0 : i32
    %c0_i32_0 = arith.constant 0 : i32
    %c0_i32_1 = arith.constant 0 : i32
    return %c0_i32, %c0_i32_0 : i32, i32
  }
  func.func @transform_2(%arg0: i32) -> (i32, i32) {
    %c0_i32 = arith.constant 0 : i32
    %c0_i32_0 = arith.constant 0 : i32
    %c0_i32_1 = arith.constant 0 : i32
    return %c0_i32, %c0_i32_0 : i32, i32
  }
  func.func @transform_3(%arg0: i32) -> (i32, i32) {
    %c0_i32 = arith.constant 0 : i32
    %c0_i32_0 = arith.constant 0 : i32
    %c0_i32_1 = arith.constant 0 : i32
    return %c0_i32, %c0_i32_0 : i32, i32
  }
  func.func @transform_4(%arg0: i32) -> (i32, i32) {
    %c0_i32 = arith.constant 0 : i32
    %c0_i32_0 = arith.constant 0 : i32
    %c0_i32_1 = arith.constant 0 : i32
    return %c0_i32, %c0_i32_0 : i32, i32
  }
}

module attributes {stable_mosaic.version = 11 : i64} {
  func.func @kernel(%arg0: i32, %arg1: memref<32x144xbf16, #tpu.memory_space<vmem>>, %arg2: memref<144x16xbf16, #tpu.memory_space<vmem>>, %arg3: memref<32x1xf32, #tpu.memory_space<vmem>>, %arg4: memref<32x16xf32, #tpu.memory_space<vmem>>) attributes {dimension_semantics = [#tpu.dimension_semantics<arbitrary>], iteration_bounds = array<i64: 1>, scalar_prefetch = 0 : i64, scratch_operands = 0 : i64, tpu.core_type = #tpu.core_type<tc>, window_params = [{pipeline_mode = #tpu.pipeline_mode<synchronous>, transform_indices = @transform_0, window_bounds = array<i64: 32, 144>}, {pipeline_mode = #tpu.pipeline_mode<synchronous>, transform_indices = @transform_1, window_bounds = array<i64: 144, 16>}, {pipeline_mode = #tpu.pipeline_mode<synchronous>, transform_indices = @transform_2, window_bounds = array<i64: 32, 1>}, {pipeline_mode = #tpu.pipeline_mode<synchronous>, transform_indices = @transform_3, window_bounds = array<i64: 32, 16>}]} {
    %c0 = arith.constant 0 : index
    %c0_0 = arith.constant 0 : index
    %0 = vector.load %arg1[%c0, %c0_0] : memref<32x144xbf16, #tpu.memory_space<vmem>>, vector<32x144xbf16>
    %c0_1 = arith.constant 0 : index
    %c0_2 = arith.constant 0 : index
    %1 = vector.load %arg2[%c0_1, %c0_2] : memref<144x16xbf16, #tpu.memory_space<vmem>>, vector<144x16xbf16>
    %cst = arith.constant dense<0.000000e+00> : vector<32x16xf32>
    %2 = tpu.matmul %0, %1, %cst {dimension_numbers = #tpu.dot_dimension_numbers<[1], [0], [0], [1], [0, 0, 1, 1], [], []>} : vector<32x144xbf16>, vector<144x16xbf16>, vector<32x16xf32> -> vector<32x16xf32>
    %c0_3 = arith.constant 0 : index
    %c0_4 = arith.constant 0 : index
    %3 = vector.load %arg3[%c0_3, %c0_4] : memref<32x1xf32, #tpu.memory_space<vmem>>, vector<32x1xf32>
    %4 = vector.broadcast %3 : vector<32x1xf32> to vector<32x16xf32>
    %5 = arith.addf %2, %4 : vector<32x16xf32>
    %cst_5 = arith.constant 0.000000e+00 : f32
    %6 = vector.broadcast %cst_5 : f32 to vector<32x16xf32>
    %7 = arith.maximumf %5, %6 : vector<32x16xf32>
    %c0_6 = arith.constant 0 : index
    %c0_7 = arith.constant 0 : index
    %8 = vector.load %arg4[%c0_6, %c0_7] : memref<32x16xf32, #tpu.memory_space<vmem>>, vector<32x16xf32>
    tpu.vector_store %arg4[%c0_6, %c0_7], %7 {strides = array<i32>} : memref<32x16xf32, #tpu.memory_space<vmem>>, vector<32x16xf32>,
    return
  }
  func.func @transform_0(%arg0: i32) -> (i32, i32) {
    %c0_i32 = arith.constant 0 : i32
    %c0_i32_0 = arith.constant 0 : i32
    %c0_i32_1 = arith.constant 0 : i32
    return %c0_i32, %c0_i32_0 : i32, i32
  }
  func.func @transform_1(%arg0: i32) -> (i32, i32) {
    %c0_i32 = arith.constant 0 : i32
    %c0_i32_0 = arith.constant 0 : i32
    %c0_i32_1 = arith.constant 0 : i32
    return %c0_i32, %c0_i32_0 : i32, i32
  }
  func.func @transform_2(%arg0: i32) -> (i32, i32) {
    %c0_i32 = arith.constant 0 : i32
    %c0_i32_0 = arith.constant 0 : i32
    %c0_i32_1 = arith.constant 0 : i32
    return %c0_i32, %c0_i32_0 : i32, i32
  }
  func.func @transform_3(%arg0: i32) -> (i32, i32) {
    %c0_i32 = arith.constant 0 : i32
    %c0_i32_0 = arith.constant 0 : i32
    %c0_i32_1 = arith.constant 0 : i32
    return %c0_i32, %c0_i32_0 : i32, i32
  }
}

module attributes {stable_mosaic.version = 11 : i64} {
  func.func @kernel(%arg0: i32, %arg1: memref<16x288xbf16, #tpu.memory_space<vmem>>, %arg2: memref<288x16xbf16, #tpu.memory_space<vmem>>, %arg3: memref<16x1xf32, #tpu.memory_space<vmem>>, %arg4: memref<16x16xf32, #tpu.memory_space<vmem>>) attributes {dimension_semantics = [#tpu.dimension_semantics<arbitrary>], iteration_bounds = array<i64: 1>, scalar_prefetch = 0 : i64, scratch_operands = 0 : i64, tpu.core_type = #tpu.core_type<tc>, window_params = [{pipeline_mode = #tpu.pipeline_mode<synchronous>, transform_indices = @transform_0, window_bounds = array<i64: 16, 288>}, {pipeline_mode = #tpu.pipeline_mode<synchronous>, transform_indices = @transform_1, window_bounds = array<i64: 288, 16>}, {pipeline_mode = #tpu.pipeline_mode<synchronous>, transform_indices = @transform_2, window_bounds = array<i64: 16, 1>}, {pipeline_mode = #tpu.pipeline_mode<synchronous>, transform_indices = @transform_3, window_bounds = array<i64: 16, 16>}]} {
    %c0 = arith.constant 0 : index
    %c0_0 = arith.constant 0 : index
    %0 = vector.load %arg1[%c0, %c0_0] : memref<16x288xbf16, #tpu.memory_space<vmem>>, vector<16x288xbf16>
    %c0_1 = arith.constant 0 : index
    %c0_2 = arith.constant 0 : index
    %1 = vector.load %arg2[%c0_1, %c0_2] : memref<288x16xbf16, #tpu.memory_space<vmem>>, vector<288x16xbf16>
    %cst = arith.constant dense<0.000000e+00> : vector<16x16xf32>
    %2 = tpu.matmul %0, %1, %cst {dimension_numbers = #tpu.dot_dimension_numbers<[1], [0], [0], [1], [0, 0, 1, 1], [], []>} : vector<16x288xbf16>, vector<288x16xbf16>, vector<16x16xf32> -> vector<16x16xf32>
    %c0_3 = arith.constant 0 : index
    %c0_4 = arith.constant 0 : index
    %3 = vector.load %arg3[%c0_3, %c0_4] : memref<16x1xf32, #tpu.memory_space<vmem>>, vector<16x1xf32>
    %4 = vector.broadcast %3 : vector<16x1xf32> to vector<16x16xf32>
    %5 = arith.addf %2, %4 : vector<16x16xf32>
    %cst_5 = arith.constant 0.000000e+00 : f32
    %6 = vector.broadcast %cst_5 : f32 to vector<16x16xf32>
    %7 = arith.maximumf %5, %6 : vector<16x16xf32>
    %c0_6 = arith.constant 0 : index
    %c0_7 = arith.constant 0 : index
    %8 = vector.load %arg4[%c0_6, %c0_7] : memref<16x16xf32, #tpu.memory_space<vmem>>, vector<16x16xf32>
    tpu.vector_store %arg4[%c0_6, %c0_7], %7 {strides = array<i32>} : memref<16x16xf32, #tpu.memory_space<vmem>>, vector<16x16xf32>,
    return
  }
  func.func @transform_0(%arg0: i32) -> (i32, i32) {
    %c0_i32 = arith.constant 0 : i32
    %c0_i32_0 = arith.constant 0 : i32
    %c0_i32_1 = arith.constant 0 : i32
    return %c0_i32, %c0_i32_0 : i32, i32
  }
  func.func @transform_1(%arg0: i32) -> (i32, i32) {
    %c0_i32 = arith.constant 0 : i32
    %c0_i32_0 = arith.constant 0 : i32
    %c0_i32_1 = arith.constant 0 : i32
    return %c0_i32, %c0_i32_0 : i32, i32
  }
  func.func @transform_2(%arg0: i32) -> (i32, i32) {
    %c0_i32 = arith.constant 0 : i32
    %c0_i32_0 = arith.constant 0 : i32
    %c0_i32_1 = arith.constant 0 : i32
    return %c0_i32, %c0_i32_0 : i32, i32
  }
  func.func @transform_3(%arg0: i32) -> (i32, i32) {
    %c0_i32 = arith.constant 0 : i32
    %c0_i32_0 = arith.constant 0 : i32
    %c0_i32_1 = arith.constant 0 : i32
    return %c0_i32, %c0_i32_0 : i32, i32
  }
}

module attributes {stable_mosaic.version = 11 : i64} {
  func.func @kernel(%arg0: i32, %arg1: memref<1x8x16xbf16, #tpu.memory_space<vmem>>, %arg2: memref<1x8x16xbf16, #tpu.memory_space<vmem>>, %arg3: memref<4x16x4xbf16, #tpu.memory_space<vmem>>, %arg4: memref<4x16x4xbf16, #tpu.memory_space<vmem>>, %arg5: memref<4x16x4xbf16, #tpu.memory_space<vmem>>, %arg6: memref<4x1x4xf32, #tpu.memory_space<vmem>>, %arg7: memref<4x1x4xf32, #tpu.memory_space<vmem>>, %arg8: memref<4x1x4xf32, #tpu.memory_space<vmem>>, %arg9: memref<4x4x16xbf16, #tpu.memory_space<vmem>>, %arg10: memref<1x16xf32, #tpu.memory_space<vmem>>, %arg11: memref<1x8x16xf32, #tpu.memory_space<vmem>>) attributes {dimension_semantics = [#tpu.dimension_semantics<parallel>], iteration_bounds = array<i64: 2>, scalar_prefetch = 0 : i64, scratch_operands = 0 : i64, tpu.core_type = #tpu.core_type<tc>, window_params = [{transform_indices = @transform_0, window_bounds = array<i64: 1, 8, 16>}, {transform_indices = @transform_1, window_bounds = array<i64: 1, 8, 16>}, {pipeline_mode = #tpu.pipeline_mode<synchronous>, transform_indices = @transform_2, window_bounds = array<i64: 4, 16, 4>}, {pipeline_mode = #tpu.pipeline_mode<synchronous>, transform_indices = @transform_3, window_bounds = array<i64: 4, 16, 4>}, {pipeline_mode = #tpu.pipeline_mode<synchronous>, transform_indices = @transform_4, window_bounds = array<i64: 4, 16, 4>}, {pipeline_mode = #tpu.pipeline_mode<synchronous>, transform_indices = @transform_5, window_bounds = array<i64: 4, 1, 4>}, {pipeline_mode = #tpu.pipeline_mode<synchronous>, transform_indices = @transform_6, window_bounds = array<i64: 4, 1, 4>}, {pipeline_mode = #tpu.pipeline_mode<synchronous>, transform_indices = @transform_7, window_bounds = array<i64: 4, 1, 4>}, {pipeline_mode = #tpu.pipeline_mode<synchronous>, transform_indices = @transform_8, window_bounds = array<i64: 4, 4, 16>}, {pipeline_mode = #tpu.pipeline_mode<synchronous>, transform_indices = @transform_9, window_bounds = array<i64: 1, 16>}, {transform_indices = @transform_10, window_bounds = array<i64: 1, 8, 16>}]} {
    %c0 = arith.constant 0 : index
    %c0_0 = arith.constant 0 : index
    %c0_1 = arith.constant 0 : index
    %0 = vector.load %arg1[%c0, %c0_0, %c0_1] : memref<1x8x16xbf16, #tpu.memory_space<vmem>>, vector<1x8x16xbf16>
    %1 = vector.shape_cast %0 : vector<1x8x16xbf16> to vector<8x16xbf16>
    %c0_2 = arith.constant 0 : index
    %c0_3 = arith.constant 0 : index
    %c0_4 = arith.constant 0 : index
    %2 = vector.load %arg2[%c0_2, %c0_3, %c0_4] : memref<1x8x16xbf16, #tpu.memory_space<vmem>>, vector<1x8x16xbf16>
    %3 = vector.shape_cast %2 : vector<1x8x16xbf16> to vector<8x16xbf16>
    %cst = arith.constant 0.000000e+00 : f32
    %4 = vector.broadcast %cst : f32 to vector<8x16xf32>
    %c0_5 = arith.constant 0 : index
    %c0_6 = arith.constant 0 : index
    %5 = vector.load %arg10[%c0_5, %c0_6] : memref<1x16xf32, #tpu.memory_space<vmem>>, vector<1x16xf32>
    %6 = vector.broadcast %5 : vector<1x16xf32> to vector<8x16xf32>
    %7 = arith.addf %4, %6 : vector<8x16xf32>
    %c0_7 = arith.constant 0 : index
    %c0_8 = arith.constant 0 : index
    %c0_9 = arith.constant 0 : index
    %8 = vector.load %arg3[%c0_7, %c0_8, %c0_9] : memref<4x16x4xbf16, #tpu.memory_space<vmem>>, vector<1x16x4xbf16>
    %9 = vector.shape_cast %8 : vector<1x16x4xbf16> to vector<16x4xbf16>
    %cst_10 = arith.constant dense<0.000000e+00> : vector<8x4xf32>
    %10 = tpu.matmul %1, %9, %cst_10 {dimension_numbers = #tpu.dot_dimension_numbers<[1], [0], [0], [1], [0, 0, 1, 1], [], []>} : vector<8x16xbf16>, vector<16x4xbf16>, vector<8x4xf32> -> vector<8x4xf32>
    %c0_11 = arith.constant 0 : index
    %c0_12 = arith.constant 0 : index
    %c0_13 = arith.constant 0 : index
    %11 = vector.load %arg6[%c0_11, %c0_12, %c0_13] : memref<4x1x4xf32, #tpu.memory_space<vmem>>, vector<1x1x4xf32>
    %12 = vector.shape_cast %11 : vector<1x1x4xf32> to vector<1x4xf32>
    %13 = vector.broadcast %12 : vector<1x4xf32> to vector<8x4xf32>
    %14 = arith.addf %10, %13 : vector<8x4xf32>
    %c0_14 = arith.constant 0 : index
    %c0_15 = arith.constant 0 : index
    %c0_16 = arith.constant 0 : index
    %15 = vector.load %arg4[%c0_14, %c0_15, %c0_16] : memref<4x16x4xbf16, #tpu.memory_space<vmem>>, vector<1x16x4xbf16>
    %16 = vector.shape_cast %15 : vector<1x16x4xbf16> to vector<16x4xbf16>
    %cst_17 = arith.constant dense<0.000000e+00> : vector<8x4xf32>
    %17 = tpu.matmul %3, %16, %cst_17 {dimension_numbers = #tpu.dot_dimension_numbers<[1], [0], [0], [1], [0, 0, 1, 1], [], []>} : vector<8x16xbf16>, vector<16x4xbf16>, vector<8x4xf32> -> vector<8x4xf32>
    %c0_18 = arith.constant 0 : index
    %c0_19 = arith.constant 0 : index
    %c0_20 = arith.constant 0 : index
    %18 = vector.load %arg7[%c0_18, %c0_19, %c0_20] : memref<4x1x4xf32, #tpu.memory_space<vmem>>, vector<1x1x4xf32>
    %19 = vector.shape_cast %18 : vector<1x1x4xf32> to vector<1x4xf32>
    %20 = vector.broadcast %19 : vector<1x4xf32> to vector<8x4xf32>
    %21 = arith.addf %17, %20 : vector<8x4xf32>
    %c0_21 = arith.constant 0 : index
    %c0_22 = arith.constant 0 : index
    %c0_23 = arith.constant 0 : index
    %22 = vector.load %arg5[%c0_21, %c0_22, %c0_23] : memref<4x16x4xbf16, #tpu.memory_space<vmem>>, vector<1x16x4xbf16>
    %23 = vector.shape_cast %22 : vector<1x16x4xbf16> to vector<16x4xbf16>
    %cst_24 = arith.constant dense<0.000000e+00> : vector<8x4xf32>
    %24 = tpu.matmul %3, %23, %cst_24 {dimension_numbers = #tpu.dot_dimension_numbers<[1], [0], [0], [1], [0, 0, 1, 1], [], []>} : vector<8x16xbf16>, vector<16x4xbf16>, vector<8x4xf32> -> vector<8x4xf32>
    %c0_25 = arith.constant 0 : index
    %c0_26 = arith.constant 0 : index
    %c0_27 = arith.constant 0 : index
    %25 = vector.load %arg8[%c0_25, %c0_26, %c0_27] : memref<4x1x4xf32, #tpu.memory_space<vmem>>, vector<1x1x4xf32>
    %26 = vector.shape_cast %25 : vector<1x1x4xf32> to vector<1x4xf32>
    %27 = vector.broadcast %26 : vector<1x4xf32> to vector<8x4xf32>
    %28 = arith.addf %24, %27 : vector<8x4xf32>
    %29 = arith.truncf %14 : vector<8x4xf32> to vector<8x4xbf16>
    %30 = arith.truncf %21 : vector<8x4xf32> to vector<8x4xbf16>
    %cst_28 = arith.constant dense<0.000000e+00> : vector<8x8xf32>
    %31 = tpu.matmul %29, %30, %cst_28 {dimension_numbers = #tpu.dot_dimension_numbers<[1], [1], [0], [0], [0, 0, 1, 0], [], []>} : vector<8x4xbf16>, vector<8x4xbf16>, vector<8x8xf32> -> vector<8x8xf32>
    %cst_29 = arith.constant 5.000000e-01 : f32
    %32 = vector.broadcast %cst_29 : f32 to vector<8x8xf32>
    %33 = arith.mulf %31, %32 : vector<8x8xf32>
    %cst_30 = arith.constant dense<0xFF800000> : vector<8xf32>
    %34 = vector.multi_reduction <maximumf>, %33, %cst_30 [1] : vector<8x8xf32> to vector<8xf32>
    %35 = vector.shape_cast %34 : vector<8xf32> to vector<8x1xf32>
    %36 = vector.broadcast %35 : vector<8x1xf32> to vector<8x8xf32>
    %37 = arith.subf %33, %36 : vector<8x8xf32>
    %38 = math.exp %37 : vector<8x8xf32>
    %cst_31 = arith.constant dense<0.000000e+00> : vector<8xf32>
    %39 = vector.multi_reduction <add>, %38, %cst_31 [1] : vector<8x8xf32> to vector<8xf32>
    %40 = vector.shape_cast %39 : vector<8xf32> to vector<8x1xf32>
    %41 = tpu.reciprocal %40 {approx = true} : vector<8x1xf32> -> vector<8x1xf32>
    %42 = vector.broadcast %41 : vector<8x1xf32> to vector<8x8xf32>
    %43 = arith.mulf %38, %42 : vector<8x8xf32>
    %44 = arith.truncf %43 : vector<8x8xf32> to vector<8x8xbf16>
    %45 = arith.truncf %28 : vector<8x4xf32> to vector<8x4xbf16>
    %cst_32 = arith.constant dense<0.000000e+00> : vector<8x4xf32>
    %46 = tpu.matmul %44, %45, %cst_32 {dimension_numbers = #tpu.dot_dimension_numbers<[1], [0], [0], [1], [0, 0, 1, 1], [], []>} : vector<8x8xbf16>, vector<8x4xbf16>, vector<8x4xf32> -> vector<8x4xf32>
    %47 = arith.truncf %46 : vector<8x4xf32> to vector<8x4xbf16>
    %c0_33 = arith.constant 0 : index
    %c0_34 = arith.constant 0 : index
    %c0_35 = arith.constant 0 : index
    %48 = vector.load %arg9[%c0_33, %c0_34, %c0_35] : memref<4x4x16xbf16, #tpu.memory_space<vmem>>, vector<1x4x16xbf16>
    %49 = vector.shape_cast %48 : vector<1x4x16xbf16> to vector<4x16xbf16>
    %cst_36 = arith.constant dense<0.000000e+00> : vector<8x16xf32>
    %50 = tpu.matmul %47, %49, %cst_36 {dimension_numbers = #tpu.dot_dimension_numbers<[1], [0], [0], [1], [0, 0, 1, 1], [], []>} : vector<8x4xbf16>, vector<4x16xbf16>, vector<8x16xf32> -> vector<8x16xf32>
    %51 = arith.addf %7, %50 : vector<8x16xf32>
    %c1 = arith.constant 1 : index
    %c0_37 = arith.constant 0 : index
    %c0_38 = arith.constant 0 : index
    %52 = vector.load %arg3[%c1, %c0_37, %c0_38] : memref<4x16x4xbf16, #tpu.memory_space<vmem>>, vector<1x16x4xbf16>
    %53 = vector.shape_cast %52 : vector<1x16x4xbf16> to vector<16x4xbf16>
    %cst_39 = arith.constant dense<0.000000e+00> : vector<8x4xf32>
    %54 = tpu.matmul %1, %53, %cst_39 {dimension_numbers = #tpu.dot_dimension_numbers<[1], [0], [0], [1], [0, 0, 1, 1], [], []>} : vector<8x16xbf16>, vector<16x4xbf16>, vector<8x4xf32> -> vector<8x4xf32>
    %c1_40 = arith.constant 1 : index
    %c0_41 = arith.constant 0 : index
    %c0_42 = arith.constant 0 : index
    %55 = vector.load %arg6[%c1_40, %c0_41, %c0_42] : memref<4x1x4xf32, #tpu.memory_space<vmem>>, vector<1x1x4xf32>
    %56 = vector.shape_cast %55 : vector<1x1x4xf32> to vector<1x4xf32>
    %57 = vector.broadcast %56 : vector<1x4xf32> to vector<8x4xf32>
    %58 = arith.addf %54, %57 : vector<8x4xf32>
    %c1_43 = arith.constant 1 : index
    %c0_44 = arith.constant 0 : index
    %c0_45 = arith.constant 0 : index
    %59 = vector.load %arg4[%c1_43, %c0_44, %c0_45] : memref<4x16x4xbf16, #tpu.memory_space<vmem>>, vector<1x16x4xbf16>
    %60 = vector.shape_cast %59 : vector<1x16x4xbf16> to vector<16x4xbf16>
    %cst_46 = arith.constant dense<0.000000e+00> : vector<8x4xf32>
    %61 = tpu.matmul %3, %60, %cst_46 {dimension_numbers = #tpu.dot_dimension_numbers<[1], [0], [0], [1], [0, 0, 1, 1], [], []>} : vector<8x16xbf16>, vector<16x4xbf16>, vector<8x4xf32> -> vector<8x4xf32>
    %c1_47 = arith.constant 1 : index
    %c0_48 = arith.constant 0 : index
    %c0_49 = arith.constant 0 : index
    %62 = vector.load %arg7[%c1_47, %c0_48, %c0_49] : memref<4x1x4xf32, #tpu.memory_space<vmem>>, vector<1x1x4xf32>
    %63 = vector.shape_cast %62 : vector<1x1x4xf32> to vector<1x4xf32>
    %64 = vector.broadcast %63 : vector<1x4xf32> to vector<8x4xf32>
    %65 = arith.addf %61, %64 : vector<8x4xf32>
    %c1_50 = arith.constant 1 : index
    %c0_51 = arith.constant 0 : index
    %c0_52 = arith.constant 0 : index
    %66 = vector.load %arg5[%c1_50, %c0_51, %c0_52] : memref<4x16x4xbf16, #tpu.memory_space<vmem>>, vector<1x16x4xbf16>
    %67 = vector.shape_cast %66 : vector<1x16x4xbf16> to vector<16x4xbf16>
    %cst_53 = arith.constant dense<0.000000e+00> : vector<8x4xf32>
    %68 = tpu.matmul %3, %67, %cst_53 {dimension_numbers = #tpu.dot_dimension_numbers<[1], [0], [0], [1], [0, 0, 1, 1], [], []>} : vector<8x16xbf16>, vector<16x4xbf16>, vector<8x4xf32> -> vector<8x4xf32>
    %c1_54 = arith.constant 1 : index
    %c0_55 = arith.constant 0 : index
    %c0_56 = arith.constant 0 : index
    %69 = vector.load %arg8[%c1_54, %c0_55, %c0_56] : memref<4x1x4xf32, #tpu.memory_space<vmem>>, vector<1x1x4xf32>
    %70 = vector.shape_cast %69 : vector<1x1x4xf32> to vector<1x4xf32>
    %71 = vector.broadcast %70 : vector<1x4xf32> to vector<8x4xf32>
    %72 = arith.addf %68, %71 : vector<8x4xf32>
    %73 = arith.truncf %58 : vector<8x4xf32> to vector<8x4xbf16>
    %74 = arith.truncf %65 : vector<8x4xf32> to vector<8x4xbf16>
    %cst_57 = arith.constant dense<0.000000e+00> : vector<8x8xf32>
    %75 = tpu.matmul %73, %74, %cst_57 {dimension_numbers = #tpu.dot_dimension_numbers<[1], [1], [0], [0], [0, 0, 1, 0], [], []>} : vector<8x4xbf16>, vector<8x4xbf16>, vector<8x8xf32> -> vector<8x8xf32>
    %cst_58 = arith.constant 5.000000e-01 : f32
    %76 = vector.broadcast %cst_58 : f32 to vector<8x8xf32>
    %77 = arith.mulf %75, %76 : vector<8x8xf32>
    %cst_59 = arith.constant dense<0xFF800000> : vector<8xf32>
    %78 = vector.multi_reduction <maximumf>, %77, %cst_59 [1] : vector<8x8xf32> to vector<8xf32>
    %79 = vector.shape_cast %78 : vector<8xf32> to vector<8x1xf32>
    %80 = vector.broadcast %79 : vector<8x1xf32> to vector<8x8xf32>
    %81 = arith.subf %77, %80 : vector<8x8xf32>
    %82 = math.exp %81 : vector<8x8xf32>
    %cst_60 = arith.constant dense<0.000000e+00> : vector<8xf32>
    %83 = vector.multi_reduction <add>, %82, %cst_60 [1] : vector<8x8xf32> to vector<8xf32>
    %84 = vector.shape_cast %83 : vector<8xf32> to vector<8x1xf32>
    %85 = tpu.reciprocal %84 {approx = true} : vector<8x1xf32> -> vector<8x1xf32>
    %86 = vector.broadcast %85 : vector<8x1xf32> to vector<8x8xf32>
    %87 = arith.mulf %82, %86 : vector<8x8xf32>
    %88 = arith.truncf %87 : vector<8x8xf32> to vector<8x8xbf16>
    %89 = arith.truncf %72 : vector<8x4xf32> to vector<8x4xbf16>
    %cst_61 = arith.constant dense<0.000000e+00> : vector<8x4xf32>
    %90 = tpu.matmul %88, %89, %cst_61 {dimension_numbers = #tpu.dot_dimension_numbers<[1], [0], [0], [1], [0, 0, 1, 1], [], []>} : vector<8x8xbf16>, vector<8x4xbf16>, vector<8x4xf32> -> vector<8x4xf32>
    %91 = arith.truncf %90 : vector<8x4xf32> to vector<8x4xbf16>
    %c1_62 = arith.constant 1 : index
    %c0_63 = arith.constant 0 : index
    %c0_64 = arith.constant 0 : index
    %92 = vector.load %arg9[%c1_62, %c0_63, %c0_64] : memref<4x4x16xbf16, #tpu.memory_space<vmem>>, vector<1x4x16xbf16>
    %93 = vector.shape_cast %92 : vector<1x4x16xbf16> to vector<4x16xbf16>
    %cst_65 = arith.constant dense<0.000000e+00> : vector<8x16xf32>
    %94 = tpu.matmul %91, %93, %cst_65 {dimension_numbers = #tpu.dot_dimension_numbers<[1], [0], [0], [1], [0, 0, 1, 1], [], []>} : vector<8x4xbf16>, vector<4x16xbf16>, vector<8x16xf32> -> vector<8x16xf32>
    %95 = arith.addf %51, %94 : vector<8x16xf32>
    %c2 = arith.constant 2 : index
    %c0_66 = arith.constant 0 : index
    %c0_67 = arith.constant 0 : index
    %96 = vector.load %arg3[%c2, %c0_66, %c0_67] : memref<4x16x4xbf16, #tpu.memory_space<vmem>>, vector<1x16x4xbf16>
    %97 = vector.shape_cast %96 : vector<1x16x4xbf16> to vector<16x4xbf16>
    %cst_68 = arith.constant dense<0.000000e+00> : vector<8x4xf32>
    %98 = tpu.matmul %1, %97, %cst_68 {dimension_numbers = #tpu.dot_dimension_numbers<[1], [0], [0], [1], [0, 0, 1, 1], [], []>} : vector<8x16xbf16>, vector<16x4xbf16>, vector<8x4xf32> -> vector<8x4xf32>
    %c2_69 = arith.constant 2 : index
    %c0_70 = arith.constant 0 : index
    %c0_71 = arith.constant 0 : index
    %99 = vector.load %arg6[%c2_69, %c0_70, %c0_71] : memref<4x1x4xf32, #tpu.memory_space<vmem>>, vector<1x1x4xf32>
    %100 = vector.shape_cast %99 : vector<1x1x4xf32> to vector<1x4xf32>
    %101 = vector.broadcast %100 : vector<1x4xf32> to vector<8x4xf32>
    %102 = arith.addf %98, %101 : vector<8x4xf32>
    %c2_72 = arith.constant 2 : index
    %c0_73 = arith.constant 0 : index
    %c0_74 = arith.constant 0 : index
    %103 = vector.load %arg4[%c2_72, %c0_73, %c0_74] : memref<4x16x4xbf16, #tpu.memory_space<vmem>>, vector<1x16x4xbf16>
    %104 = vector.shape_cast %103 : vector<1x16x4xbf16> to vector<16x4xbf16>
    %cst_75 = arith.constant dense<0.000000e+00> : vector<8x4xf32>
    %105 = tpu.matmul %3, %104, %cst_75 {dimension_numbers = #tpu.dot_dimension_numbers<[1], [0], [0], [1], [0, 0, 1, 1], [], []>} : vector<8x16xbf16>, vector<16x4xbf16>, vector<8x4xf32> -> vector<8x4xf32>
    %c2_76 = arith.constant 2 : index
    %c0_77 = arith.constant 0 : index
    %c0_78 = arith.constant 0 : index
    %106 = vector.load %arg7[%c2_76, %c0_77, %c0_78] : memref<4x1x4xf32, #tpu.memory_space<vmem>>, vector<1x1x4xf32>
    %107 = vector.shape_cast %106 : vector<1x1x4xf32> to vector<1x4xf32>
    %108 = vector.broadcast %107 : vector<1x4xf32> to vector<8x4xf32>
    %109 = arith.addf %105, %108 : vector<8x4xf32>
    %c2_79 = arith.constant 2 : index
    %c0_80 = arith.constant 0 : index
    %c0_81 = arith.constant 0 : index
    %110 = vector.load %arg5[%c2_79, %c0_80, %c0_81] : memref<4x16x4xbf16, #tpu.memory_space<vmem>>, vector<1x16x4xbf16>
    %111 = vector.shape_cast %110 : vector<1x16x4xbf16> to vector<16x4xbf16>
    %cst_82 = arith.constant dense<0.000000e+00> : vector<8x4xf32>
    %112 = tpu.matmul %3, %111, %cst_82 {dimension_numbers = #tpu.dot_dimension_numbers<[1], [0], [0], [1], [0, 0, 1, 1], [], []>} : vector<8x16xbf16>, vector<16x4xbf16>, vector<8x4xf32> -> vector<8x4xf32>
    %c2_83 = arith.constant 2 : index
    %c0_84 = arith.constant 0 : index
    %c0_85 = arith.constant 0 : index
    %113 = vector.load %arg8[%c2_83, %c0_84, %c0_85] : memref<4x1x4xf32, #tpu.memory_space<vmem>>, vector<1x1x4xf32>
    %114 = vector.shape_cast %113 : vector<1x1x4xf32> to vector<1x4xf32>
    %115 = vector.broadcast %114 : vector<1x4xf32> to vector<8x4xf32>
    %116 = arith.addf %112, %115 : vector<8x4xf32>
    %117 = arith.truncf %102 : vector<8x4xf32> to vector<8x4xbf16>
    %118 = arith.truncf %109 : vector<8x4xf32> to vector<8x4xbf16>
    %cst_86 = arith.constant dense<0.000000e+00> : vector<8x8xf32>
    %119 = tpu.matmul %117, %118, %cst_86 {dimension_numbers = #tpu.dot_dimension_numbers<[1], [1], [0], [0], [0, 0, 1, 0], [], []>} : vector<8x4xbf16>, vector<8x4xbf16>, vector<8x8xf32> -> vector<8x8xf32>
    %cst_87 = arith.constant 5.000000e-01 : f32
    %120 = vector.broadcast %cst_87 : f32 to vector<8x8xf32>
    %121 = arith.mulf %119, %120 : vector<8x8xf32>
    %cst_88 = arith.constant dense<0xFF800000> : vector<8xf32>
    %122 = vector.multi_reduction <maximumf>, %121, %cst_88 [1] : vector<8x8xf32> to vector<8xf32>
    %123 = vector.shape_cast %122 : vector<8xf32> to vector<8x1xf32>
    %124 = vector.broadcast %123 : vector<8x1xf32> to vector<8x8xf32>
    %125 = arith.subf %121, %124 : vector<8x8xf32>
    %126 = math.exp %125 : vector<8x8xf32>
    %cst_89 = arith.constant dense<0.000000e+00> : vector<8xf32>
    %127 = vector.multi_reduction <add>, %126, %cst_89 [1] : vector<8x8xf32> to vector<8xf32>
    %128 = vector.shape_cast %127 : vector<8xf32> to vector<8x1xf32>
    %129 = tpu.reciprocal %128 {approx = true} : vector<8x1xf32> -> vector<8x1xf32>
    %130 = vector.broadcast %129 : vector<8x1xf32> to vector<8x8xf32>
    %131 = arith.mulf %126, %130 : vector<8x8xf32>
    %132 = arith.truncf %131 : vector<8x8xf32> to vector<8x8xbf16>
    %133 = arith.truncf %116 : vector<8x4xf32> to vector<8x4xbf16>
    %cst_90 = arith.constant dense<0.000000e+00> : vector<8x4xf32>
    %134 = tpu.matmul %132, %133, %cst_90 {dimension_numbers = #tpu.dot_dimension_numbers<[1], [0], [0], [1], [0, 0, 1, 1], [], []>} : vector<8x8xbf16>, vector<8x4xbf16>, vector<8x4xf32> -> vector<8x4xf32>
    %135 = arith.truncf %134 : vector<8x4xf32> to vector<8x4xbf16>
    %c2_91 = arith.constant 2 : index
    %c0_92 = arith.constant 0 : index
    %c0_93 = arith.constant 0 : index
    %136 = vector.load %arg9[%c2_91, %c0_92, %c0_93] : memref<4x4x16xbf16, #tpu.memory_space<vmem>>, vector<1x4x16xbf16>
    %137 = vector.shape_cast %136 : vector<1x4x16xbf16> to vector<4x16xbf16>
    %cst_94 = arith.constant dense<0.000000e+00> : vector<8x16xf32>
    %138 = tpu.matmul %135, %137, %cst_94 {dimension_numbers = #tpu.dot_dimension_numbers<[1], [0], [0], [1], [0, 0, 1, 1], [], []>} : vector<8x4xbf16>, vector<4x16xbf16>, vector<8x16xf32> -> vector<8x16xf32>
    %139 = arith.addf %95, %138 : vector<8x16xf32>
    %c3 = arith.constant 3 : index
    %c0_95 = arith.constant 0 : index
    %c0_96 = arith.constant 0 : index
    %140 = vector.load %arg3[%c3, %c0_95, %c0_96] : memref<4x16x4xbf16, #tpu.memory_space<vmem>>, vector<1x16x4xbf16>
    %141 = vector.shape_cast %140 : vector<1x16x4xbf16> to vector<16x4xbf16>
    %cst_97 = arith.constant dense<0.000000e+00> : vector<8x4xf32>
    %142 = tpu.matmul %1, %141, %cst_97 {dimension_numbers = #tpu.dot_dimension_numbers<[1], [0], [0], [1], [0, 0, 1, 1], [], []>} : vector<8x16xbf16>, vector<16x4xbf16>, vector<8x4xf32> -> vector<8x4xf32>
    %c3_98 = arith.constant 3 : index
    %c0_99 = arith.constant 0 : index
    %c0_100 = arith.constant 0 : index
    %143 = vector.load %arg6[%c3_98, %c0_99, %c0_100] : memref<4x1x4xf32, #tpu.memory_space<vmem>>, vector<1x1x4xf32>
    %144 = vector.shape_cast %143 : vector<1x1x4xf32> to vector<1x4xf32>
    %145 = vector.broadcast %144 : vector<1x4xf32> to vector<8x4xf32>
    %146 = arith.addf %142, %145 : vector<8x4xf32>
    %c3_101 = arith.constant 3 : index
    %c0_102 = arith.constant 0 : index
    %c0_103 = arith.constant 0 : index
    %147 = vector.load %arg4[%c3_101, %c0_102, %c0_103] : memref<4x16x4xbf16, #tpu.memory_space<vmem>>, vector<1x16x4xbf16>
    %148 = vector.shape_cast %147 : vector<1x16x4xbf16> to vector<16x4xbf16>
    %cst_104 = arith.constant dense<0.000000e+00> : vector<8x4xf32>
    %149 = tpu.matmul %3, %148, %cst_104 {dimension_numbers = #tpu.dot_dimension_numbers<[1], [0], [0], [1], [0, 0, 1, 1], [], []>} : vector<8x16xbf16>, vector<16x4xbf16>, vector<8x4xf32> -> vector<8x4xf32>
    %c3_105 = arith.constant 3 : index
    %c0_106 = arith.constant 0 : index
    %c0_107 = arith.constant 0 : index
    %150 = vector.load %arg7[%c3_105, %c0_106, %c0_107] : memref<4x1x4xf32, #tpu.memory_space<vmem>>, vector<1x1x4xf32>
    %151 = vector.shape_cast %150 : vector<1x1x4xf32> to vector<1x4xf32>
    %152 = vector.broadcast %151 : vector<1x4xf32> to vector<8x4xf32>
    %153 = arith.addf %149, %152 : vector<8x4xf32>
    %c3_108 = arith.constant 3 : index
    %c0_109 = arith.constant 0 : index
    %c0_110 = arith.constant 0 : index
    %154 = vector.load %arg5[%c3_108, %c0_109, %c0_110] : memref<4x16x4xbf16, #tpu.memory_space<vmem>>, vector<1x16x4xbf16>
    %155 = vector.shape_cast %154 : vector<1x16x4xbf16> to vector<16x4xbf16>
    %cst_111 = arith.constant dense<0.000000e+00> : vector<8x4xf32>
    %156 = tpu.matmul %3, %155, %cst_111 {dimension_numbers = #tpu.dot_dimension_numbers<[1], [0], [0], [1], [0, 0, 1, 1], [], []>} : vector<8x16xbf16>, vector<16x4xbf16>, vector<8x4xf32> -> vector<8x4xf32>
    %c3_112 = arith.constant 3 : index
    %c0_113 = arith.constant 0 : index
    %c0_114 = arith.constant 0 : index
    %157 = vector.load %arg8[%c3_112, %c0_113, %c0_114] : memref<4x1x4xf32, #tpu.memory_space<vmem>>, vector<1x1x4xf32>
    %158 = vector.shape_cast %157 : vector<1x1x4xf32> to vector<1x4xf32>
    %159 = vector.broadcast %158 : vector<1x4xf32> to vector<8x4xf32>
    %160 = arith.addf %156, %159 : vector<8x4xf32>
    %161 = arith.truncf %146 : vector<8x4xf32> to vector<8x4xbf16>
    %162 = arith.truncf %153 : vector<8x4xf32> to vector<8x4xbf16>
    %cst_115 = arith.constant dense<0.000000e+00> : vector<8x8xf32>
    %163 = tpu.matmul %161, %162, %cst_115 {dimension_numbers = #tpu.dot_dimension_numbers<[1], [1], [0], [0], [0, 0, 1, 0], [], []>} : vector<8x4xbf16>, vector<8x4xbf16>, vector<8x8xf32> -> vector<8x8xf32>
    %cst_116 = arith.constant 5.000000e-01 : f32
    %164 = vector.broadcast %cst_116 : f32 to vector<8x8xf32>
    %165 = arith.mulf %163, %164 : vector<8x8xf32>
    %cst_117 = arith.constant dense<0xFF800000> : vector<8xf32>
    %166 = vector.multi_reduction <maximumf>, %165, %cst_117 [1] : vector<8x8xf32> to vector<8xf32>
    %167 = vector.shape_cast %166 : vector<8xf32> to vector<8x1xf32>
    %168 = vector.broadcast %167 : vector<8x1xf32> to vector<8x8xf32>
    %169 = arith.subf %165, %168 : vector<8x8xf32>
    %170 = math.exp %169 : vector<8x8xf32>
    %cst_118 = arith.constant dense<0.000000e+00> : vector<8xf32>
    %171 = vector.multi_reduction <add>, %170, %cst_118 [1] : vector<8x8xf32> to vector<8xf32>
    %172 = vector.shape_cast %171 : vector<8xf32> to vector<8x1xf32>
    %173 = tpu.reciprocal %172 {approx = true} : vector<8x1xf32> -> vector<8x1xf32>
    %174 = vector.broadcast %173 : vector<8x1xf32> to vector<8x8xf32>
    %175 = arith.mulf %170, %174 : vector<8x8xf32>
    %176 = arith.truncf %175 : vector<8x8xf32> to vector<8x8xbf16>
    %177 = arith.truncf %160 : vector<8x4xf32> to vector<8x4xbf16>
    %cst_119 = arith.constant dense<0.000000e+00> : vector<8x4xf32>
    %178 = tpu.matmul %176, %177, %cst_119 {dimension_numbers = #tpu.dot_dimension_numbers<[1], [0], [0], [1], [0, 0, 1, 1], [], []>} : vector<8x8xbf16>, vector<8x4xbf16>, vector<8x4xf32> -> vector<8x4xf32>
    %179 = arith.truncf %178 : vector<8x4xf32> to vector<8x4xbf16>
    %c3_120 = arith.constant 3 : index
    %c0_121 = arith.constant 0 : index
    %c0_122 = arith.constant 0 : index
    %180 = vector.load %arg9[%c3_120, %c0_121, %c0_122] : memref<4x4x16xbf16, #tpu.memory_space<vmem>>, vector<1x4x16xbf16>
    %181 = vector.shape_cast %180 : vector<1x4x16xbf16> to vector<4x16xbf16>
    %cst_123 = arith.constant dense<0.000000e+00> : vector<8x16xf32>
    %182 = tpu.matmul %179, %181, %cst_123 {dimension_numbers = #tpu.dot_dimension_numbers<[1], [0], [0], [1], [0, 0, 1, 1], [], []>} : vector<8x4xbf16>, vector<4x16xbf16>, vector<8x16xf32> -> vector<8x16xf32>
    %183 = arith.addf %139, %182 : vector<8x16xf32>
    %c0_124 = arith.constant 0 : index
    %c0_125 = arith.constant 0 : index
    %c0_126 = arith.constant 0 : index
    %184 = vector.load %arg11[%c0_124, %c0_125, %c0_126] : memref<1x8x16xf32, #tpu.memory_space<vmem>>, vector<1x8x16xf32>
    %185 = vector.shape_cast %184 : vector<1x8x16xf32> to vector<8x16xf32>
    %186 = vector.shape_cast %183 : vector<8x16xf32> to vector<1x8x16xf32>
    tpu.vector_store %arg11[%c0_124, %c0_125, %c0_126], %186 {strides = array<i32>} : memref<1x8x16xf32, #tpu.memory_space<vmem>>, vector<1x8x16xf32>,
    return
  }
  func.func @transform_0(%arg0: i32) -> (i32, i32, i32) {
    %c0_i32 = arith.constant 0 : i32
    %c0_i32_0 = arith.constant 0 : i32
    %c0_i32_1 = arith.constant 0 : i32
    return %arg0, %c0_i32, %c0_i32_0 : i32, i32, i32
  }
  func.func @transform_1(%arg0: i32) -> (i32, i32, i32) {
    %c0_i32 = arith.constant 0 : i32
    %c0_i32_0 = arith.constant 0 : i32
    %c0_i32_1 = arith.constant 0 : i32
    return %arg0, %c0_i32, %c0_i32_0 : i32, i32, i32
  }
  func.func @transform_2(%arg0: i32) -> (i32, i32, i32) {
    %c0_i32 = arith.constant 0 : i32
    %c0_i32_0 = arith.constant 0 : i32
    %c0_i32_1 = arith.constant 0 : i32
    %c0_i32_2 = arith.constant 0 : i32
    return %c0_i32, %c0_i32_0, %c0_i32_1 : i32, i32, i32
  }
  func.func @transform_3(%arg0: i32) -> (i32, i32, i32) {
    %c0_i32 = arith.constant 0 : i32
    %c0_i32_0 = arith.constant 0 : i32
    %c0_i32_1 = arith.constant 0 : i32
    %c0_i32_2 = arith.constant 0 : i32
    return %c0_i32, %c0_i32_0, %c0_i32_1 : i32, i32, i32
  }
  func.func @transform_4(%arg0: i32) -> (i32, i32, i32) {
    %c0_i32 = arith.constant 0 : i32
    %c0_i32_0 = arith.constant 0 : i32
    %c0_i32_1 = arith.constant 0 : i32
    %c0_i32_2 = arith.constant 0 : i32
    return %c0_i32, %c0_i32_0, %c0_i32_1 : i32, i32, i32
  }
  func.func @transform_5(%arg0: i32) -> (i32, i32, i32) {
    %c0_i32 = arith.constant 0 : i32
    %c0_i32_0 = arith.constant 0 : i32
    %c0_i32_1 = arith.constant 0 : i32
    %c0_i32_2 = arith.constant 0 : i32
    return %c0_i32, %c0_i32_0, %c0_i32_1 : i32, i32, i32
  }
  func.func @transform_6(%arg0: i32) -> (i32, i32, i32) {
    %c0_i32 = arith.constant 0 : i32
    %c0_i32_0 = arith.constant 0 : i32
    %c0_i32_1 = arith.constant 0 : i32
    %c0_i32_2 = arith.constant 0 : i32
    return %c0_i32, %c0_i32_0, %c0_i32_1 : i32, i32, i32
  }
  func.func @transform_7(%arg0: i32) -> (i32, i32, i32) {
    %c0_i32 = arith.constant 0 : i32
    %c0_i32_0 = arith.constant 0 : i32
    %c0_i32_1 = arith.constant 0 : i32
    %c0_i32_2 = arith.constant 0 : i32
    return %c0_i32, %c0_i32_0, %c0_i32_1 : i32, i32, i32
  }
  func.func @transform_8(%arg0: i32) -> (i32, i32, i32) {
    %c0_i32 = arith.constant 0 : i32
    %c0_i32_0 = arith.constant 0 : i32
    %c0_i32_1 = arith.constant 0 : i32
    %c0_i32_2 = arith.constant 0 : i32
    return %c0_i32, %c0_i32_0, %c0_i32_1 : i32, i32, i32
  }
  func.func @transform_9(%arg0: i32) -> (i32, i32) {
    %c0_i32 = arith.constant 0 : i32
    %c0_i32_0 = arith.constant 0 : i32
    %c0_i32_1 = arith.constant 0 : i32
    return %c0_i32, %c0_i32_0 : i32, i32
  }
  func.func @transform_10(%arg0: i32) -> (i32, i32, i32) {
    %c0_i32 = arith.constant 0 : i32
    %c0_i32_0 = arith.constant 0 : i32
    %c0_i32_1 = arith.constant 0 : i32
    return %arg0, %c0_i32, %c0_i32_0 : i32, i32, i32
  }
}

module attributes {stable_mosaic.version = 11 : i64} {
  func.func @kernel(%arg0: i32, %arg1: memref<4x16x64xbf16, #tpu.memory_space<vmem>>, %arg2: memref<4x64x16xbf16, #tpu.memory_space<vmem>>, %arg3: memref<16x1xf32, #tpu.memory_space<vmem>>, %arg4: memref<16x1xf32, #tpu.memory_space<vmem>>, %arg5: memref<4x16x16xf32, #tpu.memory_space<vmem>>) attributes {dimension_semantics = [#tpu.dimension_semantics<arbitrary>], iteration_bounds = array<i64: 1>, scalar_prefetch = 0 : i64, scratch_operands = 0 : i64, tpu.core_type = #tpu.core_type<tc>, window_params = [{pipeline_mode = #tpu.pipeline_mode<synchronous>, transform_indices = @transform_0, window_bounds = array<i64: 4, 16, 64>}, {pipeline_mode = #tpu.pipeline_mode<synchronous>, transform_indices = @transform_1, window_bounds = array<i64: 4, 64, 16>}, {pipeline_mode = #tpu.pipeline_mode<synchronous>, transform_indices = @transform_2, window_bounds = array<i64: 16, 1>}, {pipeline_mode = #tpu.pipeline_mode<synchronous>, transform_indices = @transform_3, window_bounds = array<i64: 16, 1>}, {pipeline_mode = #tpu.pipeline_mode<synchronous>, transform_indices = @transform_4, window_bounds = array<i64: 4, 16, 16>}]} {
    %c0 = arith.constant 0 : index
    %c0_0 = arith.constant 0 : index
    %c0_1 = arith.constant 0 : index
    %0 = vector.load %arg1[%c0, %c0_0, %c0_1] : memref<4x16x64xbf16, #tpu.memory_space<vmem>>, vector<1x16x64xbf16>
    %1 = vector.shape_cast %0 : vector<1x16x64xbf16> to vector<16x64xbf16>
    %c0_2 = arith.constant 0 : index
    %c0_3 = arith.constant 0 : index
    %c0_4 = arith.constant 0 : index
    %2 = vector.load %arg2[%c0_2, %c0_3, %c0_4] : memref<4x64x16xbf16, #tpu.memory_space<vmem>>, vector<1x64x16xbf16>
    %3 = vector.shape_cast %2 : vector<1x64x16xbf16> to vector<64x16xbf16>
    %cst = arith.constant dense<0.000000e+00> : vector<16x16xf32>
    %4 = tpu.matmul %1, %3, %cst {dimension_numbers = #tpu.dot_dimension_numbers<[1], [0], [0], [1], [0, 0, 1, 1], [], []>} : vector<16x64xbf16>, vector<64x16xbf16>, vector<16x16xf32> -> vector<16x16xf32>
    %c1 = arith.constant 1 : index
    %c0_5 = arith.constant 0 : index
    %c0_6 = arith.constant 0 : index
    %5 = vector.load %arg1[%c1, %c0_5, %c0_6] : memref<4x16x64xbf16, #tpu.memory_space<vmem>>, vector<1x16x64xbf16>
    %6 = vector.shape_cast %5 : vector<1x16x64xbf16> to vector<16x64xbf16>
    %c1_7 = arith.constant 1 : index
    %c0_8 = arith.constant 0 : index
    %c0_9 = arith.constant 0 : index
    %7 = vector.load %arg2[%c1_7, %c0_8, %c0_9] : memref<4x64x16xbf16, #tpu.memory_space<vmem>>, vector<1x64x16xbf16>
    %8 = vector.shape_cast %7 : vector<1x64x16xbf16> to vector<64x16xbf16>
    %cst_10 = arith.constant dense<0.000000e+00> : vector<16x16xf32>
    %9 = tpu.matmul %6, %8, %cst_10 {dimension_numbers = #tpu.dot_dimension_numbers<[1], [0], [0], [1], [0, 0, 1, 1], [], []>} : vector<16x64xbf16>, vector<64x16xbf16>, vector<16x16xf32> -> vector<16x16xf32>
    %c2 = arith.constant 2 : index
    %c0_11 = arith.constant 0 : index
    %c0_12 = arith.constant 0 : index
    %10 = vector.load %arg1[%c2, %c0_11, %c0_12] : memref<4x16x64xbf16, #tpu.memory_space<vmem>>, vector<1x16x64xbf16>
    %11 = vector.shape_cast %10 : vector<1x16x64xbf16> to vector<16x64xbf16>
    %c2_13 = arith.constant 2 : index
    %c0_14 = arith.constant 0 : index
    %c0_15 = arith.constant 0 : index
    %12 = vector.load %arg2[%c2_13, %c0_14, %c0_15] : memref<4x64x16xbf16, #tpu.memory_space<vmem>>, vector<1x64x16xbf16>
    %13 = vector.shape_cast %12 : vector<1x64x16xbf16> to vector<64x16xbf16>
    %cst_16 = arith.constant dense<0.000000e+00> : vector<16x16xf32>
    %14 = tpu.matmul %11, %13, %cst_16 {dimension_numbers = #tpu.dot_dimension_numbers<[1], [0], [0], [1], [0, 0, 1, 1], [], []>} : vector<16x64xbf16>, vector<64x16xbf16>, vector<16x16xf32> -> vector<16x16xf32>
    %c3 = arith.constant 3 : index
    %c0_17 = arith.constant 0 : index
    %c0_18 = arith.constant 0 : index
    %15 = vector.load %arg1[%c3, %c0_17, %c0_18] : memref<4x16x64xbf16, #tpu.memory_space<vmem>>, vector<1x16x64xbf16>
    %16 = vector.shape_cast %15 : vector<1x16x64xbf16> to vector<16x64xbf16>
    %c3_19 = arith.constant 3 : index
    %c0_20 = arith.constant 0 : index
    %c0_21 = arith.constant 0 : index
    %17 = vector.load %arg2[%c3_19, %c0_20, %c0_21] : memref<4x64x16xbf16, #tpu.memory_space<vmem>>, vector<1x64x16xbf16>
    %18 = vector.shape_cast %17 : vector<1x64x16xbf16> to vector<64x16xbf16>
    %cst_22 = arith.constant dense<0.000000e+00> : vector<16x16xf32>
    %19 = tpu.matmul %16, %18, %cst_22 {dimension_numbers = #tpu.dot_dimension_numbers<[1], [0], [0], [1], [0, 0, 1, 1], [], []>} : vector<16x64xbf16>, vector<64x16xbf16>, vector<16x16xf32> -> vector<16x16xf32>
    %cst_23 = arith.constant dense<0.000000e+00> : vector<16xf32>
    %20 = vector.multi_reduction <add>, %4, %cst_23 [1] : vector<16x16xf32> to vector<16xf32>
    %21 = vector.shape_cast %20 : vector<16xf32> to vector<16x1xf32>
    %cst_24 = arith.constant 0.000000e+00 : f32
    %22 = vector.broadcast %cst_24 : f32 to vector<16x1xf32>
    %23 = arith.addf %22, %21 : vector<16x1xf32>
    %cst_25 = arith.constant dense<0.000000e+00> : vector<16xf32>
    %24 = vector.multi_reduction <add>, %9, %cst_25 [1] : vector<16x16xf32> to vector<16xf32>
    %25 = vector.shape_cast %24 : vector<16xf32> to vector<16x1xf32>
    %26 = arith.addf %23, %25 : vector<16x1xf32>
    %cst_26 = arith.constant dense<0.000000e+00> : vector<16xf32>
    %27 = vector.multi_reduction <add>, %14, %cst_26 [1] : vector<16x16xf32> to vector<16xf32>
    %28 = vector.shape_cast %27 : vector<16xf32> to vector<16x1xf32>
    %29 = arith.addf %26, %28 : vector<16x1xf32>
    %cst_27 = arith.constant dense<0.000000e+00> : vector<16xf32>
    %30 = vector.multi_reduction <add>, %19, %cst_27 [1] : vector<16x16xf32> to vector<16xf32>
    %31 = vector.shape_cast %30 : vector<16xf32> to vector<16x1xf32>
    %32 = arith.addf %29, %31 : vector<16x1xf32>
    %cst_28 = arith.constant 6.400000e+01 : f32
    %33 = vector.broadcast %cst_28 : f32 to vector<16x1xf32>
    %34 = arith.divf %32, %33 : vector<16x1xf32>
    %35 = arith.mulf %4, %4 : vector<16x16xf32>
    %cst_29 = arith.constant dense<0.000000e+00> : vector<16xf32>
    %36 = vector.multi_reduction <add>, %35, %cst_29 [1] : vector<16x16xf32> to vector<16xf32>
    %37 = vector.shape_cast %36 : vector<16xf32> to vector<16x1xf32>
    %cst_30 = arith.constant 0.000000e+00 : f32
    %38 = vector.broadcast %cst_30 : f32 to vector<16x1xf32>
    %39 = arith.addf %38, %37 : vector<16x1xf32>
    %40 = arith.mulf %9, %9 : vector<16x16xf32>
    %cst_31 = arith.constant dense<0.000000e+00> : vector<16xf32>
    %41 = vector.multi_reduction <add>, %40, %cst_31 [1] : vector<16x16xf32> to vector<16xf32>
    %42 = vector.shape_cast %41 : vector<16xf32> to vector<16x1xf32>
    %43 = arith.addf %39, %42 : vector<16x1xf32>
    %44 = arith.mulf %14, %14 : vector<16x16xf32>
    %cst_32 = arith.constant dense<0.000000e+00> : vector<16xf32>
    %45 = vector.multi_reduction <add>, %44, %cst_32 [1] : vector<16x16xf32> to vector<16xf32>
    %46 = vector.shape_cast %45 : vector<16xf32> to vector<16x1xf32>
    %47 = arith.addf %43, %46 : vector<16x1xf32>
    %48 = arith.mulf %19, %19 : vector<16x16xf32>
    %cst_33 = arith.constant dense<0.000000e+00> : vector<16xf32>
    %49 = vector.multi_reduction <add>, %48, %cst_33 [1] : vector<16x16xf32> to vector<16xf32>
    %50 = vector.shape_cast %49 : vector<16xf32> to vector<16x1xf32>
    %51 = arith.addf %47, %50 : vector<16x1xf32>
    %cst_34 = arith.constant 6.400000e+01 : f32
    %52 = vector.broadcast %cst_34 : f32 to vector<16x1xf32>
    %53 = arith.divf %51, %52 : vector<16x1xf32>
    %54 = arith.mulf %34, %34 : vector<16x1xf32>
    %55 = arith.subf %53, %54 : vector<16x1xf32>
    %cst_35 = arith.constant 9.99999974E-6 : f32
    %56 = vector.broadcast %cst_35 : f32 to vector<16x1xf32>
    %57 = arith.addf %55, %56 : vector<16x1xf32>
    %58 = math.rsqrt %57 : vector<16x1xf32>
    %c0_36 = arith.constant 0 : index
    %c0_37 = arith.constant 0 : index
    %59 = vector.load %arg3[%c0_36, %c0_37] : memref<16x1xf32, #tpu.memory_space<vmem>>, vector<16x1xf32>
    %60 = arith.mulf %58, %59 : vector<16x1xf32>
    %61 = vector.broadcast %34 : vector<16x1xf32> to vector<16x16xf32>
    %62 = arith.subf %4, %61 : vector<16x16xf32>
    %63 = vector.broadcast %60 : vector<16x1xf32> to vector<16x16xf32>
    %64 = arith.mulf %62, %63 : vector<16x16xf32>
    %c0_38 = arith.constant 0 : index
    %c0_39 = arith.constant 0 : index
    %65 = vector.load %arg4[%c0_38, %c0_39] : memref<16x1xf32, #tpu.memory_space<vmem>>, vector<16x1xf32>
    %66 = vector.broadcast %65 : vector<16x1xf32> to vector<16x16xf32>
    %67 = arith.addf %64, %66 : vector<16x16xf32>
    %68 = vector.broadcast %34 : vector<16x1xf32> to vector<16x16xf32>
    %69 = arith.subf %9, %68 : vector<16x16xf32>
    %70 = vector.broadcast %60 : vector<16x1xf32> to vector<16x16xf32>
    %71 = arith.mulf %69, %70 : vector<16x16xf32>
    %c0_40 = arith.constant 0 : index
    %c0_41 = arith.constant 0 : index
    %72 = vector.load %arg4[%c0_40, %c0_41] : memref<16x1xf32, #tpu.memory_space<vmem>>, vector<16x1xf32>
    %73 = vector.broadcast %72 : vector<16x1xf32> to vector<16x16xf32>
    %74 = arith.addf %71, %73 : vector<16x16xf32>
    %75 = vector.broadcast %34 : vector<16x1xf32> to vector<16x16xf32>
    %76 = arith.subf %14, %75 : vector<16x16xf32>
    %77 = vector.broadcast %60 : vector<16x1xf32> to vector<16x16xf32>
    %78 = arith.mulf %76, %77 : vector<16x16xf32>
    %c0_42 = arith.constant 0 : index
    %c0_43 = arith.constant 0 : index
    %79 = vector.load %arg4[%c0_42, %c0_43] : memref<16x1xf32, #tpu.memory_space<vmem>>, vector<16x1xf32>
    %80 = vector.broadcast %79 : vector<16x1xf32> to vector<16x16xf32>
    %81 = arith.addf %78, %80 : vector<16x16xf32>
    %82 = vector.broadcast %34 : vector<16x1xf32> to vector<16x16xf32>
    %83 = arith.subf %19, %82 : vector<16x16xf32>
    %84 = vector.broadcast %60 : vector<16x1xf32> to vector<16x16xf32>
    %85 = arith.mulf %83, %84 : vector<16x16xf32>
    %c0_44 = arith.constant 0 : index
    %c0_45 = arith.constant 0 : index
    %86 = vector.load %arg4[%c0_44, %c0_45] : memref<16x1xf32, #tpu.memory_space<vmem>>, vector<16x1xf32>
    %87 = vector.broadcast %86 : vector<16x1xf32> to vector<16x16xf32>
    %88 = arith.addf %85, %87 : vector<16x16xf32>
    %cst_46 = arith.constant 0.000000e+00 : f32
    %89 = vector.broadcast %cst_46 : f32 to vector<16x16xf32>
    %90 = arith.maximumf %67, %89 : vector<16x16xf32>
    %c0_47 = arith.constant 0 : index
    %c0_48 = arith.constant 0 : index
    %c0_49 = arith.constant 0 : index
    %91 = vector.load %arg5[%c0_47, %c0_48, %c0_49] : memref<4x16x16xf32, #tpu.memory_space<vmem>>, vector<1x16x16xf32>
    %92 = vector.shape_cast %91 : vector<1x16x16xf32> to vector<16x16xf32>
    %93 = vector.shape_cast %90 : vector<16x16xf32> to vector<1x16x16xf32>
    tpu.vector_store %arg5[%c0_47, %c0_48, %c0_49], %93 {strides = array<i32>} : memref<4x16x16xf32, #tpu.memory_space<vmem>>, vector<1x16x16xf32>,
    %cst_50 = arith.constant 0.000000e+00 : f32
    %94 = vector.broadcast %cst_50 : f32 to vector<16x16xf32>
    %95 = arith.maximumf %74, %94 : vector<16x16xf32>
    %c1_51 = arith.constant 1 : index
    %c0_52 = arith.constant 0 : index
    %c0_53 = arith.constant 0 : index
    %96 = vector.load %arg5[%c1_51, %c0_52, %c0_53] : memref<4x16x16xf32, #tpu.memory_space<vmem>>, vector<1x16x16xf32>
    %97 = vector.shape_cast %96 : vector<1x16x16xf32> to vector<16x16xf32>
    %98 = vector.shape_cast %95 : vector<16x16xf32> to vector<1x16x16xf32>
    tpu.vector_store %arg5[%c1_51, %c0_52, %c0_53], %98 {strides = array<i32>} : memref<4x16x16xf32, #tpu.memory_space<vmem>>, vector<1x16x16xf32>,
    %cst_54 = arith.constant 0.000000e+00 : f32
    %99 = vector.broadcast %cst_54 : f32 to vector<16x16xf32>
    %100 = arith.maximumf %81, %99 : vector<16x16xf32>
    %c2_55 = arith.constant 2 : index
    %c0_56 = arith.constant 0 : index
    %c0_57 = arith.constant 0 : index
    %101 = vector.load %arg5[%c2_55, %c0_56, %c0_57] : memref<4x16x16xf32, #tpu.memory_space<vmem>>, vector<1x16x16xf32>
    %102 = vector.shape_cast %101 : vector<1x16x16xf32> to vector<16x16xf32>
    %103 = vector.shape_cast %100 : vector<16x16xf32> to vector<1x16x16xf32>
    tpu.vector_store %arg5[%c2_55, %c0_56, %c0_57], %103 {strides = array<i32>} : memref<4x16x16xf32, #tpu.memory_space<vmem>>, vector<1x16x16xf32>,
    %cst_58 = arith.constant 0.000000e+00 : f32
    %104 = vector.broadcast %cst_58 : f32 to vector<16x16xf32>
    %105 = arith.maximumf %88, %104 : vector<16x16xf32>
    %c3_59 = arith.constant 3 : index
    %c0_60 = arith.constant 0 : index
    %c0_61 = arith.constant 0 : index
    %106 = vector.load %arg5[%c3_59, %c0_60, %c0_61] : memref<4x16x16xf32, #tpu.memory_space<vmem>>, vector<1x16x16xf32>
    %107 = vector.shape_cast %106 : vector<1x16x16xf32> to vector<16x16xf32>
    %108 = vector.shape_cast %105 : vector<16x16xf32> to vector<1x16x16xf32>
    tpu.vector_store %arg5[%c3_59, %c0_60, %c0_61], %108 {strides = array<i32>} : memref<4x16x16xf32, #tpu.memory_space<vmem>>, vector<1x16x16xf32>,
    return
  }
  func.func @transform_0(%arg0: i32) -> (i32, i32, i32) {
    %c0_i32 = arith.constant 0 : i32
    %c0_i32_0 = arith.constant 0 : i32
    %c0_i32_1 = arith.constant 0 : i32
    %c0_i32_2 = arith.constant 0 : i32
    return %c0_i32, %c0_i32_0, %c0_i32_1 : i32, i32, i32
  }
  func.func @transform_1(%arg0: i32) -> (i32, i32, i32) {
    %c0_i32 = arith.constant 0 : i32
    %c0_i32_0 = arith.constant 0 : i32
    %c0_i32_1 = arith.constant 0 : i32
    %c0_i32_2 = arith.constant 0 : i32
    return %c0_i32, %c0_i32_0, %c0_i32_1 : i32, i32, i32
  }
  func.func @transform_2(%arg0: i32) -> (i32, i32) {
    %c0_i32 = arith.constant 0 : i32
    %c0_i32_0 = arith.constant 0 : i32
    %c0_i32_1 = arith.constant 0 : i32
    return %c0_i32, %c0_i32_0 : i32, i32
  }
  func.func @transform_3(%arg0: i32) -> (i32, i32) {
    %c0_i32 = arith.constant 0 : i32
    %c0_i32_0 = arith.constant 0 : i32
    %c0_i32_1 = arith.constant 0 : i32
    return %c0_i32, %c0_i32_0 : i32, i32
  }
  func.func @transform_4(%arg0: i32) -> (i32, i32, i32) {
    %c0_i32 = arith.constant 0 : i32
    %c0_i32_0 = arith.constant 0 : i32
    %c0_i32_1 = arith.constant 0 : i32
    %c0_i32_2 = arith.constant 0 : i32
    return %c0_i32, %c0_i32_0, %c0_i32_1 : i32, i32, i32
  }
}

module attributes {stable_mosaic.version = 11 : i64} {
  func.func @kernel(%arg0: i32, %arg1: memref<8x144xbf16, #tpu.memory_space<vmem>>, %arg2: memref<144x64xbf16, #tpu.memory_space<vmem>>, %arg3: memref<8x1xf32, #tpu.memory_space<vmem>>, %arg4: memref<8x1xf32, #tpu.memory_space<vmem>>, %arg5: memref<8x64xf32, #tpu.memory_space<vmem>>, %arg6: memref<8x64xf32, #tpu.memory_space<vmem>>) attributes {dimension_semantics = [#tpu.dimension_semantics<arbitrary>], iteration_bounds = array<i64: 1>, scalar_prefetch = 0 : i64, scratch_operands = 0 : i64, tpu.core_type = #tpu.core_type<tc>, window_params = [{pipeline_mode = #tpu.pipeline_mode<synchronous>, transform_indices = @transform_0, window_bounds = array<i64: 8, 144>}, {pipeline_mode = #tpu.pipeline_mode<synchronous>, transform_indices = @transform_1, window_bounds = array<i64: 144, 64>}, {pipeline_mode = #tpu.pipeline_mode<synchronous>, transform_indices = @transform_2, window_bounds = array<i64: 8, 1>}, {pipeline_mode = #tpu.pipeline_mode<synchronous>, transform_indices = @transform_3, window_bounds = array<i64: 8, 1>}, {pipeline_mode = #tpu.pipeline_mode<synchronous>, transform_indices = @transform_4, window_bounds = array<i64: 8, 64>}, {pipeline_mode = #tpu.pipeline_mode<synchronous>, transform_indices = @transform_5, window_bounds = array<i64: 8, 64>}]} {
    %c0 = arith.constant 0 : index
    %c0_0 = arith.constant 0 : index
    %0 = vector.load %arg1[%c0, %c0_0] : memref<8x144xbf16, #tpu.memory_space<vmem>>, vector<8x144xbf16>
    %c0_1 = arith.constant 0 : index
    %c0_2 = arith.constant 0 : index
    %1 = vector.load %arg2[%c0_1, %c0_2] : memref<144x64xbf16, #tpu.memory_space<vmem>>, vector<144x64xbf16>
    %cst = arith.constant dense<0.000000e+00> : vector<8x64xf32>
    %2 = tpu.matmul %0, %1, %cst {dimension_numbers = #tpu.dot_dimension_numbers<[1], [0], [0], [1], [0, 0, 1, 1], [], []>} : vector<8x144xbf16>, vector<144x64xbf16>, vector<8x64xf32> -> vector<8x64xf32>
    %cst_3 = arith.constant dense<0.000000e+00> : vector<8xf32>
    %3 = vector.multi_reduction <add>, %2, %cst_3 [1] : vector<8x64xf32> to vector<8xf32>
    %4 = vector.shape_cast %3 : vector<8xf32> to vector<8x1xf32>
    %cst_4 = arith.constant 6.400000e+01 : f32
    %5 = vector.broadcast %cst_4 : f32 to vector<8x1xf32>
    %6 = arith.divf %4, %5 : vector<8x1xf32>
    %7 = vector.broadcast %6 : vector<8x1xf32> to vector<8x64xf32>
    %8 = arith.subf %2, %7 : vector<8x64xf32>
    %9 = arith.mulf %8, %8 : vector<8x64xf32>
    %cst_5 = arith.constant dense<0.000000e+00> : vector<8xf32>
    %10 = vector.multi_reduction <add>, %9, %cst_5 [1] : vector<8x64xf32> to vector<8xf32>
    %11 = vector.shape_cast %10 : vector<8xf32> to vector<8x1xf32>
    %cst_6 = arith.constant 6.400000e+01 : f32
    %12 = vector.broadcast %cst_6 : f32 to vector<8x1xf32>
    %13 = arith.divf %11, %12 : vector<8x1xf32>
    %14 = vector.broadcast %6 : vector<8x1xf32> to vector<8x64xf32>
    %15 = arith.subf %2, %14 : vector<8x64xf32>
    %cst_7 = arith.constant 9.99999974E-6 : f32
    %16 = vector.broadcast %cst_7 : f32 to vector<8x1xf32>
    %17 = arith.addf %13, %16 : vector<8x1xf32>
    %18 = math.rsqrt %17 : vector<8x1xf32>
    %19 = vector.broadcast %18 : vector<8x1xf32> to vector<8x64xf32>
    %20 = arith.mulf %15, %19 : vector<8x64xf32>
    %c0_8 = arith.constant 0 : index
    %c0_9 = arith.constant 0 : index
    %21 = vector.load %arg3[%c0_8, %c0_9] : memref<8x1xf32, #tpu.memory_space<vmem>>, vector<8x1xf32>
    %22 = vector.broadcast %21 : vector<8x1xf32> to vector<8x64xf32>
    %23 = arith.mulf %20, %22 : vector<8x64xf32>
    %c0_10 = arith.constant 0 : index
    %c0_11 = arith.constant 0 : index
    %24 = vector.load %arg4[%c0_10, %c0_11] : memref<8x1xf32, #tpu.memory_space<vmem>>, vector<8x1xf32>
    %25 = vector.broadcast %24 : vector<8x1xf32> to vector<8x64xf32>
    %26 = arith.addf %23, %25 : vector<8x64xf32>
    %cst_12 = arith.constant 0.000000e+00 : f32
    %27 = vector.broadcast %cst_12 : f32 to vector<8x64xf32>
    %28 = arith.maximumf %26, %27 : vector<8x64xf32>
    %c0_13 = arith.constant 0 : index
    %c0_14 = arith.constant 0 : index
    %29 = vector.load %arg5[%c0_13, %c0_14] : memref<8x64xf32, #tpu.memory_space<vmem>>, vector<8x64xf32>
    %30 = arith.addf %28, %29 : vector<8x64xf32>
    %c0_15 = arith.constant 0 : index
    %c0_16 = arith.constant 0 : index
    %31 = vector.load %arg6[%c0_15, %c0_16] : memref<8x64xf32, #tpu.memory_space<vmem>>, vector<8x64xf32>
    tpu.vector_store %arg6[%c0_15, %c0_16], %30 {strides = array<i32>} : memref<8x64xf32, #tpu.memory_space<vmem>>, vector<8x64xf32>,
    return
  }
  func.func @transform_0(%arg0: i32) -> (i32, i32) {
    %c0_i32 = arith.constant 0 : i32
    %c0_i32_0 = arith.constant 0 : i32
    %c0_i32_1 = arith.constant 0 : i32
    return %c0_i32, %c0_i32_0 : i32, i32
  }
  func.func @transform_1(%arg0: i32) -> (i32, i32) {
    %c0_i32 = arith.constant 0 : i32
    %c0_i32_0 = arith.constant 0 : i32
    %c0_i32_1 = arith.constant 0 : i32
    return %c0_i32, %c0_i32_0 : i32, i32
  }
  func.func @transform_2(%arg0: i32) -> (i32, i32) {
    %c0_i32 = arith.constant 0 : i32
    %c0_i32_0 = arith.constant 0 : i32
    %c0_i32_1 = arith.constant 0 : i32
    return %c0_i32, %c0_i32_0 : i32, i32
  }
  func.func @transform_3(%arg0: i32) -> (i32, i32) {
    %c0_i32 = arith.constant 0 : i32
    %c0_i32_0 = arith.constant 0 : i32
    %c0_i32_1 = arith.constant 0 : i32
    return %c0_i32, %c0_i32_0 : i32, i32
  }
  func.func @transform_4(%arg0: i32) -> (i32, i32) {
    %c0_i32 = arith.constant 0 : i32
    %c0_i32_0 = arith.constant 0 : i32
    %c0_i32_1 = arith.constant 0 : i32
    return %c0_i32, %c0_i32_0 : i32, i32
  }
  func.func @transform_5(%arg0: i32) -> (i32, i32) {
    %c0_i32 = arith.constant 0 : i32
    %c0_i32_0 = arith.constant 0 : i32
    %c0_i32_1 = arith.constant 0 : i32
    return %c0_i32, %c0_i32_0 : i32, i32
  }
}

module attributes {stable_mosaic.version = 11 : i64} {
  func.func @kernel(%arg0: i32, %arg1: memref<4x8x32xbf16, #tpu.memory_space<vmem>>, %arg2: memref<4x32x64xbf16, #tpu.memory_space<vmem>>, %arg3: memref<8x1xf32, #tpu.memory_space<vmem>>, %arg4: memref<8x1xf32, #tpu.memory_space<vmem>>, %arg5: memref<4x8x64xf32, #tpu.memory_space<vmem>>) attributes {dimension_semantics = [#tpu.dimension_semantics<arbitrary>], iteration_bounds = array<i64: 1>, scalar_prefetch = 0 : i64, scratch_operands = 0 : i64, tpu.core_type = #tpu.core_type<tc>, window_params = [{pipeline_mode = #tpu.pipeline_mode<synchronous>, transform_indices = @transform_0, window_bounds = array<i64: 4, 8, 32>}, {pipeline_mode = #tpu.pipeline_mode<synchronous>, transform_indices = @transform_1, window_bounds = array<i64: 4, 32, 64>}, {pipeline_mode = #tpu.pipeline_mode<synchronous>, transform_indices = @transform_2, window_bounds = array<i64: 8, 1>}, {pipeline_mode = #tpu.pipeline_mode<synchronous>, transform_indices = @transform_3, window_bounds = array<i64: 8, 1>}, {pipeline_mode = #tpu.pipeline_mode<synchronous>, transform_indices = @transform_4, window_bounds = array<i64: 4, 8, 64>}]} {
    %c0 = arith.constant 0 : index
    %c0_0 = arith.constant 0 : index
    %c0_1 = arith.constant 0 : index
    %0 = vector.load %arg1[%c0, %c0_0, %c0_1] : memref<4x8x32xbf16, #tpu.memory_space<vmem>>, vector<1x8x32xbf16>
    %1 = vector.shape_cast %0 : vector<1x8x32xbf16> to vector<8x32xbf16>
    %c0_2 = arith.constant 0 : index
    %c0_3 = arith.constant 0 : index
    %c0_4 = arith.constant 0 : index
    %2 = vector.load %arg2[%c0_2, %c0_3, %c0_4] : memref<4x32x64xbf16, #tpu.memory_space<vmem>>, vector<1x32x64xbf16>
    %3 = vector.shape_cast %2 : vector<1x32x64xbf16> to vector<32x64xbf16>
    %cst = arith.constant dense<0.000000e+00> : vector<8x64xf32>
    %4 = tpu.matmul %1, %3, %cst {dimension_numbers = #tpu.dot_dimension_numbers<[1], [0], [0], [1], [0, 0, 1, 1], [], []>} : vector<8x32xbf16>, vector<32x64xbf16>, vector<8x64xf32> -> vector<8x64xf32>
    %c1 = arith.constant 1 : index
    %c0_5 = arith.constant 0 : index
    %c0_6 = arith.constant 0 : index
    %5 = vector.load %arg1[%c1, %c0_5, %c0_6] : memref<4x8x32xbf16, #tpu.memory_space<vmem>>, vector<1x8x32xbf16>
    %6 = vector.shape_cast %5 : vector<1x8x32xbf16> to vector<8x32xbf16>
    %c1_7 = arith.constant 1 : index
    %c0_8 = arith.constant 0 : index
    %c0_9 = arith.constant 0 : index
    %7 = vector.load %arg2[%c1_7, %c0_8, %c0_9] : memref<4x32x64xbf16, #tpu.memory_space<vmem>>, vector<1x32x64xbf16>
    %8 = vector.shape_cast %7 : vector<1x32x64xbf16> to vector<32x64xbf16>
    %cst_10 = arith.constant dense<0.000000e+00> : vector<8x64xf32>
    %9 = tpu.matmul %6, %8, %cst_10 {dimension_numbers = #tpu.dot_dimension_numbers<[1], [0], [0], [1], [0, 0, 1, 1], [], []>} : vector<8x32xbf16>, vector<32x64xbf16>, vector<8x64xf32> -> vector<8x64xf32>
    %c2 = arith.constant 2 : index
    %c0_11 = arith.constant 0 : index
    %c0_12 = arith.constant 0 : index
    %10 = vector.load %arg1[%c2, %c0_11, %c0_12] : memref<4x8x32xbf16, #tpu.memory_space<vmem>>, vector<1x8x32xbf16>
    %11 = vector.shape_cast %10 : vector<1x8x32xbf16> to vector<8x32xbf16>
    %c2_13 = arith.constant 2 : index
    %c0_14 = arith.constant 0 : index
    %c0_15 = arith.constant 0 : index
    %12 = vector.load %arg2[%c2_13, %c0_14, %c0_15] : memref<4x32x64xbf16, #tpu.memory_space<vmem>>, vector<1x32x64xbf16>
    %13 = vector.shape_cast %12 : vector<1x32x64xbf16> to vector<32x64xbf16>
    %cst_16 = arith.constant dense<0.000000e+00> : vector<8x64xf32>
    %14 = tpu.matmul %11, %13, %cst_16 {dimension_numbers = #tpu.dot_dimension_numbers<[1], [0], [0], [1], [0, 0, 1, 1], [], []>} : vector<8x32xbf16>, vector<32x64xbf16>, vector<8x64xf32> -> vector<8x64xf32>
    %c3 = arith.constant 3 : index
    %c0_17 = arith.constant 0 : index
    %c0_18 = arith.constant 0 : index
    %15 = vector.load %arg1[%c3, %c0_17, %c0_18] : memref<4x8x32xbf16, #tpu.memory_space<vmem>>, vector<1x8x32xbf16>
    %16 = vector.shape_cast %15 : vector<1x8x32xbf16> to vector<8x32xbf16>
    %c3_19 = arith.constant 3 : index
    %c0_20 = arith.constant 0 : index
    %c0_21 = arith.constant 0 : index
    %17 = vector.load %arg2[%c3_19, %c0_20, %c0_21] : memref<4x32x64xbf16, #tpu.memory_space<vmem>>, vector<1x32x64xbf16>
    %18 = vector.shape_cast %17 : vector<1x32x64xbf16> to vector<32x64xbf16>
    %cst_22 = arith.constant dense<0.000000e+00> : vector<8x64xf32>
    %19 = tpu.matmul %16, %18, %cst_22 {dimension_numbers = #tpu.dot_dimension_numbers<[1], [0], [0], [1], [0, 0, 1, 1], [], []>} : vector<8x32xbf16>, vector<32x64xbf16>, vector<8x64xf32> -> vector<8x64xf32>
    %cst_23 = arith.constant dense<0.000000e+00> : vector<8xf32>
    %20 = vector.multi_reduction <add>, %4, %cst_23 [1] : vector<8x64xf32> to vector<8xf32>
    %21 = vector.shape_cast %20 : vector<8xf32> to vector<8x1xf32>
    %cst_24 = arith.constant 0.000000e+00 : f32
    %22 = vector.broadcast %cst_24 : f32 to vector<8x1xf32>
    %23 = arith.addf %22, %21 : vector<8x1xf32>
    %cst_25 = arith.constant dense<0.000000e+00> : vector<8xf32>
    %24 = vector.multi_reduction <add>, %9, %cst_25 [1] : vector<8x64xf32> to vector<8xf32>
    %25 = vector.shape_cast %24 : vector<8xf32> to vector<8x1xf32>
    %26 = arith.addf %23, %25 : vector<8x1xf32>
    %cst_26 = arith.constant dense<0.000000e+00> : vector<8xf32>
    %27 = vector.multi_reduction <add>, %14, %cst_26 [1] : vector<8x64xf32> to vector<8xf32>
    %28 = vector.shape_cast %27 : vector<8xf32> to vector<8x1xf32>
    %29 = arith.addf %26, %28 : vector<8x1xf32>
    %cst_27 = arith.constant dense<0.000000e+00> : vector<8xf32>
    %30 = vector.multi_reduction <add>, %19, %cst_27 [1] : vector<8x64xf32> to vector<8xf32>
    %31 = vector.shape_cast %30 : vector<8xf32> to vector<8x1xf32>
    %32 = arith.addf %29, %31 : vector<8x1xf32>
    %cst_28 = arith.constant 2.560000e+02 : f32
    %33 = vector.broadcast %cst_28 : f32 to vector<8x1xf32>
    %34 = arith.divf %32, %33 : vector<8x1xf32>
    %35 = arith.mulf %4, %4 : vector<8x64xf32>
    %cst_29 = arith.constant dense<0.000000e+00> : vector<8xf32>
    %36 = vector.multi_reduction <add>, %35, %cst_29 [1] : vector<8x64xf32> to vector<8xf32>
    %37 = vector.shape_cast %36 : vector<8xf32> to vector<8x1xf32>
    %cst_30 = arith.constant 0.000000e+00 : f32
    %38 = vector.broadcast %cst_30 : f32 to vector<8x1xf32>
    %39 = arith.addf %38, %37 : vector<8x1xf32>
    %40 = arith.mulf %9, %9 : vector<8x64xf32>
    %cst_31 = arith.constant dense<0.000000e+00> : vector<8xf32>
    %41 = vector.multi_reduction <add>, %40, %cst_31 [1] : vector<8x64xf32> to vector<8xf32>
    %42 = vector.shape_cast %41 : vector<8xf32> to vector<8x1xf32>
    %43 = arith.addf %39, %42 : vector<8x1xf32>
    %44 = arith.mulf %14, %14 : vector<8x64xf32>
    %cst_32 = arith.constant dense<0.000000e+00> : vector<8xf32>
    %45 = vector.multi_reduction <add>, %44, %cst_32 [1] : vector<8x64xf32> to vector<8xf32>
    %46 = vector.shape_cast %45 : vector<8xf32> to vector<8x1xf32>
    %47 = arith.addf %43, %46 : vector<8x1xf32>
    %48 = arith.mulf %19, %19 : vector<8x64xf32>
    %cst_33 = arith.constant dense<0.000000e+00> : vector<8xf32>
    %49 = vector.multi_reduction <add>, %48, %cst_33 [1] : vector<8x64xf32> to vector<8xf32>
    %50 = vector.shape_cast %49 : vector<8xf32> to vector<8x1xf32>
    %51 = arith.addf %47, %50 : vector<8x1xf32>
    %cst_34 = arith.constant 2.560000e+02 : f32
    %52 = vector.broadcast %cst_34 : f32 to vector<8x1xf32>
    %53 = arith.divf %51, %52 : vector<8x1xf32>
    %54 = arith.mulf %34, %34 : vector<8x1xf32>
    %55 = arith.subf %53, %54 : vector<8x1xf32>
    %cst_35 = arith.constant 9.99999974E-6 : f32
    %56 = vector.broadcast %cst_35 : f32 to vector<8x1xf32>
    %57 = arith.addf %55, %56 : vector<8x1xf32>
    %58 = math.rsqrt %57 : vector<8x1xf32>
    %c0_36 = arith.constant 0 : index
    %c0_37 = arith.constant 0 : index
    %59 = vector.load %arg3[%c0_36, %c0_37] : memref<8x1xf32, #tpu.memory_space<vmem>>, vector<8x1xf32>
    %60 = arith.mulf %58, %59 : vector<8x1xf32>
    %61 = vector.broadcast %34 : vector<8x1xf32> to vector<8x64xf32>
    %62 = arith.subf %4, %61 : vector<8x64xf32>
    %63 = vector.broadcast %60 : vector<8x1xf32> to vector<8x64xf32>
    %64 = arith.mulf %62, %63 : vector<8x64xf32>
    %c0_38 = arith.constant 0 : index
    %c0_39 = arith.constant 0 : index
    %65 = vector.load %arg4[%c0_38, %c0_39] : memref<8x1xf32, #tpu.memory_space<vmem>>, vector<8x1xf32>
    %66 = vector.broadcast %65 : vector<8x1xf32> to vector<8x64xf32>
    %67 = arith.addf %64, %66 : vector<8x64xf32>
    %68 = vector.broadcast %34 : vector<8x1xf32> to vector<8x64xf32>
    %69 = arith.subf %9, %68 : vector<8x64xf32>
    %70 = vector.broadcast %60 : vector<8x1xf32> to vector<8x64xf32>
    %71 = arith.mulf %69, %70 : vector<8x64xf32>
    %c0_40 = arith.constant 0 : index
    %c0_41 = arith.constant 0 : index
    %72 = vector.load %arg4[%c0_40, %c0_41] : memref<8x1xf32, #tpu.memory_space<vmem>>, vector<8x1xf32>
    %73 = vector.broadcast %72 : vector<8x1xf32> to vector<8x64xf32>
    %74 = arith.addf %71, %73 : vector<8x64xf32>
    %75 = vector.broadcast %34 : vector<8x1xf32> to vector<8x64xf32>
    %76 = arith.subf %14, %75 : vector<8x64xf32>
    %77 = vector.broadcast %60 : vector<8x1xf32> to vector<8x64xf32>
    %78 = arith.mulf %76, %77 : vector<8x64xf32>
    %c0_42 = arith.constant 0 : index
    %c0_43 = arith.constant 0 : index
    %79 = vector.load %arg4[%c0_42, %c0_43] : memref<8x1xf32, #tpu.memory_space<vmem>>, vector<8x1xf32>
    %80 = vector.broadcast %79 : vector<8x1xf32> to vector<8x64xf32>
    %81 = arith.addf %78, %80 : vector<8x64xf32>
    %82 = vector.broadcast %34 : vector<8x1xf32> to vector<8x64xf32>
    %83 = arith.subf %19, %82 : vector<8x64xf32>
    %84 = vector.broadcast %60 : vector<8x1xf32> to vector<8x64xf32>
    %85 = arith.mulf %83, %84 : vector<8x64xf32>
    %c0_44 = arith.constant 0 : index
    %c0_45 = arith.constant 0 : index
    %86 = vector.load %arg4[%c0_44, %c0_45] : memref<8x1xf32, #tpu.memory_space<vmem>>, vector<8x1xf32>
    %87 = vector.broadcast %86 : vector<8x1xf32> to vector<8x64xf32>
    %88 = arith.addf %85, %87 : vector<8x64xf32>
    %cst_46 = arith.constant 0.000000e+00 : f32
    %89 = vector.broadcast %cst_46 : f32 to vector<8x64xf32>
    %90 = arith.maximumf %67, %89 : vector<8x64xf32>
    %c0_47 = arith.constant 0 : index
    %c0_48 = arith.constant 0 : index
    %c0_49 = arith.constant 0 : index
    %91 = vector.load %arg5[%c0_47, %c0_48, %c0_49] : memref<4x8x64xf32, #tpu.memory_space<vmem>>, vector<1x8x64xf32>
    %92 = vector.shape_cast %91 : vector<1x8x64xf32> to vector<8x64xf32>
    %93 = vector.shape_cast %90 : vector<8x64xf32> to vector<1x8x64xf32>
    tpu.vector_store %arg5[%c0_47, %c0_48, %c0_49], %93 {strides = array<i32>} : memref<4x8x64xf32, #tpu.memory_space<vmem>>, vector<1x8x64xf32>,
    %cst_50 = arith.constant 0.000000e+00 : f32
    %94 = vector.broadcast %cst_50 : f32 to vector<8x64xf32>
    %95 = arith.maximumf %74, %94 : vector<8x64xf32>
    %c1_51 = arith.constant 1 : index
    %c0_52 = arith.constant 0 : index
    %c0_53 = arith.constant 0 : index
    %96 = vector.load %arg5[%c1_51, %c0_52, %c0_53] : memref<4x8x64xf32, #tpu.memory_space<vmem>>, vector<1x8x64xf32>
    %97 = vector.shape_cast %96 : vector<1x8x64xf32> to vector<8x64xf32>
    %98 = vector.shape_cast %95 : vector<8x64xf32> to vector<1x8x64xf32>
    tpu.vector_store %arg5[%c1_51, %c0_52, %c0_53], %98 {strides = array<i32>} : memref<4x8x64xf32, #tpu.memory_space<vmem>>, vector<1x8x64xf32>,
    %cst_54 = arith.constant 0.000000e+00 : f32
    %99 = vector.broadcast %cst_54 : f32 to vector<8x64xf32>
    %100 = arith.maximumf %81, %99 : vector<8x64xf32>
    %c2_55 = arith.constant 2 : index
    %c0_56 = arith.constant 0 : index
    %c0_57 = arith.constant 0 : index
    %101 = vector.load %arg5[%c2_55, %c0_56, %c0_57] : memref<4x8x64xf32, #tpu.memory_space<vmem>>, vector<1x8x64xf32>
    %102 = vector.shape_cast %101 : vector<1x8x64xf32> to vector<8x64xf32>
    %103 = vector.shape_cast %100 : vector<8x64xf32> to vector<1x8x64xf32>
    tpu.vector_store %arg5[%c2_55, %c0_56, %c0_57], %103 {strides = array<i32>} : memref<4x8x64xf32, #tpu.memory_space<vmem>>, vector<1x8x64xf32>,
    %cst_58 = arith.constant 0.000000e+00 : f32
    %104 = vector.broadcast %cst_58 : f32 to vector<8x64xf32>
    %105 = arith.maximumf %88, %104 : vector<8x64xf32>
    %c3_59 = arith.constant 3 : index
    %c0_60 = arith.constant 0 : index
    %c0_61 = arith.constant 0 : index
    %106 = vector.load %arg5[%c3_59, %c0_60, %c0_61] : memref<4x8x64xf32, #tpu.memory_space<vmem>>, vector<1x8x64xf32>
    %107 = vector.shape_cast %106 : vector<1x8x64xf32> to vector<8x64xf32>
    %108 = vector.shape_cast %105 : vector<8x64xf32> to vector<1x8x64xf32>
    tpu.vector_store %arg5[%c3_59, %c0_60, %c0_61], %108 {strides = array<i32>} : memref<4x8x64xf32, #tpu.memory_space<vmem>>, vector<1x8x64xf32>,
    return
  }
  func.func @transform_0(%arg0: i32) -> (i32, i32, i32) {
    %c0_i32 = arith.constant 0 : i32
    %c0_i32_0 = arith.constant 0 : i32
    %c0_i32_1 = arith.constant 0 : i32
    %c0_i32_2 = arith.constant 0 : i32
    return %c0_i32, %c0_i32_0, %c0_i32_1 : i32, i32, i32
  }
  func.func @transform_1(%arg0: i32) -> (i32, i32, i32) {
    %c0_i32 = arith.constant 0 : i32
    %c0_i32_0 = arith.constant 0 : i32
    %c0_i32_1 = arith.constant 0 : i32
    %c0_i32_2 = arith.constant 0 : i32
    return %c0_i32, %c0_i32_0, %c0_i32_1 : i32, i32, i32
  }
  func.func @transform_2(%arg0: i32) -> (i32, i32) {
    %c0_i32 = arith.constant 0 : i32
    %c0_i32_0 = arith.constant 0 : i32
    %c0_i32_1 = arith.constant 0 : i32
    return %c0_i32, %c0_i32_0 : i32, i32
  }
  func.func @transform_3(%arg0: i32) -> (i32, i32) {
    %c0_i32 = arith.constant 0 : i32
    %c0_i32_0 = arith.constant 0 : i32
    %c0_i32_1 = arith.constant 0 : i32
    return %c0_i32, %c0_i32_0 : i32, i32
  }
  func.func @transform_4(%arg0: i32) -> (i32, i32, i32) {
    %c0_i32 = arith.constant 0 : i32
    %c0_i32_0 = arith.constant 0 : i32
    %c0_i32_1 = arith.constant 0 : i32
    %c0_i32_2 = arith.constant 0 : i32
    return %c0_i32, %c0_i32_0, %c0_i32_1 : i32, i32, i32
  }
}

module attributes {stable_mosaic.version = 11 : i64} {
  func.func @kernel(%arg0: i32, %arg1: memref<4x72xbf16, #tpu.memory_space<vmem>>, %arg2: memref<72x256xbf16, #tpu.memory_space<vmem>>, %arg3: memref<4x1xf32, #tpu.memory_space<vmem>>, %arg4: memref<4x1xf32, #tpu.memory_space<vmem>>, %arg5: memref<4x256xf32, #tpu.memory_space<vmem>>, %arg6: memref<4x256xf32, #tpu.memory_space<vmem>>) attributes {dimension_semantics = [#tpu.dimension_semantics<arbitrary>], iteration_bounds = array<i64: 1>, scalar_prefetch = 0 : i64, scratch_operands = 0 : i64, tpu.core_type = #tpu.core_type<tc>, window_params = [{pipeline_mode = #tpu.pipeline_mode<synchronous>, transform_indices = @transform_0, window_bounds = array<i64: 4, 72>}, {pipeline_mode = #tpu.pipeline_mode<synchronous>, transform_indices = @transform_1, window_bounds = array<i64: 72, 256>}, {pipeline_mode = #tpu.pipeline_mode<synchronous>, transform_indices = @transform_2, window_bounds = array<i64: 4, 1>}, {pipeline_mode = #tpu.pipeline_mode<synchronous>, transform_indices = @transform_3, window_bounds = array<i64: 4, 1>}, {pipeline_mode = #tpu.pipeline_mode<synchronous>, transform_indices = @transform_4, window_bounds = array<i64: 4, 256>}, {pipeline_mode = #tpu.pipeline_mode<synchronous>, transform_indices = @transform_5, window_bounds = array<i64: 4, 256>}]} {
    %c0 = arith.constant 0 : index
    %c0_0 = arith.constant 0 : index
    %0 = vector.load %arg1[%c0, %c0_0] : memref<4x72xbf16, #tpu.memory_space<vmem>>, vector<4x72xbf16>
    %c0_1 = arith.constant 0 : index
    %c0_2 = arith.constant 0 : index
    %1 = vector.load %arg2[%c0_1, %c0_2] : memref<72x256xbf16, #tpu.memory_space<vmem>>, vector<72x256xbf16>
    %cst = arith.constant dense<0.000000e+00> : vector<4x256xf32>
    %2 = tpu.matmul %0, %1, %cst {dimension_numbers = #tpu.dot_dimension_numbers<[1], [0], [0], [1], [0, 0, 1, 1], [], []>} : vector<4x72xbf16>, vector<72x256xbf16>, vector<4x256xf32> -> vector<4x256xf32>
    %cst_3 = arith.constant dense<0.000000e+00> : vector<4xf32>
    %3 = vector.multi_reduction <add>, %2, %cst_3 [1] : vector<4x256xf32> to vector<4xf32>
    %4 = vector.shape_cast %3 : vector<4xf32> to vector<4x1xf32>
    %cst_4 = arith.constant 2.560000e+02 : f32
    %5 = vector.broadcast %cst_4 : f32 to vector<4x1xf32>
    %6 = arith.divf %4, %5 : vector<4x1xf32>
    %7 = vector.broadcast %6 : vector<4x1xf32> to vector<4x256xf32>
    %8 = arith.subf %2, %7 : vector<4x256xf32>
    %9 = arith.mulf %8, %8 : vector<4x256xf32>
    %cst_5 = arith.constant dense<0.000000e+00> : vector<4xf32>
    %10 = vector.multi_reduction <add>, %9, %cst_5 [1] : vector<4x256xf32> to vector<4xf32>
    %11 = vector.shape_cast %10 : vector<4xf32> to vector<4x1xf32>
    %cst_6 = arith.constant 2.560000e+02 : f32
    %12 = vector.broadcast %cst_6 : f32 to vector<4x1xf32>
    %13 = arith.divf %11, %12 : vector<4x1xf32>
    %14 = vector.broadcast %6 : vector<4x1xf32> to vector<4x256xf32>
    %15 = arith.subf %2, %14 : vector<4x256xf32>
    %cst_7 = arith.constant 9.99999974E-6 : f32
    %16 = vector.broadcast %cst_7 : f32 to vector<4x1xf32>
    %17 = arith.addf %13, %16 : vector<4x1xf32>
    %18 = math.rsqrt %17 : vector<4x1xf32>
    %19 = vector.broadcast %18 : vector<4x1xf32> to vector<4x256xf32>
    %20 = arith.mulf %15, %19 : vector<4x256xf32>
    %c0_8 = arith.constant 0 : index
    %c0_9 = arith.constant 0 : index
    %21 = vector.load %arg3[%c0_8, %c0_9] : memref<4x1xf32, #tpu.memory_space<vmem>>, vector<4x1xf32>
    %22 = vector.broadcast %21 : vector<4x1xf32> to vector<4x256xf32>
    %23 = arith.mulf %20, %22 : vector<4x256xf32>
    %c0_10 = arith.constant 0 : index
    %c0_11 = arith.constant 0 : index
    %24 = vector.load %arg4[%c0_10, %c0_11] : memref<4x1xf32, #tpu.memory_space<vmem>>, vector<4x1xf32>
    %25 = vector.broadcast %24 : vector<4x1xf32> to vector<4x256xf32>
    %26 = arith.addf %23, %25 : vector<4x256xf32>
    %cst_12 = arith.constant 0.000000e+00 : f32
    %27 = vector.broadcast %cst_12 : f32 to vector<4x256xf32>
    %28 = arith.maximumf %26, %27 : vector<4x256xf32>
    %c0_13 = arith.constant 0 : index
    %c0_14 = arith.constant 0 : index
    %29 = vector.load %arg5[%c0_13, %c0_14] : memref<4x256xf32, #tpu.memory_space<vmem>>, vector<4x256xf32>
    %30 = arith.addf %28, %29 : vector<4x256xf32>
    %c0_15 = arith.constant 0 : index
    %c0_16 = arith.constant 0 : index
    %31 = vector.load %arg6[%c0_15, %c0_16] : memref<4x256xf32, #tpu.memory_space<vmem>>, vector<4x256xf32>
    tpu.vector_store %arg6[%c0_15, %c0_16], %30 {strides = array<i32>} : memref<4x256xf32, #tpu.memory_space<vmem>>, vector<4x256xf32>,
    return
  }
  func.func @transform_0(%arg0: i32) -> (i32, i32) {
    %c0_i32 = arith.constant 0 : i32
    %c0_i32_0 = arith.constant 0 : i32
    %c0_i32_1 = arith.constant 0 : i32
    return %c0_i32, %c0_i32_0 : i32, i32
  }
  func.func @transform_1(%arg0: i32) -> (i32, i32) {
    %c0_i32 = arith.constant 0 : i32
    %c0_i32_0 = arith.constant 0 : i32
    %c0_i32_1 = arith.constant 0 : i32
    return %c0_i32, %c0_i32_0 : i32, i32
  }
  func.func @transform_2(%arg0: i32) -> (i32, i32) {
    %c0_i32 = arith.constant 0 : i32
    %c0_i32_0 = arith.constant 0 : i32
    %c0_i32_1 = arith.constant 0 : i32
    return %c0_i32, %c0_i32_0 : i32, i32
  }
  func.func @transform_3(%arg0: i32) -> (i32, i32) {
    %c0_i32 = arith.constant 0 : i32
    %c0_i32_0 = arith.constant 0 : i32
    %c0_i32_1 = arith.constant 0 : i32
    return %c0_i32, %c0_i32_0 : i32, i32
  }
  func.func @transform_4(%arg0: i32) -> (i32, i32) {
    %c0_i32 = arith.constant 0 : i32
    %c0_i32_0 = arith.constant 0 : i32
    %c0_i32_1 = arith.constant 0 : i32
    return %c0_i32, %c0_i32_0 : i32, i32
  }
  func.func @transform_5(%arg0: i32) -> (i32, i32) {
    %c0_i32 = arith.constant 0 : i32
    %c0_i32_0 = arith.constant 0 : i32
    %c0_i32_1 = arith.constant 0 : i32
    return %c0_i32, %c0_i32_0 : i32, i32
  }
}

module attributes {stable_mosaic.version = 11 : i64} {
  func.func @kernel(%arg0: i32, %arg1: memref<8x36xbf16, #tpu.memory_space<vmem>>, %arg2: memref<36x256xbf16, #tpu.memory_space<vmem>>, %arg3: memref<8x1xf32, #tpu.memory_space<vmem>>, %arg4: memref<8x1xf32, #tpu.memory_space<vmem>>, %arg5: memref<8x256xf32, #tpu.memory_space<vmem>>, %arg6: memref<8x256xf32, #tpu.memory_space<vmem>>) attributes {dimension_semantics = [#tpu.dimension_semantics<arbitrary>], iteration_bounds = array<i64: 1>, scalar_prefetch = 0 : i64, scratch_operands = 0 : i64, tpu.core_type = #tpu.core_type<tc>, window_params = [{pipeline_mode = #tpu.pipeline_mode<synchronous>, transform_indices = @transform_0, window_bounds = array<i64: 8, 36>}, {pipeline_mode = #tpu.pipeline_mode<synchronous>, transform_indices = @transform_1, window_bounds = array<i64: 36, 256>}, {pipeline_mode = #tpu.pipeline_mode<synchronous>, transform_indices = @transform_2, window_bounds = array<i64: 8, 1>}, {pipeline_mode = #tpu.pipeline_mode<synchronous>, transform_indices = @transform_3, window_bounds = array<i64: 8, 1>}, {pipeline_mode = #tpu.pipeline_mode<synchronous>, transform_indices = @transform_4, window_bounds = array<i64: 8, 256>}, {pipeline_mode = #tpu.pipeline_mode<synchronous>, transform_indices = @transform_5, window_bounds = array<i64: 8, 256>}]} {
    %c0 = arith.constant 0 : index
    %c0_0 = arith.constant 0 : index
    %0 = vector.load %arg1[%c0, %c0_0] : memref<8x36xbf16, #tpu.memory_space<vmem>>, vector<8x36xbf16>
    %c0_1 = arith.constant 0 : index
    %c0_2 = arith.constant 0 : index
    %1 = vector.load %arg2[%c0_1, %c0_2] : memref<36x256xbf16, #tpu.memory_space<vmem>>, vector<36x256xbf16>
    %cst = arith.constant dense<0.000000e+00> : vector<8x256xf32>
    %2 = tpu.matmul %0, %1, %cst {dimension_numbers = #tpu.dot_dimension_numbers<[1], [0], [0], [1], [0, 0, 1, 1], [], []>} : vector<8x36xbf16>, vector<36x256xbf16>, vector<8x256xf32> -> vector<8x256xf32>
    %cst_3 = arith.constant dense<0.000000e+00> : vector<8xf32>
    %3 = vector.multi_reduction <add>, %2, %cst_3 [1] : vector<8x256xf32> to vector<8xf32>
    %4 = vector.shape_cast %3 : vector<8xf32> to vector<8x1xf32>
    %cst_4 = arith.constant 2.560000e+02 : f32
    %5 = vector.broadcast %cst_4 : f32 to vector<8x1xf32>
    %6 = arith.divf %4, %5 : vector<8x1xf32>
    %7 = vector.broadcast %6 : vector<8x1xf32> to vector<8x256xf32>
    %8 = arith.subf %2, %7 : vector<8x256xf32>
    %9 = arith.mulf %8, %8 : vector<8x256xf32>
    %cst_5 = arith.constant dense<0.000000e+00> : vector<8xf32>
    %10 = vector.multi_reduction <add>, %9, %cst_5 [1] : vector<8x256xf32> to vector<8xf32>
    %11 = vector.shape_cast %10 : vector<8xf32> to vector<8x1xf32>
    %cst_6 = arith.constant 2.560000e+02 : f32
    %12 = vector.broadcast %cst_6 : f32 to vector<8x1xf32>
    %13 = arith.divf %11, %12 : vector<8x1xf32>
    %14 = vector.broadcast %6 : vector<8x1xf32> to vector<8x256xf32>
    %15 = arith.subf %2, %14 : vector<8x256xf32>
    %cst_7 = arith.constant 9.99999974E-6 : f32
    %16 = vector.broadcast %cst_7 : f32 to vector<8x1xf32>
    %17 = arith.addf %13, %16 : vector<8x1xf32>
    %18 = math.rsqrt %17 : vector<8x1xf32>
    %19 = vector.broadcast %18 : vector<8x1xf32> to vector<8x256xf32>
    %20 = arith.mulf %15, %19 : vector<8x256xf32>
    %c0_8 = arith.constant 0 : index
    %c0_9 = arith.constant 0 : index
    %21 = vector.load %arg3[%c0_8, %c0_9] : memref<8x1xf32, #tpu.memory_space<vmem>>, vector<8x1xf32>
    %22 = vector.broadcast %21 : vector<8x1xf32> to vector<8x256xf32>
    %23 = arith.mulf %20, %22 : vector<8x256xf32>
    %c0_10 = arith.constant 0 : index
    %c0_11 = arith.constant 0 : index
    %24 = vector.load %arg4[%c0_10, %c0_11] : memref<8x1xf32, #tpu.memory_space<vmem>>, vector<8x1xf32>
    %25 = vector.broadcast %24 : vector<8x1xf32> to vector<8x256xf32>
    %26 = arith.addf %23, %25 : vector<8x256xf32>
    %cst_12 = arith.constant 0.000000e+00 : f32
    %27 = vector.broadcast %cst_12 : f32 to vector<8x256xf32>
    %28 = arith.subf %27, %26 : vector<8x256xf32>
    %29 = math.exp %28 : vector<8x256xf32>
    %cst_13 = arith.constant 1.000000e+00 : f32
    %30 = vector.broadcast %cst_13 : f32 to vector<8x256xf32>
    %31 = arith.addf %30, %29 : vector<8x256xf32>
    %32 = tpu.reciprocal %31 {approx = true} : vector<8x256xf32> -> vector<8x256xf32>
    %c0_14 = arith.constant 0 : index
    %c0_15 = arith.constant 0 : index
    %33 = vector.load %arg5[%c0_14, %c0_15] : memref<8x256xf32, #tpu.memory_space<vmem>>, vector<8x256xf32>
    %34 = arith.addf %32, %33 : vector<8x256xf32>
    %c0_16 = arith.constant 0 : index
    %c0_17 = arith.constant 0 : index
    %35 = vector.load %arg6[%c0_16, %c0_17] : memref<8x256xf32, #tpu.memory_space<vmem>>, vector<8x256xf32>
    tpu.vector_store %arg6[%c0_16, %c0_17], %34 {strides = array<i32>} : memref<8x256xf32, #tpu.memory_space<vmem>>, vector<8x256xf32>,
    return
  }
  func.func @transform_0(%arg0: i32) -> (i32, i32) {
    %c0_i32 = arith.constant 0 : i32
    %c0_i32_0 = arith.constant 0 : i32
    %c0_i32_1 = arith.constant 0 : i32
    return %c0_i32, %c0_i32_0 : i32, i32
  }
  func.func @transform_1(%arg0: i32) -> (i32, i32) {
    %c0_i32 = arith.constant 0 : i32
    %c0_i32_0 = arith.constant 0 : i32
    %c0_i32_1 = arith.constant 0 : i32
    return %c0_i32, %c0_i32_0 : i32, i32
  }
  func.func @transform_2(%arg0: i32) -> (i32, i32) {
    %c0_i32 = arith.constant 0 : i32
    %c0_i32_0 = arith.constant 0 : i32
    %c0_i32_1 = arith.constant 0 : i32
    return %c0_i32, %c0_i32_0 : i32, i32
  }
  func.func @transform_3(%arg0: i32) -> (i32, i32) {
    %c0_i32 = arith.constant 0 : i32
    %c0_i32_0 = arith.constant 0 : i32
    %c0_i32_1 = arith.constant 0 : i32
    return %c0_i32, %c0_i32_0 : i32, i32
  }
  func.func @transform_4(%arg0: i32) -> (i32, i32) {
    %c0_i32 = arith.constant 0 : i32
    %c0_i32_0 = arith.constant 0 : i32
    %c0_i32_1 = arith.constant 0 : i32
    return %c0_i32, %c0_i32_0 : i32, i32
  }
  func.func @transform_5(%arg0: i32) -> (i32, i32) {
    %c0_i32 = arith.constant 0 : i32
    %c0_i32_0 = arith.constant 0 : i32
    %c0_i32_1 = arith.constant 0 : i32
    return %c0_i32, %c0_i32_0 : i32, i32
  }
}

</mosaic_0001>

<llo_original>
// kernel: unet_forward.16
$region0: #{unet_forward.16}
  #allocation0 [shape = 'u32[]', space=smem, size = 0x4, offset = 0x4, fixed_abs, tag = 'smem constant byte address 0x4 - core index']
  #allocation1 [shape = 'u32[144,128]{1,0:T(1,128)}', space=vmem, size = 0x12000, scoped, tag = 'internal scratch']
  %s0 = inlined_call_operand.vmem [shape: bf16[8,32], index: 0, kind: input, shape index: {}]
  %s1 = inlined_call_operand.vmem [shape: bf16[32,1], index: 1, kind: input, shape index: {}]
  %s2 = inlined_call_operand.vmem [shape: f32[8,1], index: 2, kind: input, shape index: {}]
  %s3 = inlined_call_operand.vmem [shape: f32[8,1], index: 3, kind: output, shape index: {}]
  %s4 = sld [smem:[#allocation0]]
  $region22: #{unet_forward.16} parent=0
    _
  %s6 = ssub.s32 1, %s4
  %s7 = scalar_select 0, %s6, %s4
  // Predicated region
  $region2: #{unet_forward.16} parent=0 // pred_check
    _
  $region3: #{unet_forward.16} parent=0 // pred_check_branch
    %9 = sbr.rel (0) target = $region5
  $region4: #{unet_forward.16} parent=0 // pred_region
    _
  $region5: #{unet_forward.16} parent=0 // pred_fallthru
    _
  // Predicated region
  $region6: #{unet_forward.16} parent=0 // pred_check
    _
  $region7: #{unet_forward.16} parent=0 // pred_check_branch
    %11 = sbr.rel (0) target = $region9
  $region8: #{unet_forward.16} parent=0 // pred_region
    _
  $region9: #{unet_forward.16} parent=0 // pred_fallthru
    _
  // Predicated region
  $region10: #{unet_forward.16} parent=0 // pred_check
    _
  $region11: #{unet_forward.16} parent=0 // pred_check_branch
    %13 = sbr.rel (0) target = $region13
  $region12: #{unet_forward.16} parent=0 // pred_region
    _
  $region13: #{unet_forward.16} parent=0 // pred_fallthru
    _
  %v15 = vld [vmem:[%s0] sm:$0xf]
  %v16 = vld [vmem:[%s1] sm:$0xf]
  %v17 = vld [vmem:[%s1 + $0x4] sm:$0xf]
  %v18 = vld [vmem:[%s1 + $0x8] sm:$0xf]
  %v19 = vld [vmem:[%s1 + $0xc] sm:$0xf]
  %v20 = vld [vmem:[%s2] sm:$0xff]
  %v25 = vunpack.c.l.b16 %v16
  %v26 = vunpack.c.l.b16 %v17
  %v27 = vunpack.c.l.b16 %v18
  %v28 = vunpack.c.l.b16 %v19
  %v29 = vpack.c.b16 %v26, %v25
  %v30 = vpack.c.b16 %v28, %v27
  %vm33 = vcmask 261120
  %v35 = vsel %vm33, %v15, 0
  %37 = vmatprep.subr.bf16.mxu0 0
  %38 = vmatpush1.bf16.msra.mxu0 0
  %39 = vmatprep.subr.bf16.mxu0 0
  %40 = vmatpush1.bf16.msra.mxu0 0
  %41 = vmatprep.subr.bf16.mxu0 0
  %42 = vmatpush1.bf16.msra.mxu0 0
  %43 = vmatprep.subr.bf16.mxu0 0
  %44 = vmatpush1.bf16.msra.mxu0 0
  %45 = vmatprep.subr.bf16.mxu0 0
  %46 = vmatpush1.bf16.msra.mxu0 0
  %47 = vmatprep.subr.bf16.mxu0 0
  %48 = vmatpush1.bf16.msra.mxu0 0
  %49 = vmatprep.subr.bf16.mxu0 0
  %50 = vmatpush1.bf16.msra.mxu0 %v30
  %51 = vmatprep.subr.bf16.mxu0 0
  %52 = vmatpush1.bf16.msra.mxu0 %v29
  %53 = vmatprep.subr.bf16.mxu0 0
  %54 = vmatpush2.bf16.msra.mxu0 0
  %55 = vmatprep.subr.bf16.mxu0 0
  %56 = vmatpush2.bf16.msra.mxu0 0
  %57 = vmatprep.subr.bf16.mxu0 0
  %58 = vmatpush2.bf16.msra.mxu0 0
  %59 = vmatprep.subr.bf16.mxu0 0
  %60 = vmatpush2.bf16.msra.mxu0 0
  %61 = vmatprep.subr.bf16.mxu0 0
  %62 = vmatpush2.bf16.msra.mxu0 0
  %63 = vmatprep.subr.bf16.mxu0 0
  %64 = vmatpush2.bf16.msra.mxu0 0
  %65 = vmatprep.subr.bf16.mxu0 0
  %66 = vmatpush2.bf16.msra.mxu0 0
  %67 = vmatprep.subr.bf16.mxu0 0
  %68 = vmatpush2.bf16.msra.mxu0 0
  %69 = vmatprep.mubr.bf16.mxu0 0
  %70 = vmatmul.mubr.bf16.gmra.mxu0 %v35
  %v71 = vpop.f32.mrf.mxu0
  %v72 = vadd.f32 %v20, %v71
  %v73 = vpop.f32.mrf.mxu0
  %v74 = vpop.f32.mrf.mxu0
  %v75 = vpop.f32.mrf.mxu0
  %76 = vdwg.mxu0
  %vm77 = vcmask 7168
  %78 = vst.msk [vmem:[%s3] sm:$0xff] %vm77, %v72
  // Predicated region
  $region14: #{unet_forward.16} parent=0 // pred_check
    _
  $region15: #{unet_forward.16} parent=0 // pred_check_branch
    %80 = sbr.rel (0) target = $region17
  $region16: #{unet_forward.16} parent=0 // pred_region
    _
  $region17: #{unet_forward.16} parent=0 // pred_fallthru
    _
  // Predicated region
  $region18: #{unet_forward.16} parent=0 // pred_check
    _
  $region19: #{unet_forward.16} parent=0 // pred_check_branch
    %82 = sbr.rel (0) target = $region21
  $region20: #{unet_forward.16} parent=0 // pred_region
    _
  $region21: #{unet_forward.16} parent=0 // pred_fallthru
    _

// kernel: unet_forward.17
$region0: #{unet_forward.17}
  #allocation0 [shape = 'u32[]', space=smem, size = 0x4, offset = 0x4, fixed_abs, tag = 'smem constant byte address 0x4 - core index']
  #allocation1 [shape = 'u32[144,128]{1,0:T(1,128)}', space=vmem, size = 0x12000, scoped, tag = 'internal scratch']
  %s0 = inlined_call_operand.vmem [shape: bf16[4,72], index: 0, kind: input, shape index: {}]
  %s1 = inlined_call_operand.vmem [shape: bf16[72,256], index: 1, kind: input, shape index: {}]
  %s2 = inlined_call_operand.vmem [shape: f32[4,1], index: 2, kind: input, shape index: {}]
  %s3 = inlined_call_operand.vmem [shape: f32[4,1], index: 3, kind: input, shape index: {}]
  %s4 = inlined_call_operand.vmem [shape: f32[4,256], index: 4, kind: output, shape index: {}]
  %s5 = sld [smem:[#allocation0]]
  $region26: #{unet_forward.17} parent=0
    _
  %s7 = ssub.s32 1, %s5
  %s8 = scalar_select 0, %s7, %s5
  // Predicated region
  $region2: #{unet_forward.17} parent=0 // pred_check
    _
  $region3: #{unet_forward.17} parent=0 // pred_check_branch
    %10 = sbr.rel (0) target = $region5
  $region4: #{unet_forward.17} parent=0 // pred_region
    _
  $region5: #{unet_forward.17} parent=0 // pred_fallthru
    _
  // Predicated region
  $region6: #{unet_forward.17} parent=0 // pred_check
    _
  $region7: #{unet_forward.17} parent=0 // pred_check_branch
    %12 = sbr.rel (0) target = $region9
  $region8: #{unet_forward.17} parent=0 // pred_region
    _
  $region9: #{unet_forward.17} parent=0 // pred_fallthru
    _
  // Predicated region
  $region10: #{unet_forward.17} parent=0 // pred_check
    _
  $region11: #{unet_forward.17} parent=0 // pred_check_branch
    %14 = sbr.rel (0) target = $region13
  $region12: #{unet_forward.17} parent=0 // pred_region
    _
  $region13: #{unet_forward.17} parent=0 // pred_fallthru
    _
  // Predicated region
  $region14: #{unet_forward.17} parent=0 // pred_check
    _
  $region15: #{unet_forward.17} parent=0 // pred_check_branch
    %16 = sbr.rel (0) target = $region17
  $region16: #{unet_forward.17} parent=0 // pred_region
    _
  $region17: #{unet_forward.17} parent=0 // pred_fallthru
    _
  %v18 = vld [vmem:[%s0] sm:$0x3]
  %v19 = vld [vmem:[%s1] sm:$0xff]
  %v20 = vld [vmem:[%s1 + $0x8] sm:$0xff]
  %v21 = vld [vmem:[%s1 + $0x10] sm:$0xff]
  %v22 = vld [vmem:[%s1 + $0x18] sm:$0xff]
  %v23 = vld [vmem:[%s1 + $0x20] sm:$0xff]
  %v24 = vld [vmem:[%s1 + $0x28] sm:$0xff]
  %v25 = vld [vmem:[%s1 + $0x30] sm:$0xff]
  %v26 = vld [vmem:[%s1 + $0x38] sm:$0xff]
  %v27 = vld [vmem:[%s1 + $0x40] sm:$0xff]
  %v37 = vunpack.c.l.b16 %v19
  %v38 = vunpack.c.h.b16 %v19
  %v39 = vunpack.c.l.b16 %v20
  %v40 = vunpack.c.h.b16 %v20
  %v41 = vunpack.c.l.b16 %v21
  %v42 = vunpack.c.h.b16 %v21
  %v43 = vunpack.c.l.b16 %v22
  %v44 = vunpack.c.h.b16 %v22
  %v45 = vunpack.c.l.b16 %v23
  %v46 = vunpack.c.h.b16 %v23
  %v47 = vunpack.c.l.b16 %v24
  %v48 = vunpack.c.h.b16 %v24
  %v49 = vunpack.c.l.b16 %v25
  %v50 = vunpack.c.h.b16 %v25
  %v51 = vunpack.c.l.b16 %v26
  %v52 = vunpack.c.h.b16 %v26
  %v53 = vunpack.c.l.b16 %v27
  %v54 = vunpack.c.h.b16 %v27
  %v55 = vpack.c.b16 %v39, %v37
  %v56 = vpack.c.b16 %v40, %v38
  %v57 = vpack.c.b16 %v43, %v41
  %v58 = vpack.c.b16 %v44, %v42
  %v59 = vpack.c.b16 %v47, %v45
  %v60 = vpack.c.b16 %v48, %v46
  %v61 = vpack.c.b16 %v51, %v49
  %v62 = vpack.c.b16 %v52, %v50
  %v63 = vpack.c.b16 %v53, %v53
  %v64 = vpack.c.b16 %v54, %v54
  %vm73 = vcmask 588800
  %v75 = vsel %vm73, %v18, 0
  %vm77 = vcmask 1043456
  %v79 = vsel %vm77, %v63, 0
  %v82 = vsel %vm77, %v64, 0
  %84 = vmatprep.subr.bf16.mxu0 0
  %85 = vmatpush1.bf16.msra.mxu0 0
  %86 = vmatprep.subr.bf16.mxu0 0
  %87 = vmatpush1.bf16.msra.mxu0 0
  %88 = vmatprep.subr.bf16.mxu0 0
  %89 = vmatpush1.bf16.msra.mxu0 0
  %90 = vmatprep.subr.bf16.mxu0 %v82
  %91 = vmatpush1.bf16.msra.mxu0 %v79
  %92 = vmatprep.subr.bf16.mxu0 %v62
  %93 = vmatpush1.bf16.msra.mxu0 %v61
  %94 = vmatprep.subr.bf16.mxu0 %v60
  %95 = vmatpush1.bf16.msra.mxu0 %v59
  %96 = vmatprep.subr.bf16.mxu0 %v58
  %97 = vmatpush1.bf16.msra.mxu0 %v57
  %98 = vmatprep.subr.bf16.mxu0 %v56
  %99 = vmatpush1.bf16.msra.mxu0 %v55
  %100 = vmatprep.subr.bf16.mxu0 0
  %101 = vmatpush2.bf16.msra.mxu0 0
  %102 = vmatprep.subr.bf16.mxu0 0
  %103 = vmatpush2.bf16.msra.mxu0 0
  %104 = vmatprep.subr.bf16.mxu0 0
  %105 = vmatpush2.bf16.msra.mxu0 0
  %106 = vmatprep.subr.bf16.mxu0 0
  %107 = vmatpush2.bf16.msra.mxu0 0
  %108 = vmatprep.subr.bf16.mxu0 0
  %109 = vmatpush2.bf16.msra.mxu0 0
  %110 = vmatprep.subr.bf16.mxu0 0
  %111 = vmatpush2.bf16.msra.mxu0 0
  %112 = vmatprep.subr.bf16.mxu0 0
  %113 = vmatpush2.bf16.msra.mxu0 0
  %114 = vmatprep.subr.bf16.mxu0 0
  %115 = vmatpush2.bf16.msra.mxu0 0
  %116 = vmatprep.mubr.bf16.mxu0 0
  %117 = vmatmul.mubr.bf16.gmra.mxu0 %v75
  %v118 = vpop.f32.mrf.mxu0
  %v119 = vadd.f32 0.0, %v118
  %v120 = vpop.f32.mrf.mxu0
  %v121 = vadd.f32 0.0, %v120
  %v122 = vpop.f32.mrf.mxu0
  %v123 = vpop.f32.mrf.mxu0
  %124 = vdwg.mxu0
  %v125 = vsel %vm77, %v119, 0.0
  %v126 = vsel %vm77, %v121, 0.0
  %v127 = vadd.f32 %v125, %v126
  %128 = vadd.xlane.f32.xlu0 %v127
  %v129 = vpop.xlane.xlu0 %128
  %v130 = vrcp.pop 256.0
  %v131 = vmul.f32 %v129, %v130
  %v132 = vsub.f32 %v119, %v131
  %v133 = vsub.f32 %v121, %v131
  %v134 = vmul.f32 %v132, %v132
  %v135 = vmul.f32 %v133, %v133
  %v136 = vsel %vm77, %v134, 0.0
  %v137 = vsel %vm77, %v135, 0.0
  %v138 = vadd.f32 %v136, %v137
  %139 = vadd.xlane.f32.xlu0 %v138
  %v140 = vpop.xlane.xlu0 %139
  %v141 = vmul.f32 %v140, %v130
  %v142 = vadd.f32 %v141, 1e-05
  %v143 = vrsqrt.pop %v142
  %v144 = vmul.f32 %v132, %v143
  %v145 = vmul.f32 %v133, %v143
  %v146 = vld [vmem:[%s2] sm:$0xf]
  %148 = vset.pattern.permute.xlu0 0
  %149 = vperm.xlu0 %148, %v146
  %v150 = vpop.permute.xlu0 %149
  %v152 = vmul.f32 %v144, %v150
  %v153 = vmul.f32 %v145, %v150
  %v154 = vld [vmem:[%s3] sm:$0xf]
  %156 = vset.pattern.permute.xlu0 0
  %157 = vperm.xlu0 %156, %v154
  %v158 = vpop.permute.xlu0 %157
  %v160 = vadd.f32 %v152, %v158
  %v161 = vadd.f32 %v153, %v158
  %v162 = vmax.f32 %v160, 0.0
  %v163 = vmax.f32 %v161, 0.0
  %v166 = vcombine.low %v162, %v163
  %168 = vst [vmem:[%s4] sm:$0xff] %v166
  // Predicated region
  $region18: #{unet_forward.17} parent=0 // pred_check
    _
  $region19: #{unet_forward.17} parent=0 // pred_check_branch
    %170 = sbr.rel (0) target = $region21
  $region20: #{unet_forward.17} parent=0 // pred_region
    _
  $region21: #{unet_forward.17} parent=0 // pred_fallthru
    _
  // Predicated region
  $region22: #{unet_forward.17} parent=0 // pred_check
    _
  $region23: #{unet_forward.17} parent=0 // pred_check_branch
    %172 = sbr.rel (0) target = $region25
  $region24: #{unet_forward.17} parent=0 // pred_region
    _
  $region25: #{unet_forward.17} parent=0 // pred_fallthru
    _

// kernel: unet_forward.18
$region0: #{unet_forward.18}
  #allocation0 [shape = 'u32[]', space=smem, size = 0x4, offset = 0x4, fixed_abs, tag = 'smem constant byte address 0x4 - core index']
  #allocation1 [shape = 'u32[144,128]{1,0:T(1,128)}', space=vmem, size = 0x12000, scoped, tag = 'internal scratch']
  %s0 = inlined_call_operand.vmem [shape: bf16[4,36], index: 0, kind: input, shape index: {}]
  %s1 = inlined_call_operand.vmem [shape: bf16[36,256], index: 1, kind: input, shape index: {}]
  %s2 = inlined_call_operand.vmem [shape: f32[4,1], index: 2, kind: input, shape index: {}]
  %s3 = inlined_call_operand.vmem [shape: f32[4,1], index: 3, kind: input, shape index: {}]
  %s4 = inlined_call_operand.vmem [shape: f32[4,256], index: 4, kind: output, shape index: {}]
  %s5 = sld [smem:[#allocation0]]
  $region26: #{unet_forward.18} parent=0
    _
  %s7 = ssub.s32 1, %s5
  %s8 = scalar_select 0, %s7, %s5
  // Predicated region
  $region2: #{unet_forward.18} parent=0 // pred_check
    _
  $region3: #{unet_forward.18} parent=0 // pred_check_branch
    %10 = sbr.rel (0) target = $region5
  $region4: #{unet_forward.18} parent=0 // pred_region
    _
  $region5: #{unet_forward.18} parent=0 // pred_fallthru
    _
  // Predicated region
  $region6: #{unet_forward.18} parent=0 // pred_check
    _
  $region7: #{unet_forward.18} parent=0 // pred_check_branch
    %12 = sbr.rel (0) target = $region9
  $region8: #{unet_forward.18} parent=0 // pred_region
    _
  $region9: #{unet_forward.18} parent=0 // pred_fallthru
    _
  // Predicated region
  $region10: #{unet_forward.18} parent=0 // pred_check
    _
  $region11: #{unet_forward.18} parent=0 // pred_check_branch
    %14 = sbr.rel (0) target = $region13
  $region12: #{unet_forward.18} parent=0 // pred_region
    _
  $region13: #{unet_forward.18} parent=0 // pred_fallthru
    _
  // Predicated region
  $region14: #{unet_forward.18} parent=0 // pred_check
    _
  $region15: #{unet_forward.18} parent=0 // pred_check_branch
    %16 = sbr.rel (0) target = $region17
  $region16: #{unet_forward.18} parent=0 // pred_region
    _
  $region17: #{unet_forward.18} parent=0 // pred_fallthru
    _
  %v18 = vld [vmem:[%s0] sm:$0x3]
  %v19 = vld [vmem:[%s1] sm:$0xff]
  %v20 = vld [vmem:[%s1 + $0x8] sm:$0xff]
  %v21 = vld [vmem:[%s1 + $0x10] sm:$0xff]
  %v22 = vld [vmem:[%s1 + $0x18] sm:$0xff]
  %v23 = vld [vmem:[%s1 + $0x20] sm:$0x33]
  %v29 = vunpack.c.l.b16 %v19
  %v30 = vunpack.c.h.b16 %v19
  %v31 = vunpack.c.l.b16 %v20
  %v32 = vunpack.c.h.b16 %v20
  %v33 = vunpack.c.l.b16 %v21
  %v34 = vunpack.c.h.b16 %v21
  %v35 = vunpack.c.l.b16 %v22
  %v36 = vunpack.c.h.b16 %v22
  %v37 = vunpack.c.l.b16 %v23
  %v38 = vunpack.c.h.b16 %v23
  %v39 = vpack.c.b16 %v31, %v29
  %v40 = vpack.c.b16 %v32, %v30
  %v41 = vpack.c.b16 %v35, %v33
  %v42 = vpack.c.b16 %v36, %v34
  %v43 = vpack.c.b16 %v37, %v37
  %v44 = vpack.c.b16 %v38, %v38
  %vm49 = vcmask 293888
  %v51 = vsel %vm49, %v18, 0
  %vm53 = vcmask 1041408
  %v55 = vsel %vm53, %v43, 0
  %v58 = vsel %vm53, %v44, 0
  %60 = vmatprep.subr.bf16.mxu0 0
  %61 = vmatpush1.bf16.msra.mxu0 0
  %62 = vmatprep.subr.bf16.mxu0 0
  %63 = vmatpush1.bf16.msra.mxu0 0
  %64 = vmatprep.subr.bf16.mxu0 0
  %65 = vmatpush1.bf16.msra.mxu0 0
  %66 = vmatprep.subr.bf16.mxu0 0
  %67 = vmatpush1.bf16.msra.mxu0 0
  %68 = vmatprep.subr.bf16.mxu0 0
  %69 = vmatpush1.bf16.msra.mxu0 0
  %70 = vmatprep.subr.bf16.mxu0 %v58
  %71 = vmatpush1.bf16.msra.mxu0 %v55
  %72 = vmatprep.subr.bf16.mxu0 %v42
  %73 = vmatpush1.bf16.msra.mxu0 %v41
  %74 = vmatprep.subr.bf16.mxu0 %v40
  %75 = vmatpush1.bf16.msra.mxu0 %v39
  %76 = vmatprep.subr.bf16.mxu0 0
  %77 = vmatpush2.bf16.msra.mxu0 0
  %78 = vmatprep.subr.bf16.mxu0 0
  %79 = vmatpush2.bf16.msra.mxu0 0
  %80 = vmatprep.subr.bf16.mxu0 0
  %81 = vmatpush2.bf16.msra.mxu0 0
  %82 = vmatprep.subr.bf16.mxu0 0
  %83 = vmatpush2.bf16.msra.mxu0 0
  %84 = vmatprep.subr.bf16.mxu0 0
  %85 = vmatpush2.bf16.msra.mxu0 0
  %86 = vmatprep.subr.bf16.mxu0 0
  %87 = vmatpush2.bf16.msra.mxu0 0
  %88 = vmatprep.subr.bf16.mxu0 0
  %89 = vmatpush2.bf16.msra.mxu0 0
  %90 = vmatprep.subr.bf16.mxu0 0
  %91 = vmatpush2.bf16.msra.mxu0 0
  %92 = vmatprep.mubr.bf16.mxu0 0
  %93 = vmatmul.mubr.bf16.gmra.mxu0 %v51
  %v94 = vpop.f32.mrf.mxu0
  %v95 = vadd.f32 0.0, %v94
  %v96 = vpop.f32.mrf.mxu0
  %v97 = vadd.f32 0.0, %v96
  %v98 = vpop.f32.mrf.mxu0
  %v99 = vpop.f32.mrf.mxu0
  %100 = vdwg.mxu0
  %vm101 = vcmask 1043456
  %v102 = vsel %vm101, %v95, 0.0
  %v103 = vsel %vm101, %v97, 0.0
  %v104 = vadd.f32 %v102, %v103
  %105 = vadd.xlane.f32.xlu0 %v104
  %v106 = vpop.xlane.xlu0 %105
  %v107 = vrcp.pop 256.0
  %v108 = vmul.f32 %v106, %v107
  %v109 = vsub.f32 %v95, %v108
  %v110 = vsub.f32 %v97, %v108
  %v111 = vmul.f32 %v109, %v109
  %v112 = vmul.f32 %v110, %v110
  %v113 = vsel %vm101, %v111, 0.0
  %v114 = vsel %vm101, %v112, 0.0
  %v115 = vadd.f32 %v113, %v114
  %116 = vadd.xlane.f32.xlu0 %v115
  %v117 = vpop.xlane.xlu0 %116
  %v118 = vmul.f32 %v117, %v107
  %v119 = vadd.f32 %v118, 1e-05
  %v120 = vrsqrt.pop %v119
  %v121 = vmul.f32 %v109, %v120
  %v122 = vmul.f32 %v110, %v120
  %v123 = vld [vmem:[%s2] sm:$0xf]
  %125 = vset.pattern.permute.xlu0 0
  %126 = vperm.xlu0 %125, %v123
  %v127 = vpop.permute.xlu0 %126
  %v129 = vmul.f32 %v121, %v127
  %v130 = vmul.f32 %v122, %v127
  %v131 = vld [vmem:[%s3] sm:$0xf]
  %133 = vset.pattern.permute.xlu0 0
  %134 = vperm.xlu0 %133, %v131
  %v135 = vpop.permute.xlu0 %134
  %v137 = vadd.f32 %v129, %v135
  %v138 = vadd.f32 %v130, %v135
  %v139 = vmax.f32 %v137, 0.0
  %v140 = vmax.f32 %v138, 0.0
  %v143 = vcombine.low %v139, %v140
  %145 = vst [vmem:[%s4] sm:$0xff] %v143
  // Predicated region
  $region18: #{unet_forward.18} parent=0 // pred_check
    _
  $region19: #{unet_forward.18} parent=0 // pred_check_branch
    %147 = sbr.rel (0) target = $region21
  $region20: #{unet_forward.18} parent=0 // pred_region
    _
  $region21: #{unet_forward.18} parent=0 // pred_fallthru
    _
  // Predicated region
  $region22: #{unet_forward.18} parent=0 // pred_check
    _
  $region23: #{unet_forward.18} parent=0 // pred_check_branch
    %149 = sbr.rel (0) target = $region25
  $region24: #{unet_forward.18} parent=0 // pred_region
    _
  $region25: #{unet_forward.18} parent=0 // pred_fallthru
    _

// kernel: unet_forward.19
$region0: #{unet_forward.19}
  #allocation0 [shape = 'u32[]', space=smem, size = 0x4, offset = 0x4, fixed_abs, tag = 'smem constant byte address 0x4 - core index']
  #allocation1 [shape = 'u32[144,128]{1,0:T(1,128)}', space=vmem, size = 0x12000, scoped, tag = 'internal scratch']
  %s0 = inlined_call_operand.vmem [shape: bf16[8,36], index: 0, kind: input, shape index: {}]
  %s1 = inlined_call_operand.vmem [shape: bf16[36,64], index: 1, kind: input, shape index: {}]
  %s2 = inlined_call_operand.vmem [shape: f32[8,1], index: 2, kind: input, shape index: {}]
  %s3 = inlined_call_operand.vmem [shape: f32[8,1], index: 3, kind: input, shape index: {}]
  %s4 = inlined_call_operand.vmem [shape: f32[8,64], index: 4, kind: output, shape index: {}]
  %s5 = sld [smem:[#allocation0]]
  $region26: #{unet_forward.19} parent=0
    _
  %s7 = ssub.s32 1, %s5
  %s8 = scalar_select 0, %s7, %s5
  // Predicated region
  $region2: #{unet_forward.19} parent=0 // pred_check
    _
  $region3: #{unet_forward.19} parent=0 // pred_check_branch
    %10 = sbr.rel (0) target = $region5
  $region4: #{unet_forward.19} parent=0 // pred_region
    _
  $region5: #{unet_forward.19} parent=0 // pred_fallthru
    _
  // Predicated region
  $region6: #{unet_forward.19} parent=0 // pred_check
    _
  $region7: #{unet_forward.19} parent=0 // pred_check_branch
    %12 = sbr.rel (0) target = $region9
  $region8: #{unet_forward.19} parent=0 // pred_region
    _
  $region9: #{unet_forward.19} parent=0 // pred_fallthru
    _
  // Predicated region
  $region10: #{unet_forward.19} parent=0 // pred_check
    _
  $region11: #{unet_forward.19} parent=0 // pred_check_branch
    %14 = sbr.rel (0) target = $region13
  $region12: #{unet_forward.19} parent=0 // pred_region
    _
  $region13: #{unet_forward.19} parent=0 // pred_fallthru
    _
  // Predicated region
  $region14: #{unet_forward.19} parent=0 // pred_check
    _
  $region15: #{unet_forward.19} parent=0 // pred_check_branch
    %16 = sbr.rel (0) target = $region17
  $region16: #{unet_forward.19} parent=0 // pred_region
    _
  $region17: #{unet_forward.19} parent=0 // pred_fallthru
    _
  %v18 = vld [vmem:[%s0] sm:$0xf]
  %v19 = vld [vmem:[%s1] sm:$0xf]
  %v20 = vld [vmem:[%s1 + $0x4] sm:$0xf]
  %v21 = vld [vmem:[%s1 + $0x8] sm:$0xf]
  %v22 = vld [vmem:[%s1 + $0xc] sm:$0xf]
  %v23 = vld [vmem:[%s1 + $0x10] sm:$0x3]
  %v29 = vunpack.c.l.b16 %v19
  %v30 = vunpack.c.l.b16 %v20
  %v31 = vunpack.c.l.b16 %v21
  %v32 = vunpack.c.l.b16 %v22
  %v33 = vunpack.c.l.b16 %v23
  %v34 = vpack.c.b16 %v30, %v29
  %v35 = vpack.c.b16 %v32, %v31
  %v36 = vpack.c.b16 %v33, %v33
  %vm39 = vcmask 293888
  %v41 = vsel %vm39, %v18, 0
  %vm43 = vcmask 1041408
  %v45 = vsel %vm43, %v36, 0
  %47 = vmatprep.subr.bf16.mxu0 0
  %48 = vmatpush1.bf16.msra.mxu0 0
  %49 = vmatprep.subr.bf16.mxu0 0
  %50 = vmatpush1.bf16.msra.mxu0 0
  %51 = vmatprep.subr.bf16.mxu0 0
  %52 = vmatpush1.bf16.msra.mxu0 0
  %53 = vmatprep.subr.bf16.mxu0 0
  %54 = vmatpush1.bf16.msra.mxu0 0
  %55 = vmatprep.subr.bf16.mxu0 0
  %56 = vmatpush1.bf16.msra.mxu0 0
  %57 = vmatprep.subr.bf16.mxu0 0
  %58 = vmatpush1.bf16.msra.mxu0 %v45
  %59 = vmatprep.subr.bf16.mxu0 0
  %60 = vmatpush1.bf16.msra.mxu0 %v35
  %61 = vmatprep.subr.bf16.mxu0 0
  %62 = vmatpush1.bf16.msra.mxu0 %v34
  %63 = vmatprep.subr.bf16.mxu0 0
  %64 = vmatpush2.bf16.msra.mxu0 0
  %65 = vmatprep.subr.bf16.mxu0 0
  %66 = vmatpush2.bf16.msra.mxu0 0
  %67 = vmatprep.subr.bf16.mxu0 0
  %68 = vmatpush2.bf16.msra.mxu0 0
  %69 = vmatprep.subr.bf16.mxu0 0
  %70 = vmatpush2.bf16.msra.mxu0 0
  %71 = vmatprep.subr.bf16.mxu0 0
  %72 = vmatpush2.bf16.msra.mxu0 0
  %73 = vmatprep.subr.bf16.mxu0 0
  %74 = vmatpush2.bf16.msra.mxu0 0
  %75 = vmatprep.subr.bf16.mxu0 0
  %76 = vmatpush2.bf16.msra.mxu0 0
  %77 = vmatprep.subr.bf16.mxu0 0
  %78 = vmatpush2.bf16.msra.mxu0 0
  %79 = vmatprep.mubr.bf16.mxu0 0
  %80 = vmatmul.mubr.bf16.gmra.mxu0 %v41
  %v81 = vpop.f32.mrf.mxu0
  %v82 = vadd.f32 0.0, %v81
  %v83 = vpop.f32.mrf.mxu0
  %v84 = vpop.f32.mrf.mxu0
  %v85 = vpop.f32.mrf.mxu0
  %86 = vdwg.mxu0
  %vm87 = vcmask 523264
  %v88 = vsel %vm87, %v82, 0.0
  %89 = vadd.xlane.f32.xlu0 %v88
  %v90 = vpop.xlane.xlu0 %89
  %v91 = vrcp.pop 64.0
  %v92 = vmul.f32 %v90, %v91
  %v93 = vsub.f32 %v82, %v92
  %v94 = vmul.f32 %v93, %v93
  %v95 = vsel %vm87, %v94, 0.0
  %96 = vadd.xlane.f32.xlu0 %v95
  %v97 = vpop.xlane.xlu0 %96
  %v98 = vmul.f32 %v97, %v91
  %v99 = vadd.f32 %v98, 1e-05
  %v100 = vrsqrt.pop %v99
  %v101 = vmul.f32 %v93, %v100
  %v102 = vld [vmem:[%s2] sm:$0xff]
  %104 = vset.pattern.permute.xlu0 0
  %105 = vperm.xlu0 %104, %v102
  %v106 = vpop.permute.xlu0 %105
  %v108 = vmul.f32 %v101, %v106
  %v109 = vld [vmem:[%s3] sm:$0xff]
  %111 = vset.pattern.permute.xlu0 0
  %112 = vperm.xlu0 %111, %v109
  %v113 = vpop.permute.xlu0 %112
  %v115 = vadd.f32 %v108, %v113
  %v116 = vmax.f32 %v115, 0.0
  %117 = vst.msk [vmem:[%s4] sm:$0xff] %vm87, %v116
  // Predicated region
  $region18: #{unet_forward.19} parent=0 // pred_check
    _
  $region19: #{unet_forward.19} parent=0 // pred_check_branch
    %119 = sbr.rel (0) target = $region21
  $region20: #{unet_forward.19} parent=0 // pred_region
    _
  $region21: #{unet_forward.19} parent=0 // pred_fallthru
    _
  // Predicated region
  $region22: #{unet_forward.19} parent=0 // pred_check
    _
  $region23: #{unet_forward.19} parent=0 // pred_check_branch
    %121 = sbr.rel (0) target = $region25
  $region24: #{unet_forward.19} parent=0 // pred_region
    _
  $region25: #{unet_forward.19} parent=0 // pred_fallthru
    _

// kernel: unet_forward.20
$region0: #{unet_forward.20}
  #allocation0 [shape = 'u32[]', space=smem, size = 0x4, offset = 0x4, fixed_abs, tag = 'smem constant byte address 0x4 - core index']
  #allocation1 [shape = 'u32[144,128]{1,0:T(1,128)}', space=vmem, size = 0x12000, scoped, tag = 'internal scratch']
  %s0 = inlined_call_operand.vmem [shape: bf16[8,72], index: 0, kind: input, shape index: {}]
  %s1 = inlined_call_operand.vmem [shape: bf16[72,64], index: 1, kind: input, shape index: {}]
  %s2 = inlined_call_operand.vmem [shape: f32[8,1], index: 2, kind: input, shape index: {}]
  %s3 = inlined_call_operand.vmem [shape: f32[8,1], index: 3, kind: input, shape index: {}]
  %s4 = inlined_call_operand.vmem [shape: f32[8,64], index: 4, kind: output, shape index: {}]
  %s5 = sld [smem:[#allocation0]]
  $region26: #{unet_forward.20} parent=0
    _
  %s7 = ssub.s32 1, %s5
  %s8 = scalar_select 0, %s7, %s5
  // Predicated region
  $region2: #{unet_forward.20} parent=0 // pred_check
    _
  $region3: #{unet_forward.20} parent=0 // pred_check_branch
    %10 = sbr.rel (0) target = $region5
  $region4: #{unet_forward.20} parent=0 // pred_region
    _
  $region5: #{unet_forward.20} parent=0 // pred_fallthru
    _
  // Predicated region
  $region6: #{unet_forward.20} parent=0 // pred_check
    _
  $region7: #{unet_forward.20} parent=0 // pred_check_branch
    %12 = sbr.rel (0) target = $region9
  $region8: #{unet_forward.20} parent=0 // pred_region
    _
  $region9: #{unet_forward.20} parent=0 // pred_fallthru
    _
  // Predicated region
  $region10: #{unet_forward.20} parent=0 // pred_check
    _
  $region11: #{unet_forward.20} parent=0 // pred_check_branch
    %14 = sbr.rel (0) target = $region13
  $region12: #{unet_forward.20} parent=0 // pred_region
    _
  $region13: #{unet_forward.20} parent=0 // pred_fallthru
    _
  // Predicated region
  $region14: #{unet_forward.20} parent=0 // pred_check
    _
  $region15: #{unet_forward.20} parent=0 // pred_check_branch
    %16 = sbr.rel (0) target = $region17
  $region16: #{unet_forward.20} parent=0 // pred_region
    _
  $region17: #{unet_forward.20} parent=0 // pred_fallthru
    _
  %v18 = vld [vmem:[%s0] sm:$0xf]
  %v19 = vld [vmem:[%s1] sm:$0xf]
  %v20 = vld [vmem:[%s1 + $0x4] sm:$0xf]
  %v21 = vld [vmem:[%s1 + $0x8] sm:$0xf]
  %v22 = vld [vmem:[%s1 + $0xc] sm:$0xf]
  %v23 = vld [vmem:[%s1 + $0x10] sm:$0xf]
  %v24 = vld [vmem:[%s1 + $0x14] sm:$0xf]
  %v25 = vld [vmem:[%s1 + $0x18] sm:$0xf]
  %v26 = vld [vmem:[%s1 + $0x1c] sm:$0xf]
  %v27 = vld [vmem:[%s1 + $0x20] sm:$0xf]
  %v37 = vunpack.c.l.b16 %v19
  %v38 = vunpack.c.l.b16 %v20
  %v39 = vunpack.c.l.b16 %v21
  %v40 = vunpack.c.l.b16 %v22
  %v41 = vunpack.c.l.b16 %v23
  %v42 = vunpack.c.l.b16 %v24
  %v43 = vunpack.c.l.b16 %v25
  %v44 = vunpack.c.l.b16 %v26
  %v45 = vunpack.c.l.b16 %v27
  %v46 = vpack.c.b16 %v38, %v37
  %v47 = vpack.c.b16 %v40, %v39
  %v48 = vpack.c.b16 %v42, %v41
  %v49 = vpack.c.b16 %v44, %v43
  %v50 = vpack.c.b16 %v45, %v45
  %vm55 = vcmask 588800
  %v57 = vsel %vm55, %v18, 0
  %vm59 = vcmask 1043456
  %v61 = vsel %vm59, %v50, 0
  %63 = vmatprep.subr.bf16.mxu0 0
  %64 = vmatpush1.bf16.msra.mxu0 0
  %65 = vmatprep.subr.bf16.mxu0 0
  %66 = vmatpush1.bf16.msra.mxu0 0
  %67 = vmatprep.subr.bf16.mxu0 0
  %68 = vmatpush1.bf16.msra.mxu0 0
  %69 = vmatprep.subr.bf16.mxu0 0
  %70 = vmatpush1.bf16.msra.mxu0 %v61
  %71 = vmatprep.subr.bf16.mxu0 0
  %72 = vmatpush1.bf16.msra.mxu0 %v49
  %73 = vmatprep.subr.bf16.mxu0 0
  %74 = vmatpush1.bf16.msra.mxu0 %v48
  %75 = vmatprep.subr.bf16.mxu0 0
  %76 = vmatpush1.bf16.msra.mxu0 %v47
  %77 = vmatprep.subr.bf16.mxu0 0
  %78 = vmatpush1.bf16.msra.mxu0 %v46
  %79 = vmatprep.subr.bf16.mxu0 0
  %80 = vmatpush2.bf16.msra.mxu0 0
  %81 = vmatprep.subr.bf16.mxu0 0
  %82 = vmatpush2.bf16.msra.mxu0 0
  %83 = vmatprep.subr.bf16.mxu0 0
  %84 = vmatpush2.bf16.msra.mxu0 0
  %85 = vmatprep.subr.bf16.mxu0 0
  %86 = vmatpush2.bf16.msra.mxu0 0
  %87 = vmatprep.subr.bf16.mxu0 0
  %88 = vmatpush2.bf16.msra.mxu0 0
  %89 = vmatprep.subr.bf16.mxu0 0
  %90 = vmatpush2.bf16.msra.mxu0 0
  %91 = vmatprep.subr.bf16.mxu0 0
  %92 = vmatpush2.bf16.msra.mxu0 0
  %93 = vmatprep.subr.bf16.mxu0 0
  %94 = vmatpush2.bf16.msra.mxu0 0
  %95 = vmatprep.mubr.bf16.mxu0 0
  %96 = vmatmul.mubr.bf16.gmra.mxu0 %v57
  %v97 = vpop.f32.mrf.mxu0
  %v98 = vadd.f32 0.0, %v97
  %v99 = vpop.f32.mrf.mxu0
  %v100 = vpop.f32.mrf.mxu0
  %v101 = vpop.f32.mrf.mxu0
  %102 = vdwg.mxu0
  %vm103 = vcmask 523264
  %v104 = vsel %vm103, %v98, 0.0
  %105 = vadd.xlane.f32.xlu0 %v104
  %v106 = vpop.xlane.xlu0 %105
  %v107 = vrcp.pop 64.0
  %v108 = vmul.f32 %v106, %v107
  %v109 = vsub.f32 %v98, %v108
  %v110 = vmul.f32 %v109, %v109
  %v111 = vsel %vm103, %v110, 0.0
  %112 = vadd.xlane.f32.xlu0 %v111
  %v113 = vpop.xlane.xlu0 %112
  %v114 = vmul.f32 %v113, %v107
  %v115 = vadd.f32 %v114, 1e-05
  %v116 = vrsqrt.pop %v115
  %v117 = vmul.f32 %v109, %v116
  %v118 = vld [vmem:[%s2] sm:$0xff]
  %120 = vset.pattern.permute.xlu0 0
  %121 = vperm.xlu0 %120, %v118
  %v122 = vpop.permute.xlu0 %121
  %v124 = vmul.f32 %v117, %v122
  %v125 = vld [vmem:[%s3] sm:$0xff]
  %127 = vset.pattern.permute.xlu0 0
  %128 = vperm.xlu0 %127, %v125
  %v129 = vpop.permute.xlu0 %128
  %v131 = vadd.f32 %v124, %v129
  %v132 = vmax.f32 %v131, 0.0
  %133 = vst.msk [vmem:[%s4] sm:$0xff] %vm103, %v132
  // Predicated region
  $region18: #{unet_forward.20} parent=0 // pred_check
    _
  $region19: #{unet_forward.20} parent=0 // pred_check_branch
    %135 = sbr.rel (0) target = $region21
  $region20: #{unet_forward.20} parent=0 // pred_region
    _
  $region21: #{unet_forward.20} parent=0 // pred_fallthru
    _
  // Predicated region
  $region22: #{unet_forward.20} parent=0 // pred_check
    _
  $region23: #{unet_forward.20} parent=0 // pred_check_branch
    %137 = sbr.rel (0) target = $region25
  $region24: #{unet_forward.20} parent=0 // pred_region
    _
  $region25: #{unet_forward.20} parent=0 // pred_fallthru
    _

// kernel: unet_forward.21
$region0: #{unet_forward.21}
  #allocation0 [shape = 'u32[]', space=smem, size = 0x4, offset = 0x4, fixed_abs, tag = 'smem constant byte address 0x4 - core index']
  #allocation1 [shape = 'u32[144,128]{1,0:T(1,128)}', space=vmem, size = 0x12000, scoped, tag = 'internal scratch']
  %s0 = inlined_call_operand.vmem [shape: bf16[16,72], index: 0, kind: input, shape index: {}]
  %s1 = inlined_call_operand.vmem [shape: bf16[72,16], index: 1, kind: input, shape index: {}]
  %s2 = inlined_call_operand.vmem [shape: f32[16,1], index: 2, kind: input, shape index: {}]
  %s3 = inlined_call_operand.vmem [shape: f32[16,1], index: 3, kind: input, shape index: {}]
  %s4 = inlined_call_operand.vmem [shape: f32[16,16], index: 4, kind: output, shape index: {}]
  %s5 = sld [smem:[#allocation0]]
  $region26: #{unet_forward.21} parent=0
    _
  %s7 = ssub.s32 1, %s5
  %s8 = scalar_select 0, %s7, %s5
  // Predicated region
  $region2: #{unet_forward.21} parent=0 // pred_check
    _
  $region3: #{unet_forward.21} parent=0 // pred_check_branch
    %10 = sbr.rel (0) target = $region5
  $region4: #{unet_forward.21} parent=0 // pred_region
    _
  $region5: #{unet_forward.21} parent=0 // pred_fallthru
    _
  // Predicated region
  $region6: #{unet_forward.21} parent=0 // pred_check
    _
  $region7: #{unet_forward.21} parent=0 // pred_check_branch
    %12 = sbr.rel (0) target = $region9
  $region8: #{unet_forward.21} parent=0 // pred_region
    _
  $region9: #{unet_forward.21} parent=0 // pred_fallthru
    _
  // Predicated region
  $region10: #{unet_forward.21} parent=0 // pred_check
    _
  $region11: #{unet_forward.21} parent=0 // pred_check_branch
    %14 = sbr.rel (0) target = $region13
  $region12: #{unet_forward.21} parent=0 // pred_region
    _
  $region13: #{unet_forward.21} parent=0 // pred_fallthru
    _
  // Predicated region
  $region14: #{unet_forward.21} parent=0 // pred_check
    _
  $region15: #{unet_forward.21} parent=0 // pred_check_branch
    %16 = sbr.rel (0) target = $region17
  $region16: #{unet_forward.21} parent=0 // pred_region
    _
  $region17: #{unet_forward.21} parent=0 // pred_fallthru
    _
  %v18 = vld [vmem:[%s0] sm:$0xf]
  %v19 = vld [vmem:[%s0 + $0x4] sm:$0xf]
  %v20 = vld [vmem:[%s1] sm:$0xf]
  %v21 = vld [vmem:[%s1 + $0x4] sm:$0xf]
  %v22 = vld [vmem:[%s1 + $0x8] sm:$0xf]
  %v23 = vld [vmem:[%s1 + $0xc] sm:$0xf]
  %v24 = vld [vmem:[%s1 + $0x10] sm:$0xf]
  %v25 = vld [vmem:[%s1 + $0x14] sm:$0xf]
  %v26 = vld [vmem:[%s1 + $0x18] sm:$0xf]
  %v27 = vld [vmem:[%s1 + $0x1c] sm:$0xf]
  %v28 = vld [vmem:[%s1 + $0x20] sm:$0xf]
  %v31 = vunpack.c.l.b16 %v18
  %v32 = vunpack.c.l.b16 %v19
  %v33 = vpack.c.b16 %v32, %v31
  %v43 = vunpack.c.l.b16 %v20
  %v44 = vunpack.c.l.b16 %v21
  %v45 = vunpack.c.l.b16 %v22
  %v46 = vunpack.c.l.b16 %v23
  %v47 = vunpack.c.l.b16 %v24
  %v48 = vunpack.c.l.b16 %v25
  %v49 = vunpack.c.l.b16 %v26
  %v50 = vunpack.c.l.b16 %v27
  %v51 = vunpack.c.l.b16 %v28
  %v52 = vpack.c.b16 %v44, %v43
  %v53 = vpack.c.b16 %v46, %v45
  %v54 = vpack.c.b16 %v48, %v47
  %v55 = vpack.c.b16 %v50, %v49
  %v56 = vpack.c.b16 %v51, %v51
  %vm61 = vcmask 588800
  %v63 = vsel %vm61, %v33, 0
  %vm65 = vcmask 1043456
  %v67 = vsel %vm65, %v56, 0
  %69 = vmatprep.subr.bf16.mxu0 0
  %70 = vmatpush1.bf16.msra.mxu0 0
  %71 = vmatprep.subr.bf16.mxu0 0
  %72 = vmatpush1.bf16.msra.mxu0 0
  %73 = vmatprep.subr.bf16.mxu0 0
  %74 = vmatpush1.bf16.msra.mxu0 0
  %75 = vmatprep.subr.bf16.mxu0 0
  %76 = vmatpush1.bf16.msra.mxu0 %v67
  %77 = vmatprep.subr.bf16.mxu0 0
  %78 = vmatpush1.bf16.msra.mxu0 %v55
  %79 = vmatprep.subr.bf16.mxu0 0
  %80 = vmatpush1.bf16.msra.mxu0 %v54
  %81 = vmatprep.subr.bf16.mxu0 0
  %82 = vmatpush1.bf16.msra.mxu0 %v53
  %83 = vmatprep.subr.bf16.mxu0 0
  %84 = vmatpush1.bf16.msra.mxu0 %v52
  %85 = vmatprep.subr.bf16.mxu0 0
  %86 = vmatpush2.bf16.msra.mxu0 0
  %87 = vmatprep.subr.bf16.mxu0 0
  %88 = vmatpush2.bf16.msra.mxu0 0
  %89 = vmatprep.subr.bf16.mxu0 0
  %90 = vmatpush2.bf16.msra.mxu0 0
  %91 = vmatprep.subr.bf16.mxu0 0
  %92 = vmatpush2.bf16.msra.mxu0 0
  %93 = vmatprep.subr.bf16.mxu0 0
  %94 = vmatpush2.bf16.msra.mxu0 0
  %95 = vmatprep.subr.bf16.mxu0 0
  %96 = vmatpush2.bf16.msra.mxu0 0
  %97 = vmatprep.subr.bf16.mxu0 0
  %98 = vmatpush2.bf16.msra.mxu0 0
  %99 = vmatprep.subr.bf16.mxu0 0
  %100 = vmatpush2.bf16.msra.mxu0 0
  %101 = vmatprep.mubr.bf16.mxu0 0
  %102 = vmatmul.mubr.bf16.gmra.mxu0 %v63
  %v103 = vpop.f32.mrf.mxu0
  %v104 = vadd.f32 0.0, %v103
  %v105 = vpop.f32.mrf.mxu0
  %v106 = vpop.f32.mrf.mxu0
  %v107 = vadd.f32 0.0, %v106
  %v108 = vpop.f32.mrf.mxu0
  %109 = vdwg.mxu0
  %vm110 = vcmask 130048
  %v111 = vsel %vm110, %v104, 0.0
  %112 = vadd.xlane.f32.xlu0 %v111
  %v113 = vpop.xlane.xlu0 %112
  %v114 = vsel %vm110, %v107, 0.0
  %115 = vadd.xlane.f32.xlu0 %v114
  %v116 = vpop.xlane.xlu0 %115
  %v117 = vrcp.pop 16.0
  %v118 = vmul.f32 %v113, %v117
  %v119 = vmul.f32 %v116, %v117
  %v120 = vsub.f32 %v104, %v118
  %v121 = vsub.f32 %v107, %v119
  %v122 = vmul.f32 %v120, %v120
  %v123 = vmul.f32 %v121, %v121
  %v124 = vsel %vm110, %v122, 0.0
  %125 = vadd.xlane.f32.xlu0 %v124
  %v126 = vpop.xlane.xlu0 %125
  %v127 = vsel %vm110, %v123, 0.0
  %128 = vadd.xlane.f32.xlu0 %v127
  %v129 = vpop.xlane.xlu0 %128
  %v130 = vmul.f32 %v126, %v117
  %v131 = vmul.f32 %v129, %v117
  %v132 = vadd.f32 %v130, 1e-05
  %v133 = vadd.f32 %v131, 1e-05
  %v134 = vrsqrt.pop %v132
  %v135 = vrsqrt.pop %v133
  %v136 = vmul.f32 %v120, %v134
  %v137 = vmul.f32 %v121, %v135
  %v138 = vld [vmem:[%s2] sm:$0xff]
  %v139 = vld [vmem:[%s2 + $0x8] sm:$0xff]
  %141 = vset.pattern.permute.xlu0 0
  %142 = vperm.xlu0 %141, %v138
  %v143 = vpop.permute.xlu0 %142
  %146 = vset.pattern.permute.xlu0 0
  %147 = vperm.xlu0 %146, %v139
  %v148 = vpop.permute.xlu0 %147
  %v150 = vmul.f32 %v136, %v143
  %v151 = vmul.f32 %v137, %v148
  %v152 = vld [vmem:[%s3] sm:$0xff]
  %v153 = vld [vmem:[%s3 + $0x8] sm:$0xff]
  %155 = vset.pattern.permute.xlu0 0
  %156 = vperm.xlu0 %155, %v152
  %v157 = vpop.permute.xlu0 %156
  %160 = vset.pattern.permute.xlu0 0
  %161 = vperm.xlu0 %160, %v153
  %v162 = vpop.permute.xlu0 %161
  %v164 = vadd.f32 %v150, %v157
  %v165 = vadd.f32 %v151, %v162
  %v166 = vmax.f32 %v164, 0.0
  %v167 = vmax.f32 %v165, 0.0
  %168 = vst.msk [vmem:[%s4] sm:$0xff] %vm110, %v166
  %169 = vst.msk [vmem:[%s4 + $0x8] sm:$0xff] %vm110, %v167
  // Predicated region
  $region18: #{unet_forward.21} parent=0 // pred_check
    _
  $region19: #{unet_forward.21} parent=0 // pred_check_branch
    %171 = sbr.rel (0) target = $region21
  $region20: #{unet_forward.21} parent=0 // pred_region
    _
  $region21: #{unet_forward.21} parent=0 // pred_fallthru
    _
  // Predicated region
  $region22: #{unet_forward.21} parent=0 // pred_check
    _
  $region23: #{unet_forward.21} parent=0 // pred_check_branch
    %173 = sbr.rel (0) target = $region25
  $region24: #{unet_forward.21} parent=0 // pred_region
    _
  $region25: #{unet_forward.21} parent=0 // pred_fallthru
    _

// kernel: unet_forward.22
$region0: #{unet_forward.22}
  #allocation0 [shape = 'u32[]', space=smem, size = 0x4, offset = 0x4, fixed_abs, tag = 'smem constant byte address 0x4 - core index']
  #allocation1 [shape = 'u32[144,128]{1,0:T(1,128)}', space=vmem, size = 0x12000, scoped, tag = 'internal scratch']
  %s0 = inlined_call_operand.vmem [shape: bf16[16,144], index: 0, kind: input, shape index: {}]
  %s1 = inlined_call_operand.vmem [shape: bf16[144,16], index: 1, kind: input, shape index: {}]
  %s2 = inlined_call_operand.vmem [shape: f32[16,1], index: 2, kind: input, shape index: {}]
  %s3 = inlined_call_operand.vmem [shape: f32[16,1], index: 3, kind: input, shape index: {}]
  %s4 = inlined_call_operand.vmem [shape: f32[16,16], index: 4, kind: output, shape index: {}]
  %s5 = sld [smem:[#allocation0]]
  $region26: #{unet_forward.22} parent=0
    _
  %s7 = ssub.s32 1, %s5
  %s8 = scalar_select 0, %s7, %s5
  // Predicated region
  $region2: #{unet_forward.22} parent=0 // pred_check
    _
  $region3: #{unet_forward.22} parent=0 // pred_check_branch
    %10 = sbr.rel (0) target = $region5
  $region4: #{unet_forward.22} parent=0 // pred_region
    _
  $region5: #{unet_forward.22} parent=0 // pred_fallthru
    _
  // Predicated region
  $region6: #{unet_forward.22} parent=0 // pred_check
    _
  $region7: #{unet_forward.22} parent=0 // pred_check_branch
    %12 = sbr.rel (0) target = $region9
  $region8: #{unet_forward.22} parent=0 // pred_region
    _
  $region9: #{unet_forward.22} parent=0 // pred_fallthru
    _
  // Predicated region
  $region10: #{unet_forward.22} parent=0 // pred_check
    _
  $region11: #{unet_forward.22} parent=0 // pred_check_branch
    %14 = sbr.rel (0) target = $region13
  $region12: #{unet_forward.22} parent=0 // pred_region
    _
  $region13: #{unet_forward.22} parent=0 // pred_fallthru
    _
  // Predicated region
  $region14: #{unet_forward.22} parent=0 // pred_check
    _
  $region15: #{unet_forward.22} parent=0 // pred_check_branch
    %16 = sbr.rel (0) target = $region17
  $region16: #{unet_forward.22} parent=0 // pred_region
    _
  $region17: #{unet_forward.22} parent=0 // pred_fallthru
    _
  %v18 = vld [vmem:[%s0] sm:$0xff]
  %v19 = vld [vmem:[%s0 + $0x8] sm:$0xff]
  %v20 = vld [vmem:[%s1] sm:$0xf]
  %v21 = vld [vmem:[%s1 + $0x4] sm:$0xf]
  %v22 = vld [vmem:[%s1 + $0x8] sm:$0xf]
  %v23 = vld [vmem:[%s1 + $0xc] sm:$0xf]
  %v24 = vld [vmem:[%s1 + $0x10] sm:$0xf]
  %v25 = vld [vmem:[%s1 + $0x14] sm:$0xf]
  %v26 = vld [vmem:[%s1 + $0x18] sm:$0xf]
  %v27 = vld [vmem:[%s1 + $0x1c] sm:$0xf]
  %v28 = vld [vmem:[%s1 + $0x20] sm:$0xf]
  %v29 = vld [vmem:[%s1 + $0x24] sm:$0xf]
  %v30 = vld [vmem:[%s1 + $0x28] sm:$0xf]
  %v31 = vld [vmem:[%s1 + $0x2c] sm:$0xf]
  %v32 = vld [vmem:[%s1 + $0x30] sm:$0xf]
  %v33 = vld [vmem:[%s1 + $0x34] sm:$0xf]
  %v34 = vld [vmem:[%s1 + $0x38] sm:$0xf]
  %v35 = vld [vmem:[%s1 + $0x3c] sm:$0xf]
  %v36 = vld [vmem:[%s1 + $0x40] sm:$0xf]
  %v37 = vld [vmem:[%s1 + $0x44] sm:$0xf]
  %v40 = vunpack.c.l.b16 %v18
  %v41 = vunpack.c.h.b16 %v18
  %v42 = vunpack.c.l.b16 %v19
  %v43 = vunpack.c.h.b16 %v19
  %v44 = vpack.c.b16 %v42, %v40
  %v45 = vpack.c.b16 %v43, %v41
  %v65 = vunpack.c.l.b16 %v20
  %v66 = vunpack.c.l.b16 %v21
  %v67 = vunpack.c.l.b16 %v22
  %v68 = vunpack.c.l.b16 %v23
  %v69 = vunpack.c.l.b16 %v24
  %v70 = vunpack.c.l.b16 %v25
  %v71 = vunpack.c.l.b16 %v26
  %v72 = vunpack.c.l.b16 %v27
  %v73 = vunpack.c.l.b16 %v28
  %v74 = vunpack.c.l.b16 %v29
  %v75 = vunpack.c.l.b16 %v30
  %v76 = vunpack.c.l.b16 %v31
  %v77 = vunpack.c.l.b16 %v32
  %v78 = vunpack.c.l.b16 %v33
  %v79 = vunpack.c.l.b16 %v34
  %v80 = vunpack.c.l.b16 %v35
  %v81 = vunpack.c.l.b16 %v36
  %v82 = vunpack.c.l.b16 %v37
  %v83 = vpack.c.b16 %v66, %v65
  %v84 = vpack.c.b16 %v68, %v67
  %v85 = vpack.c.b16 %v70, %v69
  %v86 = vpack.c.b16 %v72, %v71
  %v87 = vpack.c.b16 %v74, %v73
  %v88 = vpack.c.b16 %v76, %v75
  %v89 = vpack.c.b16 %v78, %v77
  %v90 = vpack.c.b16 %v80, %v79
  %v91 = vpack.c.b16 %v82, %v81
  %vm101 = vcmask 130048
  %v103 = vsel %vm101, %v45, 0
  %105 = vmatprep.subr.bf16.mxu0 0
  %106 = vmatpush1.bf16.msra.mxu0 %v90
  %107 = vmatprep.subr.bf16.mxu0 0
  %108 = vmatpush1.bf16.msra.mxu0 %v89
  %109 = vmatprep.subr.bf16.mxu0 0
  %110 = vmatpush1.bf16.msra.mxu0 %v88
  %111 = vmatprep.subr.bf16.mxu0 0
  %112 = vmatpush1.bf16.msra.mxu0 %v87
  %113 = vmatprep.subr.bf16.mxu0 0
  %114 = vmatpush1.bf16.msra.mxu0 %v86
  %115 = vmatprep.subr.bf16.mxu0 0
  %116 = vmatpush1.bf16.msra.mxu0 %v85
  %117 = vmatprep.subr.bf16.mxu0 0
  %118 = vmatpush1.bf16.msra.mxu0 %v84
  %119 = vmatprep.subr.bf16.mxu0 0
  %120 = vmatpush1.bf16.msra.mxu0 %v83
  %121 = vmatprep.subr.bf16.mxu0 0
  %122 = vmatpush2.bf16.msra.mxu0 0
  %123 = vmatprep.subr.bf16.mxu0 0
  %124 = vmatpush2.bf16.msra.mxu0 0
  %125 = vmatprep.subr.bf16.mxu0 0
  %126 = vmatpush2.bf16.msra.mxu0 0
  %127 = vmatprep.subr.bf16.mxu0 0
  %128 = vmatpush2.bf16.msra.mxu0 0
  %129 = vmatprep.subr.bf16.mxu0 0
  %130 = vmatpush2.bf16.msra.mxu0 0
  %131 = vmatprep.subr.bf16.mxu0 0
  %132 = vmatpush2.bf16.msra.mxu0 0
  %133 = vmatprep.subr.bf16.mxu0 0
  %134 = vmatpush2.bf16.msra.mxu0 0
  %135 = vmatprep.subr.bf16.mxu0 0
  %136 = vmatpush2.bf16.msra.mxu0 %v91
  %137 = vmatprep.mubr.bf16.mxu0 %v103
  %138 = vmatmul.mubr.bf16.gmra.mxu0 %v44
  %v139 = vpop.f32.mrf.mxu0
  %v140 = vadd.f32 0.0, %v139
  %v141 = vpop.f32.mrf.mxu0
  %v142 = vpop.f32.mrf.mxu0
  %v143 = vadd.f32 0.0, %v142
  %v144 = vpop.f32.mrf.mxu0
  %145 = vdwg.mxu0
  %v146 = vsel %vm101, %v140, 0.0
  %147 = vadd.xlane.f32.xlu0 %v146
  %v148 = vpop.xlane.xlu0 %147
  %v149 = vsel %vm101, %v143, 0.0
  %150 = vadd.xlane.f32.xlu0 %v149
  %v151 = vpop.xlane.xlu0 %150
  %v152 = vrcp.pop 16.0
  %v153 = vmul.f32 %v148, %v152
  %v154 = vmul.f32 %v151, %v152
  %v155 = vsub.f32 %v140, %v153
  %v156 = vsub.f32 %v143, %v154
  %v157 = vmul.f32 %v155, %v155
  %v158 = vmul.f32 %v156, %v156
  %v159 = vsel %vm101, %v157, 0.0
  %160 = vadd.xlane.f32.xlu0 %v159
  %v161 = vpop.xlane.xlu0 %160
  %v162 = vsel %vm101, %v158, 0.0
  %163 = vadd.xlane.f32.xlu0 %v162
  %v164 = vpop.xlane.xlu0 %163
  %v165 = vmul.f32 %v161, %v152
  %v166 = vmul.f32 %v164, %v152
  %v167 = vadd.f32 %v165, 1e-05
  %v168 = vadd.f32 %v166, 1e-05
  %v169 = vrsqrt.pop %v167
  %v170 = vrsqrt.pop %v168
  %v171 = vmul.f32 %v155, %v169
  %v172 = vmul.f32 %v156, %v170
  %v173 = vld [vmem:[%s2] sm:$0xff]
  %v174 = vld [vmem:[%s2 + $0x8] sm:$0xff]
  %176 = vset.pattern.permute.xlu0 0
  %177 = vperm.xlu0 %176, %v173
  %v178 = vpop.permute.xlu0 %177
  %181 = vset.pattern.permute.xlu0 0
  %182 = vperm.xlu0 %181, %v174
  %v183 = vpop.permute.xlu0 %182
  %v185 = vmul.f32 %v171, %v178
  %v186 = vmul.f32 %v172, %v183
  %v187 = vld [vmem:[%s3] sm:$0xff]
  %v188 = vld [vmem:[%s3 + $0x8] sm:$0xff]
  %190 = vset.pattern.permute.xlu0 0
  %191 = vperm.xlu0 %190, %v187
  %v192 = vpop.permute.xlu0 %191
  %195 = vset.pattern.permute.xlu0 0
  %196 = vperm.xlu0 %195, %v188
  %v197 = vpop.permute.xlu0 %196
  %v199 = vadd.f32 %v185, %v192
  %v200 = vadd.f32 %v186, %v197
  %v201 = vmax.f32 %v199, 0.0
  %v202 = vmax.f32 %v200, 0.0
  %203 = vst.msk [vmem:[%s4] sm:$0xff] %vm101, %v201
  %204 = vst.msk [vmem:[%s4 + $0x8] sm:$0xff] %vm101, %v202
  // Predicated region
  $region18: #{unet_forward.22} parent=0 // pred_check
    _
  $region19: #{unet_forward.22} parent=0 // pred_check_branch
    %206 = sbr.rel (0) target = $region21
  $region20: #{unet_forward.22} parent=0 // pred_region
    _
  $region21: #{unet_forward.22} parent=0 // pred_fallthru
    _
  // Predicated region
  $region22: #{unet_forward.22} parent=0 // pred_check
    _
  $region23: #{unet_forward.22} parent=0 // pred_check_branch
    %208 = sbr.rel (0) target = $region25
  $region24: #{unet_forward.22} parent=0 // pred_region
    _
  $region25: #{unet_forward.22} parent=0 // pred_fallthru
    _

// kernel: unet_forward.23
$region0: #{unet_forward.23}
  #allocation0 [shape = 'u32[]', space=smem, size = 0x4, offset = 0x4, fixed_abs, tag = 'smem constant byte address 0x4 - core index']
  #allocation1 [shape = 'u32[144,128]{1,0:T(1,128)}', space=vmem, size = 0x12000, scoped, tag = 'internal scratch']
  %s0 = inlined_call_operand.vmem [shape: bf16[32,144], index: 0, kind: input, shape index: {}]
  %s1 = inlined_call_operand.vmem [shape: bf16[144,16], index: 1, kind: input, shape index: {}]
  %s2 = inlined_call_operand.vmem [shape: f32[32,1], index: 2, kind: input, shape index: {}]
  %s3 = inlined_call_operand.vmem [shape: f32[32,16], index: 3, kind: output, shape index: {}]
  %s4 = sld [smem:[#allocation0]]
  $region22: #{unet_forward.23} parent=0
    _
  %s6 = ssub.s32 1, %s4
  %s7 = scalar_select 0, %s6, %s4
  // Predicated region
  $region2: #{unet_forward.23} parent=0 // pred_check
    _
  $region3: #{unet_forward.23} parent=0 // pred_check_branch
    %9 = sbr.rel (0) target = $region5
  $region4: #{unet_forward.23} parent=0 // pred_region
    _
  $region5: #{unet_forward.23} parent=0 // pred_fallthru
    _
  // Predicated region
  $region6: #{unet_forward.23} parent=0 // pred_check
    _
  $region7: #{unet_forward.23} parent=0 // pred_check_branch
    %11 = sbr.rel (0) target = $region9
  $region8: #{unet_forward.23} parent=0 // pred_region
    _
  $region9: #{unet_forward.23} parent=0 // pred_fallthru
    _
  // Predicated region
  $region10: #{unet_forward.23} parent=0 // pred_check
    _
  $region11: #{unet_forward.23} parent=0 // pred_check_branch
    %13 = sbr.rel (0) target = $region13
  $region12: #{unet_forward.23} parent=0 // pred_region
    _
  $region13: #{unet_forward.23} parent=0 // pred_fallthru
    _
  %v15 = vld [vmem:[%s0] sm:$0xff]
  %v16 = vld [vmem:[%s0 + $0x8] sm:$0xff]
  %v17 = vld [vmem:[%s0 + $0x10] sm:$0xff]
  %v18 = vld [vmem:[%s0 + $0x18] sm:$0xff]
  %v19 = vld [vmem:[%s1] sm:$0xf]
  %v20 = vld [vmem:[%s1 + $0x4] sm:$0xf]
  %v21 = vld [vmem:[%s1 + $0x8] sm:$0xf]
  %v22 = vld [vmem:[%s1 + $0xc] sm:$0xf]
  %v23 = vld [vmem:[%s1 + $0x10] sm:$0xf]
  %v24 = vld [vmem:[%s1 + $0x14] sm:$0xf]
  %v25 = vld [vmem:[%s1 + $0x18] sm:$0xf]
  %v26 = vld [vmem:[%s1 + $0x1c] sm:$0xf]
  %v27 = vld [vmem:[%s1 + $0x20] sm:$0xf]
  %v28 = vld [vmem:[%s1 + $0x24] sm:$0xf]
  %v29 = vld [vmem:[%s1 + $0x28] sm:$0xf]
  %v30 = vld [vmem:[%s1 + $0x2c] sm:$0xf]
  %v31 = vld [vmem:[%s1 + $0x30] sm:$0xf]
  %v32 = vld [vmem:[%s1 + $0x34] sm:$0xf]
  %v33 = vld [vmem:[%s1 + $0x38] sm:$0xf]
  %v34 = vld [vmem:[%s1 + $0x3c] sm:$0xf]
  %v35 = vld [vmem:[%s1 + $0x40] sm:$0xf]
  %v36 = vld [vmem:[%s1 + $0x44] sm:$0xf]
  %v37 = vld [vmem:[%s2] sm:$0xff]
  %v38 = vld [vmem:[%s2 + $0x8] sm:$0xff]
  %v39 = vld [vmem:[%s2 + $0x10] sm:$0xff]
  %v40 = vld [vmem:[%s2 + $0x18] sm:$0xff]
  %42 = vset.pattern.permute.xlu0 0
  %43 = vperm.xlu0 %42, %v37
  %v44 = vpop.permute.xlu0 %43
  %47 = vset.pattern.permute.xlu0 0
  %48 = vperm.xlu0 %47, %v38
  %v49 = vpop.permute.xlu0 %48
  %52 = vset.pattern.permute.xlu0 0
  %53 = vperm.xlu0 %52, %v39
  %v54 = vpop.permute.xlu0 %53
  %57 = vset.pattern.permute.xlu0 0
  %58 = vperm.xlu0 %57, %v40
  %v59 = vpop.permute.xlu0 %58
  %v65 = vunpack.c.l.b16 %v15
  %v66 = vunpack.c.h.b16 %v15
  %v67 = vunpack.c.l.b16 %v16
  %v68 = vunpack.c.h.b16 %v16
  %v69 = vunpack.c.l.b16 %v17
  %v70 = vunpack.c.h.b16 %v17
  %v71 = vunpack.c.l.b16 %v18
  %v72 = vunpack.c.h.b16 %v18
  %v73 = vpack.c.b16 %v67, %v65
  %v74 = vpack.c.b16 %v68, %v66
  %v75 = vpack.c.b16 %v71, %v69
  %v76 = vpack.c.b16 %v72, %v70
  %v97 = vunpack.c.l.b16 %v19
  %v98 = vunpack.c.l.b16 %v20
  %v99 = vunpack.c.l.b16 %v21
  %v100 = vunpack.c.l.b16 %v22
  %v101 = vunpack.c.l.b16 %v23
  %v102 = vunpack.c.l.b16 %v24
  %v103 = vunpack.c.l.b16 %v25
  %v104 = vunpack.c.l.b16 %v26
  %v105 = vunpack.c.l.b16 %v27
  %v106 = vunpack.c.l.b16 %v28
  %v107 = vunpack.c.l.b16 %v29
  %v108 = vunpack.c.l.b16 %v30
  %v109 = vunpack.c.l.b16 %v31
  %v110 = vunpack.c.l.b16 %v32
  %v111 = vunpack.c.l.b16 %v33
  %v112 = vunpack.c.l.b16 %v34
  %v113 = vunpack.c.l.b16 %v35
  %v114 = vunpack.c.l.b16 %v36
  %v115 = vpack.c.b16 %v98, %v97
  %v116 = vpack.c.b16 %v100, %v99
  %v117 = vpack.c.b16 %v102, %v101
  %v118 = vpack.c.b16 %v104, %v103
  %v119 = vpack.c.b16 %v106, %v105
  %v120 = vpack.c.b16 %v108, %v107
  %v121 = vpack.c.b16 %v110, %v109
  %v122 = vpack.c.b16 %v112, %v111
  %v123 = vpack.c.b16 %v114, %v113
  %vm133 = vcmask 130048
  %v135 = vsel %vm133, %v74, 0
  %v138 = vsel %vm133, %v76, 0
  %140 = vmatprep.subr.bf16.mxu0 0
  %141 = vmatpush1.bf16.msra.mxu0 %v122
  %142 = vmatprep.subr.bf16.mxu0 0
  %143 = vmatpush1.bf16.msra.mxu0 %v121
  %144 = vmatprep.subr.bf16.mxu0 0
  %145 = vmatpush1.bf16.msra.mxu0 %v120
  %146 = vmatprep.subr.bf16.mxu0 0
  %147 = vmatpush1.bf16.msra.mxu0 %v119
  %148 = vmatprep.subr.bf16.mxu0 0
  %149 = vmatpush1.bf16.msra.mxu0 %v118
  %150 = vmatprep.subr.bf16.mxu0 0
  %151 = vmatpush1.bf16.msra.mxu0 %v117
  %152 = vmatprep.subr.bf16.mxu0 0
  %153 = vmatpush1.bf16.msra.mxu0 %v116
  %154 = vmatprep.subr.bf16.mxu0 0
  %155 = vmatpush1.bf16.msra.mxu0 %v115
  %156 = vmatprep.subr.bf16.mxu0 0
  %157 = vmatpush2.bf16.msra.mxu0 0
  %158 = vmatprep.subr.bf16.mxu0 0
  %159 = vmatpush2.bf16.msra.mxu0 0
  %160 = vmatprep.subr.bf16.mxu0 0
  %161 = vmatpush2.bf16.msra.mxu0 0
  %162 = vmatprep.subr.bf16.mxu0 0
  %163 = vmatpush2.bf16.msra.mxu0 0
  %164 = vmatprep.subr.bf16.mxu0 0
  %165 = vmatpush2.bf16.msra.mxu0 0
  %166 = vmatprep.subr.bf16.mxu0 0
  %167 = vmatpush2.bf16.msra.mxu0 0
  %168 = vmatprep.subr.bf16.mxu0 0
  %169 = vmatpush2.bf16.msra.mxu0 0
  %170 = vmatprep.subr.bf16.mxu0 0
  %171 = vmatpush2.bf16.msra.mxu0 %v123
  %172 = vmatprep.mubr.bf16.mxu0 %v135
  %173 = vmatmul.mubr.bf16.gmra.mxu0 %v73
  %v174 = vpop.f32.mrf.mxu0
  %v175 = vadd.f32 %v44, %v174
  %v176 = vpop.f32.mrf.mxu0
  %v177 = vpop.f32.mrf.mxu0
  %v178 = vadd.f32 %v49, %v177
  %v179 = vpop.f32.mrf.mxu0
  %180 = vmatprep.mubr.bf16.mxu0 %v138
  %181 = vmatmul.mubr.bf16.gmra.mxu0 %v75
  %v182 = vpop.f32.mrf.mxu0
  %v183 = vadd.f32 %v54, %v182
  %v184 = vpop.f32.mrf.mxu0
  %v185 = vpop.f32.mrf.mxu0
  %v186 = vadd.f32 %v59, %v185
  %v187 = vpop.f32.mrf.mxu0
  %188 = vdwg.mxu0
  %v189 = vmax.f32 %v175, 0.0
  %v190 = vmax.f32 %v178, 0.0
  %v191 = vmax.f32 %v183, 0.0
  %v192 = vmax.f32 %v186, 0.0
  %193 = vst.msk [vmem:[%s3] sm:$0xff] %vm133, %v189
  %194 = vst.msk [vmem:[%s3 + $0x8] sm:$0xff] %vm133, %v190
  %195 = vst.msk [vmem:[%s3 + $0x10] sm:$0xff] %vm133, %v191
  %196 = vst.msk [vmem:[%s3 + $0x18] sm:$0xff] %vm133, %v192
  // Predicated region
  $region14: #{unet_forward.23} parent=0 // pred_check
    _
  $region15: #{unet_forward.23} parent=0 // pred_check_branch
    %198 = sbr.rel (0) target = $region17
  $region16: #{unet_forward.23} parent=0 // pred_region
    _
  $region17: #{unet_forward.23} parent=0 // pred_fallthru
    _
  // Predicated region
  $region18: #{unet_forward.23} parent=0 // pred_check
    _
  $region19: #{unet_forward.23} parent=0 // pred_check_branch
    %200 = sbr.rel (0) target = $region21
  $region20: #{unet_forward.23} parent=0 // pred_region
    _
  $region21: #{unet_forward.23} parent=0 // pred_fallthru
    _

// kernel: unet_forward.24
$region0: #{unet_forward.24}
  #allocation0 [shape = 'u32[]', space=smem, size = 0x4, offset = 0x4, fixed_abs, tag = 'smem constant byte address 0x4 - core index']
  #allocation1 [shape = 'u32[144,128]{1,0:T(1,128)}', space=vmem, size = 0x12000, scoped, tag = 'internal scratch']
  %s0 = inlined_call_operand.vmem [shape: bf16[16,288], index: 0, kind: input, shape index: {}]
  %s1 = inlined_call_operand.vmem [shape: bf16[288,16], index: 1, kind: input, shape index: {}]
  %s2 = inlined_call_operand.vmem [shape: f32[16,1], index: 2, kind: input, shape index: {}]
  %s3 = inlined_call_operand.vmem [shape: f32[16,16], index: 3, kind: output, shape index: {}]
  %s4 = sld [smem:[#allocation0]]
  $region22: #{unet_forward.24} parent=0
    _
  %s6 = ssub.s32 1, %s4
  %s7 = scalar_select 0, %s6, %s4
  // Predicated region
  $region2: #{unet_forward.24} parent=0 // pred_check
    _
  $region3: #{unet_forward.24} parent=0 // pred_check_branch
    %9 = sbr.rel (0) target = $region5
  $region4: #{unet_forward.24} parent=0 // pred_region
    _
  $region5: #{unet_forward.24} parent=0 // pred_fallthru
    _
  // Predicated region
  $region6: #{unet_forward.24} parent=0 // pred_check
    _
  $region7: #{unet_forward.24} parent=0 // pred_check_branch
    %11 = sbr.rel (0) target = $region9
  $region8: #{unet_forward.24} parent=0 // pred_region
    _
  $region9: #{unet_forward.24} parent=0 // pred_fallthru
    _
  // Predicated region
  $region10: #{unet_forward.24} parent=0 // pred_check
    _
  $region11: #{unet_forward.24} parent=0 // pred_check_branch
    %13 = sbr.rel (0) target = $region13
  $region12: #{unet_forward.24} parent=0 // pred_region
    _
  $region13: #{unet_forward.24} parent=0 // pred_fallthru
    _
  %v15 = vld [vmem:[%s0] sm:$0xff]
  %v16 = vld [vmem:[%s0 + $0x8] sm:$0xf]
  %v17 = vld [vmem:[%s0 + $0xc] sm:$0xff]
  %v18 = vld [vmem:[%s0 + $0x14] sm:$0xf]
  %v19 = vld [vmem:[%s1] sm:$0xf]
  %v20 = vld [vmem:[%s1 + $0x4] sm:$0xf]
  %v21 = vld [vmem:[%s1 + $0x8] sm:$0xf]
  %v22 = vld [vmem:[%s1 + $0xc] sm:$0xf]
  %v23 = vld [vmem:[%s1 + $0x10] sm:$0xf]
  %v24 = vld [vmem:[%s1 + $0x14] sm:$0xf]
  %v25 = vld [vmem:[%s1 + $0x18] sm:$0xf]
  %v26 = vld [vmem:[%s1 + $0x1c] sm:$0xf]
  %v27 = vld [vmem:[%s1 + $0x20] sm:$0xf]
  %v28 = vld [vmem:[%s1 + $0x24] sm:$0xf]
  %v29 = vld [vmem:[%s1 + $0x28] sm:$0xf]
  %v30 = vld [vmem:[%s1 + $0x2c] sm:$0xf]
  %v31 = vld [vmem:[%s1 + $0x30] sm:$0xf]
  %v32 = vld [vmem:[%s1 + $0x34] sm:$0xf]
  %v33 = vld [vmem:[%s1 + $0x38] sm:$0xf]
  %v34 = vld [vmem:[%s1 + $0x3c] sm:$0xf]
  %v35 = vld [vmem:[%s1 + $0x40] sm:$0xf]
  %v36 = vld [vmem:[%s1 + $0x44] sm:$0xf]
  %v37 = vld [vmem:[%s1 + $0x48] sm:$0xf]
  %v38 = vld [vmem:[%s1 + $0x4c] sm:$0xf]
  %v39 = vld [vmem:[%s1 + $0x50] sm:$0xf]
  %v40 = vld [vmem:[%s1 + $0x54] sm:$0xf]
  %v41 = vld [vmem:[%s1 + $0x58] sm:$0xf]
  %v42 = vld [vmem:[%s1 + $0x5c] sm:$0xf]
  %v43 = vld [vmem:[%s1 + $0x60] sm:$0xf]
  %v44 = vld [vmem:[%s1 + $0x64] sm:$0xf]
  %v45 = vld [vmem:[%s1 + $0x68] sm:$0xf]
  %v46 = vld [vmem:[%s1 + $0x6c] sm:$0xf]
  %v47 = vld [vmem:[%s1 + $0x70] sm:$0xf]
  %v48 = vld [vmem:[%s1 + $0x74] sm:$0xf]
  %v49 = vld [vmem:[%s1 + $0x78] sm:$0xf]
  %v50 = vld [vmem:[%s1 + $0x7c] sm:$0xf]
  %v51 = vld [vmem:[%s1 + $0x80] sm:$0xf]
  %v52 = vld [vmem:[%s1 + $0x84] sm:$0xf]
  %v53 = vld [vmem:[%s1 + $0x88] sm:$0xf]
  %v54 = vld [vmem:[%s1 + $0x8c] sm:$0xf]
  %v55 = vld [vmem:[%s2] sm:$0xff]
  %v56 = vld [vmem:[%s2 + $0x8] sm:$0xff]
  %58 = vset.pattern.permute.xlu0 0
  %59 = vperm.xlu0 %58, %v55
  %v60 = vpop.permute.xlu0 %59
  %63 = vset.pattern.permute.xlu0 0
  %64 = vperm.xlu0 %63, %v56
  %v65 = vpop.permute.xlu0 %64
  %v71 = vunpack.c.l.b16 %v15
  %v72 = vunpack.c.h.b16 %v15
  %v73 = vunpack.c.l.b16 %v16
  %v74 = vunpack.c.l.b16 %v17
  %v75 = vunpack.c.h.b16 %v17
  %v76 = vunpack.c.l.b16 %v18
  %v77 = vpack.c.b16 %v74, %v71
  %v78 = vpack.c.b16 %v75, %v72
  %v79 = vpack.c.b16 %v76, %v73
  %v118 = vunpack.c.l.b16 %v19
  %v119 = vunpack.c.l.b16 %v20
  %v120 = vunpack.c.l.b16 %v21
  %v121 = vunpack.c.l.b16 %v22
  %v122 = vunpack.c.l.b16 %v23
  %v123 = vunpack.c.l.b16 %v24
  %v124 = vunpack.c.l.b16 %v25
  %v125 = vunpack.c.l.b16 %v26
  %v126 = vunpack.c.l.b16 %v27
  %v127 = vunpack.c.l.b16 %v28
  %v128 = vunpack.c.l.b16 %v29
  %v129 = vunpack.c.l.b16 %v30
  %v130 = vunpack.c.l.b16 %v31
  %v131 = vunpack.c.l.b16 %v32
  %v132 = vunpack.c.l.b16 %v33
  %v133 = vunpack.c.l.b16 %v34
  %v134 = vunpack.c.l.b16 %v35
  %v135 = vunpack.c.l.b16 %v36
  %v136 = vunpack.c.l.b16 %v37
  %v137 = vunpack.c.l.b16 %v38
  %v138 = vunpack.c.l.b16 %v39
  %v139 = vunpack.c.l.b16 %v40
  %v140 = vunpack.c.l.b16 %v41
  %v141 = vunpack.c.l.b16 %v42
  %v142 = vunpack.c.l.b16 %v43
  %v143 = vunpack.c.l.b16 %v44
  %v144 = vunpack.c.l.b16 %v45
  %v145 = vunpack.c.l.b16 %v46
  %v146 = vunpack.c.l.b16 %v47
  %v147 = vunpack.c.l.b16 %v48
  %v148 = vunpack.c.l.b16 %v49
  %v149 = vunpack.c.l.b16 %v50
  %v150 = vunpack.c.l.b16 %v51
  %v151 = vunpack.c.l.b16 %v52
  %v152 = vunpack.c.l.b16 %v53
  %v153 = vunpack.c.l.b16 %v54
  %v154 = vpack.c.b16 %v119, %v118
  %v155 = vpack.c.b16 %v121, %v120
  %v156 = vpack.c.b16 %v123, %v122
  %v157 = vpack.c.b16 %v125, %v124
  %v158 = vpack.c.b16 %v127, %v126
  %v159 = vpack.c.b16 %v129, %v128
  %v160 = vpack.c.b16 %v131, %v130
  %v161 = vpack.c.b16 %v133, %v132
  %v162 = vpack.c.b16 %v135, %v134
  %v163 = vpack.c.b16 %v137, %v136
  %v164 = vpack.c.b16 %v139, %v138
  %v165 = vpack.c.b16 %v141, %v140
  %v166 = vpack.c.b16 %v143, %v142
  %v167 = vpack.c.b16 %v145, %v144
  %v168 = vpack.c.b16 %v147, %v146
  %v169 = vpack.c.b16 %v149, %v148
  %v170 = vpack.c.b16 %v151, %v150
  %v171 = vpack.c.b16 %v153, %v152
  %vm190 = vcmask 261120
  %v192 = vsel %vm190, %v79, 0
  %194 = vmatprep.subr.bf16.mxu0 0
  %195 = vmatpush1.bf16.msra.mxu0 %v161
  %196 = vmatprep.subr.bf16.mxu0 0
  %197 = vmatpush1.bf16.msra.mxu0 %v160
  %198 = vmatprep.subr.bf16.mxu0 0
  %199 = vmatpush1.bf16.msra.mxu0 %v159
  %200 = vmatprep.subr.bf16.mxu0 0
  %201 = vmatpush1.bf16.msra.mxu0 %v158
  %202 = vmatprep.subr.bf16.mxu0 0
  %203 = vmatpush1.bf16.msra.mxu0 %v157
  %204 = vmatprep.subr.bf16.mxu0 0
  %205 = vmatpush1.bf16.msra.mxu0 %v156
  %206 = vmatprep.subr.bf16.mxu0 0
  %207 = vmatpush1.bf16.msra.mxu0 %v155
  %208 = vmatprep.subr.bf16.mxu0 0
  %209 = vmatpush1.bf16.msra.mxu0 %v154
  %210 = vmatprep.subr.bf16.mxu0 0
  %211 = vmatpush2.bf16.msra.mxu0 %v169
  %212 = vmatprep.subr.bf16.mxu0 0
  %213 = vmatpush2.bf16.msra.mxu0 %v168
  %214 = vmatprep.subr.bf16.mxu0 0
  %215 = vmatpush2.bf16.msra.mxu0 %v167
  %216 = vmatprep.subr.bf16.mxu0 0
  %217 = vmatpush2.bf16.msra.mxu0 %v166
  %218 = vmatprep.subr.bf16.mxu0 0
  %219 = vmatpush2.bf16.msra.mxu0 %v165
  %220 = vmatprep.subr.bf16.mxu0 0
  %221 = vmatpush2.bf16.msra.mxu0 %v164
  %222 = vmatprep.subr.bf16.mxu0 0
  %223 = vmatpush2.bf16.msra.mxu0 %v163
  %224 = vmatprep.subr.bf16.mxu0 0
  %225 = vmatpush2.bf16.msra.mxu0 %v162
  %226 = vmatprep.mubr.bf16.mxu0 %v78
  %227 = vmatmul.mubr.bf16.gmra.mxu0 %v77
  %v228 = vpop.f32.mrf.mxu0
  %v229 = vadd.f32 %v60, %v228
  %v230 = vpop.f32.mrf.mxu0
  %v231 = vpop.f32.mrf.mxu0
  %v232 = vadd.f32 %v65, %v231
  %v233 = vpop.f32.mrf.mxu0
  %234 = vdwg.mxu0
  %235 = vmatprep.subr.bf16.mxu0 0
  %236 = vmatpush1.bf16.msra.mxu0 0
  %237 = vmatprep.subr.bf16.mxu0 0
  %238 = vmatpush1.bf16.msra.mxu0 0
  %239 = vmatprep.subr.bf16.mxu0 0
  %240 = vmatpush1.bf16.msra.mxu0 0
  %241 = vmatprep.subr.bf16.mxu0 0
  %242 = vmatpush1.bf16.msra.mxu0 0
  %243 = vmatprep.subr.bf16.mxu0 0
  %244 = vmatpush1.bf16.msra.mxu0 0
  %245 = vmatprep.subr.bf16.mxu0 0
  %246 = vmatpush1.bf16.msra.mxu0 0
  %247 = vmatprep.subr.bf16.mxu0 0
  %248 = vmatpush1.bf16.msra.mxu0 %v171
  %249 = vmatprep.subr.bf16.mxu0 0
  %250 = vmatpush1.bf16.msra.mxu0 %v170
  %251 = vmatprep.subr.bf16.mxu0 0
  %252 = vmatpush2.bf16.msra.mxu0 0
  %253 = vmatprep.subr.bf16.mxu0 0
  %254 = vmatpush2.bf16.msra.mxu0 0
  %255 = vmatprep.subr.bf16.mxu0 0
  %256 = vmatpush2.bf16.msra.mxu0 0
  %257 = vmatprep.subr.bf16.mxu0 0
  %258 = vmatpush2.bf16.msra.mxu0 0
  %259 = vmatprep.subr.bf16.mxu0 0
  %260 = vmatpush2.bf16.msra.mxu0 0
  %261 = vmatprep.subr.bf16.mxu0 0
  %262 = vmatpush2.bf16.msra.mxu0 0
  %263 = vmatprep.subr.bf16.mxu0 0
  %264 = vmatpush2.bf16.msra.mxu0 0
  %265 = vmatprep.subr.bf16.mxu0 0
  %266 = vmatpush2.bf16.msra.mxu0 0
  %267 = vmatprep.mubr.bf16.mxu0 0
  %268 = vmatmul.mubr.bf16.gmra.mxu0 %v192
  %v269 = vpop.f32.mrf.mxu0
  %v270 = vadd.f32 %v229, %v269
  %v271 = vpop.f32.mrf.mxu0
  %v272 = vpop.f32.mrf.mxu0
  %v273 = vadd.f32 %v232, %v272
  %v274 = vpop.f32.mrf.mxu0
  %275 = vdwg.mxu0
  %v276 = vmax.f32 %v270, 0.0
  %v277 = vmax.f32 %v273, 0.0
  %vm278 = vcmask 130048
  %279 = vst.msk [vmem:[%s3] sm:$0xff] %vm278, %v276
  %280 = vst.msk [vmem:[%s3 + $0x8] sm:$0xff] %vm278, %v277
  // Predicated region
  $region14: #{unet_forward.24} parent=0 // pred_check
    _
  $region15: #{unet_forward.24} parent=0 // pred_check_branch
    %282 = sbr.rel (0) target = $region17
  $region16: #{unet_forward.24} parent=0 // pred_region
    _
  $region17: #{unet_forward.24} parent=0 // pred_fallthru
    _
  // Predicated region
  $region18: #{unet_forward.24} parent=0 // pred_check
    _
  $region19: #{unet_forward.24} parent=0 // pred_check_branch
    %284 = sbr.rel (0) target = $region21
  $region20: #{unet_forward.24} parent=0 // pred_region
    _
  $region21: #{unet_forward.24} parent=0 // pred_fallthru
    _

// kernel: unet_forward.25
$region0: #{unet_forward.25}
  #allocation0 [shape = 'u32[]', space=smem, size = 0x4, offset = 0x4, fixed_abs, tag = 'smem constant byte address 0x4 - core index']
  #allocation1 [shape = 'u32[144,128]{1,0:T(1,128)}', space=vmem, size = 0x12000, scoped, tag = 'internal scratch']
  %s0 = inlined_call_operand.vmem [shape: bf16[2,8,16], index: 0, kind: input, shape index: {}]
  %s1 = inlined_call_operand.vmem [shape: bf16[2,8,16], index: 1, kind: input, shape index: {}]
  %s2 = inlined_call_operand.vmem [shape: bf16[4,16,4], index: 2, kind: input, shape index: {}]
  %s3 = inlined_call_operand.vmem [shape: bf16[4,16,4], index: 3, kind: input, shape index: {}]
  %s4 = inlined_call_operand.vmem [shape: bf16[4,16,4], index: 4, kind: input, shape index: {}]
  %s5 = inlined_call_operand.vmem [shape: f32[4,1,4], index: 5, kind: input, shape index: {}]
  %s6 = inlined_call_operand.vmem [shape: f32[4,1,4], index: 6, kind: input, shape index: {}]
  %s7 = inlined_call_operand.vmem [shape: f32[4,1,4], index: 7, kind: input, shape index: {}]
  %s8 = inlined_call_operand.vmem [shape: bf16[4,4,16], index: 8, kind: input, shape index: {}]
  %s9 = inlined_call_operand.vmem [shape: f32[1,16], index: 9, kind: input, shape index: {}]
  %s10 = inlined_call_operand.vmem [shape: f32[2,8,16], index: 10, kind: output, shape index: {}]
  %s11 = sld [smem:[#allocation0]]
  $region73: #{unet_forward.25} parent=0
    _
  %s13 = ssub.s32 1, %s11
  %s14 = scalar_select 0, %s13, %s11
  loop: start=0, step=1, limit=4
  $region2: #{unet_forward.25} parent=0 // loop_pre_header
    _
  $region3: #{unet_forward.25} parent=0 // loop_header
    %s16 = sphi 0, %s20
    %p17 = scmp.ge.s32.totalorder %s16, 4
    %s26 = sphi 0, %s28
    %s29 = sphi 0, %s26
    %s30 = sphi 0, %s29
    %s46 = sphi 0, %s30
    %s52 = sphi 0, %s54
    %s55 = sphi 0, %s52
    %s56 = sphi 0, %s55
    %s72 = sphi 0, %s56
    %s76 = sphi 0, %s76
    %s78 = sphi 0, %s76
    %s79 = sphi 0, %s78
    %s93 = sphi 0, %s79
    %s97 = sphi 0, %s97
    %s99 = sphi 0, %s97
    %s100 = sphi 0, %s99
    %s114 = sphi 0, %s100
    %s118 = sphi 0, %s118
    %s120 = sphi 0, %s118
    %s121 = sphi 0, %s120
    %s135 = sphi 0, %s121
    %s139 = sphi 0, %s139
    %s141 = sphi 0, %s139
    %s142 = sphi 0, %s141
    %s156 = sphi 0, %s142
    %s160 = sphi 0, %s160
    %s162 = sphi 0, %s160
    %s163 = sphi 0, %s162
    %s177 = sphi 0, %s163
    %s181 = sphi 0, %s181
    %s183 = sphi 0, %s181
    %s184 = sphi 0, %s183
    %s198 = sphi 0, %s184
    %s202 = sphi 0, %s202
    %s204 = sphi 0, %s202
    %s205 = sphi 0, %s204
    %s219 = sphi 0, %s205
    %s223 = sphi 0, %s223
    %s225 = sphi 0, %s223
    %s226 = sphi 0, %s225
    %s240 = sphi 0, %s226
    %s246 = sphi 0, %s248
    %s249 = sphi 0, %s246
    %s250 = sphi 0, %s249
    %s266 = sphi 0, %s250
  $region4: #{unet_forward.25} parent=0 // loop_header_branch
    %19 = sbr.rel (%p17) target = $region8
  $region5: #{unet_forward.25} parent=0 // loop_body
    %s21 = ssub.s32 %s16, 1
    %s22 = ssub.s32 %s16, 2
    %s23 = sadd.s32 %s16, 1
    %s24 = ssub.s32 %s16, %s23
    %p25 = scmp.eq.s32.totalorder %s24, 0
    %s27 = sadd.s32 %s26, 1
    %s28 = scalar_select %p25, %s26, %s27
    %p31 = pneg %p25
    %p32 = scmp.eq.s32.totalorder %s16, 1
    %p33 = por %p31, %p32
    %p34 = scmp.ne.s32.totalorder %s26, %s29
    %p35 = scmp.eq.s32.totalorder %s16, 0
    %p36 = por %p34, %p35
    %p37 = scmp.ne.s32.totalorder %s26, %s29
    %p38 = scmp.eq.s32.totalorder %s21, 1
    %p39 = por %p37, %p38
    %p40 = scmp.ne.s32.totalorder %s29, %s30
    %p41 = scmp.eq.s32.totalorder %s21, 0
    %p42 = por %p40, %p41
    %p43 = scmp.ne.s32.totalorder %s29, %s30
    %p44 = scmp.eq.s32.totalorder %s22, 1
    %p45 = por %p43, %p44
    %p47 = scmp.ne.s32.totalorder %s30, %s46
    %p48 = scmp.eq.s32.totalorder %s22, 0
    %p49 = por %p47, %p48
    %s50 = ssub.s32 %s16, %s23
    %p51 = scmp.eq.s32.totalorder %s50, 0
    %s53 = sadd.s32 %s52, 1
    %s54 = scalar_select %p51, %s52, %s53
    %p57 = pneg %p51
    %p58 = scmp.eq.s32.totalorder %s16, 1
    %p59 = por %p57, %p58
    %p60 = scmp.ne.s32.totalorder %s52, %s55
    %p61 = scmp.eq.s32.totalorder %s16, 0
    %p62 = por %p60, %p61
    %p63 = scmp.ne.s32.totalorder %s52, %s55
    %p64 = scmp.eq.s32.totalorder %s21, 1
    %p65 = por %p63, %p64
    %p66 = scmp.ne.s32.totalorder %s55, %s56
    %p67 = scmp.eq.s32.totalorder %s21, 0
    %p68 = por %p66, %p67
    %p69 = scmp.ne.s32.totalorder %s55, %s56
    %p70 = scmp.eq.s32.totalorder %s22, 1
    %p71 = por %p69, %p70
    %p73 = scmp.ne.s32.totalorder %s56, %s72
    %p74 = scmp.eq.s32.totalorder %s22, 0
    %p75 = por %p73, %p74
    %s77 = sadd.s32 %s76, 1
    %p80 = scmp.eq.s32.totalorder %s16, 1
    %p81 = scmp.ne.s32.totalorder %s76, %s78
    %p82 = scmp.eq.s32.totalorder %s16, 0
    %p83 = por %p81, %p82
    %p84 = scmp.ne.s32.totalorder %s76, %s78
    %p85 = scmp.eq.s32.totalorder %s21, 1
    %p86 = por %p84, %p85
    %p87 = scmp.ne.s32.totalorder %s78, %s79
    %p88 = scmp.eq.s32.totalorder %s21, 0
    %p89 = por %p87, %p88
    %p90 = scmp.ne.s32.totalorder %s78, %s79
    %p91 = scmp.eq.s32.totalorder %s22, 1
    %p92 = por %p90, %p91
    %p94 = scmp.ne.s32.totalorder %s79, %s93
    %p95 = scmp.eq.s32.totalorder %s22, 0
    %p96 = por %p94, %p95
    %s98 = sadd.s32 %s97, 1
    %p101 = scmp.eq.s32.totalorder %s16, 1
    %p102 = scmp.ne.s32.totalorder %s97, %s99
    %p103 = scmp.eq.s32.totalorder %s16, 0
    %p104 = por %p102, %p103
    %p105 = scmp.ne.s32.totalorder %s97, %s99
    %p106 = scmp.eq.s32.totalorder %s21, 1
    %p107 = por %p105, %p106
    %p108 = scmp.ne.s32.totalorder %s99, %s100
    %p109 = scmp.eq.s32.totalorder %s21, 0
    %p110 = por %p108, %p109
    %p111 = scmp.ne.s32.totalorder %s99, %s100
    %p112 = scmp.eq.s32.totalorder %s22, 1
    %p113 = por %p111, %p112
    %p115 = scmp.ne.s32.totalorder %s100, %s114
    %p116 = scmp.eq.s32.totalorder %s22, 0
    %p117 = por %p115, %p116
    %s119 = sadd.s32 %s118, 1
    %p122 = scmp.eq.s32.totalorder %s16, 1
    %p123 = scmp.ne.s32.totalorder %s118, %s120
    %p124 = scmp.eq.s32.totalorder %s16, 0
    %p125 = por %p123, %p124
    %p126 = scmp.ne.s32.totalorder %s118, %s120
    %p127 = scmp.eq.s32.totalorder %s21, 1
    %p128 = por %p126, %p127
    %p129 = scmp.ne.s32.totalorder %s120, %s121
    %p130 = scmp.eq.s32.totalorder %s21, 0
    %p131 = por %p129, %p130
    %p132 = scmp.ne.s32.totalorder %s120, %s121
    %p133 = scmp.eq.s32.totalorder %s22, 1
    %p134 = por %p132, %p133
    %p136 = scmp.ne.s32.totalorder %s121, %s135
    %p137 = scmp.eq.s32.totalorder %s22, 0
    %p138 = por %p136, %p137
    %s140 = sadd.s32 %s139, 1
    %p143 = scmp.eq.s32.totalorder %s16, 1
    %p144 = scmp.ne.s32.totalorder %s139, %s141
    %p145 = scmp.eq.s32.totalorder %s16, 0
    %p146 = por %p144, %p145
    %p147 = scmp.ne.s32.totalorder %s139, %s141
    %p148 = scmp.eq.s32.totalorder %s21, 1
    %p149 = por %p147, %p148
    %p150 = scmp.ne.s32.totalorder %s141, %s142
    %p151 = scmp.eq.s32.totalorder %s21, 0
    %p152 = por %p150, %p151
    %p153 = scmp.ne.s32.totalorder %s141, %s142
    %p154 = scmp.eq.s32.totalorder %s22, 1
    %p155 = por %p153, %p154
    %p157 = scmp.ne.s32.totalorder %s142, %s156
    %p158 = scmp.eq.s32.totalorder %s22, 0
    %p159 = por %p157, %p158
    %s161 = sadd.s32 %s160, 1
    %p164 = scmp.eq.s32.totalorder %s16, 1
    %p165 = scmp.ne.s32.totalorder %s160, %s162
    %p166 = scmp.eq.s32.totalorder %s16, 0
    %p167 = por %p165, %p166
    %p168 = scmp.ne.s32.totalorder %s160, %s162
    %p169 = scmp.eq.s32.totalorder %s21, 1
    %p170 = por %p168, %p169
    %p171 = scmp.ne.s32.totalorder %s162, %s163
    %p172 = scmp.eq.s32.totalorder %s21, 0
    %p173 = por %p171, %p172
    %p174 = scmp.ne.s32.totalorder %s162, %s163
    %p175 = scmp.eq.s32.totalorder %s22, 1
    %p176 = por %p174, %p175
    %p178 = scmp.ne.s32.totalorder %s163, %s177
    %p179 = scmp.eq.s32.totalorder %s22, 0
    %p180 = por %p178, %p179
    %s182 = sadd.s32 %s181, 1
    %p185 = scmp.eq.s32.totalorder %s16, 1
    %p186 = scmp.ne.s32.totalorder %s181, %s183
    %p187 = scmp.eq.s32.totalorder %s16, 0
    %p188 = por %p186, %p187
    %p189 = scmp.ne.s32.totalorder %s181, %s183
    %p190 = scmp.eq.s32.totalorder %s21, 1
    %p191 = por %p189, %p190
    %p192 = scmp.ne.s32.totalorder %s183, %s184
    %p193 = scmp.eq.s32.totalorder %s21, 0
    %p194 = por %p192, %p193
    %p195 = scmp.ne.s32.totalorder %s183, %s184
    %p196 = scmp.eq.s32.totalorder %s22, 1
    %p197 = por %p195, %p196
    %p199 = scmp.ne.s32.totalorder %s184, %s198
    %p200 = scmp.eq.s32.totalorder %s22, 0
    %p201 = por %p199, %p200
    %s203 = sadd.s32 %s202, 1
    %p206 = scmp.eq.s32.totalorder %s16, 1
    %p207 = scmp.ne.s32.totalorder %s202, %s204
    %p208 = scmp.eq.s32.totalorder %s16, 0
    %p209 = por %p207, %p208
    %p210 = scmp.ne.s32.totalorder %s202, %s204
    %p211 = scmp.eq.s32.totalorder %s21, 1
    %p212 = por %p210, %p211
    %p213 = scmp.ne.s32.totalorder %s204, %s205
    %p214 = scmp.eq.s32.totalorder %s21, 0
    %p215 = por %p213, %p214
    %p216 = scmp.ne.s32.totalorder %s204, %s205
    %p217 = scmp.eq.s32.totalorder %s22, 1
    %p218 = por %p216, %p217
    %p220 = scmp.ne.s32.totalorder %s205, %s219
    %p221 = scmp.eq.s32.totalorder %s22, 0
    %p222 = por %p220, %p221
    %s224 = sadd.s32 %s223, 1
    %p227 = scmp.eq.s32.totalorder %s16, 1
    %p228 = scmp.ne.s32.totalorder %s223, %s225
    %p229 = scmp.eq.s32.totalorder %s16, 0
    %p230 = por %p228, %p229
    %p231 = scmp.ne.s32.totalorder %s223, %s225
    %p232 = scmp.eq.s32.totalorder %s21, 1
    %p233 = por %p231, %p232
    %p234 = scmp.ne.s32.totalorder %s225, %s226
    %p235 = scmp.eq.s32.totalorder %s21, 0
    %p236 = por %p234, %p235
    %p237 = scmp.ne.s32.totalorder %s225, %s226
    %p238 = scmp.eq.s32.totalorder %s22, 1
    %p239 = por %p237, %p238
    %p241 = scmp.ne.s32.totalorder %s226, %s240
    %p242 = scmp.eq.s32.totalorder %s22, 0
    %p243 = por %p241, %p242
    %s244 = ssub.s32 %s16, %s23
    %p245 = scmp.eq.s32.totalorder %s244, 0
    %s247 = sadd.s32 %s246, 1
    %s248 = scalar_select %p245, %s246, %s247
    %p251 = pneg %p245
    %p252 = scmp.eq.s32.totalorder %s16, 1
    %p253 = por %p251, %p252
    %p254 = scmp.ne.s32.totalorder %s246, %s249
    %p255 = scmp.eq.s32.totalorder %s16, 0
    %p256 = por %p254, %p255
    %p257 = scmp.ne.s32.totalorder %s246, %s249
    %p258 = scmp.eq.s32.totalorder %s21, 1
    %p259 = por %p257, %p258
    %p260 = scmp.ne.s32.totalorder %s249, %s250
    %p261 = scmp.eq.s32.totalorder %s21, 0
    %p262 = por %p260, %p261
    %p263 = scmp.ne.s32.totalorder %s249, %s250
    %p264 = scmp.eq.s32.totalorder %s22, 1
    %p265 = por %p263, %p264
    %p267 = scmp.ne.s32.totalorder %s250, %s266
    %p268 = scmp.eq.s32.totalorder %s22, 0
    %p269 = por %p267, %p268
    %p270 = scmp.le.s32.totalorder 1, %s16
    %p271 = scmp.lt.s32.totalorder %s16, 3
    %p272 = pnand %p270, %p271
    %p273 = pneg %p272
    // Predicated region
    $region9: #{unet_forward.25} parent=5 // pred_check
      _
    $region10: #{unet_forward.25} parent=5 // pred_check_branch
      %275 = sbr.rel (%p272) target = $region12
    $region11: #{unet_forward.25} parent=5 // pred_region
      %s276 = ssub.s32 %s16, 1
      // Predicated region
      $region13: #{unet_forward.25} parent=11 // pred_check
        %p277 = pneg %p89
      $region14: #{unet_forward.25} parent=11 // pred_check_branch
        %279 = sbr.rel (%p277) target = $region16
      $region15: #{unet_forward.25} parent=11 // pred_region
        _
      $region16: #{unet_forward.25} parent=11 // pred_fallthru
        _
      // Predicated region
      $region17: #{unet_forward.25} parent=11 // pred_check
        %p280 = pneg %p110
      $region18: #{unet_forward.25} parent=11 // pred_check_branch
        %282 = sbr.rel (%p280) target = $region20
      $region19: #{unet_forward.25} parent=11 // pred_region
        _
      $region20: #{unet_forward.25} parent=11 // pred_fallthru
        _
      // Predicated region
      $region21: #{unet_forward.25} parent=11 // pred_check
        %p283 = pneg %p131
      $region22: #{unet_forward.25} parent=11 // pred_check_branch
        %285 = sbr.rel (%p283) target = $region24
      $region23: #{unet_forward.25} parent=11 // pred_region
        _
      $region24: #{unet_forward.25} parent=11 // pred_fallthru
        _
      // Predicated region
      $region25: #{unet_forward.25} parent=11 // pred_check
        %p286 = pneg %p152
      $region26: #{unet_forward.25} parent=11 // pred_check_branch
        %288 = sbr.rel (%p286) target = $region28
      $region27: #{unet_forward.25} parent=11 // pred_region
        _
      $region28: #{unet_forward.25} parent=11 // pred_fallthru
        _
      // Predicated region
      $region29: #{unet_forward.25} parent=11 // pred_check
        %p289 = pneg %p173
      $region30: #{unet_forward.25} parent=11 // pred_check_branch
        %291 = sbr.rel (%p289) target = $region32
      $region31: #{unet_forward.25} parent=11 // pred_region
        _
      $region32: #{unet_forward.25} parent=11 // pred_fallthru
        _
      // Predicated region
      $region33: #{unet_forward.25} parent=11 // pred_check
        %p292 = pneg %p194
      $region34: #{unet_forward.25} parent=11 // pred_check_branch
        %294 = sbr.rel (%p292) target = $region36
      $region35: #{unet_forward.25} parent=11 // pred_region
        _
      $region36: #{unet_forward.25} parent=11 // pred_fallthru
        _
      // Predicated region
      $region37: #{unet_forward.25} parent=11 // pred_check
        %p295 = pneg %p215
      $region38: #{unet_forward.25} parent=11 // pred_check_branch
        %297 = sbr.rel (%p295) target = $region40
      $region39: #{unet_forward.25} parent=11 // pred_region
        _
      $region40: #{unet_forward.25} parent=11 // pred_fallthru
        _
      // Predicated region
      $region41: #{unet_forward.25} parent=11 // pred_check
        %p298 = pneg %p236
      $region42: #{unet_forward.25} parent=11 // pred_check_branch
        %300 = sbr.rel (%p298) target = $region44
      $region43: #{unet_forward.25} parent=11 // pred_region
        _
      $region44: #{unet_forward.25} parent=11 // pred_fallthru
        _
    $region12: #{unet_forward.25} parent=5 // pred_fallthru
      _
    %p301 = scmp.lt.s32.totalorder %s16, 2
    // Predicated region
    $region45: #{unet_forward.25} parent=5 // pred_check
      %p302 = pneg %p301
    $region46: #{unet_forward.25} parent=5 // pred_check_branch
      %304 = sbr.rel (%p302) target = $region48
    $region47: #{unet_forward.25} parent=5 // pred_region
      // Predicated region
      $region49: #{unet_forward.25} parent=47 // pred_check
        %p305 = pneg %p36
      $region50: #{unet_forward.25} parent=47 // pred_check_branch
        %307 = sbr.rel (%p305) target = $region52
      $region51: #{unet_forward.25} parent=47 // pred_region
        %p308 = scmp.lt.s32.totalorder %s16, 1
        %s309 = scalar_select %p308, %s16, 1
        %s310 = smul.addr %s309, 4
        %s311 = scalar_lea.vmem %s0, %s310
      $region52: #{unet_forward.25} parent=47 // pred_fallthru
        _
      // Predicated region
      $region53: #{unet_forward.25} parent=47 // pred_check
        %p312 = pneg %p62
      $region54: #{unet_forward.25} parent=47 // pred_check_branch
        %314 = sbr.rel (%p312) target = $region56
      $region55: #{unet_forward.25} parent=47 // pred_region
        %p315 = scmp.lt.s32.totalorder %s16, 1
        %s316 = scalar_select %p315, %s16, 1
        %s317 = smul.addr %s316, 4
        %s318 = scalar_lea.vmem %s1, %s317
      $region56: #{unet_forward.25} parent=47 // pred_fallthru
        _
    $region48: #{unet_forward.25} parent=5 // pred_fallthru
      _
    %p319 = scmp.le.s32.totalorder 1, %s16
    %p320 = scmp.lt.s32.totalorder %s16, 3
    %p321 = pnand %p319, %p320
    %p322 = pneg %p321
    // Predicated region
    $region57: #{unet_forward.25} parent=5 // pred_check
      _
    $region58: #{unet_forward.25} parent=5 // pred_check_branch
      %324 = sbr.rel (%p321) target = $region60
    $region59: #{unet_forward.25} parent=5 // pred_region
      %s325 = ssub.s32 %s16, 1
      %p326 = scmp.lt.s32.totalorder %s21, 1
      %s327 = scalar_select %p326, %s21, 1
      %s328 = smul.addr %s327, 4
      %s329 = scalar_lea.vmem %s0, %s328
      %p330 = pneg %p42
      %p331 = pneg %p39
      %p332 = scmp.lt.s32.totalorder %s21, 1
      %s333 = scalar_select %p332, %s21, 1
      %s334 = smul.addr %s333, 4
      %s335 = scalar_lea.vmem %s1, %s334
      %p336 = pneg %p68
      %p337 = pneg %p65
      %p338 = pneg %p89
      %p339 = pneg %p86
      %p340 = pneg %p110
      %p341 = pneg %p107
      %p342 = pneg %p131
      %p343 = pneg %p128
      %p344 = pneg %p152
      %p345 = pneg %p149
      %p346 = pneg %p173
      %p347 = pneg %p170
      %p348 = pneg %p194
      %p349 = pneg %p191
      %p350 = pneg %p215
      %p351 = pneg %p212
      %p352 = pneg %p236
      %p353 = pneg %p233
      %p354 = pneg %p262
      %p355 = pneg %p259
      %p356 = scmp.lt.s32.totalorder %s21, 1
      %s357 = scalar_select %p356, %s21, 1
      %s358 = smul.addr %s357, 8
      %s359 = scalar_lea.vmem %s10, %s358
      %p360 = scmp.lt.s32.totalorder %s21, 1
      %s361 = scalar_select %p360, %s21, 1
      %s362 = smul.addr %s361, 4
      %s363 = scalar_lea.vmem %s0, %s362
      %p364 = scmp.lt.s32.totalorder %s21, 1
      %s365 = scalar_select %p364, %s21, 1
      %s366 = smul.addr %s365, 4
      %s367 = scalar_lea.vmem %s1, %s366
      %p368 = scmp.lt.s32.totalorder %s21, 1
      %s369 = scalar_select %p368, %s21, 1
      %s370 = smul.addr %s369, 8
      %s371 = scalar_lea.vmem %s10, %s370
      %v373 = vld [vmem:[%s363] sm:$0xf]
      %v374 = vld [vmem:[%s367] sm:$0xf]
      %v375 = vld [vmem:[%s9] sm:$0x1]
      %v377 = vlaneseq
      %v378 = vshrl.u32 %v377, 7
      %v379 = vsub.s32 0, %v378
      %v380 = vrot.slane %v375, %v379
      %v382 = vadd.f32 %v380, 0.0
      %v383 = vld [vmem:[%s2] sm:$0xf]
      %v384 = vld [vmem:[%s2 + $0x4] sm:$0xf]
      %v385 = vld [vmem:[%s5] sm:$0x1]
      %v387 = vlaneseq
      %v388 = vshrl.u32 %v387, 7
      %v389 = vsub.s32 0, %v388
      %v390 = vrot.slane %v385, %v389
      %v394 = vunpack.c.l.b16 %v383
      %v395 = vunpack.c.l.b16 %v384
      %v396 = vpack.c.b16 %v395, %v394
      %vm398 = vcmask 130048
      %v400 = vsel %vm398, %v373, 0
      %402 = vmatprep.subr.bf16.mxu0 0
      %403 = vmatpush1.bf16.msra.mxu0 0
      %404 = vmatprep.subr.bf16.mxu0 0
      %405 = vmatpush1.bf16.msra.mxu0 0
      %406 = vmatprep.subr.bf16.mxu0 0
      %407 = vmatpush1.bf16.msra.mxu0 0
      %408 = vmatprep.subr.bf16.mxu0 0
      %409 = vmatpush1.bf16.msra.mxu0 0
      %410 = vmatprep.subr.bf16.mxu0 0
      %411 = vmatpush1.bf16.msra.mxu0 0
      %412 = vmatprep.subr.bf16.mxu0 0
      %413 = vmatpush1.bf16.msra.mxu0 0
      %414 = vmatprep.subr.bf16.mxu0 0
      %415 = vmatpush1.bf16.msra.mxu0 0
      %416 = vmatprep.subr.bf16.mxu0 0
      %417 = vmatpush1.bf16.msra.mxu0 %v396
      %418 = vmatprep.subr.bf16.mxu0 0
      %419 = vmatpush2.bf16.msra.mxu0 0
      %420 = vmatprep.subr.bf16.mxu0 0
      %421 = vmatpush2.bf16.msra.mxu0 0
      %422 = vmatprep.subr.bf16.mxu0 0
      %423 = vmatpush2.bf16.msra.mxu0 0
      %424 = vmatprep.subr.bf16.mxu0 0
      %425 = vmatpush2.bf16.msra.mxu0 0
      %426 = vmatprep.subr.bf16.mxu0 0
      %427 = vmatpush2.bf16.msra.mxu0 0
      %428 = vmatprep.subr.bf16.mxu0 0
      %429 = vmatpush2.bf16.msra.mxu0 0
      %430 = vmatprep.subr.bf16.mxu0 0
      %431 = vmatpush2.bf16.msra.mxu0 0
      %432 = vmatprep.subr.bf16.mxu0 0
      %433 = vmatpush2.bf16.msra.mxu0 0
      %434 = vmatprep.mubr.bf16.mxu0 0
      %435 = vmatmul.mubr.bf16.gmra.mxu0 %v400
      %v436 = vpop.f32.mrf.mxu0
      %v437 = vadd.f32 %v390, %v436
      %v438 = vpop.f32.mrf.mxu0
      %v439 = vpop.f32.mrf.mxu0
      %v440 = vpop.f32.mrf.mxu0
      %441 = vdwg.mxu0
      %v442 = vld [vmem:[%s3] sm:$0xf]
      %v443 = vld [vmem:[%s3 + $0x4] sm:$0xf]
      %v444 = vld [vmem:[%s6] sm:$0x1]
      %v446 = vlaneseq
      %v447 = vshrl.u32 %v446, 7
      %v448 = vsub.s32 0, %v447
      %v449 = vrot.slane %v444, %v448
      %v453 = vunpack.c.l.b16 %v442
      %v454 = vunpack.c.l.b16 %v443
      %v455 = vpack.c.b16 %v454, %v453
      %v458 = vsel %vm398, %v374, 0
      %460 = vmatprep.subr.bf16.mxu0 0
      %461 = vmatpush1.bf16.msra.mxu0 0
      %462 = vmatprep.subr.bf16.mxu0 0
      %463 = vmatpush1.bf16.msra.mxu0 0
      %464 = vmatprep.subr.bf16.mxu0 0
      %465 = vmatpush1.bf16.msra.mxu0 0
      %466 = vmatprep.subr.bf16.mxu0 0
      %467 = vmatpush1.bf16.msra.mxu0 0
      %468 = vmatprep.subr.bf16.mxu0 0
      %469 = vmatpush1.bf16.msra.mxu0 0
      %470 = vmatprep.subr.bf16.mxu0 0
      %471 = vmatpush1.bf16.msra.mxu0 0
      %472 = vmatprep.subr.bf16.mxu0 0
      %473 = vmatpush1.bf16.msra.mxu0 0
      %474 = vmatprep.subr.bf16.mxu0 0
      %475 = vmatpush1.bf16.msra.mxu0 %v455
      %476 = vmatprep.subr.bf16.mxu0 0
      %477 = vmatpush2.bf16.msra.mxu0 0
      %478 = vmatprep.subr.bf16.mxu0 0
      %479 = vmatpush2.bf16.msra.mxu0 0
      %480 = vmatprep.subr.bf16.mxu0 0
      %481 = vmatpush2.bf16.msra.mxu0 0
      %482 = vmatprep.subr.bf16.mxu0 0
      %483 = vmatpush2.bf16.msra.mxu0 0
      %484 = vmatprep.subr.bf16.mxu0 0
      %485 = vmatpush2.bf16.msra.mxu0 0
      %486 = vmatprep.subr.bf16.mxu0 0
      %487 = vmatpush2.bf16.msra.mxu0 0
      %488 = vmatprep.subr.bf16.mxu0 0
      %489 = vmatpush2.bf16.msra.mxu0 0
      %490 = vmatprep.subr.bf16.mxu0 0
      %491 = vmatpush2.bf16.msra.mxu0 0
      %492 = vmatprep.mubr.bf16.mxu0 0
      %493 = vmatmul.mubr.bf16.gmra.mxu0 %v458
      %v494 = vpop.f32.mrf.mxu0
      %v495 = vadd.f32 %v449, %v494
      %v496 = vpop.f32.mrf.mxu0
      %v497 = vpop.f32.mrf.mxu0
      %v498 = vpop.f32.mrf.mxu0
      %499 = vdwg.mxu0
      %v500 = vld [vmem:[%s4] sm:$0xf]
      %v501 = vld [vmem:[%s4 + $0x4] sm:$0xf]
      %v502 = vld [vmem:[%s7] sm:$0x1]
      %v504 = vlaneseq
      %v505 = vshrl.u32 %v504, 7
      %v506 = vsub.s32 0, %v505
      %v507 = vrot.slane %v502, %v506
      %v511 = vunpack.c.l.b16 %v500
      %v512 = vunpack.c.l.b16 %v501
      %v513 = vpack.c.b16 %v512, %v511
      %515 = vmatprep.subr.bf16.mxu0 0
      %516 = vmatpush1.bf16.msra.mxu0 0
      %517 = vmatprep.subr.bf16.mxu0 0
      %518 = vmatpush1.bf16.msra.mxu0 0
      %519 = vmatprep.subr.bf16.mxu0 0
      %520 = vmatpush1.bf16.msra.mxu0 0
      %521 = vmatprep.subr.bf16.mxu0 0
      %522 = vmatpush1.bf16.msra.mxu0 0
      %523 = vmatprep.subr.bf16.mxu0 0
      %524 = vmatpush1.bf16.msra.mxu0 0
      %525 = vmatprep.subr.bf16.mxu0 0
      %526 = vmatpush1.bf16.msra.mxu0 0
      %527 = vmatprep.subr.bf16.mxu0 0
      %528 = vmatpush1.bf16.msra.mxu0 0
      %529 = vmatprep.subr.bf16.mxu0 0
      %530 = vmatpush1.bf16.msra.mxu0 %v513
      %531 = vmatprep.subr.bf16.mxu0 0
      %532 = vmatpush2.bf16.msra.mxu0 0
      %533 = vmatprep.subr.bf16.mxu0 0
      %534 = vmatpush2.bf16.msra.mxu0 0
      %535 = vmatprep.subr.bf16.mxu0 0
      %536 = vmatpush2.bf16.msra.mxu0 0
      %537 = vmatprep.subr.bf16.mxu0 0
      %538 = vmatpush2.bf16.msra.mxu0 0
      %539 = vmatprep.subr.bf16.mxu0 0
      %540 = vmatpush2.bf16.msra.mxu0 0
      %541 = vmatprep.subr.bf16.mxu0 0
      %542 = vmatpush2.bf16.msra.mxu0 0
      %543 = vmatprep.subr.bf16.mxu0 0
      %544 = vmatpush2.bf16.msra.mxu0 0
      %545 = vmatprep.subr.bf16.mxu0 0
      %546 = vmatpush2.bf16.msra.mxu0 0
      %547 = vmatprep.mubr.bf16.mxu0 0
      %548 = vmatmul.mubr.bf16.gmra.mxu0 %v458
      %v549 = vpop.f32.mrf.mxu0
      %v550 = vadd.f32 %v507, %v549
      %v551 = vpop.f32.mrf.mxu0
      %v552 = vpop.f32.mrf.mxu0
      %v553 = vpop.f32.mrf.mxu0
      %554 = vdwg.mxu0
      %v555 = vpack.c.bf16 %v437, %v437
      %v556 = vpack.c.bf16 %v495, %v495
      %vm557 = vcmask 31744
      %v559 = vsel %vm557, %v555, 0
      %v562 = vsel %vm557, %v556, 0
      %564 = vmatprep.subr.bf16.mxu0 0
      %565 = vmatpush1.bf16.xpose.msra.mxu0 0
      %566 = vmatprep.subr.bf16.mxu0 0
      %567 = vmatpush1.bf16.xpose.msra.mxu0 0
      %568 = vmatprep.subr.bf16.mxu0 0
      %569 = vmatpush1.bf16.xpose.msra.mxu0 0
      %570 = vmatprep.subr.bf16.mxu0 0
      %571 = vmatpush1.bf16.xpose.msra.mxu0 0
      %572 = vmatprep.subr.bf16.mxu0 0
      %573 = vmatpush1.bf16.xpose.msra.mxu0 0
      %574 = vmatprep.subr.bf16.mxu0 0
      %575 = vmatpush1.bf16.xpose.msra.mxu0 0
      %576 = vmatprep.subr.bf16.mxu0 0
      %577 = vmatpush1.bf16.xpose.msra.mxu0 0
      %578 = vmatprep.subr.bf16.mxu0 0
      %579 = vmatpush1.bf16.xpose.msra.mxu0 %v562
      %580 = vmatprep.subr.bf16.mxu0 0
      %581 = vmatpush2.bf16.xpose.msra.mxu0 0
      %582 = vmatprep.subr.bf16.mxu0 0
      %583 = vmatpush2.bf16.xpose.msra.mxu0 0
      %584 = vmatprep.subr.bf16.mxu0 0
      %585 = vmatpush2.bf16.xpose.msra.mxu0 0
      %586 = vmatprep.subr.bf16.mxu0 0
      %587 = vmatpush2.bf16.xpose.msra.mxu0 0
      %588 = vmatprep.subr.bf16.mxu0 0
      %589 = vmatpush2.bf16.xpose.msra.mxu0 0
      %590 = vmatprep.subr.bf16.mxu0 0
      %591 = vmatpush2.bf16.xpose.msra.mxu0 0
      %592 = vmatprep.subr.bf16.mxu0 0
      %593 = vmatpush2.bf16.xpose.msra.mxu0 0
      %594 = vmatprep.subr.bf16.mxu0 0
      %595 = vmatpush2.bf16.xpose.msra.mxu0 0
      %596 = vmatprep.mubr.bf16.mxu0 0
      %597 = vmatmul.mubr.bf16.gmra.mxu0 %v559
      %v598 = vpop.f32.mrf.mxu0
      %v599 = vadd.f32 0.0, %v598
      %v600 = vpop.f32.mrf.mxu0
      %v601 = vpop.f32.mrf.mxu0
      %v602 = vpop.f32.mrf.mxu0
      %603 = vdwg.mxu0
      %v604 = vmul.f32 %v599, 0.5
      %vm605 = vcmask 64512
      %v606 = vsel %vm605, %v604, -inf
      %607 = vmax.xlane.f32.xlu0 %v606
      %v608 = vpop.xlane.xlu0 %607
      %v609 = vsub.f32 %v604, %v608
      %v610 = vmul.f32 %v609, 1.442695
      %v611 = vpow.pop %v610
      %v612 = vsel %vm605, %v611, 0.0
      %613 = vadd.xlane.f32.xlu0 %v612
      %v614 = vpop.xlane.xlu0 %613
      %v615 = vrcp.pop %v614
      %v616 = vmul.f32 %v611, %v615
      %v617 = vpack.c.bf16 %v616, %v616
      %v618 = vpack.c.bf16 %v550, %v550
      %v620 = vsel %vm605, %v617, 0
      %vm622 = vcmask 1043456
      %v624 = vsel %vm622, %v618, 0
      %626 = vmatprep.subr.bf16.mxu0 0
      %627 = vmatpush1.bf16.msra.mxu0 0
      %628 = vmatprep.subr.bf16.mxu0 0
      %629 = vmatpush1.bf16.msra.mxu0 0
      %630 = vmatprep.subr.bf16.mxu0 0
      %631 = vmatpush1.bf16.msra.mxu0 0
      %632 = vmatprep.subr.bf16.mxu0 0
      %633 = vmatpush1.bf16.msra.mxu0 0
      %634 = vmatprep.subr.bf16.mxu0 0
      %635 = vmatpush1.bf16.msra.mxu0 0
      %636 = vmatprep.subr.bf16.mxu0 0
      %637 = vmatpush1.bf16.msra.mxu0 0
      %638 = vmatprep.subr.bf16.mxu0 0
      %639 = vmatpush1.bf16.msra.mxu0 0
      %640 = vmatprep.subr.bf16.mxu0 0
      %641 = vmatpush1.bf16.msra.mxu0 %v624
      %642 = vmatprep.subr.bf16.mxu0 0
      %643 = vmatpush2.bf16.msra.mxu0 0
      %644 = vmatprep.subr.bf16.mxu0 0
      %645 = vmatpush2.bf16.msra.mxu0 0
      %646 = vmatprep.subr.bf16.mxu0 0
      %647 = vmatpush2.bf16.msra.mxu0 0
      %648 = vmatprep.subr.bf16.mxu0 0
      %649 = vmatpush2.bf16.msra.mxu0 0
      %650 = vmatprep.subr.bf16.mxu0 0
      %651 = vmatpush2.bf16.msra.mxu0 0
      %652 = vmatprep.subr.bf16.mxu0 0
      %653 = vmatpush2.bf16.msra.mxu0 0
      %654 = vmatprep.subr.bf16.mxu0 0
      %655 = vmatpush2.bf16.msra.mxu0 0
      %656 = vmatprep.subr.bf16.mxu0 0
      %657 = vmatpush2.bf16.msra.mxu0 0
      %658 = vmatprep.mubr.bf16.mxu0 0
      %659 = vmatmul.mubr.bf16.gmra.mxu0 %v620
      %v660 = vpop.f32.mrf.mxu0
      %v661 = vadd.f32 0.0, %v660
      %v662 = vpop.f32.mrf.mxu0
      %v663 = vpop.f32.mrf.mxu0
      %v664 = vpop.f32.mrf.mxu0
      %665 = vdwg.mxu0
      %v666 = vpack.c.bf16 %v661, %v661
      %v667 = vld [vmem:[%s8] sm:$0x3]
      %v669 = vsel %vm557, %v666, 0
      %vm671 = vcmask 1041408
      %v673 = vsel %vm671, %v667, 0
      %675 = vmatprep.subr.bf16.mxu0 0
      %676 = vmatpush1.bf16.msra.mxu0 0
      %677 = vmatprep.subr.bf16.mxu0 0
      %678 = vmatpush1.bf16.msra.mxu0 0
      %679 = vmatprep.subr.bf16.mxu0 0
      %680 = vmatpush1.bf16.msra.mxu0 0
      %681 = vmatprep.subr.bf16.mxu0 0
      %682 = vmatpush1.bf16.msra.mxu0 0
      %683 = vmatprep.subr.bf16.mxu0 0
      %684 = vmatpush1.bf16.msra.mxu0 0
      %685 = vmatprep.subr.bf16.mxu0 0
      %686 = vmatpush1.bf16.msra.mxu0 0
      %687 = vmatprep.subr.bf16.mxu0 0
      %688 = vmatpush1.bf16.msra.mxu0 0
      %689 = vmatprep.subr.bf16.mxu0 0
      %690 = vmatpush1.bf16.msra.mxu0 %v673
      %691 = vmatprep.subr.bf16.mxu0 0
      %692 = vmatpush2.bf16.msra.mxu0 0
      %693 = vmatprep.subr.bf16.mxu0 0
      %694 = vmatpush2.bf16.msra.mxu0 0
      %695 = vmatprep.subr.bf16.mxu0 0
      %696 = vmatpush2.bf16.msra.mxu0 0
      %697 = vmatprep.subr.bf16.mxu0 0
      %698 = vmatpush2.bf16.msra.mxu0 0
      %699 = vmatprep.subr.bf16.mxu0 0
      %700 = vmatpush2.bf16.msra.mxu0 0
      %701 = vmatprep.subr.bf16.mxu0 0
      %702 = vmatpush2.bf16.msra.mxu0 0
      %703 = vmatprep.subr.bf16.mxu0 0
      %704 = vmatpush2.bf16.msra.mxu0 0
      %705 = vmatprep.subr.bf16.mxu0 0
      %706 = vmatpush2.bf16.msra.mxu0 0
      %707 = vmatprep.mubr.bf16.mxu0 0
      %708 = vmatmul.mubr.bf16.gmra.mxu0 %v669
      %v709 = vpop.f32.mrf.mxu0
      %v710 = vadd.f32 0.0, %v709
      %v711 = vpop.f32.mrf.mxu0
      %v712 = vpop.f32.mrf.mxu0
      %v713 = vpop.f32.mrf.mxu0
      %714 = vdwg.mxu0
      %v715 = vadd.f32 %v382, %v710
      %s716 = scalar_lea.vmem %s2, 8
      %v717 = vld [vmem:[%s716] sm:$0xf]
      %v718 = vld [vmem:[%s716 + $0x4] sm:$0xf]
      %s719 = scalar_lea.vmem %s5, 1
      %v720 = vld [vmem:[%s719] sm:$0x1]
      %v722 = vlaneseq
      %v723 = vshrl.u32 %v722, 7
      %v724 = vsub.s32 0, %v723
      %v725 = vrot.slane %v720, %v724
      %v729 = vunpack.c.l.b16 %v717
      %v730 = vunpack.c.l.b16 %v718
      %v731 = vpack.c.b16 %v730, %v729
      %733 = vmatprep.subr.bf16.mxu0 0
      %734 = vmatpush1.bf16.msra.mxu0 0
      %735 = vmatprep.subr.bf16.mxu0 0
      %736 = vmatpush1.bf16.msra.mxu0 0
      %737 = vmatprep.subr.bf16.mxu0 0
      %738 = vmatpush1.bf16.msra.mxu0 0
      %739 = vmatprep.subr.bf16.mxu0 0
      %740 = vmatpush1.bf16.msra.mxu0 0
      %741 = vmatprep.subr.bf16.mxu0 0
      %742 = vmatpush1.bf16.msra.mxu0 0
      %743 = vmatprep.subr.bf16.mxu0 0
      %744 = vmatpush1.bf16.msra.mxu0 0
      %745 = vmatprep.subr.bf16.mxu0 0
      %746 = vmatpush1.bf16.msra.mxu0 0
      %747 = vmatprep.subr.bf16.mxu0 0
      %748 = vmatpush1.bf16.msra.mxu0 %v731
      %749 = vmatprep.subr.bf16.mxu0 0
      %750 = vmatpush2.bf16.msra.mxu0 0
      %751 = vmatprep.subr.bf16.mxu0 0
      %752 = vmatpush2.bf16.msra.mxu0 0
      %753 = vmatprep.subr.bf16.mxu0 0
      %754 = vmatpush2.bf16.msra.mxu0 0
      %755 = vmatprep.subr.bf16.mxu0 0
      %756 = vmatpush2.bf16.msra.mxu0 0
      %757 = vmatprep.subr.bf16.mxu0 0
      %758 = vmatpush2.bf16.msra.mxu0 0
      %759 = vmatprep.subr.bf16.mxu0 0
      %760 = vmatpush2.bf16.msra.mxu0 0
      %761 = vmatprep.subr.bf16.mxu0 0
      %762 = vmatpush2.bf16.msra.mxu0 0
      %763 = vmatprep.subr.bf16.mxu0 0
      %764 = vmatpush2.bf16.msra.mxu0 0
      %765 = vmatprep.mubr.bf16.mxu0 0
      %766 = vmatmul.mubr.bf16.gmra.mxu0 %v400
      %v767 = vpop.f32.mrf.mxu0
      %v768 = vadd.f32 %v725, %v767
      %v769 = vpop.f32.mrf.mxu0
      %v770 = vpop.f32.mrf.mxu0
      %v771 = vpop.f32.mrf.mxu0
      %772 = vdwg.mxu0
      %s773 = scalar_lea.vmem %s3, 8
      %v774 = vld [vmem:[%s773] sm:$0xf]
      %v775 = vld [vmem:[%s773 + $0x4] sm:$0xf]
      %s776 = scalar_lea.vmem %s6, 1
      %v777 = vld [vmem:[%s776] sm:$0x1]
      %v779 = vlaneseq
      %v780 = vshrl.u32 %v779, 7
      %v781 = vsub.s32 0, %v780
      %v782 = vrot.slane %v777, %v781
      %v786 = vunpack.c.l.b16 %v774
      %v787 = vunpack.c.l.b16 %v775
      %v788 = vpack.c.b16 %v787, %v786
      %790 = vmatprep.subr.bf16.mxu0 0
      %791 = vmatpush1.bf16.msra.mxu0 0
      %792 = vmatprep.subr.bf16.mxu0 0
      %793 = vmatpush1.bf16.msra.mxu0 0
      %794 = vmatprep.subr.bf16.mxu0 0
      %795 = vmatpush1.bf16.msra.mxu0 0
      %796 = vmatprep.subr.bf16.mxu0 0
      %797 = vmatpush1.bf16.msra.mxu0 0
      %798 = vmatprep.subr.bf16.mxu0 0
      %799 = vmatpush1.bf16.msra.mxu0 0
      %800 = vmatprep.subr.bf16.mxu0 0
      %801 = vmatpush1.bf16.msra.mxu0 0
      %802 = vmatprep.subr.bf16.mxu0 0
      %803 = vmatpush1.bf16.msra.mxu0 0
      %804 = vmatprep.subr.bf16.mxu0 0
      %805 = vmatpush1.bf16.msra.mxu0 %v788
      %806 = vmatprep.subr.bf16.mxu0 0
      %807 = vmatpush2.bf16.msra.mxu0 0
      %808 = vmatprep.subr.bf16.mxu0 0
      %809 = vmatpush2.bf16.msra.mxu0 0
      %810 = vmatprep.subr.bf16.mxu0 0
      %811 = vmatpush2.bf16.msra.mxu0 0
      %812 = vmatprep.subr.bf16.mxu0 0
      %813 = vmatpush2.bf16.msra.mxu0 0
      %814 = vmatprep.subr.bf16.mxu0 0
      %815 = vmatpush2.bf16.msra.mxu0 0
      %816 = vmatprep.subr.bf16.mxu0 0
      %817 = vmatpush2.bf16.msra.mxu0 0
      %818 = vmatprep.subr.bf16.mxu0 0
      %819 = vmatpush2.bf16.msra.mxu0 0
      %820 = vmatprep.subr.bf16.mxu0 0
      %821 = vmatpush2.bf16.msra.mxu0 0
      %822 = vmatprep.mubr.bf16.mxu0 0
      %823 = vmatmul.mubr.bf16.gmra.mxu0 %v458
      %v824 = vpop.f32.mrf.mxu0
      %v825 = vadd.f32 %v782, %v824
      %v826 = vpop.f32.mrf.mxu0
      %v827 = vpop.f32.mrf.mxu0
      %v828 = vpop.f32.mrf.mxu0
      %829 = vdwg.mxu0
      %s830 = scalar_lea.vmem %s4, 8
      %v831 = vld [vmem:[%s830] sm:$0xf]
      %v832 = vld [vmem:[%s830 + $0x4] sm:$0xf]
      %s833 = scalar_lea.vmem %s7, 1
      %v834 = vld [vmem:[%s833] sm:$0x1]
      %v836 = vlaneseq
      %v837 = vshrl.u32 %v836, 7
      %v838 = vsub.s32 0, %v837
      %v839 = vrot.slane %v834, %v838
      %v843 = vunpack.c.l.b16 %v831
      %v844 = vunpack.c.l.b16 %v832
      %v845 = vpack.c.b16 %v844, %v843
      %847 = vmatprep.subr.bf16.mxu0 0
      %848 = vmatpush1.bf16.msra.mxu0 0
      %849 = vmatprep.subr.bf16.mxu0 0
      %850 = vmatpush1.bf16.msra.mxu0 0
      %851 = vmatprep.subr.bf16.mxu0 0
      %852 = vmatpush1.bf16.msra.mxu0 0
      %853 = vmatprep.subr.bf16.mxu0 0
      %854 = vmatpush1.bf16.msra.mxu0 0
      %855 = vmatprep.subr.bf16.mxu0 0
      %856 = vmatpush1.bf16.msra.mxu0 0
      %857 = vmatprep.subr.bf16.mxu0 0
      %858 = vmatpush1.bf16.msra.mxu0 0
      %859 = vmatprep.subr.bf16.mxu0 0
      %860 = vmatpush1.bf16.msra.mxu0 0
      %861 = vmatprep.subr.bf16.mxu0 0
      %862 = vmatpush1.bf16.msra.mxu0 %v845
      %863 = vmatprep.subr.bf16.mxu0 0
      %864 = vmatpush2.bf16.msra.mxu0 0
      %865 = vmatprep.subr.bf16.mxu0 0
      %866 = vmatpush2.bf16.msra.mxu0 0
      %867 = vmatprep.subr.bf16.mxu0 0
      %868 = vmatpush2.bf16.msra.mxu0 0
      %869 = vmatprep.subr.bf16.mxu0 0
      %870 = vmatpush2.bf16.msra.mxu0 0
      %871 = vmatprep.subr.bf16.mxu0 0
      %872 = vmatpush2.bf16.msra.mxu0 0
      %873 = vmatprep.subr.bf16.mxu0 0
      %874 = vmatpush2.bf16.msra.mxu0 0
      %875 = vmatprep.subr.bf16.mxu0 0
      %876 = vmatpush2.bf16.msra.mxu0 0
      %877 = vmatprep.subr.bf16.mxu0 0
      %878 = vmatpush2.bf16.msra.mxu0 0
      %879 = vmatprep.mubr.bf16.mxu0 0
      %880 = vmatmul.mubr.bf16.gmra.mxu0 %v458
      %v881 = vpop.f32.mrf.mxu0
      %v882 = vadd.f32 %v839, %v881
      %v883 = vpop.f32.mrf.mxu0
      %v884 = vpop.f32.mrf.mxu0
      %v885 = vpop.f32.mrf.mxu0
      %886 = vdwg.mxu0
      %v887 = vpack.c.bf16 %v768, %v768
      %v888 = vpack.c.bf16 %v825, %v825
      %v890 = vsel %vm557, %v887, 0
      %v893 = vsel %vm557, %v888, 0
      %895 = vmatprep.subr.bf16.mxu0 0
      %896 = vmatpush1.bf16.xpose.msra.mxu0 0
      %897 = vmatprep.subr.bf16.mxu0 0
      %898 = vmatpush1.bf16.xpose.msra.mxu0 0
      %899 = vmatprep.subr.bf16.mxu0 0
      %900 = vmatpush1.bf16.xpose.msra.mxu0 0
      %901 = vmatprep.subr.bf16.mxu0 0
      %902 = vmatpush1.bf16.xpose.msra.mxu0 0
      %903 = vmatprep.subr.bf16.mxu0 0
      %904 = vmatpush1.bf16.xpose.msra.mxu0 0
      %905 = vmatprep.subr.bf16.mxu0 0
      %906 = vmatpush1.bf16.xpose.msra.mxu0 0
      %907 = vmatprep.subr.bf16.mxu0 0
      %908 = vmatpush1.bf16.xpose.msra.mxu0 0
      %909 = vmatprep.subr.bf16.mxu0 0
      %910 = vmatpush1.bf16.xpose.msra.mxu0 %v893
      %911 = vmatprep.subr.bf16.mxu0 0
      %912 = vmatpush2.bf16.xpose.msra.mxu0 0
      %913 = vmatprep.subr.bf16.mxu0 0
      %914 = vmatpush2.bf16.xpose.msra.mxu0 0
      %915 = vmatprep.subr.bf16.mxu0 0
      %916 = vmatpush2.bf16.xpose.msra.mxu0 0
      %917 = vmatprep.subr.bf16.mxu0 0
      %918 = vmatpush2.bf16.xpose.msra.mxu0 0
      %919 = vmatprep.subr.bf16.mxu0 0
      %920 = vmatpush2.bf16.xpose.msra.mxu0 0
      %921 = vmatprep.subr.bf16.mxu0 0
      %922 = vmatpush2.bf16.xpose.msra.mxu0 0
      %923 = vmatprep.subr.bf16.mxu0 0
      %924 = vmatpush2.bf16.xpose.msra.mxu0 0
      %925 = vmatprep.subr.bf16.mxu0 0
      %926 = vmatpush2.bf16.xpose.msra.mxu0 0
      %927 = vmatprep.mubr.bf16.mxu0 0
      %928 = vmatmul.mubr.bf16.gmra.mxu0 %v890
      %v929 = vpop.f32.mrf.mxu0
      %v930 = vadd.f32 0.0, %v929
      %v931 = vpop.f32.mrf.mxu0
      %v932 = vpop.f32.mrf.mxu0
      %v933 = vpop.f32.mrf.mxu0
      %934 = vdwg.mxu0
      %v935 = vmul.f32 %v930, 0.5
      %v936 = vsel %vm605, %v935, -inf
      %937 = vmax.xlane.f32.xlu0 %v936
      %v938 = vpop.xlane.xlu0 %937
      %v939 = vsub.f32 %v935, %v938
      %v940 = vmul.f32 %v939, 1.442695
      %v941 = vpow.pop %v940
      %v942 = vsel %vm605, %v941, 0.0
      %943 = vadd.xlane.f32.xlu0 %v942
      %v944 = vpop.xlane.xlu0 %943
      %v945 = vrcp.pop %v944
      %v946 = vmul.f32 %v941, %v945
      %v947 = vpack.c.bf16 %v946, %v946
      %v948 = vpack.c.bf16 %v882, %v882
      %v950 = vsel %vm605, %v947, 0
      %v953 = vsel %vm622, %v948, 0
      %955 = vmatprep.subr.bf16.mxu0 0
      %956 = vmatpush1.bf16.msra.mxu0 0
      %957 = vmatprep.subr.bf16.mxu0 0
      %958 = vmatpush1.bf16.msra.mxu0 0
      %959 = vmatprep.subr.bf16.mxu0 0
      %960 = vmatpush1.bf16.msra.mxu0 0
      %961 = vmatprep.subr.bf16.mxu0 0
      %962 = vmatpush1.bf16.msra.mxu0 0
      %963 = vmatprep.subr.bf16.mxu0 0
      %964 = vmatpush1.bf16.msra.mxu0 0
      %965 = vmatprep.subr.bf16.mxu0 0
      %966 = vmatpush1.bf16.msra.mxu0 0
      %967 = vmatprep.subr.bf16.mxu0 0
      %968 = vmatpush1.bf16.msra.mxu0 0
      %969 = vmatprep.subr.bf16.mxu0 0
      %970 = vmatpush1.bf16.msra.mxu0 %v953
      %971 = vmatprep.subr.bf16.mxu0 0
      %972 = vmatpush2.bf16.msra.mxu0 0
      %973 = vmatprep.subr.bf16.mxu0 0
      %974 = vmatpush2.bf16.msra.mxu0 0
      %975 = vmatprep.subr.bf16.mxu0 0
      %976 = vmatpush2.bf16.msra.mxu0 0
      %977 = vmatprep.subr.bf16.mxu0 0
      %978 = vmatpush2.bf16.msra.mxu0 0
      %979 = vmatprep.subr.bf16.mxu0 0
      %980 = vmatpush2.bf16.msra.mxu0 0
      %981 = vmatprep.subr.bf16.mxu0 0
      %982 = vmatpush2.bf16.msra.mxu0 0
      %983 = vmatprep.subr.bf16.mxu0 0
      %984 = vmatpush2.bf16.msra.mxu0 0
      %985 = vmatprep.subr.bf16.mxu0 0
      %986 = vmatpush2.bf16.msra.mxu0 0
      %987 = vmatprep.mubr.bf16.mxu0 0
      %988 = vmatmul.mubr.bf16.gmra.mxu0 %v950
      %v989 = vpop.f32.mrf.mxu0
      %v990 = vadd.f32 0.0, %v989
      %v991 = vpop.f32.mrf.mxu0
      %v992 = vpop.f32.mrf.mxu0
      %v993 = vpop.f32.mrf.mxu0
      %994 = vdwg.mxu0
      %v995 = vpack.c.bf16 %v990, %v990
      %s996 = scalar_lea.vmem %s8, 2
      %v997 = vld [vmem:[%s996] sm:$0x3]
      %v999 = vsel %vm557, %v995, 0
      %v1002 = vsel %vm671, %v997, 0
      %1004 = vmatprep.subr.bf16.mxu0 0
      %1005 = vmatpush1.bf16.msra.mxu0 0
      %1006 = vmatprep.subr.bf16.mxu0 0
      %1007 = vmatpush1.bf16.msra.mxu0 0
      %1008 = vmatprep.subr.bf16.mxu0 0
      %1009 = vmatpush1.bf16.msra.mxu0 0
      %1010 = vmatprep.subr.bf16.mxu0 0
      %1011 = vmatpush1.bf16.msra.mxu0 0
      %1012 = vmatprep.subr.bf16.mxu0 0
      %1013 = vmatpush1.bf16.msra.mxu0 0
      %1014 = vmatprep.subr.bf16.mxu0 0
      %1015 = vmatpush1.bf16.msra.mxu0 0
      %1016 = vmatprep.subr.bf16.mxu0 0
      %1017 = vmatpush1.bf16.msra.mxu0 0
      %1018 = vmatprep.subr.bf16.mxu0 0
      %1019 = vmatpush1.bf16.msra.mxu0 %v1002
      %1020 = vmatprep.subr.bf16.mxu0 0
      %1021 = vmatpush2.bf16.msra.mxu0 0
      %1022 = vmatprep.subr.bf16.mxu0 0
      %1023 = vmatpush2.bf16.msra.mxu0 0
      %1024 = vmatprep.subr.bf16.mxu0 0
      %1025 = vmatpush2.bf16.msra.mxu0 0
      %1026 = vmatprep.subr.bf16.mxu0 0
      %1027 = vmatpush2.bf16.msra.mxu0 0
      %1028 = vmatprep.subr.bf16.mxu0 0
      %1029 = vmatpush2.bf16.msra.mxu0 0
      %1030 = vmatprep.subr.bf16.mxu0 0
      %1031 = vmatpush2.bf16.msra.mxu0 0
      %1032 = vmatprep.subr.bf16.mxu0 0
      %1033 = vmatpush2.bf16.msra.mxu0 0
      %1034 = vmatprep.subr.bf16.mxu0 0
      %1035 = vmatpush2.bf16.msra.mxu0 0
      %1036 = vmatprep.mubr.bf16.mxu0 0
      %1037 = vmatmul.mubr.bf16.gmra.mxu0 %v999
      %v1038 = vpop.f32.mrf.mxu0
      %v1039 = vadd.f32 0.0, %v1038
      %v1040 = vpop.f32.mrf.mxu0
      %v1041 = vpop.f32.mrf.mxu0
      %v1042 = vpop.f32.mrf.mxu0
      %1043 = vdwg.mxu0
      %v1044 = vadd.f32 %v715, %v1039
      %s1045 = scalar_lea.vmem %s2, 16
      %v1046 = vld [vmem:[%s1045] sm:$0xf]
      %v1047 = vld [vmem:[%s1045 + $0x4] sm:$0xf]
      %s1048 = scalar_lea.vmem %s5, 2
      %v1049 = vld [vmem:[%s1048] sm:$0x1]
      %v1051 = vlaneseq
      %v1052 = vshrl.u32 %v1051, 7
      %v1053 = vsub.s32 0, %v1052
      %v1054 = vrot.slane %v1049, %v1053
      %v1058 = vunpack.c.l.b16 %v1046
      %v1059 = vunpack.c.l.b16 %v1047
      %v1060 = vpack.c.b16 %v1059, %v1058
      %1062 = vmatprep.subr.bf16.mxu0 0
      %1063 = vmatpush1.bf16.msra.mxu0 0
      %1064 = vmatprep.subr.bf16.mxu0 0
      %1065 = vmatpush1.bf16.msra.mxu0 0
      %1066 = vmatprep.subr.bf16.mxu0 0
      %1067 = vmatpush1.bf16.msra.mxu0 0
      %1068 = vmatprep.subr.bf16.mxu0 0
      %1069 = vmatpush1.bf16.msra.mxu0 0
      %1070 = vmatprep.subr.bf16.mxu0 0
      %1071 = vmatpush1.bf16.msra.mxu0 0
      %1072 = vmatprep.subr.bf16.mxu0 0
      %1073 = vmatpush1.bf16.msra.mxu0 0
      %1074 = vmatprep.subr.bf16.mxu0 0
      %1075 = vmatpush1.bf16.msra.mxu0 0
      %1076 = vmatprep.subr.bf16.mxu0 0
      %1077 = vmatpush1.bf16.msra.mxu0 %v1060
      %1078 = vmatprep.subr.bf16.mxu0 0
      %1079 = vmatpush2.bf16.msra.mxu0 0
      %1080 = vmatprep.subr.bf16.mxu0 0
      %1081 = vmatpush2.bf16.msra.mxu0 0
      %1082 = vmatprep.subr.bf16.mxu0 0
      %1083 = vmatpush2.bf16.msra.mxu0 0
      %1084 = vmatprep.subr.bf16.mxu0 0
      %1085 = vmatpush2.bf16.msra.mxu0 0
      %1086 = vmatprep.subr.bf16.mxu0 0
      %1087 = vmatpush2.bf16.msra.mxu0 0
      %1088 = vmatprep.subr.bf16.mxu0 0
      %1089 = vmatpush2.bf16.msra.mxu0 0
      %1090 = vmatprep.subr.bf16.mxu0 0
      %1091 = vmatpush2.bf16.msra.mxu0 0
      %1092 = vmatprep.subr.bf16.mxu0 0
      %1093 = vmatpush2.bf16.msra.mxu0 0
      %1094 = vmatprep.mubr.bf16.mxu0 0
      %1095 = vmatmul.mubr.bf16.gmra.mxu0 %v400
      %v1096 = vpop.f32.mrf.mxu0
      %v1097 = vadd.f32 %v1054, %v1096
      %v1098 = vpop.f32.mrf.mxu0
      %v1099 = vpop.f32.mrf.mxu0
      %v1100 = vpop.f32.mrf.mxu0
      %1101 = vdwg.mxu0
      %s1102 = scalar_lea.vmem %s3, 16
      %v1103 = vld [vmem:[%s1102] sm:$0xf]
      %v1104 = vld [vmem:[%s1102 + $0x4] sm:$0xf]
      %s1105 = scalar_lea.vmem %s6, 2
      %v1106 = vld [vmem:[%s1105] sm:$0x1]
      %v1108 = vlaneseq
      %v1109 = vshrl.u32 %v1108, 7
      %v1110 = vsub.s32 0, %v1109
      %v1111 = vrot.slane %v1106, %v1110
      %v1115 = vunpack.c.l.b16 %v1103
      %v1116 = vunpack.c.l.b16 %v1104
      %v1117 = vpack.c.b16 %v1116, %v1115
      %1119 = vmatprep.subr.bf16.mxu0 0
      %1120 = vmatpush1.bf16.msra.mxu0 0
      %1121 = vmatprep.subr.bf16.mxu0 0
      %1122 = vmatpush1.bf16.msra.mxu0 0
      %1123 = vmatprep.subr.bf16.mxu0 0
      %1124 = vmatpush1.bf16.msra.mxu0 0
      %1125 = vmatprep.subr.bf16.mxu0 0
      %1126 = vmatpush1.bf16.msra.mxu0 0
      %1127 = vmatprep.subr.bf16.mxu0 0
      %1128 = vmatpush1.bf16.msra.mxu0 0
      %1129 = vmatprep.subr.bf16.mxu0 0
      %1130 = vmatpush1.bf16.msra.mxu0 0
      %1131 = vmatprep.subr.bf16.mxu0 0
      %1132 = vmatpush1.bf16.msra.mxu0 0
      %1133 = vmatprep.subr.bf16.mxu0 0
      %1134 = vmatpush1.bf16.msra.mxu0 %v1117
      %1135 = vmatprep.subr.bf16.mxu0 0
      %1136 = vmatpush2.bf16.msra.mxu0 0
      %1137 = vmatprep.subr.bf16.mxu0 0
      %1138 = vmatpush2.bf16.msra.mxu0 0
      %1139 = vmatprep.subr.bf16.mxu0 0
      %1140 = vmatpush2.bf16.msra.mxu0 0
      %1141 = vmatprep.subr.bf16.mxu0 0
      %1142 = vmatpush2.bf16.msra.mxu0 0
      %1143 = vmatprep.subr.bf16.mxu0 0
      %1144 = vmatpush2.bf16.msra.mxu0 0
      %1145 = vmatprep.subr.bf16.mxu0 0
      %1146 = vmatpush2.bf16.msra.mxu0 0
      %1147 = vmatprep.subr.bf16.mxu0 0
      %1148 = vmatpush2.bf16.msra.mxu0 0
      %1149 = vmatprep.subr.bf16.mxu0 0
      %1150 = vmatpush2.bf16.msra.mxu0 0
      %1151 = vmatprep.mubr.bf16.mxu0 0
      %1152 = vmatmul.mubr.bf16.gmra.mxu0 %v458
      %v1153 = vpop.f32.mrf.mxu0
      %v1154 = vadd.f32 %v1111, %v1153
      %v1155 = vpop.f32.mrf.mxu0
      %v1156 = vpop.f32.mrf.mxu0
      %v1157 = vpop.f32.mrf.mxu0
      %1158 = vdwg.mxu0
      %s1159 = scalar_lea.vmem %s4, 16
      %v1160 = vld [vmem:[%s1159] sm:$0xf]
      %v1161 = vld [vmem:[%s1159 + $0x4] sm:$0xf]
      %s1162 = scalar_lea.vmem %s7, 2
      %v1163 = vld [vmem:[%s1162] sm:$0x1]
      %v1165 = vlaneseq
      %v1166 = vshrl.u32 %v1165, 7
      %v1167 = vsub.s32 0, %v1166
      %v1168 = vrot.slane %v1163, %v1167
      %v1172 = vunpack.c.l.b16 %v1160
      %v1173 = vunpack.c.l.b16 %v1161
      %v1174 = vpack.c.b16 %v1173, %v1172
      %1176 = vmatprep.subr.bf16.mxu0 0
      %1177 = vmatpush1.bf16.msra.mxu0 0
      %1178 = vmatprep.subr.bf16.mxu0 0
      %1179 = vmatpush1.bf16.msra.mxu0 0
      %1180 = vmatprep.subr.bf16.mxu0 0
      %1181 = vmatpush1.bf16.msra.mxu0 0
      %1182 = vmatprep.subr.bf16.mxu0 0
      %1183 = vmatpush1.bf16.msra.mxu0 0
      %1184 = vmatprep.subr.bf16.mxu0 0
      %1185 = vmatpush1.bf16.msra.mxu0 0
      %1186 = vmatprep.subr.bf16.mxu0 0
      %1187 = vmatpush1.bf16.msra.mxu0 0
      %1188 = vmatprep.subr.bf16.mxu0 0
      %1189 = vmatpush1.bf16.msra.mxu0 0
      %1190 = vmatprep.subr.bf16.mxu0 0
      %1191 = vmatpush1.bf16.msra.mxu0 %v1174
      %1192 = vmatprep.subr.bf16.mxu0 0
      %1193 = vmatpush2.bf16.msra.mxu0 0
      %1194 = vmatprep.subr.bf16.mxu0 0
      %1195 = vmatpush2.bf16.msra.mxu0 0
      %1196 = vmatprep.subr.bf16.mxu0 0
      %1197 = vmatpush2.bf16.msra.mxu0 0
      %1198 = vmatprep.subr.bf16.mxu0 0
      %1199 = vmatpush2.bf16.msra.mxu0 0
      %1200 = vmatprep.subr.bf16.mxu0 0
      %1201 = vmatpush2.bf16.msra.mxu0 0
      %1202 = vmatprep.subr.bf16.mxu0 0
      %1203 = vmatpush2.bf16.msra.mxu0 0
      %1204 = vmatprep.subr.bf16.mxu0 0
      %1205 = vmatpush2.bf16.msra.mxu0 0
      %1206 = vmatprep.subr.bf16.mxu0 0
      %1207 = vmatpush2.bf16.msra.mxu0 0
      %1208 = vmatprep.mubr.bf16.mxu0 0
      %1209 = vmatmul.mubr.bf16.gmra.mxu0 %v458
      %v1210 = vpop.f32.mrf.mxu0
      %v1211 = vadd.f32 %v1168, %v1210
      %v1212 = vpop.f32.mrf.mxu0
      %v1213 = vpop.f32.mrf.mxu0
      %v1214 = vpop.f32.mrf.mxu0
      %1215 = vdwg.mxu0
      %v1216 = vpack.c.bf16 %v1097, %v1097
      %v1217 = vpack.c.bf16 %v1154, %v1154
      %v1219 = vsel %vm557, %v1216, 0
      %v1222 = vsel %vm557, %v1217, 0
      %1224 = vmatprep.subr.bf16.mxu0 0
      %1225 = vmatpush1.bf16.xpose.msra.mxu0 0
      %1226 = vmatprep.subr.bf16.mxu0 0
      %1227 = vmatpush1.bf16.xpose.msra.mxu0 0
      %1228 = vmatprep.subr.bf16.mxu0 0
      %1229 = vmatpush1.bf16.xpose.msra.mxu0 0
      %1230 = vmatprep.subr.bf16.mxu0 0
      %1231 = vmatpush1.bf16.xpose.msra.mxu0 0
      %1232 = vmatprep.subr.bf16.mxu0 0
      %1233 = vmatpush1.bf16.xpose.msra.mxu0 0
      %1234 = vmatprep.subr.bf16.mxu0 0
      %1235 = vmatpush1.bf16.xpose.msra.mxu0 0
      %1236 = vmatprep.subr.bf16.mxu0 0
      %1237 = vmatpush1.bf16.xpose.msra.mxu0 0
      %1238 = vmatprep.subr.bf16.mxu0 0
      %1239 = vmatpush1.bf16.xpose.msra.mxu0 %v1222
      %1240 = vmatprep.subr.bf16.mxu0 0
      %1241 = vmatpush2.bf16.xpose.msra.mxu0 0
      %1242 = vmatprep.subr.bf16.mxu0 0
      %1243 = vmatpush2.bf16.xpose.msra.mxu0 0
      %1244 = vmatprep.subr.bf16.mxu0 0
      %1245 = vmatpush2.bf16.xpose.msra.mxu0 0
      %1246 = vmatprep.subr.bf16.mxu0 0
      %1247 = vmatpush2.bf16.xpose.msra.mxu0 0
      %1248 = vmatprep.subr.bf16.mxu0 0
      %1249 = vmatpush2.bf16.xpose.msra.mxu0 0
      %1250 = vmatprep.subr.bf16.mxu0 0
      %1251 = vmatpush2.bf16.xpose.msra.mxu0 0
      %1252 = vmatprep.subr.bf16.mxu0 0
      %1253 = vmatpush2.bf16.xpose.msra.mxu0 0
      %1254 = vmatprep.subr.bf16.mxu0 0
      %1255 = vmatpush2.bf16.xpose.msra.mxu0 0
      %1256 = vmatprep.mubr.bf16.mxu0 0
      %1257 = vmatmul.mubr.bf16.gmra.mxu0 %v1219
      %v1258 = vpop.f32.mrf.mxu0
      %v1259 = vadd.f32 0.0, %v1258
      %v1260 = vpop.f32.mrf.mxu0
      %v1261 = vpop.f32.mrf.mxu0
      %v1262 = vpop.f32.mrf.mxu0
      %1263 = vdwg.mxu0
      %v1264 = vmul.f32 %v1259, 0.5
      %v1265 = vsel %vm605, %v1264, -inf
      %1266 = vmax.xlane.f32.xlu0 %v1265
      %v1267 = vpop.xlane.xlu0 %1266
      %v1268 = vsub.f32 %v1264, %v1267
      %v1269 = vmul.f32 %v1268, 1.442695
      %v1270 = vpow.pop %v1269
      %v1271 = vsel %vm605, %v1270, 0.0
      %1272 = vadd.xlane.f32.xlu0 %v1271
      %v1273 = vpop.xlane.xlu0 %1272
      %v1274 = vrcp.pop %v1273
      %v1275 = vmul.f32 %v1270, %v1274
      %v1276 = vpack.c.bf16 %v1275, %v1275
      %v1277 = vpack.c.bf16 %v1211, %v1211
      %v1279 = vsel %vm605, %v1276, 0
      %v1282 = vsel %vm622, %v1277, 0
      %1284 = vmatprep.subr.bf16.mxu0 0
      %1285 = vmatpush1.bf16.msra.mxu0 0
      %1286 = vmatprep.subr.bf16.mxu0 0
      %1287 = vmatpush1.bf16.msra.mxu0 0
      %1288 = vmatprep.subr.bf16.mxu0 0
      %1289 = vmatpush1.bf16.msra.mxu0 0
      %1290 = vmatprep.subr.bf16.mxu0 0
      %1291 = vmatpush1.bf16.msra.mxu0 0
      %1292 = vmatprep.subr.bf16.mxu0 0
      %1293 = vmatpush1.bf16.msra.mxu0 0
      %1294 = vmatprep.subr.bf16.mxu0 0
      %1295 = vmatpush1.bf16.msra.mxu0 0
      %1296 = vmatprep.subr.bf16.mxu0 0
      %1297 = vmatpush1.bf16.msra.mxu0 0
      %1298 = vmatprep.subr.bf16.mxu0 0
      %1299 = vmatpush1.bf16.msra.mxu0 %v1282
      %1300 = vmatprep.subr.bf16.mxu0 0
      %1301 = vmatpush2.bf16.msra.mxu0 0
      %1302 = vmatprep.subr.bf16.mxu0 0
      %1303 = vmatpush2.bf16.msra.mxu0 0
      %1304 = vmatprep.subr.bf16.mxu0 0
      %1305 = vmatpush2.bf16.msra.mxu0 0
      %1306 = vmatprep.subr.bf16.mxu0 0
      %1307 = vmatpush2.bf16.msra.mxu0 0
      %1308 = vmatprep.subr.bf16.mxu0 0
      %1309 = vmatpush2.bf16.msra.mxu0 0
      %1310 = vmatprep.subr.bf16.mxu0 0
      %1311 = vmatpush2.bf16.msra.mxu0 0
      %1312 = vmatprep.subr.bf16.mxu0 0
      %1313 = vmatpush2.bf16.msra.mxu0 0
      %1314 = vmatprep.subr.bf16.mxu0 0
      %1315 = vmatpush2.bf16.msra.mxu0 0
      %1316 = vmatprep.mubr.bf16.mxu0 0
      %1317 = vmatmul.mubr.bf16.gmra.mxu0 %v1279
      %v1318 = vpop.f32.mrf.mxu0
      %v1319 = vadd.f32 0.0, %v1318
      %v1320 = vpop.f32.mrf.mxu0
      %v1321 = vpop.f32.mrf.mxu0
      %v1322 = vpop.f32.mrf.mxu0
      %1323 = vdwg.mxu0
      %v1324 = vpack.c.bf16 %v1319, %v1319
      %s1325 = scalar_lea.vmem %s8, 4
      %v1326 = vld [vmem:[%s1325] sm:$0x3]
      %v1328 = vsel %vm557, %v1324, 0
      %v1331 = vsel %vm671, %v1326, 0
      %1333 = vmatprep.subr.bf16.mxu0 0
      %1334 = vmatpush1.bf16.msra.mxu0 0
      %1335 = vmatprep.subr.bf16.mxu0 0
      %1336 = vmatpush1.bf16.msra.mxu0 0
      %1337 = vmatprep.subr.bf16.mxu0 0
      %1338 = vmatpush1.bf16.msra.mxu0 0
      %1339 = vmatprep.subr.bf16.mxu0 0
      %1340 = vmatpush1.bf16.msra.mxu0 0
      %1341 = vmatprep.subr.bf16.mxu0 0
      %1342 = vmatpush1.bf16.msra.mxu0 0
      %1343 = vmatprep.subr.bf16.mxu0 0
      %1344 = vmatpush1.bf16.msra.mxu0 0
      %1345 = vmatprep.subr.bf16.mxu0 0
      %1346 = vmatpush1.bf16.msra.mxu0 0
      %1347 = vmatprep.subr.bf16.mxu0 0
      %1348 = vmatpush1.bf16.msra.mxu0 %v1331
      %1349 = vmatprep.subr.bf16.mxu0 0
      %1350 = vmatpush2.bf16.msra.mxu0 0
      %1351 = vmatprep.subr.bf16.mxu0 0
      %1352 = vmatpush2.bf16.msra.mxu0 0
      %1353 = vmatprep.subr.bf16.mxu0 0
      %1354 = vmatpush2.bf16.msra.mxu0 0
      %1355 = vmatprep.subr.bf16.mxu0 0
      %1356 = vmatpush2.bf16.msra.mxu0 0
      %1357 = vmatprep.subr.bf16.mxu0 0
      %1358 = vmatpush2.bf16.msra.mxu0 0
      %1359 = vmatprep.subr.bf16.mxu0 0
      %1360 = vmatpush2.bf16.msra.mxu0 0
      %1361 = vmatprep.subr.bf16.mxu0 0
      %1362 = vmatpush2.bf16.msra.mxu0 0
      %1363 = vmatprep.subr.bf16.mxu0 0
      %1364 = vmatpush2.bf16.msra.mxu0 0
      %1365 = vmatprep.mubr.bf16.mxu0 0
      %1366 = vmatmul.mubr.bf16.gmra.mxu0 %v1328
      %v1367 = vpop.f32.mrf.mxu0
      %v1368 = vadd.f32 0.0, %v1367
      %v1369 = vpop.f32.mrf.mxu0
      %v1370 = vpop.f32.mrf.mxu0
      %v1371 = vpop.f32.mrf.mxu0
      %1372 = vdwg.mxu0
      %v1373 = vadd.f32 %v1044, %v1368
      %s1374 = scalar_lea.vmem %s2, 24
      %v1375 = vld [vmem:[%s1374] sm:$0xf]
      %v1376 = vld [vmem:[%s1374 + $0x4] sm:$0xf]
      %s1377 = scalar_lea.vmem %s5, 3
      %v1378 = vld [vmem:[%s1377] sm:$0x1]
      %v1380 = vlaneseq
      %v1381 = vshrl.u32 %v1380, 7
      %v1382 = vsub.s32 0, %v1381
      %v1383 = vrot.slane %v1378, %v1382
      %v1387 = vunpack.c.l.b16 %v1375
      %v1388 = vunpack.c.l.b16 %v1376
      %v1389 = vpack.c.b16 %v1388, %v1387
      %1391 = vmatprep.subr.bf16.mxu0 0
      %1392 = vmatpush1.bf16.msra.mxu0 0
      %1393 = vmatprep.subr.bf16.mxu0 0
      %1394 = vmatpush1.bf16.msra.mxu0 0
      %1395 = vmatprep.subr.bf16.mxu0 0
      %1396 = vmatpush1.bf16.msra.mxu0 0
      %1397 = vmatprep.subr.bf16.mxu0 0
      %1398 = vmatpush1.bf16.msra.mxu0 0
      %1399 = vmatprep.subr.bf16.mxu0 0
      %1400 = vmatpush1.bf16.msra.mxu0 0
      %1401 = vmatprep.subr.bf16.mxu0 0
      %1402 = vmatpush1.bf16.msra.mxu0 0
      %1403 = vmatprep.subr.bf16.mxu0 0
      %1404 = vmatpush1.bf16.msra.mxu0 0
      %1405 = vmatprep.subr.bf16.mxu0 0
      %1406 = vmatpush1.bf16.msra.mxu0 %v1389
      %1407 = vmatprep.subr.bf16.mxu0 0
      %1408 = vmatpush2.bf16.msra.mxu0 0
      %1409 = vmatprep.subr.bf16.mxu0 0
      %1410 = vmatpush2.bf16.msra.mxu0 0
      %1411 = vmatprep.subr.bf16.mxu0 0
      %1412 = vmatpush2.bf16.msra.mxu0 0
      %1413 = vmatprep.subr.bf16.mxu0 0
      %1414 = vmatpush2.bf16.msra.mxu0 0
      %1415 = vmatprep.subr.bf16.mxu0 0
      %1416 = vmatpush2.bf16.msra.mxu0 0
      %1417 = vmatprep.subr.bf16.mxu0 0
      %1418 = vmatpush2.bf16.msra.mxu0 0
      %1419 = vmatprep.subr.bf16.mxu0 0
      %1420 = vmatpush2.bf16.msra.mxu0 0
      %1421 = vmatprep.subr.bf16.mxu0 0
      %1422 = vmatpush2.bf16.msra.mxu0 0
      %1423 = vmatprep.mubr.bf16.mxu0 0
      %1424 = vmatmul.mubr.bf16.gmra.mxu0 %v400
      %v1425 = vpop.f32.mrf.mxu0
      %v1426 = vadd.f32 %v1383, %v1425
      %v1427 = vpop.f32.mrf.mxu0
      %v1428 = vpop.f32.mrf.mxu0
      %v1429 = vpop.f32.mrf.mxu0
      %1430 = vdwg.mxu0
      %s1431 = scalar_lea.vmem %s3, 24
      %v1432 = vld [vmem:[%s1431] sm:$0xf]
      %v1433 = vld [vmem:[%s1431 + $0x4] sm:$0xf]
      %s1434 = scalar_lea.vmem %s6, 3
      %v1435 = vld [vmem:[%s1434] sm:$0x1]
      %v1437 = vlaneseq
      %v1438 = vshrl.u32 %v1437, 7
      %v1439 = vsub.s32 0, %v1438
      %v1440 = vrot.slane %v1435, %v1439
      %v1444 = vunpack.c.l.b16 %v1432
      %v1445 = vunpack.c.l.b16 %v1433
      %v1446 = vpack.c.b16 %v1445, %v1444
      %1448 = vmatprep.subr.bf16.mxu0 0
      %1449 = vmatpush1.bf16.msra.mxu0 0
      %1450 = vmatprep.subr.bf16.mxu0 0
      %1451 = vmatpush1.bf16.msra.mxu0 0
      %1452 = vmatprep.subr.bf16.mxu0 0
      %1453 = vmatpush1.bf16.msra.mxu0 0
      %1454 = vmatprep.subr.bf16.mxu0 0
      %1455 = vmatpush1.bf16.msra.mxu0 0
      %1456 = vmatprep.subr.bf16.mxu0 0
      %1457 = vmatpush1.bf16.msra.mxu0 0
      %1458 = vmatprep.subr.bf16.mxu0 0
      %1459 = vmatpush1.bf16.msra.mxu0 0
      %1460 = vmatprep.subr.bf16.mxu0 0
      %1461 = vmatpush1.bf16.msra.mxu0 0
      %1462 = vmatprep.subr.bf16.mxu0 0
      %1463 = vmatpush1.bf16.msra.mxu0 %v1446
      %1464 = vmatprep.subr.bf16.mxu0 0
      %1465 = vmatpush2.bf16.msra.mxu0 0
      %1466 = vmatprep.subr.bf16.mxu0 0
      %1467 = vmatpush2.bf16.msra.mxu0 0
      %1468 = vmatprep.subr.bf16.mxu0 0
      %1469 = vmatpush2.bf16.msra.mxu0 0
      %1470 = vmatprep.subr.bf16.mxu0 0
      %1471 = vmatpush2.bf16.msra.mxu0 0
      %1472 = vmatprep.subr.bf16.mxu0 0
      %1473 = vmatpush2.bf16.msra.mxu0 0
      %1474 = vmatprep.subr.bf16.mxu0 0
      %1475 = vmatpush2.bf16.msra.mxu0 0
      %1476 = vmatprep.subr.bf16.mxu0 0
      %1477 = vmatpush2.bf16.msra.mxu0 0
      %1478 = vmatprep.subr.bf16.mxu0 0
      %1479 = vmatpush2.bf16.msra.mxu0 0
      %1480 = vmatprep.mubr.bf16.mxu0 0
      %1481 = vmatmul.mubr.bf16.gmra.mxu0 %v458
      %v1482 = vpop.f32.mrf.mxu0
      %v1483 = vadd.f32 %v1440, %v1482
      %v1484 = vpop.f32.mrf.mxu0
      %v1485 = vpop.f32.mrf.mxu0
      %v1486 = vpop.f32.mrf.mxu0
      %1487 = vdwg.mxu0
      %s1488 = scalar_lea.vmem %s4, 24
      %v1489 = vld [vmem:[%s1488] sm:$0xf]
      %v1490 = vld [vmem:[%s1488 + $0x4] sm:$0xf]
      %s1491 = scalar_lea.vmem %s7, 3
      %v1492 = vld [vmem:[%s1491] sm:$0x1]
      %v1494 = vlaneseq
      %v1495 = vshrl.u32 %v1494, 7
      %v1496 = vsub.s32 0, %v1495
      %v1497 = vrot.slane %v1492, %v1496
      %v1501 = vunpack.c.l.b16 %v1489
      %v1502 = vunpack.c.l.b16 %v1490
      %v1503 = vpack.c.b16 %v1502, %v1501
      %1505 = vmatprep.subr.bf16.mxu0 0
      %1506 = vmatpush1.bf16.msra.mxu0 0
      %1507 = vmatprep.subr.bf16.mxu0 0
      %1508 = vmatpush1.bf16.msra.mxu0 0
      %1509 = vmatprep.subr.bf16.mxu0 0
      %1510 = vmatpush1.bf16.msra.mxu0 0
      %1511 = vmatprep.subr.bf16.mxu0 0
      %1512 = vmatpush1.bf16.msra.mxu0 0
      %1513 = vmatprep.subr.bf16.mxu0 0
      %1514 = vmatpush1.bf16.msra.mxu0 0
      %1515 = vmatprep.subr.bf16.mxu0 0
      %1516 = vmatpush1.bf16.msra.mxu0 0
      %1517 = vmatprep.subr.bf16.mxu0 0
      %1518 = vmatpush1.bf16.msra.mxu0 0
      %1519 = vmatprep.subr.bf16.mxu0 0
      %1520 = vmatpush1.bf16.msra.mxu0 %v1503
      %1521 = vmatprep.subr.bf16.mxu0 0
      %1522 = vmatpush2.bf16.msra.mxu0 0
      %1523 = vmatprep.subr.bf16.mxu0 0
      %1524 = vmatpush2.bf16.msra.mxu0 0
      %1525 = vmatprep.subr.bf16.mxu0 0
      %1526 = vmatpush2.bf16.msra.mxu0 0
      %1527 = vmatprep.subr.bf16.mxu0 0
      %1528 = vmatpush2.bf16.msra.mxu0 0
      %1529 = vmatprep.subr.bf16.mxu0 0
      %1530 = vmatpush2.bf16.msra.mxu0 0
      %1531 = vmatprep.subr.bf16.mxu0 0
      %1532 = vmatpush2.bf16.msra.mxu0 0
      %1533 = vmatprep.subr.bf16.mxu0 0
      %1534 = vmatpush2.bf16.msra.mxu0 0
      %1535 = vmatprep.subr.bf16.mxu0 0
      %1536 = vmatpush2.bf16.msra.mxu0 0
      %1537 = vmatprep.mubr.bf16.mxu0 0
      %1538 = vmatmul.mubr.bf16.gmra.mxu0 %v458
      %v1539 = vpop.f32.mrf.mxu0
      %v1540 = vadd.f32 %v1497, %v1539
      %v1541 = vpop.f32.mrf.mxu0
      %v1542 = vpop.f32.mrf.mxu0
      %v1543 = vpop.f32.mrf.mxu0
      %1544 = vdwg.mxu0
      %v1545 = vpack.c.bf16 %v1426, %v1426
      %v1546 = vpack.c.bf16 %v1483, %v1483
      %v1548 = vsel %vm557, %v1545, 0
      %v1551 = vsel %vm557, %v1546, 0
      %1553 = vmatprep.subr.bf16.mxu0 0
      %1554 = vmatpush1.bf16.xpose.msra.mxu0 0
      %1555 = vmatprep.subr.bf16.mxu0 0
      %1556 = vmatpush1.bf16.xpose.msra.mxu0 0
      %1557 = vmatprep.subr.bf16.mxu0 0
      %1558 = vmatpush1.bf16.xpose.msra.mxu0 0
      %1559 = vmatprep.subr.bf16.mxu0 0
      %1560 = vmatpush1.bf16.xpose.msra.mxu0 0
      %1561 = vmatprep.subr.bf16.mxu0 0
      %1562 = vmatpush1.bf16.xpose.msra.mxu0 0
      %1563 = vmatprep.subr.bf16.mxu0 0
      %1564 = vmatpush1.bf16.xpose.msra.mxu0 0
      %1565 = vmatprep.subr.bf16.mxu0 0
      %1566 = vmatpush1.bf16.xpose.msra.mxu0 0
      %1567 = vmatprep.subr.bf16.mxu0 0
      %1568 = vmatpush1.bf16.xpose.msra.mxu0 %v1551
      %1569 = vmatprep.subr.bf16.mxu0 0
      %1570 = vmatpush2.bf16.xpose.msra.mxu0 0
      %1571 = vmatprep.subr.bf16.mxu0 0
      %1572 = vmatpush2.bf16.xpose.msra.mxu0 0
      %1573 = vmatprep.subr.bf16.mxu0 0
      %1574 = vmatpush2.bf16.xpose.msra.mxu0 0
      %1575 = vmatprep.subr.bf16.mxu0 0
      %1576 = vmatpush2.bf16.xpose.msra.mxu0 0
      %1577 = vmatprep.subr.bf16.mxu0 0
      %1578 = vmatpush2.bf16.xpose.msra.mxu0 0
      %1579 = vmatprep.subr.bf16.mxu0 0
      %1580 = vmatpush2.bf16.xpose.msra.mxu0 0
      %1581 = vmatprep.subr.bf16.mxu0 0
      %1582 = vmatpush2.bf16.xpose.msra.mxu0 0
      %1583 = vmatprep.subr.bf16.mxu0 0
      %1584 = vmatpush2.bf16.xpose.msra.mxu0 0
      %1585 = vmatprep.mubr.bf16.mxu0 0
      %1586 = vmatmul.mubr.bf16.gmra.mxu0 %v1548
      %v1587 = vpop.f32.mrf.mxu0
      %v1588 = vadd.f32 0.0, %v1587
      %v1589 = vpop.f32.mrf.mxu0
      %v1590 = vpop.f32.mrf.mxu0
      %v1591 = vpop.f32.mrf.mxu0
      %1592 = vdwg.mxu0
      %v1593 = vmul.f32 %v1588, 0.5
      %v1594 = vsel %vm605, %v1593, -inf
      %1595 = vmax.xlane.f32.xlu0 %v1594
      %v1596 = vpop.xlane.xlu0 %1595
      %v1597 = vsub.f32 %v1593, %v1596
      %v1598 = vmul.f32 %v1597, 1.442695
      %v1599 = vpow.pop %v1598
      %v1600 = vsel %vm605, %v1599, 0.0
      %1601 = vadd.xlane.f32.xlu0 %v1600
      %v1602 = vpop.xlane.xlu0 %1601
      %v1603 = vrcp.pop %v1602
      %v1604 = vmul.f32 %v1599, %v1603
      %v1605 = vpack.c.bf16 %v1604, %v1604
      %v1606 = vpack.c.bf16 %v1540, %v1540
      %v1608 = vsel %vm605, %v1605, 0
      %v1611 = vsel %vm622, %v1606, 0
      %1613 = vmatprep.subr.bf16.mxu0 0
      %1614 = vmatpush1.bf16.msra.mxu0 0
      %1615 = vmatprep.subr.bf16.mxu0 0
      %1616 = vmatpush1.bf16.msra.mxu0 0
      %1617 = vmatprep.subr.bf16.mxu0 0
      %1618 = vmatpush1.bf16.msra.mxu0 0
      %1619 = vmatprep.subr.bf16.mxu0 0
      %1620 = vmatpush1.bf16.msra.mxu0 0
      %1621 = vmatprep.subr.bf16.mxu0 0
      %1622 = vmatpush1.bf16.msra.mxu0 0
      %1623 = vmatprep.subr.bf16.mxu0 0
      %1624 = vmatpush1.bf16.msra.mxu0 0
      %1625 = vmatprep.subr.bf16.mxu0 0
      %1626 = vmatpush1.bf16.msra.mxu0 0
      %1627 = vmatprep.subr.bf16.mxu0 0
      %1628 = vmatpush1.bf16.msra.mxu0 %v1611
      %1629 = vmatprep.subr.bf16.mxu0 0
      %1630 = vmatpush2.bf16.msra.mxu0 0
      %1631 = vmatprep.subr.bf16.mxu0 0
      %1632 = vmatpush2.bf16.msra.mxu0 0
      %1633 = vmatprep.subr.bf16.mxu0 0
      %1634 = vmatpush2.bf16.msra.mxu0 0
      %1635 = vmatprep.subr.bf16.mxu0 0
      %1636 = vmatpush2.bf16.msra.mxu0 0
      %1637 = vmatprep.subr.bf16.mxu0 0
      %1638 = vmatpush2.bf16.msra.mxu0 0
      %1639 = vmatprep.subr.bf16.mxu0 0
      %1640 = vmatpush2.bf16.msra.mxu0 0
      %1641 = vmatprep.subr.bf16.mxu0 0
      %1642 = vmatpush2.bf16.msra.mxu0 0
      %1643 = vmatprep.subr.bf16.mxu0 0
      %1644 = vmatpush2.bf16.msra.mxu0 0
      %1645 = vmatprep.mubr.bf16.mxu0 0
      %1646 = vmatmul.mubr.bf16.gmra.mxu0 %v1608
      %v1647 = vpop.f32.mrf.mxu0
      %v1648 = vadd.f32 0.0, %v1647
      %v1649 = vpop.f32.mrf.mxu0
      %v1650 = vpop.f32.mrf.mxu0
      %v1651 = vpop.f32.mrf.mxu0
      %1652 = vdwg.mxu0
      %v1653 = vpack.c.bf16 %v1648, %v1648
      %s1654 = scalar_lea.vmem %s8, 6
      %v1655 = vld [vmem:[%s1654] sm:$0x3]
      %v1657 = vsel %vm557, %v1653, 0
      %v1660 = vsel %vm671, %v1655, 0
      %1662 = vmatprep.subr.bf16.mxu0 0
      %1663 = vmatpush1.bf16.msra.mxu0 0
      %1664 = vmatprep.subr.bf16.mxu0 0
      %1665 = vmatpush1.bf16.msra.mxu0 0
      %1666 = vmatprep.subr.bf16.mxu0 0
      %1667 = vmatpush1.bf16.msra.mxu0 0
      %1668 = vmatprep.subr.bf16.mxu0 0
      %1669 = vmatpush1.bf16.msra.mxu0 0
      %1670 = vmatprep.subr.bf16.mxu0 0
      %1671 = vmatpush1.bf16.msra.mxu0 0
      %1672 = vmatprep.subr.bf16.mxu0 0
      %1673 = vmatpush1.bf16.msra.mxu0 0
      %1674 = vmatprep.subr.bf16.mxu0 0
      %1675 = vmatpush1.bf16.msra.mxu0 0
      %1676 = vmatprep.subr.bf16.mxu0 0
      %1677 = vmatpush1.bf16.msra.mxu0 %v1660
      %1678 = vmatprep.subr.bf16.mxu0 0
      %1679 = vmatpush2.bf16.msra.mxu0 0
      %1680 = vmatprep.subr.bf16.mxu0 0
      %1681 = vmatpush2.bf16.msra.mxu0 0
      %1682 = vmatprep.subr.bf16.mxu0 0
      %1683 = vmatpush2.bf16.msra.mxu0 0
      %1684 = vmatprep.subr.bf16.mxu0 0
      %1685 = vmatpush2.bf16.msra.mxu0 0
      %1686 = vmatprep.subr.bf16.mxu0 0
      %1687 = vmatpush2.bf16.msra.mxu0 0
      %1688 = vmatprep.subr.bf16.mxu0 0
      %1689 = vmatpush2.bf16.msra.mxu0 0
      %1690 = vmatprep.subr.bf16.mxu0 0
      %1691 = vmatpush2.bf16.msra.mxu0 0
      %1692 = vmatprep.subr.bf16.mxu0 0
      %1693 = vmatpush2.bf16.msra.mxu0 0
      %1694 = vmatprep.mubr.bf16.mxu0 0
      %1695 = vmatmul.mubr.bf16.gmra.mxu0 %v1657
      %v1696 = vpop.f32.mrf.mxu0
      %v1697 = vadd.f32 0.0, %v1696
      %v1698 = vpop.f32.mrf.mxu0
      %v1699 = vpop.f32.mrf.mxu0
      %v1700 = vpop.f32.mrf.mxu0
      %1701 = vdwg.mxu0
      %v1702 = vadd.f32 %v1373, %v1697
      %1703 = vst.msk [vmem:[%s371] sm:$0xff] %vm398, %v1702
      %p1704 = scmp.lt.s32.totalorder %s21, 1
      %s1705 = scalar_select %p1704, %s21, 1
      %s1706 = smul.addr %s1705, 8
      %s1707 = scalar_lea.vmem %s10, %s1706
      // Predicated region
      $region61: #{unet_forward.25} parent=59 // pred_check
        %p1708 = pneg %p259
      $region62: #{unet_forward.25} parent=59 // pred_check_branch
        %1710 = sbr.rel (%p1708) target = $region64
      $region63: #{unet_forward.25} parent=59 // pred_region
        _
      $region64: #{unet_forward.25} parent=59 // pred_fallthru
        _
    $region60: #{unet_forward.25} parent=5 // pred_fallthru
      _
    %p1711 = scmp.le.s32.totalorder 2, %s16
    // Predicated region
    $region65: #{unet_forward.25} parent=5 // pred_check
      %p1712 = pneg %p1711
    $region66: #{unet_forward.25} parent=5 // pred_check_branch
      %1714 = sbr.rel (%p1712) target = $region68
    $region67: #{unet_forward.25} parent=5 // pred_region
      %s1715 = ssub.s32 %s16, 2
      // Predicated region
      $region69: #{unet_forward.25} parent=67 // pred_check
        %p1716 = pneg %p265
      $region70: #{unet_forward.25} parent=67 // pred_check_branch
        %1718 = sbr.rel (%p1716) target = $region72
      $region71: #{unet_forward.25} parent=67 // pred_region
        %p1719 = scmp.lt.s32.totalorder %s22, 1
        %s1720 = scalar_select %p1719, %s22, 1
        %s1721 = smul.addr %s1720, 8
        %s1722 = scalar_lea.vmem %s10, %s1721
      $region72: #{unet_forward.25} parent=67 // pred_fallthru
        _
    $region68: #{unet_forward.25} parent=5 // pred_fallthru
      _
  $region6: #{unet_forward.25} parent=0 // loop_footer
    %s20 = sadd.s32 1, %s16
  $region7: #{unet_forward.25} parent=0 // loop_footer_branch
    %15 = sbr.rel target = $region3
  $region8: #{unet_forward.25} parent=0 // loop_exit
    _

// kernel: unet_forward.26
$region0: #{unet_forward.26}
  #allocation0 [shape = 'u32[]', space=smem, size = 0x4, offset = 0x4, fixed_abs, tag = 'smem constant byte address 0x4 - core index']
  #allocation1 [shape = 'u32[144,128]{1,0:T(1,128)}', space=vmem, size = 0x12000, scoped, tag = 'internal scratch']
  %s0 = inlined_call_operand.vmem [shape: bf16[4,16,64], index: 0, kind: input, shape index: {}]
  %s1 = inlined_call_operand.vmem [shape: bf16[4,64,16], index: 1, kind: input, shape index: {}]
  %s2 = inlined_call_operand.vmem [shape: f32[16,1], index: 2, kind: input, shape index: {}]
  %s3 = inlined_call_operand.vmem [shape: f32[16,1], index: 3, kind: input, shape index: {}]
  %s4 = inlined_call_operand.vmem [shape: f32[4,16,16], index: 4, kind: output, shape index: {}]
  %s5 = sld [smem:[#allocation0]]
  $region26: #{unet_forward.26} parent=0
    _
  %s7 = ssub.s32 1, %s5
  %s8 = scalar_select 0, %s7, %s5
  // Predicated region
  $region2: #{unet_forward.26} parent=0 // pred_check
    _
  $region3: #{unet_forward.26} parent=0 // pred_check_branch
    %10 = sbr.rel (0) target = $region5
  $region4: #{unet_forward.26} parent=0 // pred_region
    _
  $region5: #{unet_forward.26} parent=0 // pred_fallthru
    _
  // Predicated region
  $region6: #{unet_forward.26} parent=0 // pred_check
    _
  $region7: #{unet_forward.26} parent=0 // pred_check_branch
    %12 = sbr.rel (0) target = $region9
  $region8: #{unet_forward.26} parent=0 // pred_region
    _
  $region9: #{unet_forward.26} parent=0 // pred_fallthru
    _
  // Predicated region
  $region10: #{unet_forward.26} parent=0 // pred_check
    _
  $region11: #{unet_forward.26} parent=0 // pred_check_branch
    %14 = sbr.rel (0) target = $region13
  $region12: #{unet_forward.26} parent=0 // pred_region
    _
  $region13: #{unet_forward.26} parent=0 // pred_fallthru
    _
  // Predicated region
  $region14: #{unet_forward.26} parent=0 // pred_check
    _
  $region15: #{unet_forward.26} parent=0 // pred_check_branch
    %16 = sbr.rel (0) target = $region17
  $region16: #{unet_forward.26} parent=0 // pred_region
    _
  $region17: #{unet_forward.26} parent=0 // pred_fallthru
    _
  %v18 = vld [vmem:[%s0] sm:$0xf]
  %v19 = vld [vmem:[%s0 + $0x4] sm:$0xf]
  %v20 = vld [vmem:[%s1] sm:$0xf]
  %v21 = vld [vmem:[%s1 + $0x4] sm:$0xf]
  %v22 = vld [vmem:[%s1 + $0x8] sm:$0xf]
  %v23 = vld [vmem:[%s1 + $0xc] sm:$0xf]
  %v24 = vld [vmem:[%s1 + $0x10] sm:$0xf]
  %v25 = vld [vmem:[%s1 + $0x14] sm:$0xf]
  %v26 = vld [vmem:[%s1 + $0x18] sm:$0xf]
  %v27 = vld [vmem:[%s1 + $0x1c] sm:$0xf]
  %v30 = vunpack.c.l.b16 %v18
  %v31 = vunpack.c.l.b16 %v19
  %v32 = vpack.c.b16 %v31, %v30
  %v41 = vunpack.c.l.b16 %v20
  %v42 = vunpack.c.l.b16 %v21
  %v43 = vunpack.c.l.b16 %v22
  %v44 = vunpack.c.l.b16 %v23
  %v45 = vunpack.c.l.b16 %v24
  %v46 = vunpack.c.l.b16 %v25
  %v47 = vunpack.c.l.b16 %v26
  %v48 = vunpack.c.l.b16 %v27
  %v49 = vpack.c.b16 %v42, %v41
  %v50 = vpack.c.b16 %v44, %v43
  %v51 = vpack.c.b16 %v46, %v45
  %v52 = vpack.c.b16 %v48, %v47
  %vm57 = vcmask 523264
  %v59 = vsel %vm57, %v32, 0
  %61 = vmatprep.subr.bf16.mxu0 0
  %62 = vmatpush1.bf16.msra.mxu0 0
  %63 = vmatprep.subr.bf16.mxu0 0
  %64 = vmatpush1.bf16.msra.mxu0 0
  %65 = vmatprep.subr.bf16.mxu0 0
  %66 = vmatpush1.bf16.msra.mxu0 0
  %67 = vmatprep.subr.bf16.mxu0 0
  %68 = vmatpush1.bf16.msra.mxu0 0
  %69 = vmatprep.subr.bf16.mxu0 0
  %70 = vmatpush1.bf16.msra.mxu0 %v52
  %71 = vmatprep.subr.bf16.mxu0 0
  %72 = vmatpush1.bf16.msra.mxu0 %v51
  %73 = vmatprep.subr.bf16.mxu0 0
  %74 = vmatpush1.bf16.msra.mxu0 %v50
  %75 = vmatprep.subr.bf16.mxu0 0
  %76 = vmatpush1.bf16.msra.mxu0 %v49
  %77 = vmatprep.subr.bf16.mxu0 0
  %78 = vmatpush2.bf16.msra.mxu0 0
  %79 = vmatprep.subr.bf16.mxu0 0
  %80 = vmatpush2.bf16.msra.mxu0 0
  %81 = vmatprep.subr.bf16.mxu0 0
  %82 = vmatpush2.bf16.msra.mxu0 0
  %83 = vmatprep.subr.bf16.mxu0 0
  %84 = vmatpush2.bf16.msra.mxu0 0
  %85 = vmatprep.subr.bf16.mxu0 0
  %86 = vmatpush2.bf16.msra.mxu0 0
  %87 = vmatprep.subr.bf16.mxu0 0
  %88 = vmatpush2.bf16.msra.mxu0 0
  %89 = vmatprep.subr.bf16.mxu0 0
  %90 = vmatpush2.bf16.msra.mxu0 0
  %91 = vmatprep.subr.bf16.mxu0 0
  %92 = vmatpush2.bf16.msra.mxu0 0
  %93 = vmatprep.mubr.bf16.mxu0 0
  %94 = vmatmul.mubr.bf16.gmra.mxu0 %v59
  %v95 = vpop.f32.mrf.mxu0
  %v96 = vadd.f32 0.0, %v95
  %v97 = vpop.f32.mrf.mxu0
  %v98 = vpop.f32.mrf.mxu0
  %v99 = vadd.f32 0.0, %v98
  %v100 = vpop.f32.mrf.mxu0
  %101 = vdwg.mxu0
  %s102 = scalar_lea.vmem %s0, 8
  %v103 = vld [vmem:[%s102] sm:$0xf]
  %v104 = vld [vmem:[%s102 + $0x4] sm:$0xf]
  %s105 = scalar_lea.vmem %s1, 32
  %v106 = vld [vmem:[%s105] sm:$0xf]
  %v107 = vld [vmem:[%s105 + $0x4] sm:$0xf]
  %v108 = vld [vmem:[%s105 + $0x8] sm:$0xf]
  %v109 = vld [vmem:[%s105 + $0xc] sm:$0xf]
  %v110 = vld [vmem:[%s105 + $0x10] sm:$0xf]
  %v111 = vld [vmem:[%s105 + $0x14] sm:$0xf]
  %v112 = vld [vmem:[%s105 + $0x18] sm:$0xf]
  %v113 = vld [vmem:[%s105 + $0x1c] sm:$0xf]
  %v116 = vunpack.c.l.b16 %v103
  %v117 = vunpack.c.l.b16 %v104
  %v118 = vpack.c.b16 %v117, %v116
  %v127 = vunpack.c.l.b16 %v106
  %v128 = vunpack.c.l.b16 %v107
  %v129 = vunpack.c.l.b16 %v108
  %v130 = vunpack.c.l.b16 %v109
  %v131 = vunpack.c.l.b16 %v110
  %v132 = vunpack.c.l.b16 %v111
  %v133 = vunpack.c.l.b16 %v112
  %v134 = vunpack.c.l.b16 %v113
  %v135 = vpack.c.b16 %v128, %v127
  %v136 = vpack.c.b16 %v130, %v129
  %v137 = vpack.c.b16 %v132, %v131
  %v138 = vpack.c.b16 %v134, %v133
  %v144 = vsel %vm57, %v118, 0
  %146 = vmatprep.subr.bf16.mxu0 0
  %147 = vmatpush1.bf16.msra.mxu0 0
  %148 = vmatprep.subr.bf16.mxu0 0
  %149 = vmatpush1.bf16.msra.mxu0 0
  %150 = vmatprep.subr.bf16.mxu0 0
  %151 = vmatpush1.bf16.msra.mxu0 0
  %152 = vmatprep.subr.bf16.mxu0 0
  %153 = vmatpush1.bf16.msra.mxu0 0
  %154 = vmatprep.subr.bf16.mxu0 0
  %155 = vmatpush1.bf16.msra.mxu0 %v138
  %156 = vmatprep.subr.bf16.mxu0 0
  %157 = vmatpush1.bf16.msra.mxu0 %v137
  %158 = vmatprep.subr.bf16.mxu0 0
  %159 = vmatpush1.bf16.msra.mxu0 %v136
  %160 = vmatprep.subr.bf16.mxu0 0
  %161 = vmatpush1.bf16.msra.mxu0 %v135
  %162 = vmatprep.subr.bf16.mxu0 0
  %163 = vmatpush2.bf16.msra.mxu0 0
  %164 = vmatprep.subr.bf16.mxu0 0
  %165 = vmatpush2.bf16.msra.mxu0 0
  %166 = vmatprep.subr.bf16.mxu0 0
  %167 = vmatpush2.bf16.msra.mxu0 0
  %168 = vmatprep.subr.bf16.mxu0 0
  %169 = vmatpush2.bf16.msra.mxu0 0
  %170 = vmatprep.subr.bf16.mxu0 0
  %171 = vmatpush2.bf16.msra.mxu0 0
  %172 = vmatprep.subr.bf16.mxu0 0
  %173 = vmatpush2.bf16.msra.mxu0 0
  %174 = vmatprep.subr.bf16.mxu0 0
  %175 = vmatpush2.bf16.msra.mxu0 0
  %176 = vmatprep.subr.bf16.mxu0 0
  %177 = vmatpush2.bf16.msra.mxu0 0
  %178 = vmatprep.mubr.bf16.mxu0 0
  %179 = vmatmul.mubr.bf16.gmra.mxu0 %v144
  %v180 = vpop.f32.mrf.mxu0
  %v181 = vadd.f32 0.0, %v180
  %v182 = vpop.f32.mrf.mxu0
  %v183 = vpop.f32.mrf.mxu0
  %v184 = vadd.f32 0.0, %v183
  %v185 = vpop.f32.mrf.mxu0
  %186 = vdwg.mxu0
  %s187 = scalar_lea.vmem %s0, 16
  %v188 = vld [vmem:[%s187] sm:$0xf]
  %v189 = vld [vmem:[%s187 + $0x4] sm:$0xf]
  %s190 = scalar_lea.vmem %s1, 64
  %v191 = vld [vmem:[%s190] sm:$0xf]
  %v192 = vld [vmem:[%s190 + $0x4] sm:$0xf]
  %v193 = vld [vmem:[%s190 + $0x8] sm:$0xf]
  %v194 = vld [vmem:[%s190 + $0xc] sm:$0xf]
  %v195 = vld [vmem:[%s190 + $0x10] sm:$0xf]
  %v196 = vld [vmem:[%s190 + $0x14] sm:$0xf]
  %v197 = vld [vmem:[%s190 + $0x18] sm:$0xf]
  %v198 = vld [vmem:[%s190 + $0x1c] sm:$0xf]
  %v201 = vunpack.c.l.b16 %v188
  %v202 = vunpack.c.l.b16 %v189
  %v203 = vpack.c.b16 %v202, %v201
  %v212 = vunpack.c.l.b16 %v191
  %v213 = vunpack.c.l.b16 %v192
  %v214 = vunpack.c.l.b16 %v193
  %v215 = vunpack.c.l.b16 %v194
  %v216 = vunpack.c.l.b16 %v195
  %v217 = vunpack.c.l.b16 %v196
  %v218 = vunpack.c.l.b16 %v197
  %v219 = vunpack.c.l.b16 %v198
  %v220 = vpack.c.b16 %v213, %v212
  %v221 = vpack.c.b16 %v215, %v214
  %v222 = vpack.c.b16 %v217, %v216
  %v223 = vpack.c.b16 %v219, %v218
  %v229 = vsel %vm57, %v203, 0
  %231 = vmatprep.subr.bf16.mxu0 0
  %232 = vmatpush1.bf16.msra.mxu0 0
  %233 = vmatprep.subr.bf16.mxu0 0
  %234 = vmatpush1.bf16.msra.mxu0 0
  %235 = vmatprep.subr.bf16.mxu0 0
  %236 = vmatpush1.bf16.msra.mxu0 0
  %237 = vmatprep.subr.bf16.mxu0 0
  %238 = vmatpush1.bf16.msra.mxu0 0
  %239 = vmatprep.subr.bf16.mxu0 0
  %240 = vmatpush1.bf16.msra.mxu0 %v223
  %241 = vmatprep.subr.bf16.mxu0 0
  %242 = vmatpush1.bf16.msra.mxu0 %v222
  %243 = vmatprep.subr.bf16.mxu0 0
  %244 = vmatpush1.bf16.msra.mxu0 %v221
  %245 = vmatprep.subr.bf16.mxu0 0
  %246 = vmatpush1.bf16.msra.mxu0 %v220
  %247 = vmatprep.subr.bf16.mxu0 0
  %248 = vmatpush2.bf16.msra.mxu0 0
  %249 = vmatprep.subr.bf16.mxu0 0
  %250 = vmatpush2.bf16.msra.mxu0 0
  %251 = vmatprep.subr.bf16.mxu0 0
  %252 = vmatpush2.bf16.msra.mxu0 0
  %253 = vmatprep.subr.bf16.mxu0 0
  %254 = vmatpush2.bf16.msra.mxu0 0
  %255 = vmatprep.subr.bf16.mxu0 0
  %256 = vmatpush2.bf16.msra.mxu0 0
  %257 = vmatprep.subr.bf16.mxu0 0
  %258 = vmatpush2.bf16.msra.mxu0 0
  %259 = vmatprep.subr.bf16.mxu0 0
  %260 = vmatpush2.bf16.msra.mxu0 0
  %261 = vmatprep.subr.bf16.mxu0 0
  %262 = vmatpush2.bf16.msra.mxu0 0
  %263 = vmatprep.mubr.bf16.mxu0 0
  %264 = vmatmul.mubr.bf16.gmra.mxu0 %v229
  %v265 = vpop.f32.mrf.mxu0
  %v266 = vadd.f32 0.0, %v265
  %v267 = vpop.f32.mrf.mxu0
  %v268 = vpop.f32.mrf.mxu0
  %v269 = vadd.f32 0.0, %v268
  %v270 = vpop.f32.mrf.mxu0
  %271 = vdwg.mxu0
  %s272 = scalar_lea.vmem %s0, 24
  %v273 = vld [vmem:[%s272] sm:$0xf]
  %v274 = vld [vmem:[%s272 + $0x4] sm:$0xf]
  %s275 = scalar_lea.vmem %s1, 96
  %v276 = vld [vmem:[%s275] sm:$0xf]
  %v277 = vld [vmem:[%s275 + $0x4] sm:$0xf]
  %v278 = vld [vmem:[%s275 + $0x8] sm:$0xf]
  %v279 = vld [vmem:[%s275 + $0xc] sm:$0xf]
  %v280 = vld [vmem:[%s275 + $0x10] sm:$0xf]
  %v281 = vld [vmem:[%s275 + $0x14] sm:$0xf]
  %v282 = vld [vmem:[%s275 + $0x18] sm:$0xf]
  %v283 = vld [vmem:[%s275 + $0x1c] sm:$0xf]
  %v286 = vunpack.c.l.b16 %v273
  %v287 = vunpack.c.l.b16 %v274
  %v288 = vpack.c.b16 %v287, %v286
  %v297 = vunpack.c.l.b16 %v276
  %v298 = vunpack.c.l.b16 %v277
  %v299 = vunpack.c.l.b16 %v278
  %v300 = vunpack.c.l.b16 %v279
  %v301 = vunpack.c.l.b16 %v280
  %v302 = vunpack.c.l.b16 %v281
  %v303 = vunpack.c.l.b16 %v282
  %v304 = vunpack.c.l.b16 %v283
  %v305 = vpack.c.b16 %v298, %v297
  %v306 = vpack.c.b16 %v300, %v299
  %v307 = vpack.c.b16 %v302, %v301
  %v308 = vpack.c.b16 %v304, %v303
  %v314 = vsel %vm57, %v288, 0
  %316 = vmatprep.subr.bf16.mxu0 0
  %317 = vmatpush1.bf16.msra.mxu0 0
  %318 = vmatprep.subr.bf16.mxu0 0
  %319 = vmatpush1.bf16.msra.mxu0 0
  %320 = vmatprep.subr.bf16.mxu0 0
  %321 = vmatpush1.bf16.msra.mxu0 0
  %322 = vmatprep.subr.bf16.mxu0 0
  %323 = vmatpush1.bf16.msra.mxu0 0
  %324 = vmatprep.subr.bf16.mxu0 0
  %325 = vmatpush1.bf16.msra.mxu0 %v308
  %326 = vmatprep.subr.bf16.mxu0 0
  %327 = vmatpush1.bf16.msra.mxu0 %v307
  %328 = vmatprep.subr.bf16.mxu0 0
  %329 = vmatpush1.bf16.msra.mxu0 %v306
  %330 = vmatprep.subr.bf16.mxu0 0
  %331 = vmatpush1.bf16.msra.mxu0 %v305
  %332 = vmatprep.subr.bf16.mxu0 0
  %333 = vmatpush2.bf16.msra.mxu0 0
  %334 = vmatprep.subr.bf16.mxu0 0
  %335 = vmatpush2.bf16.msra.mxu0 0
  %336 = vmatprep.subr.bf16.mxu0 0
  %337 = vmatpush2.bf16.msra.mxu0 0
  %338 = vmatprep.subr.bf16.mxu0 0
  %339 = vmatpush2.bf16.msra.mxu0 0
  %340 = vmatprep.subr.bf16.mxu0 0
  %341 = vmatpush2.bf16.msra.mxu0 0
  %342 = vmatprep.subr.bf16.mxu0 0
  %343 = vmatpush2.bf16.msra.mxu0 0
  %344 = vmatprep.subr.bf16.mxu0 0
  %345 = vmatpush2.bf16.msra.mxu0 0
  %346 = vmatprep.subr.bf16.mxu0 0
  %347 = vmatpush2.bf16.msra.mxu0 0
  %348 = vmatprep.mubr.bf16.mxu0 0
  %349 = vmatmul.mubr.bf16.gmra.mxu0 %v314
  %v350 = vpop.f32.mrf.mxu0
  %v351 = vadd.f32 0.0, %v350
  %v352 = vpop.f32.mrf.mxu0
  %v353 = vpop.f32.mrf.mxu0
  %v354 = vadd.f32 0.0, %v353
  %v355 = vpop.f32.mrf.mxu0
  %356 = vdwg.mxu0
  %vm357 = vcmask 130048
  %v358 = vsel %vm357, %v96, 0.0
  %359 = vadd.xlane.f32.xlu0 %v358
  %v360 = vpop.xlane.xlu0 %359
  %v361 = vsel %vm357, %v99, 0.0
  %362 = vadd.xlane.f32.xlu0 %v361
  %v363 = vpop.xlane.xlu0 %362
  %v364 = vadd.f32 %v360, 0.0
  %v365 = vadd.f32 %v363, 0.0
  %v366 = vsel %vm357, %v181, 0.0
  %367 = vadd.xlane.f32.xlu0 %v366
  %v368 = vpop.xlane.xlu0 %367
  %v369 = vsel %vm357, %v184, 0.0
  %370 = vadd.xlane.f32.xlu0 %v369
  %v371 = vpop.xlane.xlu0 %370
  %v372 = vadd.f32 %v364, %v368
  %v373 = vadd.f32 %v365, %v371
  %v374 = vsel %vm357, %v266, 0.0
  %375 = vadd.xlane.f32.xlu0 %v374
  %v376 = vpop.xlane.xlu0 %375
  %v377 = vsel %vm357, %v269, 0.0
  %378 = vadd.xlane.f32.xlu0 %v377
  %v379 = vpop.xlane.xlu0 %378
  %v380 = vadd.f32 %v372, %v376
  %v381 = vadd.f32 %v373, %v379
  %v382 = vsel %vm357, %v351, 0.0
  %383 = vadd.xlane.f32.xlu0 %v382
  %v384 = vpop.xlane.xlu0 %383
  %v385 = vsel %vm357, %v354, 0.0
  %386 = vadd.xlane.f32.xlu0 %v385
  %v387 = vpop.xlane.xlu0 %386
  %v388 = vadd.f32 %v380, %v384
  %v389 = vadd.f32 %v381, %v387
  %v390 = vrcp.pop 64.0
  %v391 = vmul.f32 %v388, %v390
  %v392 = vmul.f32 %v389, %v390
  %v393 = vmul.f32 %v96, %v96
  %v394 = vmul.f32 %v99, %v99
  %v395 = vsel %vm357, %v393, 0.0
  %396 = vadd.xlane.f32.xlu0 %v395
  %v397 = vpop.xlane.xlu0 %396
  %v398 = vsel %vm357, %v394, 0.0
  %399 = vadd.xlane.f32.xlu0 %v398
  %v400 = vpop.xlane.xlu0 %399
  %v401 = vadd.f32 %v397, 0.0
  %v402 = vadd.f32 %v400, 0.0
  %v403 = vmul.f32 %v181, %v181
  %v404 = vmul.f32 %v184, %v184
  %v405 = vsel %vm357, %v403, 0.0
  %406 = vadd.xlane.f32.xlu0 %v405
  %v407 = vpop.xlane.xlu0 %406
  %v408 = vsel %vm357, %v404, 0.0
  %409 = vadd.xlane.f32.xlu0 %v408
  %v410 = vpop.xlane.xlu0 %409
  %v411 = vadd.f32 %v401, %v407
  %v412 = vadd.f32 %v402, %v410
  %v413 = vmul.f32 %v266, %v266
  %v414 = vmul.f32 %v269, %v269
  %v415 = vsel %vm357, %v413, 0.0
  %416 = vadd.xlane.f32.xlu0 %v415
  %v417 = vpop.xlane.xlu0 %416
  %v418 = vsel %vm357, %v414, 0.0
  %419 = vadd.xlane.f32.xlu0 %v418
  %v420 = vpop.xlane.xlu0 %419
  %v421 = vadd.f32 %v411, %v417
  %v422 = vadd.f32 %v412, %v420
  %v423 = vmul.f32 %v351, %v351
  %v424 = vmul.f32 %v354, %v354
  %v425 = vsel %vm357, %v423, 0.0
  %426 = vadd.xlane.f32.xlu0 %v425
  %v427 = vpop.xlane.xlu0 %426
  %v428 = vsel %vm357, %v424, 0.0
  %429 = vadd.xlane.f32.xlu0 %v428
  %v430 = vpop.xlane.xlu0 %429
  %v431 = vadd.f32 %v421, %v427
  %v432 = vadd.f32 %v422, %v430
  %v433 = vmul.f32 %v431, %v390
  %v434 = vmul.f32 %v432, %v390
  %v435 = vmul.f32 %v391, %v391
  %v436 = vmul.f32 %v392, %v392
  %v437 = vsub.f32 %v433, %v435
  %v438 = vsub.f32 %v434, %v436
  %v439 = vadd.f32 %v437, 1e-05
  %v440 = vadd.f32 %v438, 1e-05
  %v441 = vrsqrt.pop %v439
  %v442 = vrsqrt.pop %v440
  %v443 = vld [vmem:[%s2] sm:$0xff]
  %v444 = vld [vmem:[%s2 + $0x8] sm:$0xff]
  %v445 = vmul.f32 %v441, %v443
  %v446 = vmul.f32 %v442, %v444
  %v447 = vsub.f32 %v96, %v391
  %v448 = vsub.f32 %v99, %v392
  %450 = vset.pattern.permute.xlu0 0
  %451 = vperm.xlu0 %450, %v445
  %v452 = vpop.permute.xlu0 %451
  %455 = vset.pattern.permute.xlu0 0
  %456 = vperm.xlu0 %455, %v446
  %v457 = vpop.permute.xlu0 %456
  %v459 = vmul.f32 %v447, %v452
  %v460 = vmul.f32 %v448, %v457
  %v461 = vld [vmem:[%s3] sm:$0xff]
  %v462 = vld [vmem:[%s3 + $0x8] sm:$0xff]
  %464 = vset.pattern.permute.xlu0 0
  %465 = vperm.xlu0 %464, %v461
  %v466 = vpop.permute.xlu0 %465
  %469 = vset.pattern.permute.xlu0 0
  %470 = vperm.xlu0 %469, %v462
  %v471 = vpop.permute.xlu0 %470
  %v473 = vadd.f32 %v459, %v466
  %v474 = vadd.f32 %v460, %v471
  %v475 = vsub.f32 %v181, %v391
  %v476 = vsub.f32 %v184, %v392
  %v477 = vmul.f32 %v475, %v452
  %v478 = vmul.f32 %v476, %v457
  %v479 = vadd.f32 %v477, %v466
  %v480 = vadd.f32 %v478, %v471
  %v481 = vsub.f32 %v266, %v391
  %v482 = vsub.f32 %v269, %v392
  %v483 = vmul.f32 %v481, %v452
  %v484 = vmul.f32 %v482, %v457
  %v485 = vadd.f32 %v483, %v466
  %v486 = vadd.f32 %v484, %v471
  %v487 = vsub.f32 %v351, %v391
  %v488 = vsub.f32 %v354, %v392
  %v489 = vmul.f32 %v487, %v452
  %v490 = vmul.f32 %v488, %v457
  %v491 = vadd.f32 %v489, %v466
  %v492 = vadd.f32 %v490, %v471
  %v493 = vmax.f32 %v473, 0.0
  %v494 = vmax.f32 %v474, 0.0
  %495 = vst.msk [vmem:[%s4] sm:$0xff] %vm357, %v493
  %496 = vst.msk [vmem:[%s4 + $0x8] sm:$0xff] %vm357, %v494
  %v497 = vmax.f32 %v479, 0.0
  %v498 = vmax.f32 %v480, 0.0
  %s499 = scalar_lea.vmem %s4, 16
  %500 = vst.msk [vmem:[%s499] sm:$0xff] %vm357, %v497
  %501 = vst.msk [vmem:[%s499 + $0x8] sm:$0xff] %vm357, %v498
  %v502 = vmax.f32 %v485, 0.0
  %v503 = vmax.f32 %v486, 0.0
  %s504 = scalar_lea.vmem %s4, 32
  %505 = vst.msk [vmem:[%s504] sm:$0xff] %vm357, %v502
  %506 = vst.msk [vmem:[%s504 + $0x8] sm:$0xff] %vm357, %v503
  %v507 = vmax.f32 %v491, 0.0
  %v508 = vmax.f32 %v492, 0.0
  %s509 = scalar_lea.vmem %s4, 48
  %510 = vst.msk [vmem:[%s509] sm:$0xff] %vm357, %v507
  %511 = vst.msk [vmem:[%s509 + $0x8] sm:$0xff] %vm357, %v508
  // Predicated region
  $region18: #{unet_forward.26} parent=0 // pred_check
    _
  $region19: #{unet_forward.26} parent=0 // pred_check_branch
    %513 = sbr.rel (0) target = $region21
  $region20: #{unet_forward.26} parent=0 // pred_region
    _
  $region21: #{unet_forward.26} parent=0 // pred_fallthru
    _
  // Predicated region
  $region22: #{unet_forward.26} parent=0 // pred_check
    _
  $region23: #{unet_forward.26} parent=0 // pred_check_branch
    %515 = sbr.rel (0) target = $region25
  $region24: #{unet_forward.26} parent=0 // pred_region
    _
  $region25: #{unet_forward.26} parent=0 // pred_fallthru
    _

// kernel: unet_forward.27
$region0: #{unet_forward.27}
  #allocation0 [shape = 'u32[]', space=smem, size = 0x4, offset = 0x4, fixed_abs, tag = 'smem constant byte address 0x4 - core index']
  #allocation1 [shape = 'u32[144,128]{1,0:T(1,128)}', space=vmem, size = 0x12000, scoped, tag = 'internal scratch']
  %s0 = inlined_call_operand.vmem [shape: bf16[8,144], index: 0, kind: input, shape index: {}]
  %s1 = inlined_call_operand.vmem [shape: bf16[144,64], index: 1, kind: input, shape index: {}]
  %s2 = inlined_call_operand.vmem [shape: f32[8,1], index: 2, kind: input, shape index: {}]
  %s3 = inlined_call_operand.vmem [shape: f32[8,1], index: 3, kind: input, shape index: {}]
  %s4 = inlined_call_operand.vmem [shape: f32[8,64], index: 4, kind: input, shape index: {}]
  %s5 = inlined_call_operand.vmem [shape: f32[8,64], index: 5, kind: output, shape index: {}]
  %s6 = sld [smem:[#allocation0]]
  $region30: #{unet_forward.27} parent=0
    _
  %s8 = ssub.s32 1, %s6
  %s9 = scalar_select 0, %s8, %s6
  // Predicated region
  $region2: #{unet_forward.27} parent=0 // pred_check
    _
  $region3: #{unet_forward.27} parent=0 // pred_check_branch
    %11 = sbr.rel (0) target = $region5
  $region4: #{unet_forward.27} parent=0 // pred_region
    _
  $region5: #{unet_forward.27} parent=0 // pred_fallthru
    _
  // Predicated region
  $region6: #{unet_forward.27} parent=0 // pred_check
    _
  $region7: #{unet_forward.27} parent=0 // pred_check_branch
    %13 = sbr.rel (0) target = $region9
  $region8: #{unet_forward.27} parent=0 // pred_region
    _
  $region9: #{unet_forward.27} parent=0 // pred_fallthru
    _
  // Predicated region
  $region10: #{unet_forward.27} parent=0 // pred_check
    _
  $region11: #{unet_forward.27} parent=0 // pred_check_branch
    %15 = sbr.rel (0) target = $region13
  $region12: #{unet_forward.27} parent=0 // pred_region
    _
  $region13: #{unet_forward.27} parent=0 // pred_fallthru
    _
  // Predicated region
  $region14: #{unet_forward.27} parent=0 // pred_check
    _
  $region15: #{unet_forward.27} parent=0 // pred_check_branch
    %17 = sbr.rel (0) target = $region17
  $region16: #{unet_forward.27} parent=0 // pred_region
    _
  $region17: #{unet_forward.27} parent=0 // pred_fallthru
    _
  // Predicated region
  $region18: #{unet_forward.27} parent=0 // pred_check
    _
  $region19: #{unet_forward.27} parent=0 // pred_check_branch
    %19 = sbr.rel (0) target = $region21
  $region20: #{unet_forward.27} parent=0 // pred_region
    _
  $region21: #{unet_forward.27} parent=0 // pred_fallthru
    _
  %v21 = vld [vmem:[%s0] sm:$0xff]
  %v22 = vld [vmem:[%s1] sm:$0xf]
  %v23 = vld [vmem:[%s1 + $0x4] sm:$0xf]
  %v24 = vld [vmem:[%s1 + $0x8] sm:$0xf]
  %v25 = vld [vmem:[%s1 + $0xc] sm:$0xf]
  %v26 = vld [vmem:[%s1 + $0x10] sm:$0xf]
  %v27 = vld [vmem:[%s1 + $0x14] sm:$0xf]
  %v28 = vld [vmem:[%s1 + $0x18] sm:$0xf]
  %v29 = vld [vmem:[%s1 + $0x1c] sm:$0xf]
  %v30 = vld [vmem:[%s1 + $0x20] sm:$0xf]
  %v31 = vld [vmem:[%s1 + $0x24] sm:$0xf]
  %v32 = vld [vmem:[%s1 + $0x28] sm:$0xf]
  %v33 = vld [vmem:[%s1 + $0x2c] sm:$0xf]
  %v34 = vld [vmem:[%s1 + $0x30] sm:$0xf]
  %v35 = vld [vmem:[%s1 + $0x34] sm:$0xf]
  %v36 = vld [vmem:[%s1 + $0x38] sm:$0xf]
  %v37 = vld [vmem:[%s1 + $0x3c] sm:$0xf]
  %v38 = vld [vmem:[%s1 + $0x40] sm:$0xf]
  %v39 = vld [vmem:[%s1 + $0x44] sm:$0xf]
  %v41 = vunpack.c.l.b16 %v21
  %v42 = vunpack.c.h.b16 %v21
  %v43 = vpack.c.b16 %v41, %v41
  %v44 = vpack.c.b16 %v42, %v42
  %v64 = vunpack.c.l.b16 %v22
  %v65 = vunpack.c.l.b16 %v23
  %v66 = vunpack.c.l.b16 %v24
  %v67 = vunpack.c.l.b16 %v25
  %v68 = vunpack.c.l.b16 %v26
  %v69 = vunpack.c.l.b16 %v27
  %v70 = vunpack.c.l.b16 %v28
  %v71 = vunpack.c.l.b16 %v29
  %v72 = vunpack.c.l.b16 %v30
  %v73 = vunpack.c.l.b16 %v31
  %v74 = vunpack.c.l.b16 %v32
  %v75 = vunpack.c.l.b16 %v33
  %v76 = vunpack.c.l.b16 %v34
  %v77 = vunpack.c.l.b16 %v35
  %v78 = vunpack.c.l.b16 %v36
  %v79 = vunpack.c.l.b16 %v37
  %v80 = vunpack.c.l.b16 %v38
  %v81 = vunpack.c.l.b16 %v39
  %v82 = vpack.c.b16 %v65, %v64
  %v83 = vpack.c.b16 %v67, %v66
  %v84 = vpack.c.b16 %v69, %v68
  %v85 = vpack.c.b16 %v71, %v70
  %v86 = vpack.c.b16 %v73, %v72
  %v87 = vpack.c.b16 %v75, %v74
  %v88 = vpack.c.b16 %v77, %v76
  %v89 = vpack.c.b16 %v79, %v78
  %v90 = vpack.c.b16 %v81, %v80
  %vm100 = vcmask 130048
  %v102 = vsel %vm100, %v44, 0
  %104 = vmatprep.subr.bf16.mxu0 0
  %105 = vmatpush1.bf16.msra.mxu0 %v89
  %106 = vmatprep.subr.bf16.mxu0 0
  %107 = vmatpush1.bf16.msra.mxu0 %v88
  %108 = vmatprep.subr.bf16.mxu0 0
  %109 = vmatpush1.bf16.msra.mxu0 %v87
  %110 = vmatprep.subr.bf16.mxu0 0
  %111 = vmatpush1.bf16.msra.mxu0 %v86
  %112 = vmatprep.subr.bf16.mxu0 0
  %113 = vmatpush1.bf16.msra.mxu0 %v85
  %114 = vmatprep.subr.bf16.mxu0 0
  %115 = vmatpush1.bf16.msra.mxu0 %v84
  %116 = vmatprep.subr.bf16.mxu0 0
  %117 = vmatpush1.bf16.msra.mxu0 %v83
  %118 = vmatprep.subr.bf16.mxu0 0
  %119 = vmatpush1.bf16.msra.mxu0 %v82
  %120 = vmatprep.subr.bf16.mxu0 0
  %121 = vmatpush2.bf16.msra.mxu0 0
  %122 = vmatprep.subr.bf16.mxu0 0
  %123 = vmatpush2.bf16.msra.mxu0 0
  %124 = vmatprep.subr.bf16.mxu0 0
  %125 = vmatpush2.bf16.msra.mxu0 0
  %126 = vmatprep.subr.bf16.mxu0 0
  %127 = vmatpush2.bf16.msra.mxu0 0
  %128 = vmatprep.subr.bf16.mxu0 0
  %129 = vmatpush2.bf16.msra.mxu0 0
  %130 = vmatprep.subr.bf16.mxu0 0
  %131 = vmatpush2.bf16.msra.mxu0 0
  %132 = vmatprep.subr.bf16.mxu0 0
  %133 = vmatpush2.bf16.msra.mxu0 0
  %134 = vmatprep.subr.bf16.mxu0 0
  %135 = vmatpush2.bf16.msra.mxu0 %v90
  %136 = vmatprep.mubr.bf16.mxu0 %v102
  %137 = vmatmul.mubr.bf16.gmra.mxu0 %v43
  %v138 = vpop.f32.mrf.mxu0
  %v139 = vadd.f32 0.0, %v138
  %v140 = vpop.f32.mrf.mxu0
  %v141 = vpop.f32.mrf.mxu0
  %v142 = vpop.f32.mrf.mxu0
  %143 = vdwg.mxu0
  %vm144 = vcmask 523264
  %v145 = vsel %vm144, %v139, 0.0
  %146 = vadd.xlane.f32.xlu0 %v145
  %v147 = vpop.xlane.xlu0 %146
  %v148 = vrcp.pop 64.0
  %v149 = vmul.f32 %v147, %v148
  %v150 = vsub.f32 %v139, %v149
  %v151 = vmul.f32 %v150, %v150
  %v152 = vsel %vm144, %v151, 0.0
  %153 = vadd.xlane.f32.xlu0 %v152
  %v154 = vpop.xlane.xlu0 %153
  %v155 = vmul.f32 %v154, %v148
  %v156 = vadd.f32 %v155, 1e-05
  %v157 = vrsqrt.pop %v156
  %v158 = vmul.f32 %v150, %v157
  %v159 = vld [vmem:[%s2] sm:$0xff]
  %161 = vset.pattern.permute.xlu0 0
  %162 = vperm.xlu0 %161, %v159
  %v163 = vpop.permute.xlu0 %162
  %v165 = vmul.f32 %v158, %v163
  %v166 = vld [vmem:[%s3] sm:$0xff]
  %168 = vset.pattern.permute.xlu0 0
  %169 = vperm.xlu0 %168, %v166
  %v170 = vpop.permute.xlu0 %169
  %v172 = vadd.f32 %v165, %v170
  %v173 = vmax.f32 %v172, 0.0
  %v174 = vld [vmem:[%s4] sm:$0xff]
  %v175 = vadd.f32 %v173, %v174
  %176 = vst.msk [vmem:[%s5] sm:$0xff] %vm144, %v175
  // Predicated region
  $region22: #{unet_forward.27} parent=0 // pred_check
    _
  $region23: #{unet_forward.27} parent=0 // pred_check_branch
    %178 = sbr.rel (0) target = $region25
  $region24: #{unet_forward.27} parent=0 // pred_region
    _
  $region25: #{unet_forward.27} parent=0 // pred_fallthru
    _
  // Predicated region
  $region26: #{unet_forward.27} parent=0 // pred_check
    _
  $region27: #{unet_forward.27} parent=0 // pred_check_branch
    %180 = sbr.rel (0) target = $region29
  $region28: #{unet_forward.27} parent=0 // pred_region
    _
  $region29: #{unet_forward.27} parent=0 // pred_fallthru
    _

// kernel: unet_forward.28
$region0: #{unet_forward.28}
  #allocation0 [shape = 'u32[]', space=smem, size = 0x4, offset = 0x4, fixed_abs, tag = 'smem constant byte address 0x4 - core index']
  #allocation1 [shape = 'u32[144,128]{1,0:T(1,128)}', space=vmem, size = 0x12000, scoped, tag = 'internal scratch']
  %s0 = inlined_call_operand.vmem [shape: bf16[4,8,32], index: 0, kind: input, shape index: {}]
  %s1 = inlined_call_operand.vmem [shape: bf16[4,32,64], index: 1, kind: input, shape index: {}]
  %s2 = inlined_call_operand.vmem [shape: f32[8,1], index: 2, kind: input, shape index: {}]
  %s3 = inlined_call_operand.vmem [shape: f32[8,1], index: 3, kind: input, shape index: {}]
  %s4 = inlined_call_operand.vmem [shape: f32[4,8,64], index: 4, kind: output, shape index: {}]
  %s5 = sld [smem:[#allocation0]]
  $region26: #{unet_forward.28} parent=0
    _
  %s7 = ssub.s32 1, %s5
  %s8 = scalar_select 0, %s7, %s5
  // Predicated region
  $region2: #{unet_forward.28} parent=0 // pred_check
    _
  $region3: #{unet_forward.28} parent=0 // pred_check_branch
    %10 = sbr.rel (0) target = $region5
  $region4: #{unet_forward.28} parent=0 // pred_region
    _
  $region5: #{unet_forward.28} parent=0 // pred_fallthru
    _
  // Predicated region
  $region6: #{unet_forward.28} parent=0 // pred_check
    _
  $region7: #{unet_forward.28} parent=0 // pred_check_branch
    %12 = sbr.rel (0) target = $region9
  $region8: #{unet_forward.28} parent=0 // pred_region
    _
  $region9: #{unet_forward.28} parent=0 // pred_fallthru
    _
  // Predicated region
  $region10: #{unet_forward.28} parent=0 // pred_check
    _
  $region11: #{unet_forward.28} parent=0 // pred_check_branch
    %14 = sbr.rel (0) target = $region13
  $region12: #{unet_forward.28} parent=0 // pred_region
    _
  $region13: #{unet_forward.28} parent=0 // pred_fallthru
    _
  // Predicated region
  $region14: #{unet_forward.28} parent=0 // pred_check
    _
  $region15: #{unet_forward.28} parent=0 // pred_check_branch
    %16 = sbr.rel (0) target = $region17
  $region16: #{unet_forward.28} parent=0 // pred_region
    _
  $region17: #{unet_forward.28} parent=0 // pred_fallthru
    _
  %v18 = vld [vmem:[%s0] sm:$0xf]
  %v19 = vld [vmem:[%s1] sm:$0xf]
  %v20 = vld [vmem:[%s1 + $0x4] sm:$0xf]
  %v21 = vld [vmem:[%s1 + $0x8] sm:$0xf]
  %v22 = vld [vmem:[%s1 + $0xc] sm:$0xf]
  %v27 = vunpack.c.l.b16 %v19
  %v28 = vunpack.c.l.b16 %v20
  %v29 = vunpack.c.l.b16 %v21
  %v30 = vunpack.c.l.b16 %v22
  %v31 = vpack.c.b16 %v28, %v27
  %v32 = vpack.c.b16 %v30, %v29
  %vm35 = vcmask 261120
  %v37 = vsel %vm35, %v18, 0
  %39 = vmatprep.subr.bf16.mxu0 0
  %40 = vmatpush1.bf16.msra.mxu0 0
  %41 = vmatprep.subr.bf16.mxu0 0
  %42 = vmatpush1.bf16.msra.mxu0 0
  %43 = vmatprep.subr.bf16.mxu0 0
  %44 = vmatpush1.bf16.msra.mxu0 0
  %45 = vmatprep.subr.bf16.mxu0 0
  %46 = vmatpush1.bf16.msra.mxu0 0
  %47 = vmatprep.subr.bf16.mxu0 0
  %48 = vmatpush1.bf16.msra.mxu0 0
  %49 = vmatprep.subr.bf16.mxu0 0
  %50 = vmatpush1.bf16.msra.mxu0 0
  %51 = vmatprep.subr.bf16.mxu0 0
  %52 = vmatpush1.bf16.msra.mxu0 %v32
  %53 = vmatprep.subr.bf16.mxu0 0
  %54 = vmatpush1.bf16.msra.mxu0 %v31
  %55 = vmatprep.subr.bf16.mxu0 0
  %56 = vmatpush2.bf16.msra.mxu0 0
  %57 = vmatprep.subr.bf16.mxu0 0
  %58 = vmatpush2.bf16.msra.mxu0 0
  %59 = vmatprep.subr.bf16.mxu0 0
  %60 = vmatpush2.bf16.msra.mxu0 0
  %61 = vmatprep.subr.bf16.mxu0 0
  %62 = vmatpush2.bf16.msra.mxu0 0
  %63 = vmatprep.subr.bf16.mxu0 0
  %64 = vmatpush2.bf16.msra.mxu0 0
  %65 = vmatprep.subr.bf16.mxu0 0
  %66 = vmatpush2.bf16.msra.mxu0 0
  %67 = vmatprep.subr.bf16.mxu0 0
  %68 = vmatpush2.bf16.msra.mxu0 0
  %69 = vmatprep.subr.bf16.mxu0 0
  %70 = vmatpush2.bf16.msra.mxu0 0
  %71 = vmatprep.mubr.bf16.mxu0 0
  %72 = vmatmul.mubr.bf16.gmra.mxu0 %v37
  %v73 = vpop.f32.mrf.mxu0
  %v74 = vadd.f32 0.0, %v73
  %v75 = vpop.f32.mrf.mxu0
  %v76 = vpop.f32.mrf.mxu0
  %v77 = vpop.f32.mrf.mxu0
  %78 = vdwg.mxu0
  %s79 = scalar_lea.vmem %s0, 4
  %v80 = vld [vmem:[%s79] sm:$0xf]
  %s81 = scalar_lea.vmem %s1, 16
  %v82 = vld [vmem:[%s81] sm:$0xf]
  %v83 = vld [vmem:[%s81 + $0x4] sm:$0xf]
  %v84 = vld [vmem:[%s81 + $0x8] sm:$0xf]
  %v85 = vld [vmem:[%s81 + $0xc] sm:$0xf]
  %v90 = vunpack.c.l.b16 %v82
  %v91 = vunpack.c.l.b16 %v83
  %v92 = vunpack.c.l.b16 %v84
  %v93 = vunpack.c.l.b16 %v85
  %v94 = vpack.c.b16 %v91, %v90
  %v95 = vpack.c.b16 %v93, %v92
  %v99 = vsel %vm35, %v80, 0
  %101 = vmatprep.subr.bf16.mxu0 0
  %102 = vmatpush1.bf16.msra.mxu0 0
  %103 = vmatprep.subr.bf16.mxu0 0
  %104 = vmatpush1.bf16.msra.mxu0 0
  %105 = vmatprep.subr.bf16.mxu0 0
  %106 = vmatpush1.bf16.msra.mxu0 0
  %107 = vmatprep.subr.bf16.mxu0 0
  %108 = vmatpush1.bf16.msra.mxu0 0
  %109 = vmatprep.subr.bf16.mxu0 0
  %110 = vmatpush1.bf16.msra.mxu0 0
  %111 = vmatprep.subr.bf16.mxu0 0
  %112 = vmatpush1.bf16.msra.mxu0 0
  %113 = vmatprep.subr.bf16.mxu0 0
  %114 = vmatpush1.bf16.msra.mxu0 %v95
  %115 = vmatprep.subr.bf16.mxu0 0
  %116 = vmatpush1.bf16.msra.mxu0 %v94
  %117 = vmatprep.subr.bf16.mxu0 0
  %118 = vmatpush2.bf16.msra.mxu0 0
  %119 = vmatprep.subr.bf16.mxu0 0
  %120 = vmatpush2.bf16.msra.mxu0 0
  %121 = vmatprep.subr.bf16.mxu0 0
  %122 = vmatpush2.bf16.msra.mxu0 0
  %123 = vmatprep.subr.bf16.mxu0 0
  %124 = vmatpush2.bf16.msra.mxu0 0
  %125 = vmatprep.subr.bf16.mxu0 0
  %126 = vmatpush2.bf16.msra.mxu0 0
  %127 = vmatprep.subr.bf16.mxu0 0
  %128 = vmatpush2.bf16.msra.mxu0 0
  %129 = vmatprep.subr.bf16.mxu0 0
  %130 = vmatpush2.bf16.msra.mxu0 0
  %131 = vmatprep.subr.bf16.mxu0 0
  %132 = vmatpush2.bf16.msra.mxu0 0
  %133 = vmatprep.mubr.bf16.mxu0 0
  %134 = vmatmul.mubr.bf16.gmra.mxu0 %v99
  %v135 = vpop.f32.mrf.mxu0
  %v136 = vadd.f32 0.0, %v135
  %v137 = vpop.f32.mrf.mxu0
  %v138 = vpop.f32.mrf.mxu0
  %v139 = vpop.f32.mrf.mxu0
  %140 = vdwg.mxu0
  %s141 = scalar_lea.vmem %s0, 8
  %v142 = vld [vmem:[%s141] sm:$0xf]
  %s143 = scalar_lea.vmem %s1, 32
  %v144 = vld [vmem:[%s143] sm:$0xf]
  %v145 = vld [vmem:[%s143 + $0x4] sm:$0xf]
  %v146 = vld [vmem:[%s143 + $0x8] sm:$0xf]
  %v147 = vld [vmem:[%s143 + $0xc] sm:$0xf]
  %v152 = vunpack.c.l.b16 %v144
  %v153 = vunpack.c.l.b16 %v145
  %v154 = vunpack.c.l.b16 %v146
  %v155 = vunpack.c.l.b16 %v147
  %v156 = vpack.c.b16 %v153, %v152
  %v157 = vpack.c.b16 %v155, %v154
  %v161 = vsel %vm35, %v142, 0
  %163 = vmatprep.subr.bf16.mxu0 0
  %164 = vmatpush1.bf16.msra.mxu0 0
  %165 = vmatprep.subr.bf16.mxu0 0
  %166 = vmatpush1.bf16.msra.mxu0 0
  %167 = vmatprep.subr.bf16.mxu0 0
  %168 = vmatpush1.bf16.msra.mxu0 0
  %169 = vmatprep.subr.bf16.mxu0 0
  %170 = vmatpush1.bf16.msra.mxu0 0
  %171 = vmatprep.subr.bf16.mxu0 0
  %172 = vmatpush1.bf16.msra.mxu0 0
  %173 = vmatprep.subr.bf16.mxu0 0
  %174 = vmatpush1.bf16.msra.mxu0 0
  %175 = vmatprep.subr.bf16.mxu0 0
  %176 = vmatpush1.bf16.msra.mxu0 %v157
  %177 = vmatprep.subr.bf16.mxu0 0
  %178 = vmatpush1.bf16.msra.mxu0 %v156
  %179 = vmatprep.subr.bf16.mxu0 0
  %180 = vmatpush2.bf16.msra.mxu0 0
  %181 = vmatprep.subr.bf16.mxu0 0
  %182 = vmatpush2.bf16.msra.mxu0 0
  %183 = vmatprep.subr.bf16.mxu0 0
  %184 = vmatpush2.bf16.msra.mxu0 0
  %185 = vmatprep.subr.bf16.mxu0 0
  %186 = vmatpush2.bf16.msra.mxu0 0
  %187 = vmatprep.subr.bf16.mxu0 0
  %188 = vmatpush2.bf16.msra.mxu0 0
  %189 = vmatprep.subr.bf16.mxu0 0
  %190 = vmatpush2.bf16.msra.mxu0 0
  %191 = vmatprep.subr.bf16.mxu0 0
  %192 = vmatpush2.bf16.msra.mxu0 0
  %193 = vmatprep.subr.bf16.mxu0 0
  %194 = vmatpush2.bf16.msra.mxu0 0
  %195 = vmatprep.mubr.bf16.mxu0 0
  %196 = vmatmul.mubr.bf16.gmra.mxu0 %v161
  %v197 = vpop.f32.mrf.mxu0
  %v198 = vadd.f32 0.0, %v197
  %v199 = vpop.f32.mrf.mxu0
  %v200 = vpop.f32.mrf.mxu0
  %v201 = vpop.f32.mrf.mxu0
  %202 = vdwg.mxu0
  %s203 = scalar_lea.vmem %s0, 12
  %v204 = vld [vmem:[%s203] sm:$0xf]
  %s205 = scalar_lea.vmem %s1, 48
  %v206 = vld [vmem:[%s205] sm:$0xf]
  %v207 = vld [vmem:[%s205 + $0x4] sm:$0xf]
  %v208 = vld [vmem:[%s205 + $0x8] sm:$0xf]
  %v209 = vld [vmem:[%s205 + $0xc] sm:$0xf]
  %v214 = vunpack.c.l.b16 %v206
  %v215 = vunpack.c.l.b16 %v207
  %v216 = vunpack.c.l.b16 %v208
  %v217 = vunpack.c.l.b16 %v209
  %v218 = vpack.c.b16 %v215, %v214
  %v219 = vpack.c.b16 %v217, %v216
  %v223 = vsel %vm35, %v204, 0
  %225 = vmatprep.subr.bf16.mxu0 0
  %226 = vmatpush1.bf16.msra.mxu0 0
  %227 = vmatprep.subr.bf16.mxu0 0
  %228 = vmatpush1.bf16.msra.mxu0 0
  %229 = vmatprep.subr.bf16.mxu0 0
  %230 = vmatpush1.bf16.msra.mxu0 0
  %231 = vmatprep.subr.bf16.mxu0 0
  %232 = vmatpush1.bf16.msra.mxu0 0
  %233 = vmatprep.subr.bf16.mxu0 0
  %234 = vmatpush1.bf16.msra.mxu0 0
  %235 = vmatprep.subr.bf16.mxu0 0
  %236 = vmatpush1.bf16.msra.mxu0 0
  %237 = vmatprep.subr.bf16.mxu0 0
  %238 = vmatpush1.bf16.msra.mxu0 %v219
  %239 = vmatprep.subr.bf16.mxu0 0
  %240 = vmatpush1.bf16.msra.mxu0 %v218
  %241 = vmatprep.subr.bf16.mxu0 0
  %242 = vmatpush2.bf16.msra.mxu0 0
  %243 = vmatprep.subr.bf16.mxu0 0
  %244 = vmatpush2.bf16.msra.mxu0 0
  %245 = vmatprep.subr.bf16.mxu0 0
  %246 = vmatpush2.bf16.msra.mxu0 0
  %247 = vmatprep.subr.bf16.mxu0 0
  %248 = vmatpush2.bf16.msra.mxu0 0
  %249 = vmatprep.subr.bf16.mxu0 0
  %250 = vmatpush2.bf16.msra.mxu0 0
  %251 = vmatprep.subr.bf16.mxu0 0
  %252 = vmatpush2.bf16.msra.mxu0 0
  %253 = vmatprep.subr.bf16.mxu0 0
  %254 = vmatpush2.bf16.msra.mxu0 0
  %255 = vmatprep.subr.bf16.mxu0 0
  %256 = vmatpush2.bf16.msra.mxu0 0
  %257 = vmatprep.mubr.bf16.mxu0 0
  %258 = vmatmul.mubr.bf16.gmra.mxu0 %v223
  %v259 = vpop.f32.mrf.mxu0
  %v260 = vadd.f32 0.0, %v259
  %v261 = vpop.f32.mrf.mxu0
  %v262 = vpop.f32.mrf.mxu0
  %v263 = vpop.f32.mrf.mxu0
  %264 = vdwg.mxu0
  %vm265 = vcmask 523264
  %v266 = vsel %vm265, %v74, 0.0
  %267 = vadd.xlane.f32.xlu0 %v266
  %v268 = vpop.xlane.xlu0 %267
  %v269 = vadd.f32 %v268, 0.0
  %v270 = vsel %vm265, %v136, 0.0
  %271 = vadd.xlane.f32.xlu0 %v270
  %v272 = vpop.xlane.xlu0 %271
  %v273 = vadd.f32 %v269, %v272
  %v274 = vsel %vm265, %v198, 0.0
  %275 = vadd.xlane.f32.xlu0 %v274
  %v276 = vpop.xlane.xlu0 %275
  %v277 = vadd.f32 %v273, %v276
  %v278 = vsel %vm265, %v260, 0.0
  %279 = vadd.xlane.f32.xlu0 %v278
  %v280 = vpop.xlane.xlu0 %279
  %v281 = vadd.f32 %v277, %v280
  %v282 = vrcp.pop 256.0
  %v283 = vmul.f32 %v281, %v282
  %v284 = vmul.f32 %v74, %v74
  %v285 = vsel %vm265, %v284, 0.0
  %286 = vadd.xlane.f32.xlu0 %v285
  %v287 = vpop.xlane.xlu0 %286
  %v288 = vadd.f32 %v287, 0.0
  %v289 = vmul.f32 %v136, %v136
  %v290 = vsel %vm265, %v289, 0.0
  %291 = vadd.xlane.f32.xlu0 %v290
  %v292 = vpop.xlane.xlu0 %291
  %v293 = vadd.f32 %v288, %v292
  %v294 = vmul.f32 %v198, %v198
  %v295 = vsel %vm265, %v294, 0.0
  %296 = vadd.xlane.f32.xlu0 %v295
  %v297 = vpop.xlane.xlu0 %296
  %v298 = vadd.f32 %v293, %v297
  %v299 = vmul.f32 %v260, %v260
  %v300 = vsel %vm265, %v299, 0.0
  %301 = vadd.xlane.f32.xlu0 %v300
  %v302 = vpop.xlane.xlu0 %301
  %v303 = vadd.f32 %v298, %v302
  %v304 = vmul.f32 %v303, %v282
  %v305 = vmul.f32 %v283, %v283
  %v306 = vsub.f32 %v304, %v305
  %v307 = vadd.f32 %v306, 1e-05
  %v308 = vrsqrt.pop %v307
  %v309 = vld [vmem:[%s2] sm:$0xff]
  %v310 = vmul.f32 %v308, %v309
  %v311 = vsub.f32 %v74, %v283
  %313 = vset.pattern.permute.xlu0 0
  %314 = vperm.xlu0 %313, %v310
  %v315 = vpop.permute.xlu0 %314
  %v317 = vmul.f32 %v311, %v315
  %v318 = vld [vmem:[%s3] sm:$0xff]
  %320 = vset.pattern.permute.xlu0 0
  %321 = vperm.xlu0 %320, %v318
  %v322 = vpop.permute.xlu0 %321
  %v324 = vadd.f32 %v317, %v322
  %v325 = vsub.f32 %v136, %v283
  %v326 = vmul.f32 %v325, %v315
  %v327 = vadd.f32 %v326, %v322
  %v328 = vsub.f32 %v198, %v283
  %v329 = vmul.f32 %v328, %v315
  %v330 = vadd.f32 %v329, %v322
  %v331 = vsub.f32 %v260, %v283
  %v332 = vmul.f32 %v331, %v315
  %v333 = vadd.f32 %v332, %v322
  %v334 = vmax.f32 %v324, 0.0
  %335 = vst.msk [vmem:[%s4] sm:$0xff] %vm265, %v334
  %v336 = vmax.f32 %v327, 0.0
  %s337 = scalar_lea.vmem %s4, 8
  %338 = vst.msk [vmem:[%s337] sm:$0xff] %vm265, %v336
  %v339 = vmax.f32 %v330, 0.0
  %s340 = scalar_lea.vmem %s4, 16
  %341 = vst.msk [vmem:[%s340] sm:$0xff] %vm265, %v339
  %v342 = vmax.f32 %v333, 0.0
  %s343 = scalar_lea.vmem %s4, 24
  %344 = vst.msk [vmem:[%s343] sm:$0xff] %vm265, %v342
  // Predicated region
  $region18: #{unet_forward.28} parent=0 // pred_check
    _
  $region19: #{unet_forward.28} parent=0 // pred_check_branch
    %346 = sbr.rel (0) target = $region21
  $region20: #{unet_forward.28} parent=0 // pred_region
    _
  $region21: #{unet_forward.28} parent=0 // pred_fallthru
    _
  // Predicated region
  $region22: #{unet_forward.28} parent=0 // pred_check
    _
  $region23: #{unet_forward.28} parent=0 // pred_check_branch
    %348 = sbr.rel (0) target = $region25
  $region24: #{unet_forward.28} parent=0 // pred_region
    _
  $region25: #{unet_forward.28} parent=0 // pred_fallthru
    _

// kernel: unet_forward.29
$region0: #{unet_forward.29}
  #allocation0 [shape = 'u32[]', space=smem, size = 0x4, offset = 0x4, fixed_abs, tag = 'smem constant byte address 0x4 - core index']
  #allocation1 [shape = 'u32[144,128]{1,0:T(1,128)}', space=vmem, size = 0x12000, scoped, tag = 'internal scratch']
  %s0 = inlined_call_operand.vmem [shape: bf16[4,72], index: 0, kind: input, shape index: {}]
  %s1 = inlined_call_operand.vmem [shape: bf16[72,256], index: 1, kind: input, shape index: {}]
  %s2 = inlined_call_operand.vmem [shape: f32[4,1], index: 2, kind: input, shape index: {}]
  %s3 = inlined_call_operand.vmem [shape: f32[4,1], index: 3, kind: input, shape index: {}]
  %s4 = inlined_call_operand.vmem [shape: f32[4,256], index: 4, kind: input, shape index: {}]
  %s5 = inlined_call_operand.vmem [shape: f32[4,256], index: 5, kind: output, shape index: {}]
  %s6 = sld [smem:[#allocation0]]
  $region30: #{unet_forward.29} parent=0
    _
  %s8 = ssub.s32 1, %s6
  %s9 = scalar_select 0, %s8, %s6
  // Predicated region
  $region2: #{unet_forward.29} parent=0 // pred_check
    _
  $region3: #{unet_forward.29} parent=0 // pred_check_branch
    %11 = sbr.rel (0) target = $region5
  $region4: #{unet_forward.29} parent=0 // pred_region
    _
  $region5: #{unet_forward.29} parent=0 // pred_fallthru
    _
  // Predicated region
  $region6: #{unet_forward.29} parent=0 // pred_check
    _
  $region7: #{unet_forward.29} parent=0 // pred_check_branch
    %13 = sbr.rel (0) target = $region9
  $region8: #{unet_forward.29} parent=0 // pred_region
    _
  $region9: #{unet_forward.29} parent=0 // pred_fallthru
    _
  // Predicated region
  $region10: #{unet_forward.29} parent=0 // pred_check
    _
  $region11: #{unet_forward.29} parent=0 // pred_check_branch
    %15 = sbr.rel (0) target = $region13
  $region12: #{unet_forward.29} parent=0 // pred_region
    _
  $region13: #{unet_forward.29} parent=0 // pred_fallthru
    _
  // Predicated region
  $region14: #{unet_forward.29} parent=0 // pred_check
    _
  $region15: #{unet_forward.29} parent=0 // pred_check_branch
    %17 = sbr.rel (0) target = $region17
  $region16: #{unet_forward.29} parent=0 // pred_region
    _
  $region17: #{unet_forward.29} parent=0 // pred_fallthru
    _
  // Predicated region
  $region18: #{unet_forward.29} parent=0 // pred_check
    _
  $region19: #{unet_forward.29} parent=0 // pred_check_branch
    %19 = sbr.rel (0) target = $region21
  $region20: #{unet_forward.29} parent=0 // pred_region
    _
  $region21: #{unet_forward.29} parent=0 // pred_fallthru
    _
  %v21 = vld [vmem:[%s0] sm:$0x3]
  %v22 = vld [vmem:[%s1] sm:$0xff]
  %v23 = vld [vmem:[%s1 + $0x8] sm:$0xff]
  %v24 = vld [vmem:[%s1 + $0x10] sm:$0xff]
  %v25 = vld [vmem:[%s1 + $0x18] sm:$0xff]
  %v26 = vld [vmem:[%s1 + $0x20] sm:$0xff]
  %v27 = vld [vmem:[%s1 + $0x28] sm:$0xff]
  %v28 = vld [vmem:[%s1 + $0x30] sm:$0xff]
  %v29 = vld [vmem:[%s1 + $0x38] sm:$0xff]
  %v30 = vld [vmem:[%s1 + $0x40] sm:$0xff]
  %v40 = vunpack.c.l.b16 %v22
  %v41 = vunpack.c.h.b16 %v22
  %v42 = vunpack.c.l.b16 %v23
  %v43 = vunpack.c.h.b16 %v23
  %v44 = vunpack.c.l.b16 %v24
  %v45 = vunpack.c.h.b16 %v24
  %v46 = vunpack.c.l.b16 %v25
  %v47 = vunpack.c.h.b16 %v25
  %v48 = vunpack.c.l.b16 %v26
  %v49 = vunpack.c.h.b16 %v26
  %v50 = vunpack.c.l.b16 %v27
  %v51 = vunpack.c.h.b16 %v27
  %v52 = vunpack.c.l.b16 %v28
  %v53 = vunpack.c.h.b16 %v28
  %v54 = vunpack.c.l.b16 %v29
  %v55 = vunpack.c.h.b16 %v29
  %v56 = vunpack.c.l.b16 %v30
  %v57 = vunpack.c.h.b16 %v30
  %v58 = vpack.c.b16 %v42, %v40
  %v59 = vpack.c.b16 %v43, %v41
  %v60 = vpack.c.b16 %v46, %v44
  %v61 = vpack.c.b16 %v47, %v45
  %v62 = vpack.c.b16 %v50, %v48
  %v63 = vpack.c.b16 %v51, %v49
  %v64 = vpack.c.b16 %v54, %v52
  %v65 = vpack.c.b16 %v55, %v53
  %v66 = vpack.c.b16 %v56, %v56
  %v67 = vpack.c.b16 %v57, %v57
  %vm76 = vcmask 588800
  %v78 = vsel %vm76, %v21, 0
  %vm80 = vcmask 1043456
  %v82 = vsel %vm80, %v66, 0
  %v85 = vsel %vm80, %v67, 0
  %87 = vmatprep.subr.bf16.mxu0 0
  %88 = vmatpush1.bf16.msra.mxu0 0
  %89 = vmatprep.subr.bf16.mxu0 0
  %90 = vmatpush1.bf16.msra.mxu0 0
  %91 = vmatprep.subr.bf16.mxu0 0
  %92 = vmatpush1.bf16.msra.mxu0 0
  %93 = vmatprep.subr.bf16.mxu0 %v85
  %94 = vmatpush1.bf16.msra.mxu0 %v82
  %95 = vmatprep.subr.bf16.mxu0 %v65
  %96 = vmatpush1.bf16.msra.mxu0 %v64
  %97 = vmatprep.subr.bf16.mxu0 %v63
  %98 = vmatpush1.bf16.msra.mxu0 %v62
  %99 = vmatprep.subr.bf16.mxu0 %v61
  %100 = vmatpush1.bf16.msra.mxu0 %v60
  %101 = vmatprep.subr.bf16.mxu0 %v59
  %102 = vmatpush1.bf16.msra.mxu0 %v58
  %103 = vmatprep.subr.bf16.mxu0 0
  %104 = vmatpush2.bf16.msra.mxu0 0
  %105 = vmatprep.subr.bf16.mxu0 0
  %106 = vmatpush2.bf16.msra.mxu0 0
  %107 = vmatprep.subr.bf16.mxu0 0
  %108 = vmatpush2.bf16.msra.mxu0 0
  %109 = vmatprep.subr.bf16.mxu0 0
  %110 = vmatpush2.bf16.msra.mxu0 0
  %111 = vmatprep.subr.bf16.mxu0 0
  %112 = vmatpush2.bf16.msra.mxu0 0
  %113 = vmatprep.subr.bf16.mxu0 0
  %114 = vmatpush2.bf16.msra.mxu0 0
  %115 = vmatprep.subr.bf16.mxu0 0
  %116 = vmatpush2.bf16.msra.mxu0 0
  %117 = vmatprep.subr.bf16.mxu0 0
  %118 = vmatpush2.bf16.msra.mxu0 0
  %119 = vmatprep.mubr.bf16.mxu0 0
  %120 = vmatmul.mubr.bf16.gmra.mxu0 %v78
  %v121 = vpop.f32.mrf.mxu0
  %v122 = vadd.f32 0.0, %v121
  %v123 = vpop.f32.mrf.mxu0
  %v124 = vadd.f32 0.0, %v123
  %v125 = vpop.f32.mrf.mxu0
  %v126 = vpop.f32.mrf.mxu0
  %127 = vdwg.mxu0
  %v128 = vsel %vm80, %v122, 0.0
  %v129 = vsel %vm80, %v124, 0.0
  %v130 = vadd.f32 %v128, %v129
  %131 = vadd.xlane.f32.xlu0 %v130
  %v132 = vpop.xlane.xlu0 %131
  %v133 = vrcp.pop 256.0
  %v134 = vmul.f32 %v132, %v133
  %v135 = vsub.f32 %v122, %v134
  %v136 = vsub.f32 %v124, %v134
  %v137 = vmul.f32 %v135, %v135
  %v138 = vmul.f32 %v136, %v136
  %v139 = vsel %vm80, %v137, 0.0
  %v140 = vsel %vm80, %v138, 0.0
  %v141 = vadd.f32 %v139, %v140
  %142 = vadd.xlane.f32.xlu0 %v141
  %v143 = vpop.xlane.xlu0 %142
  %v144 = vmul.f32 %v143, %v133
  %v145 = vadd.f32 %v144, 1e-05
  %v146 = vrsqrt.pop %v145
  %v147 = vmul.f32 %v135, %v146
  %v148 = vmul.f32 %v136, %v146
  %v149 = vld [vmem:[%s2] sm:$0xf]
  %151 = vset.pattern.permute.xlu0 0
  %152 = vperm.xlu0 %151, %v149
  %v153 = vpop.permute.xlu0 %152
  %v155 = vmul.f32 %v147, %v153
  %v156 = vmul.f32 %v148, %v153
  %v157 = vld [vmem:[%s3] sm:$0xf]
  %159 = vset.pattern.permute.xlu0 0
  %160 = vperm.xlu0 %159, %v157
  %v161 = vpop.permute.xlu0 %160
  %v163 = vadd.f32 %v155, %v161
  %v164 = vadd.f32 %v156, %v161
  %v165 = vmax.f32 %v163, 0.0
  %v166 = vmax.f32 %v164, 0.0
  %v167 = vld [vmem:[%s4] sm:$0xff]
  %v169 = vcombine.high %v167, %v167
  %v171 = vadd.f32 %v165, %v167
  %v172 = vadd.f32 %v166, %v169
  %v175 = vcombine.low %v171, %v172
  %177 = vst [vmem:[%s5] sm:$0xff] %v175
  // Predicated region
  $region22: #{unet_forward.29} parent=0 // pred_check
    _
  $region23: #{unet_forward.29} parent=0 // pred_check_branch
    %179 = sbr.rel (0) target = $region25
  $region24: #{unet_forward.29} parent=0 // pred_region
    _
  $region25: #{unet_forward.29} parent=0 // pred_fallthru
    _
  // Predicated region
  $region26: #{unet_forward.29} parent=0 // pred_check
    _
  $region27: #{unet_forward.29} parent=0 // pred_check_branch
    %181 = sbr.rel (0) target = $region29
  $region28: #{unet_forward.29} parent=0 // pred_region
    _
  $region29: #{unet_forward.29} parent=0 // pred_fallthru
    _

// kernel: unet_forward.31
$region0: #{unet_forward.31}
  #allocation0 [shape = 'u32[]', space=smem, size = 0x4, offset = 0x4, fixed_abs, tag = 'smem constant byte address 0x4 - core index']
  #allocation1 [shape = 'u32[144,128]{1,0:T(1,128)}', space=vmem, size = 0x12000, scoped, tag = 'internal scratch']
  %s0 = inlined_call_operand.vmem [shape: bf16[8,36], index: 0, kind: input, shape index: {}]
  %s1 = inlined_call_operand.vmem [shape: bf16[36,256], index: 1, kind: input, shape index: {}]
  %s2 = inlined_call_operand.vmem [shape: f32[8,1], index: 2, kind: input, shape index: {}]
  %s3 = inlined_call_operand.vmem [shape: f32[8,1], index: 3, kind: input, shape index: {}]
  %s4 = inlined_call_operand.vmem [shape: f32[8,256], index: 4, kind: input, shape index: {}]
  %s5 = inlined_call_operand.vmem [shape: f32[8,256], index: 5, kind: output, shape index: {}]
  %s6 = sld [smem:[#allocation0]]
  $region30: #{unet_forward.31} parent=0
    _
  %s8 = ssub.s32 1, %s6
  %s9 = scalar_select 0, %s8, %s6
  // Predicated region
  $region2: #{unet_forward.31} parent=0 // pred_check
    _
  $region3: #{unet_forward.31} parent=0 // pred_check_branch
    %11 = sbr.rel (0) target = $region5
  $region4: #{unet_forward.31} parent=0 // pred_region
    _
  $region5: #{unet_forward.31} parent=0 // pred_fallthru
    _
  // Predicated region
  $region6: #{unet_forward.31} parent=0 // pred_check
    _
  $region7: #{unet_forward.31} parent=0 // pred_check_branch
    %13 = sbr.rel (0) target = $region9
  $region8: #{unet_forward.31} parent=0 // pred_region
    _
  $region9: #{unet_forward.31} parent=0 // pred_fallthru
    _
  // Predicated region
  $region10: #{unet_forward.31} parent=0 // pred_check
    _
  $region11: #{unet_forward.31} parent=0 // pred_check_branch
    %15 = sbr.rel (0) target = $region13
  $region12: #{unet_forward.31} parent=0 // pred_region
    _
  $region13: #{unet_forward.31} parent=0 // pred_fallthru
    _
  // Predicated region
  $region14: #{unet_forward.31} parent=0 // pred_check
    _
  $region15: #{unet_forward.31} parent=0 // pred_check_branch
    %17 = sbr.rel (0) target = $region17
  $region16: #{unet_forward.31} parent=0 // pred_region
    _
  $region17: #{unet_forward.31} parent=0 // pred_fallthru
    _
  // Predicated region
  $region18: #{unet_forward.31} parent=0 // pred_check
    _
  $region19: #{unet_forward.31} parent=0 // pred_check_branch
    %19 = sbr.rel (0) target = $region21
  $region20: #{unet_forward.31} parent=0 // pred_region
    _
  $region21: #{unet_forward.31} parent=0 // pred_fallthru
    _
  %v21 = vld [vmem:[%s0] sm:$0xf]
  %v22 = vld [vmem:[%s1] sm:$0xff]
  %v23 = vld [vmem:[%s1 + $0x8] sm:$0xff]
  %v24 = vld [vmem:[%s1 + $0x10] sm:$0xff]
  %v25 = vld [vmem:[%s1 + $0x18] sm:$0xff]
  %v26 = vld [vmem:[%s1 + $0x20] sm:$0x33]
  %v32 = vunpack.c.l.b16 %v22
  %v33 = vunpack.c.h.b16 %v22
  %v34 = vunpack.c.l.b16 %v23
  %v35 = vunpack.c.h.b16 %v23
  %v36 = vunpack.c.l.b16 %v24
  %v37 = vunpack.c.h.b16 %v24
  %v38 = vunpack.c.l.b16 %v25
  %v39 = vunpack.c.h.b16 %v25
  %v40 = vunpack.c.l.b16 %v26
  %v41 = vunpack.c.h.b16 %v26
  %v42 = vpack.c.b16 %v34, %v32
  %v43 = vpack.c.b16 %v35, %v33
  %v44 = vpack.c.b16 %v38, %v36
  %v45 = vpack.c.b16 %v39, %v37
  %v46 = vpack.c.b16 %v40, %v40
  %v47 = vpack.c.b16 %v41, %v41
  %vm52 = vcmask 293888
  %v54 = vsel %vm52, %v21, 0
  %vm56 = vcmask 1041408
  %v58 = vsel %vm56, %v46, 0
  %v61 = vsel %vm56, %v47, 0
  %63 = vmatprep.subr.bf16.mxu0 0
  %64 = vmatpush1.bf16.msra.mxu0 0
  %65 = vmatprep.subr.bf16.mxu0 0
  %66 = vmatpush1.bf16.msra.mxu0 0
  %67 = vmatprep.subr.bf16.mxu0 0
  %68 = vmatpush1.bf16.msra.mxu0 0
  %69 = vmatprep.subr.bf16.mxu0 0
  %70 = vmatpush1.bf16.msra.mxu0 0
  %71 = vmatprep.subr.bf16.mxu0 0
  %72 = vmatpush1.bf16.msra.mxu0 0
  %73 = vmatprep.subr.bf16.mxu0 %v61
  %74 = vmatpush1.bf16.msra.mxu0 %v58
  %75 = vmatprep.subr.bf16.mxu0 %v45
  %76 = vmatpush1.bf16.msra.mxu0 %v44
  %77 = vmatprep.subr.bf16.mxu0 %v43
  %78 = vmatpush1.bf16.msra.mxu0 %v42
  %79 = vmatprep.subr.bf16.mxu0 0
  %80 = vmatpush2.bf16.msra.mxu0 0
  %81 = vmatprep.subr.bf16.mxu0 0
  %82 = vmatpush2.bf16.msra.mxu0 0
  %83 = vmatprep.subr.bf16.mxu0 0
  %84 = vmatpush2.bf16.msra.mxu0 0
  %85 = vmatprep.subr.bf16.mxu0 0
  %86 = vmatpush2.bf16.msra.mxu0 0
  %87 = vmatprep.subr.bf16.mxu0 0
  %88 = vmatpush2.bf16.msra.mxu0 0
  %89 = vmatprep.subr.bf16.mxu0 0
  %90 = vmatpush2.bf16.msra.mxu0 0
  %91 = vmatprep.subr.bf16.mxu0 0
  %92 = vmatpush2.bf16.msra.mxu0 0
  %93 = vmatprep.subr.bf16.mxu0 0
  %94 = vmatpush2.bf16.msra.mxu0 0
  %95 = vmatprep.mubr.bf16.mxu0 0
  %96 = vmatmul.mubr.bf16.gmra.mxu0 %v54
  %v97 = vpop.f32.mrf.mxu0
  %v98 = vadd.f32 0.0, %v97
  %v99 = vpop.f32.mrf.mxu0
  %v100 = vadd.f32 0.0, %v99
  %v101 = vpop.f32.mrf.mxu0
  %v102 = vpop.f32.mrf.mxu0
  %103 = vdwg.mxu0
  %v104 = vadd.f32 %v98, %v100
  %105 = vadd.xlane.f32.xlu0 %v104
  %v106 = vpop.xlane.xlu0 %105
  %v107 = vrcp.pop 256.0
  %v108 = vmul.f32 %v106, %v107
  %v109 = vsub.f32 %v98, %v108
  %v110 = vsub.f32 %v100, %v108
  %v111 = vmul.f32 %v109, %v109
  %v112 = vmul.f32 %v110, %v110
  %v113 = vadd.f32 %v111, %v112
  %114 = vadd.xlane.f32.xlu0 %v113
  %v115 = vpop.xlane.xlu0 %114
  %v116 = vmul.f32 %v115, %v107
  %v117 = vadd.f32 %v116, 1e-05
  %v118 = vrsqrt.pop %v117
  %v119 = vmul.f32 %v109, %v118
  %v120 = vmul.f32 %v110, %v118
  %v121 = vld [vmem:[%s2] sm:$0xff]
  %123 = vset.pattern.permute.xlu0 0
  %124 = vperm.xlu0 %123, %v121
  %v125 = vpop.permute.xlu0 %124
  %v127 = vmul.f32 %v119, %v125
  %v128 = vmul.f32 %v120, %v125
  %v129 = vld [vmem:[%s3] sm:$0xff]
  %131 = vset.pattern.permute.xlu0 0
  %132 = vperm.xlu0 %131, %v129
  %v133 = vpop.permute.xlu0 %132
  %v135 = vadd.f32 %v127, %v133
  %v136 = vadd.f32 %v128, %v133
  %v137 = vsub.f32 0.0, %v135
  %v138 = vsub.f32 0.0, %v136
  %v139 = vmul.f32 %v137, 1.442695
  %v140 = vpow.pop %v139
  %v141 = vmul.f32 %v138, 1.442695
  %v142 = vpow.pop %v141
  %v143 = vadd.f32 %v140, 1.0
  %v144 = vadd.f32 %v142, 1.0
  %v145 = vrcp.pop %v143
  %v146 = vrcp.pop %v144
  %v147 = vld [vmem:[%s4] sm:$0xff]
  %v148 = vld [vmem:[%s4 + $0x8] sm:$0xff]
  %v149 = vadd.f32 %v145, %v147
  %v150 = vadd.f32 %v146, %v148
  %151 = vst [vmem:[%s5] sm:$0xff] %v149
  %152 = vst [vmem:[%s5 + $0x8] sm:$0xff] %v150
  // Predicated region
  $region22: #{unet_forward.31} parent=0 // pred_check
    _
  $region23: #{unet_forward.31} parent=0 // pred_check_branch
    %154 = sbr.rel (0) target = $region25
  $region24: #{unet_forward.31} parent=0 // pred_region
    _
  $region25: #{unet_forward.31} parent=0 // pred_fallthru
    _
  // Predicated region
  $region26: #{unet_forward.31} parent=0 // pred_check
    _
  $region27: #{unet_forward.31} parent=0 // pred_check_branch
    %156 = sbr.rel (0) target = $region29
  $region28: #{unet_forward.31} parent=0 // pred_region
    _
  $region29: #{unet_forward.31} parent=0 // pred_fallthru
    _

</llo_original>
